<compile_context>
chip_gen: v6e
topology: v6e:2x2x1
jax: 0.10.0
libtpu: 0.0.40
codegen_flags: <defaults>
</compile_context>

<pallas_src>
import numpy as np

import jax
import jax.numpy as jnp
from jax.experimental import pallas as pl
from jax.experimental.pallas import tpu as pltpu


def _round_up(x, m):
    return ((x + m - 1) // m) * m


# ----------------------------- Pallas kernel ------------------------------ #
def _stft_loss_kernel(x_ref, basis_ref, out_ref):
    """One frame tile ([y_hat rows ; y rows]): fused windowed-DFT matmul,
    clamped power, log-L1 / squared-diff / |Y|^2 partial sums."""
    two_rows = x_ref.shape[0]
    tile_rows = two_rows // 2
    n_half = basis_ref.shape[1] // 2          # real | imag halves, lane aligned

    # Single bf16 MXU pass (f32 accumulate) over the shared basis for both
    # y_hat and y frames at once.
    o = jnp.dot(x_ref[...], basis_ref[...],
                preferred_element_type=jnp.float32,
                precision=jax.lax.Precision.DEFAULT)    # (2*tile_rows, 2*n_half)

    re = o[:, :n_half]
    im = o[:, n_half:]
    p = jnp.maximum(re * re + im * im, 1e-8)            # clamped power
    ph = p[:tile_rows]                                  # y_hat rows
    py = p[tile_rows:]                                  # y rows

    l1 = 0.5 * jnp.abs(jnp.log(py) - jnp.log(ph))       # == |log|Y| - log|Yh||
    d = jnp.sqrt(py) - jnp.sqrt(ph)

    def fold(v):
        # Sublane-group fold: pure vreg adds on the VPU, no cross-lane reduce.
        return jnp.sum(v.reshape(tile_rows // 8, 8, n_half), axis=0,
                       keepdims=True)                    # (1, 8, n_half)

    # Single lane-dense output block per grid step (one writeback DMA).
    out_ref[:, :, :n_half] = fold(l1)
    out_ref[:, :, n_half:2 * n_half] = fold(d * d)
    out_ref[:, :, 2 * n_half:] = fold(py)


# ------------------------------- JAX glue --------------------------------- #
def _windowed_dft_basis(n_fft, win_length):
    """Combined [win*cos | -win*sin] basis over bins 0..n_fft/2-1 (Nyquist is
    handled outside the kernel), each half padded up to a multiple of 128."""
    n_freq = n_fft // 2 + 1
    n_half = n_fft // 2
    n_half_pad = max(128, _round_up(n_half, 128))        # no-op for n_fft>=256

    n = np.arange(n_fft, dtype=np.float64)[:, None]
    k = np.arange(n_half, dtype=np.float64)[None, :]
    ang = 2.0 * np.pi * n * k / n_fft

    # torch.hann_window (periodic), centre-padded to n_fft like torch.stft.
    m = np.arange(win_length, dtype=np.float64)
    win = 0.5 - 0.5 * np.cos(2.0 * np.pi * m / win_length)
    w_full = np.zeros(n_fft, dtype=np.float64)
    lpad = (n_fft - win_length) // 2
    w_full[lpad:lpad + win_length] = win

    basis = np.zeros((n_fft, 2 * n_half_pad), dtype=np.float32)
    basis[:, :n_half] = w_full[:, None] * np.cos(ang)
    basis[:, n_half_pad:n_half_pad + n_half] = -(w_full[:, None] * np.sin(ang))

    # Nyquist bin: cos(pi*n) = (-1)^n; its sine part is identically zero.
    nyq = (w_full * np.cos(np.pi * np.arange(n_fft, dtype=np.float64))).astype(np.float32)

    return (jnp.asarray(basis, dtype=jnp.bfloat16),
            jnp.asarray(nyq, dtype=jnp.bfloat16),
            n_freq, n_half, n_half_pad)


def _frame_signal(x, n_fft, hop_length):
    # torch.stft(center=True, pad_mode='reflect'): pad n_fft//2 each side,
    # then slide windows of length n_fft with stride hop_length.
    pad = n_fft // 2
    xp = jnp.pad(x, ((0, 0), (pad, pad)), mode='reflect')
    T = x.shape[1]
    n_frames = 1 + T // hop_length
    idx = (jnp.arange(n_frames)[:, None] * hop_length
           + jnp.arange(n_fft)[None, :])
    return xp[:, idx]  # (B, n_frames, n_fft)


def _pick_tiling(n_valid, n_fft):
    # With the bf16 basis and bf16 fused frame tiles, 256 rows at n_fft=2048
    # (512 rows otherwise) fits comfortably inside even v7x's 64 MiB per-core
    # VMEM; larger tiles amortize the ~0.35us per-grid-step overhead.
    cap = 256 if n_fft >= 2048 else 512
    rows8 = _round_up(max(n_valid, 1), 8)
    num_tiles = max(1, -(-rows8 // cap))
    if num_tiles == 1 and rows8 >= 16:
        num_tiles = 2              # feed both TensorCores on megacore parts (v7x)
    tile_rows = _round_up(-(-n_valid // num_tiles), 8)
    rows_padded = tile_rows * num_tiles
    return tile_rows, num_tiles, rows_padded


def _physical_vmem_bytes():
    try:
        return int(pltpu.get_tpu_info().vmem_capacity_bytes)
    except Exception:
        return 128 * 2 ** 20       # v5e / v6e default; only used as a cap


def _vmem_limit_bytes(tile_rows, n_fft, n_half_pad):
    bf16, f32 = 2, 4
    basis = n_fft * 2 * n_half_pad * bf16 * 2          # conservatively double-buffered
    frames = 2 * tile_rows * n_fft * bf16 * 2          # fused tile, double-buffered
    outs = 8 * 3 * n_half_pad * f32 * 2
    interm = 2 * tile_rows * 2 * n_half_pad * f32 * 4  # matmul out + power/mag/log temps
    est = basis + frames + outs + interm
    cap = _physical_vmem_bytes() - 8 * 2 ** 20         # chip-aware (64 MiB on v7x)
    return int(min(cap, max(40 * 2 ** 20, int(1.5 * est))))


def _single_scale_stft_loss(y_hat, y, n_fft, hop_length, win_length):
    basis, nyq_vec, n_freq, n_half, n_half_pad = _windowed_dft_basis(n_fft, win_length)

    # bf16 before framing: halves the gather / frame HBM traffic and feeds a
    # single-pass bf16 MXU matmul (f32 accumulate).
    fh = _frame_signal(y_hat.astype(jnp.bfloat16), n_fft, hop_length).reshape(-1, n_fft)
    fy = _frame_signal(y.astype(jnp.bfloat16), n_fft, hop_length).reshape(-1, n_fft)
    n_valid = fy.shape[0]

    # Nyquist bin outside the matmul (tiny matvec; imaginary part is zero).
    nyq_h = jnp.dot(fh, nyq_vec, preferred_element_type=jnp.float32)
    nyq_y = jnp.dot(fy, nyq_vec, preferred_element_type=jnp.float32)
    p_nh = jnp.maximum(nyq_h * nyq_h, 1e-8)
    p_ny = jnp.maximum(nyq_y * nyq_y, 1e-8)
    l1_nyq = jnp.sum(0.5 * jnp.abs(jnp.log(p_ny) - jnp.log(p_nh)))
    d_nyq = jnp.sqrt(p_ny) - jnp.sqrt(p_nh)
    sqd_nyq = jnp.sum(d_nyq * d_nyq)
    sqy_nyq = jnp.sum(p_ny)

    tile_rows, num_tiles, rows_padded = _pick_tiling(n_valid, n_fft)
    pad_rows = rows_padded - n_valid
    if pad_rows:
        fh = jnp.pad(fh, ((0, pad_rows), (0, 0)))
        fy = jnp.pad(fy, ((0, pad_rows), (0, 0)))

    # Stack y_hat / y frames per tile -> ONE fused MXU matmul per grid step
    # over the shared basis (weights pushed once, M doubled, one input stream).
    fused = jnp.concatenate(
        [fh.reshape(num_tiles, tile_rows, n_fft),
         fy.reshape(num_tiles, tile_rows, n_fft)], axis=1,
    ).reshape(num_tiles * 2 * tile_rows, n_fft)

    def run(single_buffer_basis):
        basis_kwargs = dict(block_shape=(n_fft, 2 * n_half_pad),
                            index_map=lambda i: (0, 0))
        if single_buffer_basis:
            # Constant operand: single-buffer it (no re-DMA happens anyway;
            # saves one full basis copy of VMEM — matters on v7x's 64 MiB).
            basis_spec = pl.BlockSpec(pipeline_mode=pl.Buffered(1), **basis_kwargs)
        else:
            basis_spec = pl.BlockSpec(**basis_kwargs)
        return pl.pallas_call(
            _stft_loss_kernel,
            out_shape=jax.ShapeDtypeStruct((num_tiles, 8, 3 * n_half_pad), jnp.float32),
            grid_spec=pltpu.PrefetchScalarGridSpec(
                num_scalar_prefetch=0,
                grid=(num_tiles,),
                in_specs=[
                    pl.BlockSpec((2 * tile_rows, n_fft), lambda i: (i, 0)),
                    basis_spec,
                ],
                out_specs=pl.BlockSpec((1, 8, 3 * n_half_pad), lambda i: (i, 0, 0)),
            ),
            compiler_params=pltpu.CompilerParams(
                dimension_semantics=("parallel",),
                vmem_limit_bytes=_vmem_limit_bytes(tile_rows, n_fft, n_half_pad)),
        )(fused, basis)

    try:
        parts = run(single_buffer_basis=True)
    except Exception:
        # This jax build rejects pl.Buffered(1) on a pallas_call BlockSpec:
        # fall back to the default (double-buffered) spec — still correct,
        # only costs one extra basis copy of VMEM.
        parts = run(single_buffer_basis=False)

    l1_sum = jnp.sum(parts[:, :, :n_half_pad]) + l1_nyq
    sqd_sum = jnp.sum(parts[:, :, n_half_pad:2 * n_half_pad]) + sqd_nyq

    # Zero-padded frame rows / basis columns contribute exactly 0 to the L1 and
    # Frobenius-difference terms and exactly max(0, 1e-8) = 1e-8 per element to
    # sum(|Y|^2) (folded from the clamped power, no sqrt rounding); remove them.
    spurious = rows_padded * n_half_pad - n_valid * n_half
    sqy_sum = (jnp.sum(parts[:, :, 2 * n_half_pad:])
               - jnp.float32(spurious) * jnp.float32(1e-8) + sqy_nyq)

    loss_mag = l1_sum / jnp.float32(n_valid * n_freq)        # F.l1_loss (mean)
    loss_sc = jnp.sqrt(sqd_sum) / jnp.sqrt(sqy_sum)          # ||.||_F ratio
    return loss_mag, loss_sc


def multi_scale_stft_loss(y_hat, y,
                          n_ffts=(1024, 2048, 512),
                          hop_lengths=(120, 240, 50),
                          win_lengths=(600, 1200, 240)):
    loss_mag = jnp.float32(0.0)
    loss_sc = jnp.float32(0.0)
    for n_fft, hop, wl in zip(n_ffts, hop_lengths, win_lengths):
        lm, lsc = _single_scale_stft_loss(y_hat, y, n_fft, hop, wl)
        loss_mag = loss_mag + lm
        loss_sc = loss_sc + lsc
    N = len(n_ffts)
    return loss_mag / N, loss_sc / N


# --------------------------- pure-JAX reference ---------------------------- #
def _ref_multi_scale(y_hat, y, n_ffts, hop_lengths, win_lengths):
    hi = jax.lax.Precision.HIGHEST

    def hann(wl):
        n = jnp.arange(wl, dtype=jnp.float32)
        return 0.5 - 0.5 * jnp.cos(2.0 * jnp.pi * n / wl)

    def mag(x, n_fft, hop, wl):
        frames = _frame_signal(x, n_fft, hop)
        lpad = (n_fft - wl) // 2
        win = jnp.pad(hann(wl), (lpad, n_fft - wl - lpad))
        n_freq = n_fft // 2 + 1
        n = np.arange(n_fft, dtype=np.float64)[:, None]
        k = np.arange(n_freq, dtype=np.float64)[None, :]
        ang = 2.0 * np.pi * n * k / n_fft
        cos_b = jnp.asarray(np.cos(ang), dtype=jnp.float32)
        sin_b = jnp.asarray(-np.sin(ang), dtype=jnp.float32)
        wf = frames * win
        re = jnp.einsum('bfn,nk->bfk', wf, cos_b, precision=hi)
        im = jnp.einsum('bfn,nk->bfk', wf, sin_b, precision=hi)
        return jnp.sqrt(jnp.maximum(re * re + im * im, 1e-8))

    lm_tot, lsc_tot = 0.0, 0.0
    for n_fft, hop, wl in zip(n_ffts, hop_lengths, win_lengths):
        my = mag(y, n_fft, hop, wl)
        mh = mag(y_hat, n_fft, hop, wl)
        lm_tot += jnp.mean(jnp.abs(jnp.log(my) - jnp.log(mh)))
        lsc_tot += jnp.sqrt(jnp.sum((my - mh) ** 2)) / jnp.sqrt(jnp.sum(my ** 2))
    N = len(n_ffts)
    return lm_tot / N, lsc_tot / N


if __name__ == "__main__":
    key = jax.random.PRNGKey(0)
    k1, k2 = jax.random.split(key)

    # Smallest signal length that supports the module's DEFAULT scales
    # (reflect padding needs T > n_fft//2 for n_fft=2048).
    B, T = 2, 2048
    y = jax.random.normal(k1, (B, T), dtype=jnp.float32)
    y_hat = y + 0.1 * jax.random.normal(k2, (B, T), dtype=jnp.float32)

    # Default MultiScaleSTFTLoss scales (n_fft, hop, win).
    n_ffts = (1024, 2048, 512)
    hop_lengths = (120, 240, 50)
    win_lengths = (600, 1200, 240)

    loss_mag, loss_sc = multi_scale_stft_loss(
        y_hat, y, n_ffts=n_ffts, hop_lengths=hop_lengths,
        win_lengths=win_lengths)
    jax.block_until_ready((loss_mag, loss_sc))

    ref_mag, ref_sc = _ref_multi_scale(y_hat, y, n_ffts, hop_lengths,
                                       win_lengths)
    # Tolerance reflects the deliberate bf16 single-pass MXU matmul (inputs and
    # basis in bf16, f32 accumulate) vs the f32 HIGHEST-precision reference.
    np.testing.assert_allclose(np.asarray(loss_mag), np.asarray(ref_mag),
                               rtol=3e-2, atol=3e-3)
    np.testing.assert_allclose(np.asarray(loss_sc), np.asarray(ref_sc),
                               rtol=3e-2, atol=3e-3)

    print("KERNEL_OK")
</pallas_src>

<mosaic_0001>
module attributes {stable_mosaic.version = 11 : i64} {
  func.func @_stft_loss_kernel(%arg0: i32, %arg1: memref<48x1024xbf16, #tpu.memory_space<vmem>>, %arg2: memref<1024x1024xbf16, #tpu.memory_space<vmem>>, %arg3: memref<1x8x1536xf32, #tpu.memory_space<vmem>>) attributes {dimension_semantics = [#tpu.dimension_semantics<parallel>], iteration_bounds = array<i64: 2>, scalar_prefetch = 0 : i64, scratch_operands = 0 : i64, tpu.core_type = #tpu.core_type<tc>, window_params = [{transform_indices = @transform_0, window_bounds = array<i64: 48, 1024>}, {pipeline_mode = #tpu.pipeline_mode<synchronous>, transform_indices = @transform_1, window_bounds = array<i64: 1024, 1024>}, {transform_indices = @transform_2, window_bounds = array<i64: 1, 8, 1536>}]} {
    %c0 = arith.constant 0 : index
    %c0_0 = arith.constant 0 : index
    %0 = vector.load %arg1[%c0, %c0_0] : memref<48x1024xbf16, #tpu.memory_space<vmem>>, vector<48x1024xbf16>
    %c0_1 = arith.constant 0 : index
    %c0_2 = arith.constant 0 : index
    %1 = vector.load %arg2[%c0_1, %c0_2] : memref<1024x1024xbf16, #tpu.memory_space<vmem>>, vector<1024x1024xbf16>
    %cst = arith.constant dense<0.000000e+00> : vector<48x1024xf32>
    %2 = tpu.matmul %0, %1, %cst {dimension_numbers = #tpu.dot_dimension_numbers<[1], [0], [0], [1], [0, 0, 1, 1], [], []>} : vector<48x1024xbf16>, vector<1024x1024xbf16>, vector<48x1024xf32> -> vector<48x1024xf32>
    %3 = vector.extract_strided_slice %2 {offsets = [0, 0], sizes = [48, 512], strides = [1, 1]} : vector<48x1024xf32> to vector<48x512xf32>
    %4 = vector.extract_strided_slice %2 {offsets = [0, 512], sizes = [48, 512], strides = [1, 1]} : vector<48x1024xf32> to vector<48x512xf32>
    %5 = arith.mulf %3, %3 : vector<48x512xf32>
    %6 = arith.mulf %4, %4 : vector<48x512xf32>
    %7 = arith.addf %5, %6 : vector<48x512xf32>
    %cst_3 = arith.constant 9.99999993E-9 : f32
    %8 = vector.broadcast %cst_3 : f32 to vector<48x512xf32>
    %9 = arith.maximumf %7, %8 : vector<48x512xf32>
    %10 = vector.extract_strided_slice %9 {offsets = [0, 0], sizes = [24, 512], strides = [1, 1]} : vector<48x512xf32> to vector<24x512xf32>
    %11 = vector.extract_strided_slice %9 {offsets = [24, 0], sizes = [24, 512], strides = [1, 1]} : vector<48x512xf32> to vector<24x512xf32>
    %12 = math.log %11 : vector<24x512xf32>
    %13 = math.log %10 : vector<24x512xf32>
    %14 = arith.subf %12, %13 : vector<24x512xf32>
    %15 = math.absf %14 : vector<24x512xf32>
    %cst_4 = arith.constant 5.000000e-01 : f32
    %16 = vector.broadcast %cst_4 : f32 to vector<24x512xf32>
    %17 = arith.mulf %16, %15 : vector<24x512xf32>
    %18 = math.sqrt %11 : vector<24x512xf32>
    %19 = math.sqrt %10 : vector<24x512xf32>
    %20 = arith.subf %18, %19 : vector<24x512xf32>
    %21 = vector.shape_cast %17 : vector<24x512xf32> to vector<3x8x512xf32>
    %cst_5 = arith.constant dense<0.000000e+00> : vector<8x512xf32>
    %22 = vector.multi_reduction <add>, %21, %cst_5 [0] : vector<3x8x512xf32> to vector<8x512xf32>
    %23 = vector.shape_cast %22 : vector<8x512xf32> to vector<1x8x512xf32>
    %c0_6 = arith.constant 0 : index
    %c0_7 = arith.constant 0 : index
    %c0_8 = arith.constant 0 : index
    %24 = vector.load %arg3[%c0_6, %c0_7, %c0_8] : memref<1x8x1536xf32, #tpu.memory_space<vmem>>, vector<1x8x512xf32>
    tpu.vector_store %arg3[%c0_6, %c0_7, %c0_8], %23 {strides = array<i32>} : memref<1x8x1536xf32, #tpu.memory_space<vmem>>, vector<1x8x512xf32>,
    %25 = arith.mulf %20, %20 : vector<24x512xf32>
    %26 = vector.shape_cast %25 : vector<24x512xf32> to vector<3x8x512xf32>
    %cst_9 = arith.constant dense<0.000000e+00> : vector<8x512xf32>
    %27 = vector.multi_reduction <add>, %26, %cst_9 [0] : vector<3x8x512xf32> to vector<8x512xf32>
    %28 = vector.shape_cast %27 : vector<8x512xf32> to vector<1x8x512xf32>
    %c0_10 = arith.constant 0 : index
    %c0_11 = arith.constant 0 : index
    %c512 = arith.constant 512 : index
    %29 = vector.load %arg3[%c0_10, %c0_11, %c512] : memref<1x8x1536xf32, #tpu.memory_space<vmem>>, vector<1x8x512xf32>
    tpu.vector_store %arg3[%c0_10, %c0_11, %c512], %28 {strides = array<i32>} : memref<1x8x1536xf32, #tpu.memory_space<vmem>>, vector<1x8x512xf32>,
    %30 = vector.shape_cast %11 : vector<24x512xf32> to vector<3x8x512xf32>
    %cst_12 = arith.constant dense<0.000000e+00> : vector<8x512xf32>
    %31 = vector.multi_reduction <add>, %30, %cst_12 [0] : vector<3x8x512xf32> to vector<8x512xf32>
    %32 = vector.shape_cast %31 : vector<8x512xf32> to vector<1x8x512xf32>
    %c0_13 = arith.constant 0 : index
    %c0_14 = arith.constant 0 : index
    %c1024 = arith.constant 1024 : index
    %33 = vector.load %arg3[%c0_13, %c0_14, %c1024] : memref<1x8x1536xf32, #tpu.memory_space<vmem>>, vector<1x8x512xf32>
    tpu.vector_store %arg3[%c0_13, %c0_14, %c1024], %32 {strides = array<i32>} : memref<1x8x1536xf32, #tpu.memory_space<vmem>>, vector<1x8x512xf32>,
    return
  }
  func.func @transform_0(%arg0: i32) -> (i32, i32) {
    %c0_i32 = arith.constant 0 : i32
    %c0_i32_0 = arith.constant 0 : i32
    return %arg0, %c0_i32 : i32, i32
  }
  func.func @transform_1(%arg0: i32) -> (i32, i32) {
    %c0_i32 = arith.constant 0 : i32
    %c0_i32_0 = arith.constant 0 : i32
    %c0_i32_1 = arith.constant 0 : i32
    return %c0_i32, %c0_i32_0 : i32, i32
  }
  func.func @transform_2(%arg0: i32) -> (i32, i32, i32) {
    %c0_i32 = arith.constant 0 : i32
    %c0_i32_0 = arith.constant 0 : i32
    %c0_i32_1 = arith.constant 0 : i32
    return %arg0, %c0_i32, %c0_i32_0 : i32, i32, i32
  }
}

module attributes {stable_mosaic.version = 11 : i64} {
  func.func @_stft_loss_kernel(%arg0: i32, %arg1: memref<48x1024xbf16, #tpu.memory_space<vmem>>, %arg2: memref<1024x1024xbf16, #tpu.memory_space<vmem>>, %arg3: memref<1x8x1536xf32, #tpu.memory_space<vmem>>) attributes {dimension_semantics = [#tpu.dimension_semantics<parallel>], iteration_bounds = array<i64: 2>, scalar_prefetch = 0 : i64, scratch_operands = 0 : i64, tpu.core_type = #tpu.core_type<tc>, window_params = [{transform_indices = @transform_0, window_bounds = array<i64: 48, 1024>}, {pipeline_mode = #tpu.pipeline_mode<synchronous>, transform_indices = @transform_1, window_bounds = array<i64: 1024, 1024>}, {transform_indices = @transform_2, window_bounds = array<i64: 1, 8, 1536>}]} {
    %c0 = arith.constant 0 : index
    %c0_0 = arith.constant 0 : index
    %0 = vector.load %arg1[%c0, %c0_0] : memref<48x1024xbf16, #tpu.memory_space<vmem>>, vector<48x1024xbf16>
    %c0_1 = arith.constant 0 : index
    %c0_2 = arith.constant 0 : index
    %1 = vector.load %arg2[%c0_1, %c0_2] : memref<1024x1024xbf16, #tpu.memory_space<vmem>>, vector<1024x1024xbf16>
    %cst = arith.constant dense<0.000000e+00> : vector<48x1024xf32>
    %2 = tpu.matmul %0, %1, %cst {dimension_numbers = #tpu.dot_dimension_numbers<[1], [0], [0], [1], [0, 0, 1, 1], [], []>} : vector<48x1024xbf16>, vector<1024x1024xbf16>, vector<48x1024xf32> -> vector<48x1024xf32>
    %3 = vector.extract_strided_slice %2 {offsets = [0, 0], sizes = [48, 512], strides = [1, 1]} : vector<48x1024xf32> to vector<48x512xf32>
    %4 = vector.extract_strided_slice %2 {offsets = [0, 512], sizes = [48, 512], strides = [1, 1]} : vector<48x1024xf32> to vector<48x512xf32>
    %5 = arith.mulf %3, %3 : vector<48x512xf32>
    %6 = arith.mulf %4, %4 : vector<48x512xf32>
    %7 = arith.addf %5, %6 : vector<48x512xf32>
    %cst_3 = arith.constant 9.99999993E-9 : f32
    %8 = vector.broadcast %cst_3 : f32 to vector<48x512xf32>
    %9 = arith.maximumf %7, %8 : vector<48x512xf32>
    %10 = vector.extract_strided_slice %9 {offsets = [0, 0], sizes = [24, 512], strides = [1, 1]} : vector<48x512xf32> to vector<24x512xf32>
    %11 = vector.extract_strided_slice %9 {offsets = [24, 0], sizes = [24, 512], strides = [1, 1]} : vector<48x512xf32> to vector<24x512xf32>
    %12 = math.log %11 : vector<24x512xf32>
    %13 = math.log %10 : vector<24x512xf32>
    %14 = arith.subf %12, %13 : vector<24x512xf32>
    %15 = math.absf %14 : vector<24x512xf32>
    %cst_4 = arith.constant 5.000000e-01 : f32
    %16 = vector.broadcast %cst_4 : f32 to vector<24x512xf32>
    %17 = arith.mulf %16, %15 : vector<24x512xf32>
    %18 = math.sqrt %11 : vector<24x512xf32>
    %19 = math.sqrt %10 : vector<24x512xf32>
    %20 = arith.subf %18, %19 : vector<24x512xf32>
    %21 = vector.shape_cast %17 : vector<24x512xf32> to vector<3x8x512xf32>
    %cst_5 = arith.constant dense<0.000000e+00> : vector<8x512xf32>
    %22 = vector.multi_reduction <add>, %21, %cst_5 [0] : vector<3x8x512xf32> to vector<8x512xf32>
    %23 = vector.shape_cast %22 : vector<8x512xf32> to vector<1x8x512xf32>
    %c0_6 = arith.constant 0 : index
    %c0_7 = arith.constant 0 : index
    %c0_8 = arith.constant 0 : index
    %24 = vector.load %arg3[%c0_6, %c0_7, %c0_8] : memref<1x8x1536xf32, #tpu.memory_space<vmem>>, vector<1x8x512xf32>
    tpu.vector_store %arg3[%c0_6, %c0_7, %c0_8], %23 {strides = array<i32>} : memref<1x8x1536xf32, #tpu.memory_space<vmem>>, vector<1x8x512xf32>,
    %25 = arith.mulf %20, %20 : vector<24x512xf32>
    %26 = vector.shape_cast %25 : vector<24x512xf32> to vector<3x8x512xf32>
    %cst_9 = arith.constant dense<0.000000e+00> : vector<8x512xf32>
    %27 = vector.multi_reduction <add>, %26, %cst_9 [0] : vector<3x8x512xf32> to vector<8x512xf32>
    %28 = vector.shape_cast %27 : vector<8x512xf32> to vector<1x8x512xf32>
    %c0_10 = arith.constant 0 : index
    %c0_11 = arith.constant 0 : index
    %c512 = arith.constant 512 : index
    %29 = vector.load %arg3[%c0_10, %c0_11, %c512] : memref<1x8x1536xf32, #tpu.memory_space<vmem>>, vector<1x8x512xf32>
    tpu.vector_store %arg3[%c0_10, %c0_11, %c512], %28 {strides = array<i32>} : memref<1x8x1536xf32, #tpu.memory_space<vmem>>, vector<1x8x512xf32>,
    %30 = vector.shape_cast %11 : vector<24x512xf32> to vector<3x8x512xf32>
    %cst_12 = arith.constant dense<0.000000e+00> : vector<8x512xf32>
    %31 = vector.multi_reduction <add>, %30, %cst_12 [0] : vector<3x8x512xf32> to vector<8x512xf32>
    %32 = vector.shape_cast %31 : vector<8x512xf32> to vector<1x8x512xf32>
    %c0_13 = arith.constant 0 : index
    %c0_14 = arith.constant 0 : index
    %c1024 = arith.constant 1024 : index
    %33 = vector.load %arg3[%c0_13, %c0_14, %c1024] : memref<1x8x1536xf32, #tpu.memory_space<vmem>>, vector<1x8x512xf32>
    tpu.vector_store %arg3[%c0_13, %c0_14, %c1024], %32 {strides = array<i32>} : memref<1x8x1536xf32, #tpu.memory_space<vmem>>, vector<1x8x512xf32>,
    return
  }
  func.func @transform_0(%arg0: i32) -> (i32, i32) {
    %c0_i32 = arith.constant 0 : i32
    %c0_i32_0 = arith.constant 0 : i32
    return %arg0, %c0_i32 : i32, i32
  }
  func.func @transform_1(%arg0: i32) -> (i32, i32) {
    %c0_i32 = arith.constant 0 : i32
    %c0_i32_0 = arith.constant 0 : i32
    %c0_i32_1 = arith.constant 0 : i32
    return %c0_i32, %c0_i32_0 : i32, i32
  }
  func.func @transform_2(%arg0: i32) -> (i32, i32, i32) {
    %c0_i32 = arith.constant 0 : i32
    %c0_i32_0 = arith.constant 0 : i32
    %c0_i32_1 = arith.constant 0 : i32
    return %arg0, %c0_i32, %c0_i32_0 : i32, i32, i32
  }
}

</mosaic_0001>

<llo_original>
// kernel: tpu_custom_call.1
$region0: #{tpu_custom_call.1}
  #allocation0 [shape = 'u32[]', space=smem, size = 0x4, offset = 0x4, fixed_abs, tag = 'smem constant byte address 0x4 - core index']
  #allocation1 [shape = 'u32[144,128]{1,0:T(1,128)}', space=vmem, size = 0x12000, scoped, tag = 'internal scratch']
  %s0 = inlined_call_operand.hbm [shape: bf16[96,1024], index: 0, kind: input, shape index: {}]
  %s1 = inlined_call_operand.hbm [shape: bf16[1024,1024], index: 1, kind: input, shape index: {}]
  %s2 = inlined_call_operand.hbm [shape: f32[2,8,1536], index: 2, kind: output, shape index: {}]
  %s3 = sld [smem:[#allocation0]]
  $region49: #{tpu_custom_call.1} parent=0
    _
  %s5 = ssub.s32 1, %s3
  %s6 = scalar_select 0, %s5, %s3
  $region1: #{tpu_custom_call.1} parent=0
    #allocation2 [shape = 'u8[196608]{0}', space=vmem, size = 0x30000, scoped, tag = 'input window, operand 0']
    #allocation3 [shape = 's32[2]{0}', space=sflag, size = 0x8, scoped, tag = 'scoped memory for tpu_custom_call.1']
    #allocation4 [shape = 's32[2]{0}', space=sflag, size = 0x8, scoped, tag = 'scoped memory for tpu_custom_call.1']
    #allocation5 [shape = 'u8[2097152]{0}', space=vmem, size = 0x200000, scoped, tag = 'input window, operand 1, single buffered']
    #allocation6 [shape = 's32[1]{0}', space=sflag, size = 0x4, scoped, tag = 'scoped memory for tpu_custom_call.1']
    #allocation7 [shape = 'u8[98304]{0}', space=vmem, size = 0x18000, scoped, tag = 'output window, operand 0']
    %7 = vsyncpa [#allocation3], 0
    %s8 = scalar_lea.sflag [#allocation3], 1
    %9 = vsyncpa %s8, 0
    %10 = vsyncpa [#allocation6], 0
    %11 = vsyncpa [#allocation4], 0
    %s12 = scalar_lea.sflag [#allocation4], 1
    %13 = vsyncpa %s12, 0
    loop: start=0, step=1, limit=4
    $region2: #{tpu_custom_call.1} parent=1 // loop_pre_header
      _
    $region3: #{tpu_custom_call.1} parent=1 // loop_header
      %s15 = sphi 0, %s19
      %p16 = scmp.ge.s32.totalorder %s15, 4
      %s25 = sphi 0, %s27
      %s28 = sphi 0, %s25
      %s29 = sphi 0, %s28
      %s45 = sphi 0, %s29
      %s49 = sphi 0, %s49
      %s51 = sphi 0, %s49
      %s52 = sphi 0, %s51
      %s66 = sphi 0, %s52
      %s72 = sphi 0, %s74
      %s75 = sphi 0, %s72
      %s76 = sphi 0, %s75
      %s92 = sphi 0, %s76
    $region4: #{tpu_custom_call.1} parent=1 // loop_header_branch
      %18 = sbr.rel (%p16) target = $region8
    $region5: #{tpu_custom_call.1} parent=1 // loop_body
      %s20 = ssub.s32 %s15, 1
      %s21 = ssub.s32 %s15, 2
      %s22 = sadd.s32 %s15, 1
      %s23 = ssub.s32 %s15, %s22
      %p24 = scmp.eq.s32.totalorder %s23, 0
      %s26 = sadd.s32 %s25, 1
      %s27 = scalar_select %p24, %s25, %s26
      %p30 = pneg %p24
      %p31 = scmp.eq.s32.totalorder %s15, 1
      %p32 = por %p30, %p31
      %p33 = scmp.ne.s32.totalorder %s25, %s28
      %p34 = scmp.eq.s32.totalorder %s15, 0
      %p35 = por %p33, %p34
      %p36 = scmp.ne.s32.totalorder %s25, %s28
      %p37 = scmp.eq.s32.totalorder %s20, 1
      %p38 = por %p36, %p37
      %p39 = scmp.ne.s32.totalorder %s28, %s29
      %p40 = scmp.eq.s32.totalorder %s20, 0
      %p41 = por %p39, %p40
      %p42 = scmp.ne.s32.totalorder %s28, %s29
      %p43 = scmp.eq.s32.totalorder %s21, 1
      %p44 = por %p42, %p43
      %p46 = scmp.ne.s32.totalorder %s29, %s45
      %p47 = scmp.eq.s32.totalorder %s21, 0
      %p48 = por %p46, %p47
      %s50 = sadd.s32 %s49, 1
      %p53 = scmp.eq.s32.totalorder %s15, 1
      %p54 = scmp.ne.s32.totalorder %s49, %s51
      %p55 = scmp.eq.s32.totalorder %s15, 0
      %p56 = por %p54, %p55
      %p57 = scmp.ne.s32.totalorder %s49, %s51
      %p58 = scmp.eq.s32.totalorder %s20, 1
      %p59 = por %p57, %p58
      %p60 = scmp.ne.s32.totalorder %s51, %s52
      %p61 = scmp.eq.s32.totalorder %s20, 0
      %p62 = por %p60, %p61
      %p63 = scmp.ne.s32.totalorder %s51, %s52
      %p64 = scmp.eq.s32.totalorder %s21, 1
      %p65 = por %p63, %p64
      %p67 = scmp.ne.s32.totalorder %s52, %s66
      %p68 = scmp.eq.s32.totalorder %s21, 0
      %p69 = por %p67, %p68
      %s70 = ssub.s32 %s15, %s22
      %p71 = scmp.eq.s32.totalorder %s70, 0
      %s73 = sadd.s32 %s72, 1
      %s74 = scalar_select %p71, %s72, %s73
      %p77 = pneg %p71
      %p78 = scmp.eq.s32.totalorder %s15, 1
      %p79 = por %p77, %p78
      %p80 = scmp.ne.s32.totalorder %s72, %s75
      %p81 = scmp.eq.s32.totalorder %s15, 0
      %p82 = por %p80, %p81
      %p83 = scmp.ne.s32.totalorder %s72, %s75
      %p84 = scmp.eq.s32.totalorder %s20, 1
      %p85 = por %p83, %p84
      %p86 = scmp.ne.s32.totalorder %s75, %s76
      %p87 = scmp.eq.s32.totalorder %s20, 0
      %p88 = por %p86, %p87
      %p89 = scmp.ne.s32.totalorder %s75, %s76
      %p90 = scmp.eq.s32.totalorder %s21, 1
      %p91 = por %p89, %p90
      %p93 = scmp.ne.s32.totalorder %s76, %s92
      %p94 = scmp.eq.s32.totalorder %s21, 0
      %p95 = por %p93, %p94
      %p96 = scmp.le.s32.totalorder 1, %s15
      %p97 = scmp.lt.s32.totalorder %s15, 3
      %p98 = pnand %p96, %p97
      %p99 = pneg %p98
      // Predicated region
      $region9: #{tpu_custom_call.1} parent=5 // pred_check
        _
      $region10: #{tpu_custom_call.1} parent=5 // pred_check_branch
        %101 = sbr.rel (%p98) target = $region12
      $region11: #{tpu_custom_call.1} parent=5 // pred_region
        %s102 = ssub.s32 %s15, 1
        // Predicated region
        $region13: #{tpu_custom_call.1} parent=11 // pred_check
          %p103 = pneg %p62
        $region14: #{tpu_custom_call.1} parent=11 // pred_check_branch
          %105 = sbr.rel (%p103) target = $region16
        $region15: #{tpu_custom_call.1} parent=11 // pred_region
          %s107 = ssub.s32 65536, 65536
          %108 = vsyncadd [#allocation6], %s107
          %s109 = sshll.u32 [#allocation5], 4
          %s110 = int_to_ptr.vmem [resolvable:$true] %s109
          %115 = dma.hbm_to_vmem [thread:$0]  %s1, 65536, %s110, [#allocation6], 512, 512, 32
        $region16: #{tpu_custom_call.1} parent=11 // pred_fallthru
          _
      $region12: #{tpu_custom_call.1} parent=5 // pred_fallthru
        _
      %p116 = scmp.lt.s32.totalorder %s15, 2
      // Predicated region
      $region17: #{tpu_custom_call.1} parent=5 // pred_check
        %p117 = pneg %p116
      $region18: #{tpu_custom_call.1} parent=5 // pred_check_branch
        %119 = sbr.rel (%p117) target = $region20
      $region19: #{tpu_custom_call.1} parent=5 // pred_region
        // Predicated region
        $region21: #{tpu_custom_call.1} parent=19 // pred_check
          %p120 = pneg %p35
        $region22: #{tpu_custom_call.1} parent=19 // pred_check_branch
          %122 = sbr.rel (%p120) target = $region24
        $region23: #{tpu_custom_call.1} parent=19 // pred_region
          %s123 = sand.u32 %s25, 1
          %s124 = scalar_lea.sflag [#allocation3], %s123
          %s125 = sand.u32 %s25, 1
          %s126 = smul.addr %s125, 192
          %s127 = scalar_lea.vmem [#allocation2], %s126
          %s128 = smul.u32 6, %s15
          %s130 = ssub.s32 3072, 3072
          %131 = vsyncadd %s124, %s130
          %s132 = smul.addr %s128, 8
          %s133 = smul.addr %s132, 64
          %s134 = scalar_lea.hbm %s0, %s133
          %s135 = sshll.u32 %s127, 4
          %s136 = int_to_ptr.vmem [resolvable:$true] %s135
          %141 = dma.hbm_to_vmem [thread:$0]  %s134, 3072, %s136, %s124, 512, 512, 32
        $region24: #{tpu_custom_call.1} parent=19 // pred_fallthru
          _
      $region20: #{tpu_custom_call.1} parent=5 // pred_fallthru
        _
      %p142 = scmp.le.s32.totalorder 1, %s15
      %p143 = scmp.lt.s32.totalorder %s15, 3
      %p144 = pnand %p142, %p143
      %p145 = pneg %p144
      // Predicated region
      $region25: #{tpu_custom_call.1} parent=5 // pred_check
        _
      $region26: #{tpu_custom_call.1} parent=5 // pred_check_branch
        %147 = sbr.rel (%p144) target = $region28
      $region27: #{tpu_custom_call.1} parent=5 // pred_region
        %s148 = ssub.s32 %s15, 1
        %s149 = sand.u32 %s28, 1
        %s150 = scalar_lea.sflag [#allocation3], %s149
        %s151 = sand.u32 %s28, 1
        %s152 = smul.addr %s151, 192
        %s153 = scalar_lea.vmem [#allocation2], %s152
        // Predicated region
        $region29: #{tpu_custom_call.1} parent=27 // pred_check
          %p154 = pneg %p41
        $region30: #{tpu_custom_call.1} parent=27 // pred_check_branch
          %156 = sbr.rel (%p154) target = $region32
        $region31: #{tpu_custom_call.1} parent=27 // pred_region
          %157 = dma.done %s150, 3072
        $region32: #{tpu_custom_call.1} parent=27 // pred_fallthru
          _
        // Predicated region
        $region33: #{tpu_custom_call.1} parent=27 // pred_check
          %p158 = pneg %p62
        $region34: #{tpu_custom_call.1} parent=27 // pred_check_branch
          %160 = sbr.rel (%p158) target = $region36
        $region35: #{tpu_custom_call.1} parent=27 // pred_region
          %161 = dma.done [#allocation6], 65536
        $region36: #{tpu_custom_call.1} parent=27 // pred_fallthru
          _
        %s162 = sand.u32 %s28, 1
        %s163 = scalar_lea.sflag [#allocation3], %s162
        %s164 = sand.u32 %s28, 1
        %s165 = smul.addr %s164, 192
        %s166 = scalar_lea.vmem [#allocation2], %s165
        %p167 = pneg %p41
        %p168 = pneg %p38
        %p169 = pneg %p62
        %p170 = pneg %p59
        %p171 = pneg %p88
        %p172 = pneg %p85
        %s173 = sand.u32 %s75, 1
        %s174 = scalar_lea.sflag [#allocation4], %s173
        %s175 = sand.u32 %s75, 1
        %s176 = smul.addr %s175, 96
        %s177 = scalar_lea.vmem [#allocation7], %s176
        %s178 = smul.u32 6, %s20
        %v179 = vld [vmem:[%s153] sm:$0xff]
        %v180 = vld [vmem:[%s153 + $0x8] sm:$0xff]
        %v181 = vld [vmem:[%s153 + $0x10] sm:$0xff]
        %v182 = vld [vmem:[%s153 + $0x18] sm:$0xff]
        %v183 = vld [vmem:[%s153 + $0x20] sm:$0xff]
        %v184 = vld [vmem:[%s153 + $0x28] sm:$0xff]
        %v185 = vld [vmem:[%s153 + $0x30] sm:$0xff]
        %v186 = vld [vmem:[%s153 + $0x38] sm:$0xff]
        %v187 = vld [vmem:[%s153 + $0x40] sm:$0xff]
        %v188 = vld [vmem:[%s153 + $0x48] sm:$0xff]
        %v189 = vld [vmem:[%s153 + $0x50] sm:$0xff]
        %v190 = vld [vmem:[%s153 + $0x58] sm:$0xff]
        %v191 = vld [vmem:[%s153 + $0x60] sm:$0xff]
        %v192 = vld [vmem:[%s153 + $0x68] sm:$0xff]
        %v193 = vld [vmem:[%s153 + $0x70] sm:$0xff]
        %v194 = vld [vmem:[%s153 + $0x78] sm:$0xff]
        %v195 = vld [vmem:[%s153 + $0x80] sm:$0xff]
        %v196 = vld [vmem:[%s153 + $0x88] sm:$0xff]
        %v197 = vld [vmem:[%s153 + $0x90] sm:$0xff]
        %v198 = vld [vmem:[%s153 + $0x98] sm:$0xff]
        %v199 = vld [vmem:[%s153 + $0xa0] sm:$0xff]
        %v200 = vld [vmem:[%s153 + $0xa8] sm:$0xff]
        %v201 = vld [vmem:[%s153 + $0xb0] sm:$0xff]
        %v202 = vld [vmem:[%s153 + $0xb8] sm:$0xff]
        %v203 = vld [vmem:[#allocation5] sm:$0xff]
        %v204 = vld [vmem:[#allocation5 + $0x8] sm:$0xff]
        %v205 = vld [vmem:[#allocation5 + $0x10] sm:$0xff]
        %v206 = vld [vmem:[#allocation5 + $0x18] sm:$0xff]
        %v207 = vld [vmem:[#allocation5 + $0x20] sm:$0xff]
        %v208 = vld [vmem:[#allocation5 + $0x28] sm:$0xff]
        %v209 = vld [vmem:[#allocation5 + $0x30] sm:$0xff]
        %v210 = vld [vmem:[#allocation5 + $0x38] sm:$0xff]
        %v211 = vld [vmem:[#allocation5 + $0x40] sm:$0xff]
        %v212 = vld [vmem:[#allocation5 + $0x48] sm:$0xff]
        %v213 = vld [vmem:[#allocation5 + $0x50] sm:$0xff]
        %v214 = vld [vmem:[#allocation5 + $0x58] sm:$0xff]
        %v215 = vld [vmem:[#allocation5 + $0x60] sm:$0xff]
        %v216 = vld [vmem:[#allocation5 + $0x68] sm:$0xff]
        %v217 = vld [vmem:[#allocation5 + $0x70] sm:$0xff]
        %v218 = vld [vmem:[#allocation5 + $0x78] sm:$0xff]
        %v219 = vld [vmem:[#allocation5 + $0x80] sm:$0xff]
        %v220 = vld [vmem:[#allocation5 + $0x88] sm:$0xff]
        %v221 = vld [vmem:[#allocation5 + $0x90] sm:$0xff]
        %v222 = vld [vmem:[#allocation5 + $0x98] sm:$0xff]
        %v223 = vld [vmem:[#allocation5 + $0xa0] sm:$0xff]
        %v224 = vld [vmem:[#allocation5 + $0xa8] sm:$0xff]
        %v225 = vld [vmem:[#allocation5 + $0xb0] sm:$0xff]
        %v226 = vld [vmem:[#allocation5 + $0xb8] sm:$0xff]
        %v227 = vld [vmem:[#allocation5 + $0xc0] sm:$0xff]
        %v228 = vld [vmem:[#allocation5 + $0xc8] sm:$0xff]
        %v229 = vld [vmem:[#allocation5 + $0xd0] sm:$0xff]
        %v230 = vld [vmem:[#allocation5 + $0xd8] sm:$0xff]
        %v231 = vld [vmem:[#allocation5 + $0xe0] sm:$0xff]
        %v232 = vld [vmem:[#allocation5 + $0xe8] sm:$0xff]
        %v233 = vld [vmem:[#allocation5 + $0xf0] sm:$0xff]
        %v234 = vld [vmem:[#allocation5 + $0xf8] sm:$0xff]
        %v235 = vld [vmem:[#allocation5 + $0x100] sm:$0xff]
        %v236 = vld [vmem:[#allocation5 + $0x108] sm:$0xff]
        %v237 = vld [vmem:[#allocation5 + $0x110] sm:$0xff]
        %v238 = vld [vmem:[#allocation5 + $0x118] sm:$0xff]
        %v239 = vld [vmem:[#allocation5 + $0x120] sm:$0xff]
        %v240 = vld [vmem:[#allocation5 + $0x128] sm:$0xff]
        %v241 = vld [vmem:[#allocation5 + $0x130] sm:$0xff]
        %v242 = vld [vmem:[#allocation5 + $0x138] sm:$0xff]
        %v243 = vld [vmem:[#allocation5 + $0x140] sm:$0xff]
        %v244 = vld [vmem:[#allocation5 + $0x148] sm:$0xff]
        %v245 = vld [vmem:[#allocation5 + $0x150] sm:$0xff]
        %v246 = vld [vmem:[#allocation5 + $0x158] sm:$0xff]
        %v247 = vld [vmem:[#allocation5 + $0x160] sm:$0xff]
        %v248 = vld [vmem:[#allocation5 + $0x168] sm:$0xff]
        %v249 = vld [vmem:[#allocation5 + $0x170] sm:$0xff]
        %v250 = vld [vmem:[#allocation5 + $0x178] sm:$0xff]
        %v251 = vld [vmem:[#allocation5 + $0x180] sm:$0xff]
        %v252 = vld [vmem:[#allocation5 + $0x188] sm:$0xff]
        %v253 = vld [vmem:[#allocation5 + $0x190] sm:$0xff]
        %v254 = vld [vmem:[#allocation5 + $0x198] sm:$0xff]
        %v255 = vld [vmem:[#allocation5 + $0x1a0] sm:$0xff]
        %v256 = vld [vmem:[#allocation5 + $0x1a8] sm:$0xff]
        %v257 = vld [vmem:[#allocation5 + $0x1b0] sm:$0xff]
        %v258 = vld [vmem:[#allocation5 + $0x1b8] sm:$0xff]
        %v259 = vld [vmem:[#allocation5 + $0x1c0] sm:$0xff]
        %v260 = vld [vmem:[#allocation5 + $0x1c8] sm:$0xff]
        %v261 = vld [vmem:[#allocation5 + $0x1d0] sm:$0xff]
        %v262 = vld [vmem:[#allocation5 + $0x1d8] sm:$0xff]
        %v263 = vld [vmem:[#allocation5 + $0x1e0] sm:$0xff]
        %v264 = vld [vmem:[#allocation5 + $0x1e8] sm:$0xff]
        %v265 = vld [vmem:[#allocation5 + $0x1f0] sm:$0xff]
        %v266 = vld [vmem:[#allocation5 + $0x1f8] sm:$0xff]
        %v267 = vld [vmem:[#allocation5 + $0x200] sm:$0xff]
        %v268 = vld [vmem:[#allocation5 + $0x208] sm:$0xff]
        %v269 = vld [vmem:[#allocation5 + $0x210] sm:$0xff]
        %v270 = vld [vmem:[#allocation5 + $0x218] sm:$0xff]
        %v271 = vld [vmem:[#allocation5 + $0x220] sm:$0xff]
        %v272 = vld [vmem:[#allocation5 + $0x228] sm:$0xff]
        %v273 = vld [vmem:[#allocation5 + $0x230] sm:$0xff]
        %v274 = vld [vmem:[#allocation5 + $0x238] sm:$0xff]
        %v275 = vld [vmem:[#allocation5 + $0x240] sm:$0xff]
        %v276 = vld [vmem:[#allocation5 + $0x248] sm:$0xff]
        %v277 = vld [vmem:[#allocation5 + $0x250] sm:$0xff]
        %v278 = vld [vmem:[#allocation5 + $0x258] sm:$0xff]
        %v279 = vld [vmem:[#allocation5 + $0x260] sm:$0xff]
        %v280 = vld [vmem:[#allocation5 + $0x268] sm:$0xff]
        %v281 = vld [vmem:[#allocation5 + $0x270] sm:$0xff]
        %v282 = vld [vmem:[#allocation5 + $0x278] sm:$0xff]
        %v283 = vld [vmem:[#allocation5 + $0x280] sm:$0xff]
        %v284 = vld [vmem:[#allocation5 + $0x288] sm:$0xff]
        %v285 = vld [vmem:[#allocation5 + $0x290] sm:$0xff]
        %v286 = vld [vmem:[#allocation5 + $0x298] sm:$0xff]
        %v287 = vld [vmem:[#allocation5 + $0x2a0] sm:$0xff]
        %v288 = vld [vmem:[#allocation5 + $0x2a8] sm:$0xff]
        %v289 = vld [vmem:[#allocation5 + $0x2b0] sm:$0xff]
        %v290 = vld [vmem:[#allocation5 + $0x2b8] sm:$0xff]
        %v291 = vld [vmem:[#allocation5 + $0x2c0] sm:$0xff]
        %v292 = vld [vmem:[#allocation5 + $0x2c8] sm:$0xff]
        %v293 = vld [vmem:[#allocation5 + $0x2d0] sm:$0xff]
        %v294 = vld [vmem:[#allocation5 + $0x2d8] sm:$0xff]
        %v295 = vld [vmem:[#allocation5 + $0x2e0] sm:$0xff]
        %v296 = vld [vmem:[#allocation5 + $0x2e8] sm:$0xff]
        %v297 = vld [vmem:[#allocation5 + $0x2f0] sm:$0xff]
        %v298 = vld [vmem:[#allocation5 + $0x2f8] sm:$0xff]
        %v299 = vld [vmem:[#allocation5 + $0x300] sm:$0xff]
        %v300 = vld [vmem:[#allocation5 + $0x308] sm:$0xff]
        %v301 = vld [vmem:[#allocation5 + $0x310] sm:$0xff]
        %v302 = vld [vmem:[#allocation5 + $0x318] sm:$0xff]
        %v303 = vld [vmem:[#allocation5 + $0x320] sm:$0xff]
        %v304 = vld [vmem:[#allocation5 + $0x328] sm:$0xff]
        %v305 = vld [vmem:[#allocation5 + $0x330] sm:$0xff]
        %v306 = vld [vmem:[#allocation5 + $0x338] sm:$0xff]
        %v307 = vld [vmem:[#allocation5 + $0x340] sm:$0xff]
        %v308 = vld [vmem:[#allocation5 + $0x348] sm:$0xff]
        %v309 = vld [vmem:[#allocation5 + $0x350] sm:$0xff]
        %v310 = vld [vmem:[#allocation5 + $0x358] sm:$0xff]
        %v311 = vld [vmem:[#allocation5 + $0x360] sm:$0xff]
        %v312 = vld [vmem:[#allocation5 + $0x368] sm:$0xff]
        %v313 = vld [vmem:[#allocation5 + $0x370] sm:$0xff]
        %v314 = vld [vmem:[#allocation5 + $0x378] sm:$0xff]
        %v315 = vld [vmem:[#allocation5 + $0x380] sm:$0xff]
        %v316 = vld [vmem:[#allocation5 + $0x388] sm:$0xff]
        %v317 = vld [vmem:[#allocation5 + $0x390] sm:$0xff]
        %v318 = vld [vmem:[#allocation5 + $0x398] sm:$0xff]
        %v319 = vld [vmem:[#allocation5 + $0x3a0] sm:$0xff]
        %v320 = vld [vmem:[#allocation5 + $0x3a8] sm:$0xff]
        %v321 = vld [vmem:[#allocation5 + $0x3b0] sm:$0xff]
        %v322 = vld [vmem:[#allocation5 + $0x3b8] sm:$0xff]
        %v323 = vld [vmem:[#allocation5 + $0x3c0] sm:$0xff]
        %v324 = vld [vmem:[#allocation5 + $0x3c8] sm:$0xff]
        %v325 = vld [vmem:[#allocation5 + $0x3d0] sm:$0xff]
        %v326 = vld [vmem:[#allocation5 + $0x3d8] sm:$0xff]
        %v327 = vld [vmem:[#allocation5 + $0x3e0] sm:$0xff]
        %v328 = vld [vmem:[#allocation5 + $0x3e8] sm:$0xff]
        %v329 = vld [vmem:[#allocation5 + $0x3f0] sm:$0xff]
        %v330 = vld [vmem:[#allocation5 + $0x3f8] sm:$0xff]
        %v331 = vld [vmem:[#allocation5 + $0x400] sm:$0xff]
        %v332 = vld [vmem:[#allocation5 + $0x408] sm:$0xff]
        %v333 = vld [vmem:[#allocation5 + $0x410] sm:$0xff]
        %v334 = vld [vmem:[#allocation5 + $0x418] sm:$0xff]
        %v335 = vld [vmem:[#allocation5 + $0x420] sm:$0xff]
        %v336 = vld [vmem:[#allocation5 + $0x428] sm:$0xff]
        %v337 = vld [vmem:[#allocation5 + $0x430] sm:$0xff]
        %v338 = vld [vmem:[#allocation5 + $0x438] sm:$0xff]
        %v339 = vld [vmem:[#allocation5 + $0x440] sm:$0xff]
        %v340 = vld [vmem:[#allocation5 + $0x448] sm:$0xff]
        %v341 = vld [vmem:[#allocation5 + $0x450] sm:$0xff]
        %v342 = vld [vmem:[#allocation5 + $0x458] sm:$0xff]
        %v343 = vld [vmem:[#allocation5 + $0x460] sm:$0xff]
        %v344 = vld [vmem:[#allocation5 + $0x468] sm:$0xff]
        %v345 = vld [vmem:[#allocation5 + $0x470] sm:$0xff]
        %v346 = vld [vmem:[#allocation5 + $0x478] sm:$0xff]
        %v347 = vld [vmem:[#allocation5 + $0x480] sm:$0xff]
        %v348 = vld [vmem:[#allocation5 + $0x488] sm:$0xff]
        %v349 = vld [vmem:[#allocation5 + $0x490] sm:$0xff]
        %v350 = vld [vmem:[#allocation5 + $0x498] sm:$0xff]
        %v351 = vld [vmem:[#allocation5 + $0x4a0] sm:$0xff]
        %v352 = vld [vmem:[#allocation5 + $0x4a8] sm:$0xff]
        %v353 = vld [vmem:[#allocation5 + $0x4b0] sm:$0xff]
        %v354 = vld [vmem:[#allocation5 + $0x4b8] sm:$0xff]
        %v355 = vld [vmem:[#allocation5 + $0x4c0] sm:$0xff]
        %v356 = vld [vmem:[#allocation5 + $0x4c8] sm:$0xff]
        %v357 = vld [vmem:[#allocation5 + $0x4d0] sm:$0xff]
        %v358 = vld [vmem:[#allocation5 + $0x4d8] sm:$0xff]
        %v359 = vld [vmem:[#allocation5 + $0x4e0] sm:$0xff]
        %v360 = vld [vmem:[#allocation5 + $0x4e8] sm:$0xff]
        %v361 = vld [vmem:[#allocation5 + $0x4f0] sm:$0xff]
        %v362 = vld [vmem:[#allocation5 + $0x4f8] sm:$0xff]
        %v363 = vld [vmem:[#allocation5 + $0x500] sm:$0xff]
        %v364 = vld [vmem:[#allocation5 + $0x508] sm:$0xff]
        %v365 = vld [vmem:[#allocation5 + $0x510] sm:$0xff]
        %v366 = vld [vmem:[#allocation5 + $0x518] sm:$0xff]
        %v367 = vld [vmem:[#allocation5 + $0x520] sm:$0xff]
        %v368 = vld [vmem:[#allocation5 + $0x528] sm:$0xff]
        %v369 = vld [vmem:[#allocation5 + $0x530] sm:$0xff]
        %v370 = vld [vmem:[#allocation5 + $0x538] sm:$0xff]
        %v371 = vld [vmem:[#allocation5 + $0x540] sm:$0xff]
        %v372 = vld [vmem:[#allocation5 + $0x548] sm:$0xff]
        %v373 = vld [vmem:[#allocation5 + $0x550] sm:$0xff]
        %v374 = vld [vmem:[#allocation5 + $0x558] sm:$0xff]
        %v375 = vld [vmem:[#allocation5 + $0x560] sm:$0xff]
        %v376 = vld [vmem:[#allocation5 + $0x568] sm:$0xff]
        %v377 = vld [vmem:[#allocation5 + $0x570] sm:$0xff]
        %v378 = vld [vmem:[#allocation5 + $0x578] sm:$0xff]
        %v379 = vld [vmem:[#allocation5 + $0x580] sm:$0xff]
        %v380 = vld [vmem:[#allocation5 + $0x588] sm:$0xff]
        %v381 = vld [vmem:[#allocation5 + $0x590] sm:$0xff]
        %v382 = vld [vmem:[#allocation5 + $0x598] sm:$0xff]
        %v383 = vld [vmem:[#allocation5 + $0x5a0] sm:$0xff]
        %v384 = vld [vmem:[#allocation5 + $0x5a8] sm:$0xff]
        %v385 = vld [vmem:[#allocation5 + $0x5b0] sm:$0xff]
        %v386 = vld [vmem:[#allocation5 + $0x5b8] sm:$0xff]
        %v387 = vld [vmem:[#allocation5 + $0x5c0] sm:$0xff]
        %v388 = vld [vmem:[#allocation5 + $0x5c8] sm:$0xff]
        %v389 = vld [vmem:[#allocation5 + $0x5d0] sm:$0xff]
        %v390 = vld [vmem:[#allocation5 + $0x5d8] sm:$0xff]
        %v391 = vld [vmem:[#allocation5 + $0x5e0] sm:$0xff]
        %v392 = vld [vmem:[#allocation5 + $0x5e8] sm:$0xff]
        %v393 = vld [vmem:[#allocation5 + $0x5f0] sm:$0xff]
        %v394 = vld [vmem:[#allocation5 + $0x5f8] sm:$0xff]
        %v395 = vld [vmem:[#allocation5 + $0x600] sm:$0xff]
        %v396 = vld [vmem:[#allocation5 + $0x608] sm:$0xff]
        %v397 = vld [vmem:[#allocation5 + $0x610] sm:$0xff]
        %v398 = vld [vmem:[#allocation5 + $0x618] sm:$0xff]
        %v399 = vld [vmem:[#allocation5 + $0x620] sm:$0xff]
        %v400 = vld [vmem:[#allocation5 + $0x628] sm:$0xff]
        %v401 = vld [vmem:[#allocation5 + $0x630] sm:$0xff]
        %v402 = vld [vmem:[#allocation5 + $0x638] sm:$0xff]
        %v403 = vld [vmem:[#allocation5 + $0x640] sm:$0xff]
        %v404 = vld [vmem:[#allocation5 + $0x648] sm:$0xff]
        %v405 = vld [vmem:[#allocation5 + $0x650] sm:$0xff]
        %v406 = vld [vmem:[#allocation5 + $0x658] sm:$0xff]
        %v407 = vld [vmem:[#allocation5 + $0x660] sm:$0xff]
        %v408 = vld [vmem:[#allocation5 + $0x668] sm:$0xff]
        %v409 = vld [vmem:[#allocation5 + $0x670] sm:$0xff]
        %v410 = vld [vmem:[#allocation5 + $0x678] sm:$0xff]
        %v411 = vld [vmem:[#allocation5 + $0x680] sm:$0xff]
        %v412 = vld [vmem:[#allocation5 + $0x688] sm:$0xff]
        %v413 = vld [vmem:[#allocation5 + $0x690] sm:$0xff]
        %v414 = vld [vmem:[#allocation5 + $0x698] sm:$0xff]
        %v415 = vld [vmem:[#allocation5 + $0x6a0] sm:$0xff]
        %v416 = vld [vmem:[#allocation5 + $0x6a8] sm:$0xff]
        %v417 = vld [vmem:[#allocation5 + $0x6b0] sm:$0xff]
        %v418 = vld [vmem:[#allocation5 + $0x6b8] sm:$0xff]
        %v419 = vld [vmem:[#allocation5 + $0x6c0] sm:$0xff]
        %v420 = vld [vmem:[#allocation5 + $0x6c8] sm:$0xff]
        %v421 = vld [vmem:[#allocation5 + $0x6d0] sm:$0xff]
        %v422 = vld [vmem:[#allocation5 + $0x6d8] sm:$0xff]
        %v423 = vld [vmem:[#allocation5 + $0x6e0] sm:$0xff]
        %v424 = vld [vmem:[#allocation5 + $0x6e8] sm:$0xff]
        %v425 = vld [vmem:[#allocation5 + $0x6f0] sm:$0xff]
        %v426 = vld [vmem:[#allocation5 + $0x6f8] sm:$0xff]
        %v427 = vld [vmem:[#allocation5 + $0x700] sm:$0xff]
        %v428 = vld [vmem:[#allocation5 + $0x708] sm:$0xff]
        %v429 = vld [vmem:[#allocation5 + $0x710] sm:$0xff]
        %v430 = vld [vmem:[#allocation5 + $0x718] sm:$0xff]
        %v431 = vld [vmem:[#allocation5 + $0x720] sm:$0xff]
        %v432 = vld [vmem:[#allocation5 + $0x728] sm:$0xff]
        %v433 = vld [vmem:[#allocation5 + $0x730] sm:$0xff]
        %v434 = vld [vmem:[#allocation5 + $0x738] sm:$0xff]
        %v435 = vld [vmem:[#allocation5 + $0x740] sm:$0xff]
        %v436 = vld [vmem:[#allocation5 + $0x748] sm:$0xff]
        %v437 = vld [vmem:[#allocation5 + $0x750] sm:$0xff]
        %v438 = vld [vmem:[#allocation5 + $0x758] sm:$0xff]
        %v439 = vld [vmem:[#allocation5 + $0x760] sm:$0xff]
        %v440 = vld [vmem:[#allocation5 + $0x768] sm:$0xff]
        %v441 = vld [vmem:[#allocation5 + $0x770] sm:$0xff]
        %v442 = vld [vmem:[#allocation5 + $0x778] sm:$0xff]
        %v443 = vld [vmem:[#allocation5 + $0x780] sm:$0xff]
        %v444 = vld [vmem:[#allocation5 + $0x788] sm:$0xff]
        %v445 = vld [vmem:[#allocation5 + $0x790] sm:$0xff]
        %v446 = vld [vmem:[#allocation5 + $0x798] sm:$0xff]
        %v447 = vld [vmem:[#allocation5 + $0x7a0] sm:$0xff]
        %v448 = vld [vmem:[#allocation5 + $0x7a8] sm:$0xff]
        %v449 = vld [vmem:[#allocation5 + $0x7b0] sm:$0xff]
        %v450 = vld [vmem:[#allocation5 + $0x7b8] sm:$0xff]
        %v451 = vld [vmem:[#allocation5 + $0x7c0] sm:$0xff]
        %v452 = vld [vmem:[#allocation5 + $0x7c8] sm:$0xff]
        %v453 = vld [vmem:[#allocation5 + $0x7d0] sm:$0xff]
        %v454 = vld [vmem:[#allocation5 + $0x7d8] sm:$0xff]
        %v455 = vld [vmem:[#allocation5 + $0x7e0] sm:$0xff]
        %v456 = vld [vmem:[#allocation5 + $0x7e8] sm:$0xff]
        %v457 = vld [vmem:[#allocation5 + $0x7f0] sm:$0xff]
        %v458 = vld [vmem:[#allocation5 + $0x7f8] sm:$0xff]
        %v459 = vld [vmem:[#allocation5 + $0x800] sm:$0xff]
        %v460 = vld [vmem:[#allocation5 + $0x808] sm:$0xff]
        %v461 = vld [vmem:[#allocation5 + $0x810] sm:$0xff]
        %v462 = vld [vmem:[#allocation5 + $0x818] sm:$0xff]
        %v463 = vld [vmem:[#allocation5 + $0x820] sm:$0xff]
        %v464 = vld [vmem:[#allocation5 + $0x828] sm:$0xff]
        %v465 = vld [vmem:[#allocation5 + $0x830] sm:$0xff]
        %v466 = vld [vmem:[#allocation5 + $0x838] sm:$0xff]
        %v467 = vld [vmem:[#allocation5 + $0x840] sm:$0xff]
        %v468 = vld [vmem:[#allocation5 + $0x848] sm:$0xff]
        %v469 = vld [vmem:[#allocation5 + $0x850] sm:$0xff]
        %v470 = vld [vmem:[#allocation5 + $0x858] sm:$0xff]
        %v471 = vld [vmem:[#allocation5 + $0x860] sm:$0xff]
        %v472 = vld [vmem:[#allocation5 + $0x868] sm:$0xff]
        %v473 = vld [vmem:[#allocation5 + $0x870] sm:$0xff]
        %v474 = vld [vmem:[#allocation5 + $0x878] sm:$0xff]
        %v475 = vld [vmem:[#allocation5 + $0x880] sm:$0xff]
        %v476 = vld [vmem:[#allocation5 + $0x888] sm:$0xff]
        %v477 = vld [vmem:[#allocation5 + $0x890] sm:$0xff]
        %v478 = vld [vmem:[#allocation5 + $0x898] sm:$0xff]
        %v479 = vld [vmem:[#allocation5 + $0x8a0] sm:$0xff]
        %v480 = vld [vmem:[#allocation5 + $0x8a8] sm:$0xff]
        %v481 = vld [vmem:[#allocation5 + $0x8b0] sm:$0xff]
        %v482 = vld [vmem:[#allocation5 + $0x8b8] sm:$0xff]
        %v483 = vld [vmem:[#allocation5 + $0x8c0] sm:$0xff]
        %v484 = vld [vmem:[#allocation5 + $0x8c8] sm:$0xff]
        %v485 = vld [vmem:[#allocation5 + $0x8d0] sm:$0xff]
        %v486 = vld [vmem:[#allocation5 + $0x8d8] sm:$0xff]
        %v487 = vld [vmem:[#allocation5 + $0x8e0] sm:$0xff]
        %v488 = vld [vmem:[#allocation5 + $0x8e8] sm:$0xff]
        %v489 = vld [vmem:[#allocation5 + $0x8f0] sm:$0xff]
        %v490 = vld [vmem:[#allocation5 + $0x8f8] sm:$0xff]
        %v491 = vld [vmem:[#allocation5 + $0x900] sm:$0xff]
        %v492 = vld [vmem:[#allocation5 + $0x908] sm:$0xff]
        %v493 = vld [vmem:[#allocation5 + $0x910] sm:$0xff]
        %v494 = vld [vmem:[#allocation5 + $0x918] sm:$0xff]
        %v495 = vld [vmem:[#allocation5 + $0x920] sm:$0xff]
        %v496 = vld [vmem:[#allocation5 + $0x928] sm:$0xff]
        %v497 = vld [vmem:[#allocation5 + $0x930] sm:$0xff]
        %v498 = vld [vmem:[#allocation5 + $0x938] sm:$0xff]
        %v499 = vld [vmem:[#allocation5 + $0x940] sm:$0xff]
        %v500 = vld [vmem:[#allocation5 + $0x948] sm:$0xff]
        %v501 = vld [vmem:[#allocation5 + $0x950] sm:$0xff]
        %v502 = vld [vmem:[#allocation5 + $0x958] sm:$0xff]
        %v503 = vld [vmem:[#allocation5 + $0x960] sm:$0xff]
        %v504 = vld [vmem:[#allocation5 + $0x968] sm:$0xff]
        %v505 = vld [vmem:[#allocation5 + $0x970] sm:$0xff]
        %v506 = vld [vmem:[#allocation5 + $0x978] sm:$0xff]
        %v507 = vld [vmem:[#allocation5 + $0x980] sm:$0xff]
        %v508 = vld [vmem:[#allocation5 + $0x988] sm:$0xff]
        %v509 = vld [vmem:[#allocation5 + $0x990] sm:$0xff]
        %v510 = vld [vmem:[#allocation5 + $0x998] sm:$0xff]
        %v511 = vld [vmem:[#allocation5 + $0x9a0] sm:$0xff]
        %v512 = vld [vmem:[#allocation5 + $0x9a8] sm:$0xff]
        %v513 = vld [vmem:[#allocation5 + $0x9b0] sm:$0xff]
        %v514 = vld [vmem:[#allocation5 + $0x9b8] sm:$0xff]
        %v515 = vld [vmem:[#allocation5 + $0x9c0] sm:$0xff]
        %v516 = vld [vmem:[#allocation5 + $0x9c8] sm:$0xff]
        %v517 = vld [vmem:[#allocation5 + $0x9d0] sm:$0xff]
        %v518 = vld [vmem:[#allocation5 + $0x9d8] sm:$0xff]
        %v519 = vld [vmem:[#allocation5 + $0x9e0] sm:$0xff]
        %v520 = vld [vmem:[#allocation5 + $0x9e8] sm:$0xff]
        %v521 = vld [vmem:[#allocation5 + $0x9f0] sm:$0xff]
        %v522 = vld [vmem:[#allocation5 + $0x9f8] sm:$0xff]
        %v523 = vld [vmem:[#allocation5 + $0xa00] sm:$0xff]
        %v524 = vld [vmem:[#allocation5 + $0xa08] sm:$0xff]
        %v525 = vld [vmem:[#allocation5 + $0xa10] sm:$0xff]
        %v526 = vld [vmem:[#allocation5 + $0xa18] sm:$0xff]
        %v527 = vld [vmem:[#allocation5 + $0xa20] sm:$0xff]
        %v528 = vld [vmem:[#allocation5 + $0xa28] sm:$0xff]
        %v529 = vld [vmem:[#allocation5 + $0xa30] sm:$0xff]
        %v530 = vld [vmem:[#allocation5 + $0xa38] sm:$0xff]
        %v531 = vld [vmem:[#allocation5 + $0xa40] sm:$0xff]
        %v532 = vld [vmem:[#allocation5 + $0xa48] sm:$0xff]
        %v533 = vld [vmem:[#allocation5 + $0xa50] sm:$0xff]
        %v534 = vld [vmem:[#allocation5 + $0xa58] sm:$0xff]
        %v535 = vld [vmem:[#allocation5 + $0xa60] sm:$0xff]
        %v536 = vld [vmem:[#allocation5 + $0xa68] sm:$0xff]
        %v537 = vld [vmem:[#allocation5 + $0xa70] sm:$0xff]
        %v538 = vld [vmem:[#allocation5 + $0xa78] sm:$0xff]
        %v539 = vld [vmem:[#allocation5 + $0xa80] sm:$0xff]
        %v540 = vld [vmem:[#allocation5 + $0xa88] sm:$0xff]
        %v541 = vld [vmem:[#allocation5 + $0xa90] sm:$0xff]
        %v542 = vld [vmem:[#allocation5 + $0xa98] sm:$0xff]
        %v543 = vld [vmem:[#allocation5 + $0xaa0] sm:$0xff]
        %v544 = vld [vmem:[#allocation5 + $0xaa8] sm:$0xff]
        %v545 = vld [vmem:[#allocation5 + $0xab0] sm:$0xff]
        %v546 = vld [vmem:[#allocation5 + $0xab8] sm:$0xff]
        %v547 = vld [vmem:[#allocation5 + $0xac0] sm:$0xff]
        %v548 = vld [vmem:[#allocation5 + $0xac8] sm:$0xff]
        %v549 = vld [vmem:[#allocation5 + $0xad0] sm:$0xff]
        %v550 = vld [vmem:[#allocation5 + $0xad8] sm:$0xff]
        %v551 = vld [vmem:[#allocation5 + $0xae0] sm:$0xff]
        %v552 = vld [vmem:[#allocation5 + $0xae8] sm:$0xff]
        %v553 = vld [vmem:[#allocation5 + $0xaf0] sm:$0xff]
        %v554 = vld [vmem:[#allocation5 + $0xaf8] sm:$0xff]
        %v555 = vld [vmem:[#allocation5 + $0xb00] sm:$0xff]
        %v556 = vld [vmem:[#allocation5 + $0xb08] sm:$0xff]
        %v557 = vld [vmem:[#allocation5 + $0xb10] sm:$0xff]
        %v558 = vld [vmem:[#allocation5 + $0xb18] sm:$0xff]
        %v559 = vld [vmem:[#allocation5 + $0xb20] sm:$0xff]
        %v560 = vld [vmem:[#allocation5 + $0xb28] sm:$0xff]
        %v561 = vld [vmem:[#allocation5 + $0xb30] sm:$0xff]
        %v562 = vld [vmem:[#allocation5 + $0xb38] sm:$0xff]
        %v563 = vld [vmem:[#allocation5 + $0xb40] sm:$0xff]
        %v564 = vld [vmem:[#allocation5 + $0xb48] sm:$0xff]
        %v565 = vld [vmem:[#allocation5 + $0xb50] sm:$0xff]
        %v566 = vld [vmem:[#allocation5 + $0xb58] sm:$0xff]
        %v567 = vld [vmem:[#allocation5 + $0xb60] sm:$0xff]
        %v568 = vld [vmem:[#allocation5 + $0xb68] sm:$0xff]
        %v569 = vld [vmem:[#allocation5 + $0xb70] sm:$0xff]
        %v570 = vld [vmem:[#allocation5 + $0xb78] sm:$0xff]
        %v571 = vld [vmem:[#allocation5 + $0xb80] sm:$0xff]
        %v572 = vld [vmem:[#allocation5 + $0xb88] sm:$0xff]
        %v573 = vld [vmem:[#allocation5 + $0xb90] sm:$0xff]
        %v574 = vld [vmem:[#allocation5 + $0xb98] sm:$0xff]
        %v575 = vld [vmem:[#allocation5 + $0xba0] sm:$0xff]
        %v576 = vld [vmem:[#allocation5 + $0xba8] sm:$0xff]
        %v577 = vld [vmem:[#allocation5 + $0xbb0] sm:$0xff]
        %v578 = vld [vmem:[#allocation5 + $0xbb8] sm:$0xff]
        %v579 = vld [vmem:[#allocation5 + $0xbc0] sm:$0xff]
        %v580 = vld [vmem:[#allocation5 + $0xbc8] sm:$0xff]
        %v581 = vld [vmem:[#allocation5 + $0xbd0] sm:$0xff]
        %v582 = vld [vmem:[#allocation5 + $0xbd8] sm:$0xff]
        %v583 = vld [vmem:[#allocation5 + $0xbe0] sm:$0xff]
        %v584 = vld [vmem:[#allocation5 + $0xbe8] sm:$0xff]
        %v585 = vld [vmem:[#allocation5 + $0xbf0] sm:$0xff]
        %v586 = vld [vmem:[#allocation5 + $0xbf8] sm:$0xff]
        %v587 = vld [vmem:[#allocation5 + $0xc00] sm:$0xff]
        %v588 = vld [vmem:[#allocation5 + $0xc08] sm:$0xff]
        %v589 = vld [vmem:[#allocation5 + $0xc10] sm:$0xff]
        %v590 = vld [vmem:[#allocation5 + $0xc18] sm:$0xff]
        %v591 = vld [vmem:[#allocation5 + $0xc20] sm:$0xff]
        %v592 = vld [vmem:[#allocation5 + $0xc28] sm:$0xff]
        %v593 = vld [vmem:[#allocation5 + $0xc30] sm:$0xff]
        %v594 = vld [vmem:[#allocation5 + $0xc38] sm:$0xff]
        %v595 = vld [vmem:[#allocation5 + $0xc40] sm:$0xff]
        %v596 = vld [vmem:[#allocation5 + $0xc48] sm:$0xff]
        %v597 = vld [vmem:[#allocation5 + $0xc50] sm:$0xff]
        %v598 = vld [vmem:[#allocation5 + $0xc58] sm:$0xff]
        %v599 = vld [vmem:[#allocation5 + $0xc60] sm:$0xff]
        %v600 = vld [vmem:[#allocation5 + $0xc68] sm:$0xff]
        %v601 = vld [vmem:[#allocation5 + $0xc70] sm:$0xff]
        %v602 = vld [vmem:[#allocation5 + $0xc78] sm:$0xff]
        %v603 = vld [vmem:[#allocation5 + $0xc80] sm:$0xff]
        %v604 = vld [vmem:[#allocation5 + $0xc88] sm:$0xff]
        %v605 = vld [vmem:[#allocation5 + $0xc90] sm:$0xff]
        %v606 = vld [vmem:[#allocation5 + $0xc98] sm:$0xff]
        %v607 = vld [vmem:[#allocation5 + $0xca0] sm:$0xff]
        %v608 = vld [vmem:[#allocation5 + $0xca8] sm:$0xff]
        %v609 = vld [vmem:[#allocation5 + $0xcb0] sm:$0xff]
        %v610 = vld [vmem:[#allocation5 + $0xcb8] sm:$0xff]
        %v611 = vld [vmem:[#allocation5 + $0xcc0] sm:$0xff]
        %v612 = vld [vmem:[#allocation5 + $0xcc8] sm:$0xff]
        %v613 = vld [vmem:[#allocation5 + $0xcd0] sm:$0xff]
        %v614 = vld [vmem:[#allocation5 + $0xcd8] sm:$0xff]
        %v615 = vld [vmem:[#allocation5 + $0xce0] sm:$0xff]
        %v616 = vld [vmem:[#allocation5 + $0xce8] sm:$0xff]
        %v617 = vld [vmem:[#allocation5 + $0xcf0] sm:$0xff]
        %v618 = vld [vmem:[#allocation5 + $0xcf8] sm:$0xff]
        %v619 = vld [vmem:[#allocation5 + $0xd00] sm:$0xff]
        %v620 = vld [vmem:[#allocation5 + $0xd08] sm:$0xff]
        %v621 = vld [vmem:[#allocation5 + $0xd10] sm:$0xff]
        %v622 = vld [vmem:[#allocation5 + $0xd18] sm:$0xff]
        %v623 = vld [vmem:[#allocation5 + $0xd20] sm:$0xff]
        %v624 = vld [vmem:[#allocation5 + $0xd28] sm:$0xff]
        %v625 = vld [vmem:[#allocation5 + $0xd30] sm:$0xff]
        %v626 = vld [vmem:[#allocation5 + $0xd38] sm:$0xff]
        %v627 = vld [vmem:[#allocation5 + $0xd40] sm:$0xff]
        %v628 = vld [vmem:[#allocation5 + $0xd48] sm:$0xff]
        %v629 = vld [vmem:[#allocation5 + $0xd50] sm:$0xff]
        %v630 = vld [vmem:[#allocation5 + $0xd58] sm:$0xff]
        %v631 = vld [vmem:[#allocation5 + $0xd60] sm:$0xff]
        %v632 = vld [vmem:[#allocation5 + $0xd68] sm:$0xff]
        %v633 = vld [vmem:[#allocation5 + $0xd70] sm:$0xff]
        %v634 = vld [vmem:[#allocation5 + $0xd78] sm:$0xff]
        %v635 = vld [vmem:[#allocation5 + $0xd80] sm:$0xff]
        %v636 = vld [vmem:[#allocation5 + $0xd88] sm:$0xff]
        %v637 = vld [vmem:[#allocation5 + $0xd90] sm:$0xff]
        %v638 = vld [vmem:[#allocation5 + $0xd98] sm:$0xff]
        %v639 = vld [vmem:[#allocation5 + $0xda0] sm:$0xff]
        %v640 = vld [vmem:[#allocation5 + $0xda8] sm:$0xff]
        %v641 = vld [vmem:[#allocation5 + $0xdb0] sm:$0xff]
        %v642 = vld [vmem:[#allocation5 + $0xdb8] sm:$0xff]
        %v643 = vld [vmem:[#allocation5 + $0xdc0] sm:$0xff]
        %v644 = vld [vmem:[#allocation5 + $0xdc8] sm:$0xff]
        %v645 = vld [vmem:[#allocation5 + $0xdd0] sm:$0xff]
        %v646 = vld [vmem:[#allocation5 + $0xdd8] sm:$0xff]
        %v647 = vld [vmem:[#allocation5 + $0xde0] sm:$0xff]
        %v648 = vld [vmem:[#allocation5 + $0xde8] sm:$0xff]
        %v649 = vld [vmem:[#allocation5 + $0xdf0] sm:$0xff]
        %v650 = vld [vmem:[#allocation5 + $0xdf8] sm:$0xff]
        %v651 = vld [vmem:[#allocation5 + $0xe00] sm:$0xff]
        %v652 = vld [vmem:[#allocation5 + $0xe08] sm:$0xff]
        %v653 = vld [vmem:[#allocation5 + $0xe10] sm:$0xff]
        %v654 = vld [vmem:[#allocation5 + $0xe18] sm:$0xff]
        %v655 = vld [vmem:[#allocation5 + $0xe20] sm:$0xff]
        %v656 = vld [vmem:[#allocation5 + $0xe28] sm:$0xff]
        %v657 = vld [vmem:[#allocation5 + $0xe30] sm:$0xff]
        %v658 = vld [vmem:[#allocation5 + $0xe38] sm:$0xff]
        %v659 = vld [vmem:[#allocation5 + $0xe40] sm:$0xff]
        %v660 = vld [vmem:[#allocation5 + $0xe48] sm:$0xff]
        %v661 = vld [vmem:[#allocation5 + $0xe50] sm:$0xff]
        %v662 = vld [vmem:[#allocation5 + $0xe58] sm:$0xff]
        %v663 = vld [vmem:[#allocation5 + $0xe60] sm:$0xff]
        %v664 = vld [vmem:[#allocation5 + $0xe68] sm:$0xff]
        %v665 = vld [vmem:[#allocation5 + $0xe70] sm:$0xff]
        %v666 = vld [vmem:[#allocation5 + $0xe78] sm:$0xff]
        %v667 = vld [vmem:[#allocation5 + $0xe80] sm:$0xff]
        %v668 = vld [vmem:[#allocation5 + $0xe88] sm:$0xff]
        %v669 = vld [vmem:[#allocation5 + $0xe90] sm:$0xff]
        %v670 = vld [vmem:[#allocation5 + $0xe98] sm:$0xff]
        %v671 = vld [vmem:[#allocation5 + $0xea0] sm:$0xff]
        %v672 = vld [vmem:[#allocation5 + $0xea8] sm:$0xff]
        %v673 = vld [vmem:[#allocation5 + $0xeb0] sm:$0xff]
        %v674 = vld [vmem:[#allocation5 + $0xeb8] sm:$0xff]
        %v675 = vld [vmem:[#allocation5 + $0xec0] sm:$0xff]
        %v676 = vld [vmem:[#allocation5 + $0xec8] sm:$0xff]
        %v677 = vld [vmem:[#allocation5 + $0xed0] sm:$0xff]
        %v678 = vld [vmem:[#allocation5 + $0xed8] sm:$0xff]
        %v679 = vld [vmem:[#allocation5 + $0xee0] sm:$0xff]
        %v680 = vld [vmem:[#allocation5 + $0xee8] sm:$0xff]
        %v681 = vld [vmem:[#allocation5 + $0xef0] sm:$0xff]
        %v682 = vld [vmem:[#allocation5 + $0xef8] sm:$0xff]
        %v683 = vld [vmem:[#allocation5 + $0xf00] sm:$0xff]
        %v684 = vld [vmem:[#allocation5 + $0xf08] sm:$0xff]
        %v685 = vld [vmem:[#allocation5 + $0xf10] sm:$0xff]
        %v686 = vld [vmem:[#allocation5 + $0xf18] sm:$0xff]
        %v687 = vld [vmem:[#allocation5 + $0xf20] sm:$0xff]
        %v688 = vld [vmem:[#allocation5 + $0xf28] sm:$0xff]
        %v689 = vld [vmem:[#allocation5 + $0xf30] sm:$0xff]
        %v690 = vld [vmem:[#allocation5 + $0xf38] sm:$0xff]
        %v691 = vld [vmem:[#allocation5 + $0xf40] sm:$0xff]
        %v692 = vld [vmem:[#allocation5 + $0xf48] sm:$0xff]
        %v693 = vld [vmem:[#allocation5 + $0xf50] sm:$0xff]
        %v694 = vld [vmem:[#allocation5 + $0xf58] sm:$0xff]
        %v695 = vld [vmem:[#allocation5 + $0xf60] sm:$0xff]
        %v696 = vld [vmem:[#allocation5 + $0xf68] sm:$0xff]
        %v697 = vld [vmem:[#allocation5 + $0xf70] sm:$0xff]
        %v698 = vld [vmem:[#allocation5 + $0xf78] sm:$0xff]
        %v699 = vld [vmem:[#allocation5 + $0xf80] sm:$0xff]
        %v700 = vld [vmem:[#allocation5 + $0xf88] sm:$0xff]
        %v701 = vld [vmem:[#allocation5 + $0xf90] sm:$0xff]
        %v702 = vld [vmem:[#allocation5 + $0xf98] sm:$0xff]
        %v703 = vld [vmem:[#allocation5 + $0xfa0] sm:$0xff]
        %v704 = vld [vmem:[#allocation5 + $0xfa8] sm:$0xff]
        %v705 = vld [vmem:[#allocation5 + $0xfb0] sm:$0xff]
        %v706 = vld [vmem:[#allocation5 + $0xfb8] sm:$0xff]
        %v707 = vld [vmem:[#allocation5 + $0xfc0] sm:$0xff]
        %v708 = vld [vmem:[#allocation5 + $0xfc8] sm:$0xff]
        %v709 = vld [vmem:[#allocation5 + $0xfd0] sm:$0xff]
        %v710 = vld [vmem:[#allocation5 + $0xfd8] sm:$0xff]
        %v711 = vld [vmem:[#allocation5 + $0xfe0] sm:$0xff]
        %v712 = vld [vmem:[#allocation5 + $0xfe8] sm:$0xff]
        %v713 = vld [vmem:[#allocation5 + $0xff0] sm:$0xff]
        %v714 = vld [vmem:[#allocation5 + $0xff8] sm:$0xff]
        %v739 = vunpack.c.l.b16 %v179
        %v740 = vunpack.c.h.b16 %v179
        %v741 = vunpack.c.l.b16 %v180
        %v742 = vunpack.c.h.b16 %v180
        %v743 = vunpack.c.l.b16 %v181
        %v744 = vunpack.c.h.b16 %v181
        %v745 = vunpack.c.l.b16 %v182
        %v746 = vunpack.c.h.b16 %v182
        %v747 = vunpack.c.l.b16 %v183
        %v748 = vunpack.c.h.b16 %v183
        %v749 = vunpack.c.l.b16 %v184
        %v750 = vunpack.c.h.b16 %v184
        %v751 = vunpack.c.l.b16 %v185
        %v752 = vunpack.c.h.b16 %v185
        %v753 = vunpack.c.l.b16 %v186
        %v754 = vunpack.c.h.b16 %v186
        %v755 = vunpack.c.l.b16 %v187
        %v756 = vunpack.c.h.b16 %v187
        %v757 = vunpack.c.l.b16 %v188
        %v758 = vunpack.c.h.b16 %v188
        %v759 = vunpack.c.l.b16 %v189
        %v760 = vunpack.c.h.b16 %v189
        %v761 = vunpack.c.l.b16 %v190
        %v762 = vunpack.c.h.b16 %v190
        %v763 = vunpack.c.l.b16 %v191
        %v764 = vunpack.c.h.b16 %v191
        %v765 = vunpack.c.l.b16 %v192
        %v766 = vunpack.c.h.b16 %v192
        %v767 = vunpack.c.l.b16 %v193
        %v768 = vunpack.c.h.b16 %v193
        %v769 = vunpack.c.l.b16 %v194
        %v770 = vunpack.c.h.b16 %v194
        %v771 = vunpack.c.l.b16 %v195
        %v772 = vunpack.c.h.b16 %v195
        %v773 = vunpack.c.l.b16 %v196
        %v774 = vunpack.c.h.b16 %v196
        %v775 = vunpack.c.l.b16 %v197
        %v776 = vunpack.c.h.b16 %v197
        %v777 = vunpack.c.l.b16 %v198
        %v778 = vunpack.c.h.b16 %v198
        %v779 = vunpack.c.l.b16 %v199
        %v780 = vunpack.c.h.b16 %v199
        %v781 = vunpack.c.l.b16 %v200
        %v782 = vunpack.c.h.b16 %v200
        %v783 = vunpack.c.l.b16 %v201
        %v784 = vunpack.c.h.b16 %v201
        %v785 = vunpack.c.l.b16 %v202
        %v786 = vunpack.c.h.b16 %v202
        %v787 = vpack.c.b16 %v747, %v739
        %v788 = vpack.c.b16 %v748, %v740
        %v789 = vpack.c.b16 %v749, %v741
        %v790 = vpack.c.b16 %v750, %v742
        %v791 = vpack.c.b16 %v751, %v743
        %v792 = vpack.c.b16 %v752, %v744
        %v793 = vpack.c.b16 %v753, %v745
        %v794 = vpack.c.b16 %v754, %v746
        %v795 = vpack.c.b16 %v763, %v755
        %v796 = vpack.c.b16 %v764, %v756
        %v797 = vpack.c.b16 %v765, %v757
        %v798 = vpack.c.b16 %v766, %v758
        %v799 = vpack.c.b16 %v767, %v759
        %v800 = vpack.c.b16 %v768, %v760
        %v801 = vpack.c.b16 %v769, %v761
        %v802 = vpack.c.b16 %v770, %v762
        %v803 = vpack.c.b16 %v779, %v771
        %v804 = vpack.c.b16 %v780, %v772
        %v805 = vpack.c.b16 %v781, %v773
        %v806 = vpack.c.b16 %v782, %v774
        %v807 = vpack.c.b16 %v783, %v775
        %v808 = vpack.c.b16 %v784, %v776
        %v809 = vpack.c.b16 %v785, %v777
        %v810 = vpack.c.b16 %v786, %v778
        %v1347 = vunpack.c.l.b16 %v203
        %v1348 = vunpack.c.h.b16 %v203
        %v1349 = vunpack.c.l.b16 %v204
        %v1350 = vunpack.c.h.b16 %v204
        %v1351 = vunpack.c.l.b16 %v205
        %v1352 = vunpack.c.h.b16 %v205
        %v1353 = vunpack.c.l.b16 %v206
        %v1354 = vunpack.c.h.b16 %v206
        %v1355 = vunpack.c.l.b16 %v207
        %v1356 = vunpack.c.h.b16 %v207
        %v1357 = vunpack.c.l.b16 %v208
        %v1358 = vunpack.c.h.b16 %v208
        %v1359 = vunpack.c.l.b16 %v209
        %v1360 = vunpack.c.h.b16 %v209
        %v1361 = vunpack.c.l.b16 %v210
        %v1362 = vunpack.c.h.b16 %v210
        %v1363 = vunpack.c.l.b16 %v211
        %v1364 = vunpack.c.h.b16 %v211
        %v1365 = vunpack.c.l.b16 %v212
        %v1366 = vunpack.c.h.b16 %v212
        %v1367 = vunpack.c.l.b16 %v213
        %v1368 = vunpack.c.h.b16 %v213
        %v1369 = vunpack.c.l.b16 %v214
        %v1370 = vunpack.c.h.b16 %v214
        %v1371 = vunpack.c.l.b16 %v215
        %v1372 = vunpack.c.h.b16 %v215
        %v1373 = vunpack.c.l.b16 %v216
        %v1374 = vunpack.c.h.b16 %v216
        %v1375 = vunpack.c.l.b16 %v217
        %v1376 = vunpack.c.h.b16 %v217
        %v1377 = vunpack.c.l.b16 %v218
        %v1378 = vunpack.c.h.b16 %v218
        %v1379 = vunpack.c.l.b16 %v219
        %v1380 = vunpack.c.h.b16 %v219
        %v1381 = vunpack.c.l.b16 %v220
        %v1382 = vunpack.c.h.b16 %v220
        %v1383 = vunpack.c.l.b16 %v221
        %v1384 = vunpack.c.h.b16 %v221
        %v1385 = vunpack.c.l.b16 %v222
        %v1386 = vunpack.c.h.b16 %v222
        %v1387 = vunpack.c.l.b16 %v223
        %v1388 = vunpack.c.h.b16 %v223
        %v1389 = vunpack.c.l.b16 %v224
        %v1390 = vunpack.c.h.b16 %v224
        %v1391 = vunpack.c.l.b16 %v225
        %v1392 = vunpack.c.h.b16 %v225
        %v1393 = vunpack.c.l.b16 %v226
        %v1394 = vunpack.c.h.b16 %v226
        %v1395 = vunpack.c.l.b16 %v227
        %v1396 = vunpack.c.h.b16 %v227
        %v1397 = vunpack.c.l.b16 %v228
        %v1398 = vunpack.c.h.b16 %v228
        %v1399 = vunpack.c.l.b16 %v229
        %v1400 = vunpack.c.h.b16 %v229
        %v1401 = vunpack.c.l.b16 %v230
        %v1402 = vunpack.c.h.b16 %v230
        %v1403 = vunpack.c.l.b16 %v231
        %v1404 = vunpack.c.h.b16 %v231
        %v1405 = vunpack.c.l.b16 %v232
        %v1406 = vunpack.c.h.b16 %v232
        %v1407 = vunpack.c.l.b16 %v233
        %v1408 = vunpack.c.h.b16 %v233
        %v1409 = vunpack.c.l.b16 %v234
        %v1410 = vunpack.c.h.b16 %v234
        %v1411 = vunpack.c.l.b16 %v235
        %v1412 = vunpack.c.h.b16 %v235
        %v1413 = vunpack.c.l.b16 %v236
        %v1414 = vunpack.c.h.b16 %v236
        %v1415 = vunpack.c.l.b16 %v237
        %v1416 = vunpack.c.h.b16 %v237
        %v1417 = vunpack.c.l.b16 %v238
        %v1418 = vunpack.c.h.b16 %v238
        %v1419 = vunpack.c.l.b16 %v239
        %v1420 = vunpack.c.h.b16 %v239
        %v1421 = vunpack.c.l.b16 %v240
        %v1422 = vunpack.c.h.b16 %v240
        %v1423 = vunpack.c.l.b16 %v241
        %v1424 = vunpack.c.h.b16 %v241
        %v1425 = vunpack.c.l.b16 %v242
        %v1426 = vunpack.c.h.b16 %v242
        %v1427 = vunpack.c.l.b16 %v243
        %v1428 = vunpack.c.h.b16 %v243
        %v1429 = vunpack.c.l.b16 %v244
        %v1430 = vunpack.c.h.b16 %v244
        %v1431 = vunpack.c.l.b16 %v245
        %v1432 = vunpack.c.h.b16 %v245
        %v1433 = vunpack.c.l.b16 %v246
        %v1434 = vunpack.c.h.b16 %v246
        %v1435 = vunpack.c.l.b16 %v247
        %v1436 = vunpack.c.h.b16 %v247
        %v1437 = vunpack.c.l.b16 %v248
        %v1438 = vunpack.c.h.b16 %v248
        %v1439 = vunpack.c.l.b16 %v249
        %v1440 = vunpack.c.h.b16 %v249
        %v1441 = vunpack.c.l.b16 %v250
        %v1442 = vunpack.c.h.b16 %v250
        %v1443 = vunpack.c.l.b16 %v251
        %v1444 = vunpack.c.h.b16 %v251
        %v1445 = vunpack.c.l.b16 %v252
        %v1446 = vunpack.c.h.b16 %v252
        %v1447 = vunpack.c.l.b16 %v253
        %v1448 = vunpack.c.h.b16 %v253
        %v1449 = vunpack.c.l.b16 %v254
        %v1450 = vunpack.c.h.b16 %v254
        %v1451 = vunpack.c.l.b16 %v255
        %v1452 = vunpack.c.h.b16 %v255
        %v1453 = vunpack.c.l.b16 %v256
        %v1454 = vunpack.c.h.b16 %v256
        %v1455 = vunpack.c.l.b16 %v257
        %v1456 = vunpack.c.h.b16 %v257
        %v1457 = vunpack.c.l.b16 %v258
        %v1458 = vunpack.c.h.b16 %v258
        %v1459 = vunpack.c.l.b16 %v259
        %v1460 = vunpack.c.h.b16 %v259
        %v1461 = vunpack.c.l.b16 %v260
        %v1462 = vunpack.c.h.b16 %v260
        %v1463 = vunpack.c.l.b16 %v261
        %v1464 = vunpack.c.h.b16 %v261
        %v1465 = vunpack.c.l.b16 %v262
        %v1466 = vunpack.c.h.b16 %v262
        %v1467 = vunpack.c.l.b16 %v263
        %v1468 = vunpack.c.h.b16 %v263
        %v1469 = vunpack.c.l.b16 %v264
        %v1470 = vunpack.c.h.b16 %v264
        %v1471 = vunpack.c.l.b16 %v265
        %v1472 = vunpack.c.h.b16 %v265
        %v1473 = vunpack.c.l.b16 %v266
        %v1474 = vunpack.c.h.b16 %v266
        %v1475 = vunpack.c.l.b16 %v267
        %v1476 = vunpack.c.h.b16 %v267
        %v1477 = vunpack.c.l.b16 %v268
        %v1478 = vunpack.c.h.b16 %v268
        %v1479 = vunpack.c.l.b16 %v269
        %v1480 = vunpack.c.h.b16 %v269
        %v1481 = vunpack.c.l.b16 %v270
        %v1482 = vunpack.c.h.b16 %v270
        %v1483 = vunpack.c.l.b16 %v271
        %v1484 = vunpack.c.h.b16 %v271
        %v1485 = vunpack.c.l.b16 %v272
        %v1486 = vunpack.c.h.b16 %v272
        %v1487 = vunpack.c.l.b16 %v273
        %v1488 = vunpack.c.h.b16 %v273
        %v1489 = vunpack.c.l.b16 %v274
        %v1490 = vunpack.c.h.b16 %v274
        %v1491 = vunpack.c.l.b16 %v275
        %v1492 = vunpack.c.h.b16 %v275
        %v1493 = vunpack.c.l.b16 %v276
        %v1494 = vunpack.c.h.b16 %v276
        %v1495 = vunpack.c.l.b16 %v277
        %v1496 = vunpack.c.h.b16 %v277
        %v1497 = vunpack.c.l.b16 %v278
        %v1498 = vunpack.c.h.b16 %v278
        %v1499 = vunpack.c.l.b16 %v279
        %v1500 = vunpack.c.h.b16 %v279
        %v1501 = vunpack.c.l.b16 %v280
        %v1502 = vunpack.c.h.b16 %v280
        %v1503 = vunpack.c.l.b16 %v281
        %v1504 = vunpack.c.h.b16 %v281
        %v1505 = vunpack.c.l.b16 %v282
        %v1506 = vunpack.c.h.b16 %v282
        %v1507 = vunpack.c.l.b16 %v283
        %v1508 = vunpack.c.h.b16 %v283
        %v1509 = vunpack.c.l.b16 %v284
        %v1510 = vunpack.c.h.b16 %v284
        %v1511 = vunpack.c.l.b16 %v285
        %v1512 = vunpack.c.h.b16 %v285
        %v1513 = vunpack.c.l.b16 %v286
        %v1514 = vunpack.c.h.b16 %v286
        %v1515 = vunpack.c.l.b16 %v287
        %v1516 = vunpack.c.h.b16 %v287
        %v1517 = vunpack.c.l.b16 %v288
        %v1518 = vunpack.c.h.b16 %v288
        %v1519 = vunpack.c.l.b16 %v289
        %v1520 = vunpack.c.h.b16 %v289
        %v1521 = vunpack.c.l.b16 %v290
        %v1522 = vunpack.c.h.b16 %v290
        %v1523 = vunpack.c.l.b16 %v291
        %v1524 = vunpack.c.h.b16 %v291
        %v1525 = vunpack.c.l.b16 %v292
        %v1526 = vunpack.c.h.b16 %v292
        %v1527 = vunpack.c.l.b16 %v293
        %v1528 = vunpack.c.h.b16 %v293
        %v1529 = vunpack.c.l.b16 %v294
        %v1530 = vunpack.c.h.b16 %v294
        %v1531 = vunpack.c.l.b16 %v295
        %v1532 = vunpack.c.h.b16 %v295
        %v1533 = vunpack.c.l.b16 %v296
        %v1534 = vunpack.c.h.b16 %v296
        %v1535 = vunpack.c.l.b16 %v297
        %v1536 = vunpack.c.h.b16 %v297
        %v1537 = vunpack.c.l.b16 %v298
        %v1538 = vunpack.c.h.b16 %v298
        %v1539 = vunpack.c.l.b16 %v299
        %v1540 = vunpack.c.h.b16 %v299
        %v1541 = vunpack.c.l.b16 %v300
        %v1542 = vunpack.c.h.b16 %v300
        %v1543 = vunpack.c.l.b16 %v301
        %v1544 = vunpack.c.h.b16 %v301
        %v1545 = vunpack.c.l.b16 %v302
        %v1546 = vunpack.c.h.b16 %v302
        %v1547 = vunpack.c.l.b16 %v303
        %v1548 = vunpack.c.h.b16 %v303
        %v1549 = vunpack.c.l.b16 %v304
        %v1550 = vunpack.c.h.b16 %v304
        %v1551 = vunpack.c.l.b16 %v305
        %v1552 = vunpack.c.h.b16 %v305
        %v1553 = vunpack.c.l.b16 %v306
        %v1554 = vunpack.c.h.b16 %v306
        %v1555 = vunpack.c.l.b16 %v307
        %v1556 = vunpack.c.h.b16 %v307
        %v1557 = vunpack.c.l.b16 %v308
        %v1558 = vunpack.c.h.b16 %v308
        %v1559 = vunpack.c.l.b16 %v309
        %v1560 = vunpack.c.h.b16 %v309
        %v1561 = vunpack.c.l.b16 %v310
        %v1562 = vunpack.c.h.b16 %v310
        %v1563 = vunpack.c.l.b16 %v311
        %v1564 = vunpack.c.h.b16 %v311
        %v1565 = vunpack.c.l.b16 %v312
        %v1566 = vunpack.c.h.b16 %v312
        %v1567 = vunpack.c.l.b16 %v313
        %v1568 = vunpack.c.h.b16 %v313
        %v1569 = vunpack.c.l.b16 %v314
        %v1570 = vunpack.c.h.b16 %v314
        %v1571 = vunpack.c.l.b16 %v315
        %v1572 = vunpack.c.h.b16 %v315
        %v1573 = vunpack.c.l.b16 %v316
        %v1574 = vunpack.c.h.b16 %v316
        %v1575 = vunpack.c.l.b16 %v317
        %v1576 = vunpack.c.h.b16 %v317
        %v1577 = vunpack.c.l.b16 %v318
        %v1578 = vunpack.c.h.b16 %v318
        %v1579 = vunpack.c.l.b16 %v319
        %v1580 = vunpack.c.h.b16 %v319
        %v1581 = vunpack.c.l.b16 %v320
        %v1582 = vunpack.c.h.b16 %v320
        %v1583 = vunpack.c.l.b16 %v321
        %v1584 = vunpack.c.h.b16 %v321
        %v1585 = vunpack.c.l.b16 %v322
        %v1586 = vunpack.c.h.b16 %v322
        %v1587 = vunpack.c.l.b16 %v323
        %v1588 = vunpack.c.h.b16 %v323
        %v1589 = vunpack.c.l.b16 %v324
        %v1590 = vunpack.c.h.b16 %v324
        %v1591 = vunpack.c.l.b16 %v325
        %v1592 = vunpack.c.h.b16 %v325
        %v1593 = vunpack.c.l.b16 %v326
        %v1594 = vunpack.c.h.b16 %v326
        %v1595 = vunpack.c.l.b16 %v327
        %v1596 = vunpack.c.h.b16 %v327
        %v1597 = vunpack.c.l.b16 %v328
        %v1598 = vunpack.c.h.b16 %v328
        %v1599 = vunpack.c.l.b16 %v329
        %v1600 = vunpack.c.h.b16 %v329
        %v1601 = vunpack.c.l.b16 %v330
        %v1602 = vunpack.c.h.b16 %v330
        %v1603 = vunpack.c.l.b16 %v331
        %v1604 = vunpack.c.h.b16 %v331
        %v1605 = vunpack.c.l.b16 %v332
        %v1606 = vunpack.c.h.b16 %v332
        %v1607 = vunpack.c.l.b16 %v333
        %v1608 = vunpack.c.h.b16 %v333
        %v1609 = vunpack.c.l.b16 %v334
        %v1610 = vunpack.c.h.b16 %v334
        %v1611 = vunpack.c.l.b16 %v335
        %v1612 = vunpack.c.h.b16 %v335
        %v1613 = vunpack.c.l.b16 %v336
        %v1614 = vunpack.c.h.b16 %v336
        %v1615 = vunpack.c.l.b16 %v337
        %v1616 = vunpack.c.h.b16 %v337
        %v1617 = vunpack.c.l.b16 %v338
        %v1618 = vunpack.c.h.b16 %v338
        %v1619 = vunpack.c.l.b16 %v339
        %v1620 = vunpack.c.h.b16 %v339
        %v1621 = vunpack.c.l.b16 %v340
        %v1622 = vunpack.c.h.b16 %v340
        %v1623 = vunpack.c.l.b16 %v341
        %v1624 = vunpack.c.h.b16 %v341
        %v1625 = vunpack.c.l.b16 %v342
        %v1626 = vunpack.c.h.b16 %v342
        %v1627 = vunpack.c.l.b16 %v343
        %v1628 = vunpack.c.h.b16 %v343
        %v1629 = vunpack.c.l.b16 %v344
        %v1630 = vunpack.c.h.b16 %v344
        %v1631 = vunpack.c.l.b16 %v345
        %v1632 = vunpack.c.h.b16 %v345
        %v1633 = vunpack.c.l.b16 %v346
        %v1634 = vunpack.c.h.b16 %v346
        %v1635 = vunpack.c.l.b16 %v347
        %v1636 = vunpack.c.h.b16 %v347
        %v1637 = vunpack.c.l.b16 %v348
        %v1638 = vunpack.c.h.b16 %v348
        %v1639 = vunpack.c.l.b16 %v349
        %v1640 = vunpack.c.h.b16 %v349
        %v1641 = vunpack.c.l.b16 %v350
        %v1642 = vunpack.c.h.b16 %v350
        %v1643 = vunpack.c.l.b16 %v351
        %v1644 = vunpack.c.h.b16 %v351
        %v1645 = vunpack.c.l.b16 %v352
        %v1646 = vunpack.c.h.b16 %v352
        %v1647 = vunpack.c.l.b16 %v353
        %v1648 = vunpack.c.h.b16 %v353
        %v1649 = vunpack.c.l.b16 %v354
        %v1650 = vunpack.c.h.b16 %v354
        %v1651 = vunpack.c.l.b16 %v355
        %v1652 = vunpack.c.h.b16 %v355
        %v1653 = vunpack.c.l.b16 %v356
        %v1654 = vunpack.c.h.b16 %v356
        %v1655 = vunpack.c.l.b16 %v357
        %v1656 = vunpack.c.h.b16 %v357
        %v1657 = vunpack.c.l.b16 %v358
        %v1658 = vunpack.c.h.b16 %v358
        %v1659 = vunpack.c.l.b16 %v359
        %v1660 = vunpack.c.h.b16 %v359
        %v1661 = vunpack.c.l.b16 %v360
        %v1662 = vunpack.c.h.b16 %v360
        %v1663 = vunpack.c.l.b16 %v361
        %v1664 = vunpack.c.h.b16 %v361
        %v1665 = vunpack.c.l.b16 %v362
        %v1666 = vunpack.c.h.b16 %v362
        %v1667 = vunpack.c.l.b16 %v363
        %v1668 = vunpack.c.h.b16 %v363
        %v1669 = vunpack.c.l.b16 %v364
        %v1670 = vunpack.c.h.b16 %v364
        %v1671 = vunpack.c.l.b16 %v365
        %v1672 = vunpack.c.h.b16 %v365
        %v1673 = vunpack.c.l.b16 %v366
        %v1674 = vunpack.c.h.b16 %v366
        %v1675 = vunpack.c.l.b16 %v367
        %v1676 = vunpack.c.h.b16 %v367
        %v1677 = vunpack.c.l.b16 %v368
        %v1678 = vunpack.c.h.b16 %v368
        %v1679 = vunpack.c.l.b16 %v369
        %v1680 = vunpack.c.h.b16 %v369
        %v1681 = vunpack.c.l.b16 %v370
        %v1682 = vunpack.c.h.b16 %v370
        %v1683 = vunpack.c.l.b16 %v371
        %v1684 = vunpack.c.h.b16 %v371
        %v1685 = vunpack.c.l.b16 %v372
        %v1686 = vunpack.c.h.b16 %v372
        %v1687 = vunpack.c.l.b16 %v373
        %v1688 = vunpack.c.h.b16 %v373
        %v1689 = vunpack.c.l.b16 %v374
        %v1690 = vunpack.c.h.b16 %v374
        %v1691 = vunpack.c.l.b16 %v375
        %v1692 = vunpack.c.h.b16 %v375
        %v1693 = vunpack.c.l.b16 %v376
        %v1694 = vunpack.c.h.b16 %v376
        %v1695 = vunpack.c.l.b16 %v377
        %v1696 = vunpack.c.h.b16 %v377
        %v1697 = vunpack.c.l.b16 %v378
        %v1698 = vunpack.c.h.b16 %v378
        %v1699 = vunpack.c.l.b16 %v379
        %v1700 = vunpack.c.h.b16 %v379
        %v1701 = vunpack.c.l.b16 %v380
        %v1702 = vunpack.c.h.b16 %v380
        %v1703 = vunpack.c.l.b16 %v381
        %v1704 = vunpack.c.h.b16 %v381
        %v1705 = vunpack.c.l.b16 %v382
        %v1706 = vunpack.c.h.b16 %v382
        %v1707 = vunpack.c.l.b16 %v383
        %v1708 = vunpack.c.h.b16 %v383
        %v1709 = vunpack.c.l.b16 %v384
        %v1710 = vunpack.c.h.b16 %v384
        %v1711 = vunpack.c.l.b16 %v385
        %v1712 = vunpack.c.h.b16 %v385
        %v1713 = vunpack.c.l.b16 %v386
        %v1714 = vunpack.c.h.b16 %v386
        %v1715 = vunpack.c.l.b16 %v387
        %v1716 = vunpack.c.h.b16 %v387
        %v1717 = vunpack.c.l.b16 %v388
        %v1718 = vunpack.c.h.b16 %v388
        %v1719 = vunpack.c.l.b16 %v389
        %v1720 = vunpack.c.h.b16 %v389
        %v1721 = vunpack.c.l.b16 %v390
        %v1722 = vunpack.c.h.b16 %v390
        %v1723 = vunpack.c.l.b16 %v391
        %v1724 = vunpack.c.h.b16 %v391
        %v1725 = vunpack.c.l.b16 %v392
        %v1726 = vunpack.c.h.b16 %v392
        %v1727 = vunpack.c.l.b16 %v393
        %v1728 = vunpack.c.h.b16 %v393
        %v1729 = vunpack.c.l.b16 %v394
        %v1730 = vunpack.c.h.b16 %v394
        %v1731 = vunpack.c.l.b16 %v395
        %v1732 = vunpack.c.h.b16 %v395
        %v1733 = vunpack.c.l.b16 %v396
        %v1734 = vunpack.c.h.b16 %v396
        %v1735 = vunpack.c.l.b16 %v397
        %v1736 = vunpack.c.h.b16 %v397
        %v1737 = vunpack.c.l.b16 %v398
        %v1738 = vunpack.c.h.b16 %v398
        %v1739 = vunpack.c.l.b16 %v399
        %v1740 = vunpack.c.h.b16 %v399
        %v1741 = vunpack.c.l.b16 %v400
        %v1742 = vunpack.c.h.b16 %v400
        %v1743 = vunpack.c.l.b16 %v401
        %v1744 = vunpack.c.h.b16 %v401
        %v1745 = vunpack.c.l.b16 %v402
        %v1746 = vunpack.c.h.b16 %v402
        %v1747 = vunpack.c.l.b16 %v403
        %v1748 = vunpack.c.h.b16 %v403
        %v1749 = vunpack.c.l.b16 %v404
        %v1750 = vunpack.c.h.b16 %v404
        %v1751 = vunpack.c.l.b16 %v405
        %v1752 = vunpack.c.h.b16 %v405
        %v1753 = vunpack.c.l.b16 %v406
        %v1754 = vunpack.c.h.b16 %v406
        %v1755 = vunpack.c.l.b16 %v407
        %v1756 = vunpack.c.h.b16 %v407
        %v1757 = vunpack.c.l.b16 %v408
        %v1758 = vunpack.c.h.b16 %v408
        %v1759 = vunpack.c.l.b16 %v409
        %v1760 = vunpack.c.h.b16 %v409
        %v1761 = vunpack.c.l.b16 %v410
        %v1762 = vunpack.c.h.b16 %v410
        %v1763 = vunpack.c.l.b16 %v411
        %v1764 = vunpack.c.h.b16 %v411
        %v1765 = vunpack.c.l.b16 %v412
        %v1766 = vunpack.c.h.b16 %v412
        %v1767 = vunpack.c.l.b16 %v413
        %v1768 = vunpack.c.h.b16 %v413
        %v1769 = vunpack.c.l.b16 %v414
        %v1770 = vunpack.c.h.b16 %v414
        %v1771 = vunpack.c.l.b16 %v415
        %v1772 = vunpack.c.h.b16 %v415
        %v1773 = vunpack.c.l.b16 %v416
        %v1774 = vunpack.c.h.b16 %v416
        %v1775 = vunpack.c.l.b16 %v417
        %v1776 = vunpack.c.h.b16 %v417
        %v1777 = vunpack.c.l.b16 %v418
        %v1778 = vunpack.c.h.b16 %v418
        %v1779 = vunpack.c.l.b16 %v419
        %v1780 = vunpack.c.h.b16 %v419
        %v1781 = vunpack.c.l.b16 %v420
        %v1782 = vunpack.c.h.b16 %v420
        %v1783 = vunpack.c.l.b16 %v421
        %v1784 = vunpack.c.h.b16 %v421
        %v1785 = vunpack.c.l.b16 %v422
        %v1786 = vunpack.c.h.b16 %v422
        %v1787 = vunpack.c.l.b16 %v423
        %v1788 = vunpack.c.h.b16 %v423
        %v1789 = vunpack.c.l.b16 %v424
        %v1790 = vunpack.c.h.b16 %v424
        %v1791 = vunpack.c.l.b16 %v425
        %v1792 = vunpack.c.h.b16 %v425
        %v1793 = vunpack.c.l.b16 %v426
        %v1794 = vunpack.c.h.b16 %v426
        %v1795 = vunpack.c.l.b16 %v427
        %v1796 = vunpack.c.h.b16 %v427
        %v1797 = vunpack.c.l.b16 %v428
        %v1798 = vunpack.c.h.b16 %v428
        %v1799 = vunpack.c.l.b16 %v429
        %v1800 = vunpack.c.h.b16 %v429
        %v1801 = vunpack.c.l.b16 %v430
        %v1802 = vunpack.c.h.b16 %v430
        %v1803 = vunpack.c.l.b16 %v431
        %v1804 = vunpack.c.h.b16 %v431
        %v1805 = vunpack.c.l.b16 %v432
        %v1806 = vunpack.c.h.b16 %v432
        %v1807 = vunpack.c.l.b16 %v433
        %v1808 = vunpack.c.h.b16 %v433
        %v1809 = vunpack.c.l.b16 %v434
        %v1810 = vunpack.c.h.b16 %v434
        %v1811 = vunpack.c.l.b16 %v435
        %v1812 = vunpack.c.h.b16 %v435
        %v1813 = vunpack.c.l.b16 %v436
        %v1814 = vunpack.c.h.b16 %v436
        %v1815 = vunpack.c.l.b16 %v437
        %v1816 = vunpack.c.h.b16 %v437
        %v1817 = vunpack.c.l.b16 %v438
        %v1818 = vunpack.c.h.b16 %v438
        %v1819 = vunpack.c.l.b16 %v439
        %v1820 = vunpack.c.h.b16 %v439
        %v1821 = vunpack.c.l.b16 %v440
        %v1822 = vunpack.c.h.b16 %v440
        %v1823 = vunpack.c.l.b16 %v441
        %v1824 = vunpack.c.h.b16 %v441
        %v1825 = vunpack.c.l.b16 %v442
        %v1826 = vunpack.c.h.b16 %v442
        %v1827 = vunpack.c.l.b16 %v443
        %v1828 = vunpack.c.h.b16 %v443
        %v1829 = vunpack.c.l.b16 %v444
        %v1830 = vunpack.c.h.b16 %v444
        %v1831 = vunpack.c.l.b16 %v445
        %v1832 = vunpack.c.h.b16 %v445
        %v1833 = vunpack.c.l.b16 %v446
        %v1834 = vunpack.c.h.b16 %v446
        %v1835 = vunpack.c.l.b16 %v447
        %v1836 = vunpack.c.h.b16 %v447
        %v1837 = vunpack.c.l.b16 %v448
        %v1838 = vunpack.c.h.b16 %v448
        %v1839 = vunpack.c.l.b16 %v449
        %v1840 = vunpack.c.h.b16 %v449
        %v1841 = vunpack.c.l.b16 %v450
        %v1842 = vunpack.c.h.b16 %v450
        %v1843 = vunpack.c.l.b16 %v451
        %v1844 = vunpack.c.h.b16 %v451
        %v1845 = vunpack.c.l.b16 %v452
        %v1846 = vunpack.c.h.b16 %v452
        %v1847 = vunpack.c.l.b16 %v453
        %v1848 = vunpack.c.h.b16 %v453
        %v1849 = vunpack.c.l.b16 %v454
        %v1850 = vunpack.c.h.b16 %v454
        %v1851 = vunpack.c.l.b16 %v455
        %v1852 = vunpack.c.h.b16 %v455
        %v1853 = vunpack.c.l.b16 %v456
        %v1854 = vunpack.c.h.b16 %v456
        %v1855 = vunpack.c.l.b16 %v457
        %v1856 = vunpack.c.h.b16 %v457
        %v1857 = vunpack.c.l.b16 %v458
        %v1858 = vunpack.c.h.b16 %v458
        %v1859 = vunpack.c.l.b16 %v459
        %v1860 = vunpack.c.h.b16 %v459
        %v1861 = vunpack.c.l.b16 %v460
        %v1862 = vunpack.c.h.b16 %v460
        %v1863 = vunpack.c.l.b16 %v461
        %v1864 = vunpack.c.h.b16 %v461
        %v1865 = vunpack.c.l.b16 %v462
        %v1866 = vunpack.c.h.b16 %v462
        %v1867 = vunpack.c.l.b16 %v463
        %v1868 = vunpack.c.h.b16 %v463
        %v1869 = vunpack.c.l.b16 %v464
        %v1870 = vunpack.c.h.b16 %v464
        %v1871 = vunpack.c.l.b16 %v465
        %v1872 = vunpack.c.h.b16 %v465
        %v1873 = vunpack.c.l.b16 %v466
        %v1874 = vunpack.c.h.b16 %v466
        %v1875 = vunpack.c.l.b16 %v467
        %v1876 = vunpack.c.h.b16 %v467
        %v1877 = vunpack.c.l.b16 %v468
        %v1878 = vunpack.c.h.b16 %v468
        %v1879 = vunpack.c.l.b16 %v469
        %v1880 = vunpack.c.h.b16 %v469
        %v1881 = vunpack.c.l.b16 %v470
        %v1882 = vunpack.c.h.b16 %v470
        %v1883 = vunpack.c.l.b16 %v471
        %v1884 = vunpack.c.h.b16 %v471
        %v1885 = vunpack.c.l.b16 %v472
        %v1886 = vunpack.c.h.b16 %v472
        %v1887 = vunpack.c.l.b16 %v473
        %v1888 = vunpack.c.h.b16 %v473
        %v1889 = vunpack.c.l.b16 %v474
        %v1890 = vunpack.c.h.b16 %v474
        %v1891 = vunpack.c.l.b16 %v475
        %v1892 = vunpack.c.h.b16 %v475
        %v1893 = vunpack.c.l.b16 %v476
        %v1894 = vunpack.c.h.b16 %v476
        %v1895 = vunpack.c.l.b16 %v477
        %v1896 = vunpack.c.h.b16 %v477
        %v1897 = vunpack.c.l.b16 %v478
        %v1898 = vunpack.c.h.b16 %v478
        %v1899 = vunpack.c.l.b16 %v479
        %v1900 = vunpack.c.h.b16 %v479
        %v1901 = vunpack.c.l.b16 %v480
        %v1902 = vunpack.c.h.b16 %v480
        %v1903 = vunpack.c.l.b16 %v481
        %v1904 = vunpack.c.h.b16 %v481
        %v1905 = vunpack.c.l.b16 %v482
        %v1906 = vunpack.c.h.b16 %v482
        %v1907 = vunpack.c.l.b16 %v483
        %v1908 = vunpack.c.h.b16 %v483
        %v1909 = vunpack.c.l.b16 %v484
        %v1910 = vunpack.c.h.b16 %v484
        %v1911 = vunpack.c.l.b16 %v485
        %v1912 = vunpack.c.h.b16 %v485
        %v1913 = vunpack.c.l.b16 %v486
        %v1914 = vunpack.c.h.b16 %v486
        %v1915 = vunpack.c.l.b16 %v487
        %v1916 = vunpack.c.h.b16 %v487
        %v1917 = vunpack.c.l.b16 %v488
        %v1918 = vunpack.c.h.b16 %v488
        %v1919 = vunpack.c.l.b16 %v489
        %v1920 = vunpack.c.h.b16 %v489
        %v1921 = vunpack.c.l.b16 %v490
        %v1922 = vunpack.c.h.b16 %v490
        %v1923 = vunpack.c.l.b16 %v491
        %v1924 = vunpack.c.h.b16 %v491
        %v1925 = vunpack.c.l.b16 %v492
        %v1926 = vunpack.c.h.b16 %v492
        %v1927 = vunpack.c.l.b16 %v493
        %v1928 = vunpack.c.h.b16 %v493
        %v1929 = vunpack.c.l.b16 %v494
        %v1930 = vunpack.c.h.b16 %v494
        %v1931 = vunpack.c.l.b16 %v495
        %v1932 = vunpack.c.h.b16 %v495
        %v1933 = vunpack.c.l.b16 %v496
        %v1934 = vunpack.c.h.b16 %v496
        %v1935 = vunpack.c.l.b16 %v497
        %v1936 = vunpack.c.h.b16 %v497
        %v1937 = vunpack.c.l.b16 %v498
        %v1938 = vunpack.c.h.b16 %v498
        %v1939 = vunpack.c.l.b16 %v499
        %v1940 = vunpack.c.h.b16 %v499
        %v1941 = vunpack.c.l.b16 %v500
        %v1942 = vunpack.c.h.b16 %v500
        %v1943 = vunpack.c.l.b16 %v501
        %v1944 = vunpack.c.h.b16 %v501
        %v1945 = vunpack.c.l.b16 %v502
        %v1946 = vunpack.c.h.b16 %v502
        %v1947 = vunpack.c.l.b16 %v503
        %v1948 = vunpack.c.h.b16 %v503
        %v1949 = vunpack.c.l.b16 %v504
        %v1950 = vunpack.c.h.b16 %v504
        %v1951 = vunpack.c.l.b16 %v505
        %v1952 = vunpack.c.h.b16 %v505
        %v1953 = vunpack.c.l.b16 %v506
        %v1954 = vunpack.c.h.b16 %v506
        %v1955 = vunpack.c.l.b16 %v507
        %v1956 = vunpack.c.h.b16 %v507
        %v1957 = vunpack.c.l.b16 %v508
        %v1958 = vunpack.c.h.b16 %v508
        %v1959 = vunpack.c.l.b16 %v509
        %v1960 = vunpack.c.h.b16 %v509
        %v1961 = vunpack.c.l.b16 %v510
        %v1962 = vunpack.c.h.b16 %v510
        %v1963 = vunpack.c.l.b16 %v511
        %v1964 = vunpack.c.h.b16 %v511
        %v1965 = vunpack.c.l.b16 %v512
        %v1966 = vunpack.c.h.b16 %v512
        %v1967 = vunpack.c.l.b16 %v513
        %v1968 = vunpack.c.h.b16 %v513
        %v1969 = vunpack.c.l.b16 %v514
        %v1970 = vunpack.c.h.b16 %v514
        %v1971 = vunpack.c.l.b16 %v515
        %v1972 = vunpack.c.h.b16 %v515
        %v1973 = vunpack.c.l.b16 %v516
        %v1974 = vunpack.c.h.b16 %v516
        %v1975 = vunpack.c.l.b16 %v517
        %v1976 = vunpack.c.h.b16 %v517
        %v1977 = vunpack.c.l.b16 %v518
        %v1978 = vunpack.c.h.b16 %v518
        %v1979 = vunpack.c.l.b16 %v519
        %v1980 = vunpack.c.h.b16 %v519
        %v1981 = vunpack.c.l.b16 %v520
        %v1982 = vunpack.c.h.b16 %v520
        %v1983 = vunpack.c.l.b16 %v521
        %v1984 = vunpack.c.h.b16 %v521
        %v1985 = vunpack.c.l.b16 %v522
        %v1986 = vunpack.c.h.b16 %v522
        %v1987 = vunpack.c.l.b16 %v523
        %v1988 = vunpack.c.h.b16 %v523
        %v1989 = vunpack.c.l.b16 %v524
        %v1990 = vunpack.c.h.b16 %v524
        %v1991 = vunpack.c.l.b16 %v525
        %v1992 = vunpack.c.h.b16 %v525
        %v1993 = vunpack.c.l.b16 %v526
        %v1994 = vunpack.c.h.b16 %v526
        %v1995 = vunpack.c.l.b16 %v527
        %v1996 = vunpack.c.h.b16 %v527
        %v1997 = vunpack.c.l.b16 %v528
        %v1998 = vunpack.c.h.b16 %v528
        %v1999 = vunpack.c.l.b16 %v529
        %v2000 = vunpack.c.h.b16 %v529
        %v2001 = vunpack.c.l.b16 %v530
        %v2002 = vunpack.c.h.b16 %v530
        %v2003 = vunpack.c.l.b16 %v531
        %v2004 = vunpack.c.h.b16 %v531
        %v2005 = vunpack.c.l.b16 %v532
        %v2006 = vunpack.c.h.b16 %v532
        %v2007 = vunpack.c.l.b16 %v533
        %v2008 = vunpack.c.h.b16 %v533
        %v2009 = vunpack.c.l.b16 %v534
        %v2010 = vunpack.c.h.b16 %v534
        %v2011 = vunpack.c.l.b16 %v535
        %v2012 = vunpack.c.h.b16 %v535
        %v2013 = vunpack.c.l.b16 %v536
        %v2014 = vunpack.c.h.b16 %v536
        %v2015 = vunpack.c.l.b16 %v537
        %v2016 = vunpack.c.h.b16 %v537
        %v2017 = vunpack.c.l.b16 %v538
        %v2018 = vunpack.c.h.b16 %v538
        %v2019 = vunpack.c.l.b16 %v539
        %v2020 = vunpack.c.h.b16 %v539
        %v2021 = vunpack.c.l.b16 %v540
        %v2022 = vunpack.c.h.b16 %v540
        %v2023 = vunpack.c.l.b16 %v541
        %v2024 = vunpack.c.h.b16 %v541
        %v2025 = vunpack.c.l.b16 %v542
        %v2026 = vunpack.c.h.b16 %v542
        %v2027 = vunpack.c.l.b16 %v543
        %v2028 = vunpack.c.h.b16 %v543
        %v2029 = vunpack.c.l.b16 %v544
        %v2030 = vunpack.c.h.b16 %v544
        %v2031 = vunpack.c.l.b16 %v545
        %v2032 = vunpack.c.h.b16 %v545
        %v2033 = vunpack.c.l.b16 %v546
        %v2034 = vunpack.c.h.b16 %v546
        %v2035 = vunpack.c.l.b16 %v547
        %v2036 = vunpack.c.h.b16 %v547
        %v2037 = vunpack.c.l.b16 %v548
        %v2038 = vunpack.c.h.b16 %v548
        %v2039 = vunpack.c.l.b16 %v549
        %v2040 = vunpack.c.h.b16 %v549
        %v2041 = vunpack.c.l.b16 %v550
        %v2042 = vunpack.c.h.b16 %v550
        %v2043 = vunpack.c.l.b16 %v551
        %v2044 = vunpack.c.h.b16 %v551
        %v2045 = vunpack.c.l.b16 %v552
        %v2046 = vunpack.c.h.b16 %v552
        %v2047 = vunpack.c.l.b16 %v553
        %v2048 = vunpack.c.h.b16 %v553
        %v2049 = vunpack.c.l.b16 %v554
        %v2050 = vunpack.c.h.b16 %v554
        %v2051 = vunpack.c.l.b16 %v555
        %v2052 = vunpack.c.h.b16 %v555
        %v2053 = vunpack.c.l.b16 %v556
        %v2054 = vunpack.c.h.b16 %v556
        %v2055 = vunpack.c.l.b16 %v557
        %v2056 = vunpack.c.h.b16 %v557
        %v2057 = vunpack.c.l.b16 %v558
        %v2058 = vunpack.c.h.b16 %v558
        %v2059 = vunpack.c.l.b16 %v559
        %v2060 = vunpack.c.h.b16 %v559
        %v2061 = vunpack.c.l.b16 %v560
        %v2062 = vunpack.c.h.b16 %v560
        %v2063 = vunpack.c.l.b16 %v561
        %v2064 = vunpack.c.h.b16 %v561
        %v2065 = vunpack.c.l.b16 %v562
        %v2066 = vunpack.c.h.b16 %v562
        %v2067 = vunpack.c.l.b16 %v563
        %v2068 = vunpack.c.h.b16 %v563
        %v2069 = vunpack.c.l.b16 %v564
        %v2070 = vunpack.c.h.b16 %v564
        %v2071 = vunpack.c.l.b16 %v565
        %v2072 = vunpack.c.h.b16 %v565
        %v2073 = vunpack.c.l.b16 %v566
        %v2074 = vunpack.c.h.b16 %v566
        %v2075 = vunpack.c.l.b16 %v567
        %v2076 = vunpack.c.h.b16 %v567
        %v2077 = vunpack.c.l.b16 %v568
        %v2078 = vunpack.c.h.b16 %v568
        %v2079 = vunpack.c.l.b16 %v569
        %v2080 = vunpack.c.h.b16 %v569
        %v2081 = vunpack.c.l.b16 %v570
        %v2082 = vunpack.c.h.b16 %v570
        %v2083 = vunpack.c.l.b16 %v571
        %v2084 = vunpack.c.h.b16 %v571
        %v2085 = vunpack.c.l.b16 %v572
        %v2086 = vunpack.c.h.b16 %v572
        %v2087 = vunpack.c.l.b16 %v573
        %v2088 = vunpack.c.h.b16 %v573
        %v2089 = vunpack.c.l.b16 %v574
        %v2090 = vunpack.c.h.b16 %v574
        %v2091 = vunpack.c.l.b16 %v575
        %v2092 = vunpack.c.h.b16 %v575
        %v2093 = vunpack.c.l.b16 %v576
        %v2094 = vunpack.c.h.b16 %v576
        %v2095 = vunpack.c.l.b16 %v577
        %v2096 = vunpack.c.h.b16 %v577
        %v2097 = vunpack.c.l.b16 %v578
        %v2098 = vunpack.c.h.b16 %v578
        %v2099 = vunpack.c.l.b16 %v579
        %v2100 = vunpack.c.h.b16 %v579
        %v2101 = vunpack.c.l.b16 %v580
        %v2102 = vunpack.c.h.b16 %v580
        %v2103 = vunpack.c.l.b16 %v581
        %v2104 = vunpack.c.h.b16 %v581
        %v2105 = vunpack.c.l.b16 %v582
        %v2106 = vunpack.c.h.b16 %v582
        %v2107 = vunpack.c.l.b16 %v583
        %v2108 = vunpack.c.h.b16 %v583
        %v2109 = vunpack.c.l.b16 %v584
        %v2110 = vunpack.c.h.b16 %v584
        %v2111 = vunpack.c.l.b16 %v585
        %v2112 = vunpack.c.h.b16 %v585
        %v2113 = vunpack.c.l.b16 %v586
        %v2114 = vunpack.c.h.b16 %v586
        %v2115 = vunpack.c.l.b16 %v587
        %v2116 = vunpack.c.h.b16 %v587
        %v2117 = vunpack.c.l.b16 %v588
        %v2118 = vunpack.c.h.b16 %v588
        %v2119 = vunpack.c.l.b16 %v589
        %v2120 = vunpack.c.h.b16 %v589
        %v2121 = vunpack.c.l.b16 %v590
        %v2122 = vunpack.c.h.b16 %v590
        %v2123 = vunpack.c.l.b16 %v591
        %v2124 = vunpack.c.h.b16 %v591
        %v2125 = vunpack.c.l.b16 %v592
        %v2126 = vunpack.c.h.b16 %v592
        %v2127 = vunpack.c.l.b16 %v593
        %v2128 = vunpack.c.h.b16 %v593
        %v2129 = vunpack.c.l.b16 %v594
        %v2130 = vunpack.c.h.b16 %v594
        %v2131 = vunpack.c.l.b16 %v595
        %v2132 = vunpack.c.h.b16 %v595
        %v2133 = vunpack.c.l.b16 %v596
        %v2134 = vunpack.c.h.b16 %v596
        %v2135 = vunpack.c.l.b16 %v597
        %v2136 = vunpack.c.h.b16 %v597
        %v2137 = vunpack.c.l.b16 %v598
        %v2138 = vunpack.c.h.b16 %v598
        %v2139 = vunpack.c.l.b16 %v599
        %v2140 = vunpack.c.h.b16 %v599
        %v2141 = vunpack.c.l.b16 %v600
        %v2142 = vunpack.c.h.b16 %v600
        %v2143 = vunpack.c.l.b16 %v601
        %v2144 = vunpack.c.h.b16 %v601
        %v2145 = vunpack.c.l.b16 %v602
        %v2146 = vunpack.c.h.b16 %v602
        %v2147 = vunpack.c.l.b16 %v603
        %v2148 = vunpack.c.h.b16 %v603
        %v2149 = vunpack.c.l.b16 %v604
        %v2150 = vunpack.c.h.b16 %v604
        %v2151 = vunpack.c.l.b16 %v605
        %v2152 = vunpack.c.h.b16 %v605
        %v2153 = vunpack.c.l.b16 %v606
        %v2154 = vunpack.c.h.b16 %v606
        %v2155 = vunpack.c.l.b16 %v607
        %v2156 = vunpack.c.h.b16 %v607
        %v2157 = vunpack.c.l.b16 %v608
        %v2158 = vunpack.c.h.b16 %v608
        %v2159 = vunpack.c.l.b16 %v609
        %v2160 = vunpack.c.h.b16 %v609
        %v2161 = vunpack.c.l.b16 %v610
        %v2162 = vunpack.c.h.b16 %v610
        %v2163 = vunpack.c.l.b16 %v611
        %v2164 = vunpack.c.h.b16 %v611
        %v2165 = vunpack.c.l.b16 %v612
        %v2166 = vunpack.c.h.b16 %v612
        %v2167 = vunpack.c.l.b16 %v613
        %v2168 = vunpack.c.h.b16 %v613
        %v2169 = vunpack.c.l.b16 %v614
        %v2170 = vunpack.c.h.b16 %v614
        %v2171 = vunpack.c.l.b16 %v615
        %v2172 = vunpack.c.h.b16 %v615
        %v2173 = vunpack.c.l.b16 %v616
        %v2174 = vunpack.c.h.b16 %v616
        %v2175 = vunpack.c.l.b16 %v617
        %v2176 = vunpack.c.h.b16 %v617
        %v2177 = vunpack.c.l.b16 %v618
        %v2178 = vunpack.c.h.b16 %v618
        %v2179 = vunpack.c.l.b16 %v619
        %v2180 = vunpack.c.h.b16 %v619
        %v2181 = vunpack.c.l.b16 %v620
        %v2182 = vunpack.c.h.b16 %v620
        %v2183 = vunpack.c.l.b16 %v621
        %v2184 = vunpack.c.h.b16 %v621
        %v2185 = vunpack.c.l.b16 %v622
        %v2186 = vunpack.c.h.b16 %v622
        %v2187 = vunpack.c.l.b16 %v623
        %v2188 = vunpack.c.h.b16 %v623
        %v2189 = vunpack.c.l.b16 %v624
        %v2190 = vunpack.c.h.b16 %v624
        %v2191 = vunpack.c.l.b16 %v625
        %v2192 = vunpack.c.h.b16 %v625
        %v2193 = vunpack.c.l.b16 %v626
        %v2194 = vunpack.c.h.b16 %v626
        %v2195 = vunpack.c.l.b16 %v627
        %v2196 = vunpack.c.h.b16 %v627
        %v2197 = vunpack.c.l.b16 %v628
        %v2198 = vunpack.c.h.b16 %v628
        %v2199 = vunpack.c.l.b16 %v629
        %v2200 = vunpack.c.h.b16 %v629
        %v2201 = vunpack.c.l.b16 %v630
        %v2202 = vunpack.c.h.b16 %v630
        %v2203 = vunpack.c.l.b16 %v631
        %v2204 = vunpack.c.h.b16 %v631
        %v2205 = vunpack.c.l.b16 %v632
        %v2206 = vunpack.c.h.b16 %v632
        %v2207 = vunpack.c.l.b16 %v633
        %v2208 = vunpack.c.h.b16 %v633
        %v2209 = vunpack.c.l.b16 %v634
        %v2210 = vunpack.c.h.b16 %v634
        %v2211 = vunpack.c.l.b16 %v635
        %v2212 = vunpack.c.h.b16 %v635
        %v2213 = vunpack.c.l.b16 %v636
        %v2214 = vunpack.c.h.b16 %v636
        %v2215 = vunpack.c.l.b16 %v637
        %v2216 = vunpack.c.h.b16 %v637
        %v2217 = vunpack.c.l.b16 %v638
        %v2218 = vunpack.c.h.b16 %v638
        %v2219 = vunpack.c.l.b16 %v639
        %v2220 = vunpack.c.h.b16 %v639
        %v2221 = vunpack.c.l.b16 %v640
        %v2222 = vunpack.c.h.b16 %v640
        %v2223 = vunpack.c.l.b16 %v641
        %v2224 = vunpack.c.h.b16 %v641
        %v2225 = vunpack.c.l.b16 %v642
        %v2226 = vunpack.c.h.b16 %v642
        %v2227 = vunpack.c.l.b16 %v643
        %v2228 = vunpack.c.h.b16 %v643
        %v2229 = vunpack.c.l.b16 %v644
        %v2230 = vunpack.c.h.b16 %v644
        %v2231 = vunpack.c.l.b16 %v645
        %v2232 = vunpack.c.h.b16 %v645
        %v2233 = vunpack.c.l.b16 %v646
        %v2234 = vunpack.c.h.b16 %v646
        %v2235 = vunpack.c.l.b16 %v647
        %v2236 = vunpack.c.h.b16 %v647
        %v2237 = vunpack.c.l.b16 %v648
        %v2238 = vunpack.c.h.b16 %v648
        %v2239 = vunpack.c.l.b16 %v649
        %v2240 = vunpack.c.h.b16 %v649
        %v2241 = vunpack.c.l.b16 %v650
        %v2242 = vunpack.c.h.b16 %v650
        %v2243 = vunpack.c.l.b16 %v651
        %v2244 = vunpack.c.h.b16 %v651
        %v2245 = vunpack.c.l.b16 %v652
        %v2246 = vunpack.c.h.b16 %v652
        %v2247 = vunpack.c.l.b16 %v653
        %v2248 = vunpack.c.h.b16 %v653
        %v2249 = vunpack.c.l.b16 %v654
        %v2250 = vunpack.c.h.b16 %v654
        %v2251 = vunpack.c.l.b16 %v655
        %v2252 = vunpack.c.h.b16 %v655
        %v2253 = vunpack.c.l.b16 %v656
        %v2254 = vunpack.c.h.b16 %v656
        %v2255 = vunpack.c.l.b16 %v657
        %v2256 = vunpack.c.h.b16 %v657
        %v2257 = vunpack.c.l.b16 %v658
        %v2258 = vunpack.c.h.b16 %v658
        %v2259 = vunpack.c.l.b16 %v659
        %v2260 = vunpack.c.h.b16 %v659
        %v2261 = vunpack.c.l.b16 %v660
        %v2262 = vunpack.c.h.b16 %v660
        %v2263 = vunpack.c.l.b16 %v661
        %v2264 = vunpack.c.h.b16 %v661
        %v2265 = vunpack.c.l.b16 %v662
        %v2266 = vunpack.c.h.b16 %v662
        %v2267 = vunpack.c.l.b16 %v663
        %v2268 = vunpack.c.h.b16 %v663
        %v2269 = vunpack.c.l.b16 %v664
        %v2270 = vunpack.c.h.b16 %v664
        %v2271 = vunpack.c.l.b16 %v665
        %v2272 = vunpack.c.h.b16 %v665
        %v2273 = vunpack.c.l.b16 %v666
        %v2274 = vunpack.c.h.b16 %v666
        %v2275 = vunpack.c.l.b16 %v667
        %v2276 = vunpack.c.h.b16 %v667
        %v2277 = vunpack.c.l.b16 %v668
        %v2278 = vunpack.c.h.b16 %v668
        %v2279 = vunpack.c.l.b16 %v669
        %v2280 = vunpack.c.h.b16 %v669
        %v2281 = vunpack.c.l.b16 %v670
        %v2282 = vunpack.c.h.b16 %v670
        %v2283 = vunpack.c.l.b16 %v671
        %v2284 = vunpack.c.h.b16 %v671
        %v2285 = vunpack.c.l.b16 %v672
        %v2286 = vunpack.c.h.b16 %v672
        %v2287 = vunpack.c.l.b16 %v673
        %v2288 = vunpack.c.h.b16 %v673
        %v2289 = vunpack.c.l.b16 %v674
        %v2290 = vunpack.c.h.b16 %v674
        %v2291 = vunpack.c.l.b16 %v675
        %v2292 = vunpack.c.h.b16 %v675
        %v2293 = vunpack.c.l.b16 %v676
        %v2294 = vunpack.c.h.b16 %v676
        %v2295 = vunpack.c.l.b16 %v677
        %v2296 = vunpack.c.h.b16 %v677
        %v2297 = vunpack.c.l.b16 %v678
        %v2298 = vunpack.c.h.b16 %v678
        %v2299 = vunpack.c.l.b16 %v679
        %v2300 = vunpack.c.h.b16 %v679
        %v2301 = vunpack.c.l.b16 %v680
        %v2302 = vunpack.c.h.b16 %v680
        %v2303 = vunpack.c.l.b16 %v681
        %v2304 = vunpack.c.h.b16 %v681
        %v2305 = vunpack.c.l.b16 %v682
        %v2306 = vunpack.c.h.b16 %v682
        %v2307 = vunpack.c.l.b16 %v683
        %v2308 = vunpack.c.h.b16 %v683
        %v2309 = vunpack.c.l.b16 %v684
        %v2310 = vunpack.c.h.b16 %v684
        %v2311 = vunpack.c.l.b16 %v685
        %v2312 = vunpack.c.h.b16 %v685
        %v2313 = vunpack.c.l.b16 %v686
        %v2314 = vunpack.c.h.b16 %v686
        %v2315 = vunpack.c.l.b16 %v687
        %v2316 = vunpack.c.h.b16 %v687
        %v2317 = vunpack.c.l.b16 %v688
        %v2318 = vunpack.c.h.b16 %v688
        %v2319 = vunpack.c.l.b16 %v689
        %v2320 = vunpack.c.h.b16 %v689
        %v2321 = vunpack.c.l.b16 %v690
        %v2322 = vunpack.c.h.b16 %v690
        %v2323 = vunpack.c.l.b16 %v691
        %v2324 = vunpack.c.h.b16 %v691
        %v2325 = vunpack.c.l.b16 %v692
        %v2326 = vunpack.c.h.b16 %v692
        %v2327 = vunpack.c.l.b16 %v693
        %v2328 = vunpack.c.h.b16 %v693
        %v2329 = vunpack.c.l.b16 %v694
        %v2330 = vunpack.c.h.b16 %v694
        %v2331 = vunpack.c.l.b16 %v695
        %v2332 = vunpack.c.h.b16 %v695
        %v2333 = vunpack.c.l.b16 %v696
        %v2334 = vunpack.c.h.b16 %v696
        %v2335 = vunpack.c.l.b16 %v697
        %v2336 = vunpack.c.h.b16 %v697
        %v2337 = vunpack.c.l.b16 %v698
        %v2338 = vunpack.c.h.b16 %v698
        %v2339 = vunpack.c.l.b16 %v699
        %v2340 = vunpack.c.h.b16 %v699
        %v2341 = vunpack.c.l.b16 %v700
        %v2342 = vunpack.c.h.b16 %v700
        %v2343 = vunpack.c.l.b16 %v701
        %v2344 = vunpack.c.h.b16 %v701
        %v2345 = vunpack.c.l.b16 %v702
        %v2346 = vunpack.c.h.b16 %v702
        %v2347 = vunpack.c.l.b16 %v703
        %v2348 = vunpack.c.h.b16 %v703
        %v2349 = vunpack.c.l.b16 %v704
        %v2350 = vunpack.c.h.b16 %v704
        %v2351 = vunpack.c.l.b16 %v705
        %v2352 = vunpack.c.h.b16 %v705
        %v2353 = vunpack.c.l.b16 %v706
        %v2354 = vunpack.c.h.b16 %v706
        %v2355 = vunpack.c.l.b16 %v707
        %v2356 = vunpack.c.h.b16 %v707
        %v2357 = vunpack.c.l.b16 %v708
        %v2358 = vunpack.c.h.b16 %v708
        %v2359 = vunpack.c.l.b16 %v709
        %v2360 = vunpack.c.h.b16 %v709
        %v2361 = vunpack.c.l.b16 %v710
        %v2362 = vunpack.c.h.b16 %v710
        %v2363 = vunpack.c.l.b16 %v711
        %v2364 = vunpack.c.h.b16 %v711
        %v2365 = vunpack.c.l.b16 %v712
        %v2366 = vunpack.c.h.b16 %v712
        %v2367 = vunpack.c.l.b16 %v713
        %v2368 = vunpack.c.h.b16 %v713
        %v2369 = vunpack.c.l.b16 %v714
        %v2370 = vunpack.c.h.b16 %v714
        %v2371 = vpack.c.b16 %v1355, %v1347
        %v2372 = vpack.c.b16 %v1356, %v1348
        %v2373 = vpack.c.b16 %v1357, %v1349
        %v2374 = vpack.c.b16 %v1358, %v1350
        %v2375 = vpack.c.b16 %v1359, %v1351
        %v2376 = vpack.c.b16 %v1360, %v1352
        %v2377 = vpack.c.b16 %v1361, %v1353
        %v2378 = vpack.c.b16 %v1362, %v1354
        %v2379 = vpack.c.b16 %v1371, %v1363
        %v2380 = vpack.c.b16 %v1372, %v1364
        %v2381 = vpack.c.b16 %v1373, %v1365
        %v2382 = vpack.c.b16 %v1374, %v1366
        %v2383 = vpack.c.b16 %v1375, %v1367
        %v2384 = vpack.c.b16 %v1376, %v1368
        %v2385 = vpack.c.b16 %v1377, %v1369
        %v2386 = vpack.c.b16 %v1378, %v1370
        %v2387 = vpack.c.b16 %v1387, %v1379
        %v2388 = vpack.c.b16 %v1388, %v1380
        %v2389 = vpack.c.b16 %v1389, %v1381
        %v2390 = vpack.c.b16 %v1390, %v1382
        %v2391 = vpack.c.b16 %v1391, %v1383
        %v2392 = vpack.c.b16 %v1392, %v1384
        %v2393 = vpack.c.b16 %v1393, %v1385
        %v2394 = vpack.c.b16 %v1394, %v1386
        %v2395 = vpack.c.b16 %v1403, %v1395
        %v2396 = vpack.c.b16 %v1404, %v1396
        %v2397 = vpack.c.b16 %v1405, %v1397
        %v2398 = vpack.c.b16 %v1406, %v1398
        %v2399 = vpack.c.b16 %v1407, %v1399
        %v2400 = vpack.c.b16 %v1408, %v1400
        %v2401 = vpack.c.b16 %v1409, %v1401
        %v2402 = vpack.c.b16 %v1410, %v1402
        %v2403 = vpack.c.b16 %v1419, %v1411
        %v2404 = vpack.c.b16 %v1420, %v1412
        %v2405 = vpack.c.b16 %v1421, %v1413
        %v2406 = vpack.c.b16 %v1422, %v1414
        %v2407 = vpack.c.b16 %v1423, %v1415
        %v2408 = vpack.c.b16 %v1424, %v1416
        %v2409 = vpack.c.b16 %v1425, %v1417
        %v2410 = vpack.c.b16 %v1426, %v1418
        %v2411 = vpack.c.b16 %v1435, %v1427
        %v2412 = vpack.c.b16 %v1436, %v1428
        %v2413 = vpack.c.b16 %v1437, %v1429
        %v2414 = vpack.c.b16 %v1438, %v1430
        %v2415 = vpack.c.b16 %v1439, %v1431
        %v2416 = vpack.c.b16 %v1440, %v1432
        %v2417 = vpack.c.b16 %v1441, %v1433
        %v2418 = vpack.c.b16 %v1442, %v1434
        %v2419 = vpack.c.b16 %v1451, %v1443
        %v2420 = vpack.c.b16 %v1452, %v1444
        %v2421 = vpack.c.b16 %v1453, %v1445
        %v2422 = vpack.c.b16 %v1454, %v1446
        %v2423 = vpack.c.b16 %v1455, %v1447
        %v2424 = vpack.c.b16 %v1456, %v1448
        %v2425 = vpack.c.b16 %v1457, %v1449
        %v2426 = vpack.c.b16 %v1458, %v1450
        %v2427 = vpack.c.b16 %v1467, %v1459
        %v2428 = vpack.c.b16 %v1468, %v1460
        %v2429 = vpack.c.b16 %v1469, %v1461
        %v2430 = vpack.c.b16 %v1470, %v1462
        %v2431 = vpack.c.b16 %v1471, %v1463
        %v2432 = vpack.c.b16 %v1472, %v1464
        %v2433 = vpack.c.b16 %v1473, %v1465
        %v2434 = vpack.c.b16 %v1474, %v1466
        %v2435 = vpack.c.b16 %v1483, %v1475
        %v2436 = vpack.c.b16 %v1484, %v1476
        %v2437 = vpack.c.b16 %v1485, %v1477
        %v2438 = vpack.c.b16 %v1486, %v1478
        %v2439 = vpack.c.b16 %v1487, %v1479
        %v2440 = vpack.c.b16 %v1488, %v1480
        %v2441 = vpack.c.b16 %v1489, %v1481
        %v2442 = vpack.c.b16 %v1490, %v1482
        %v2443 = vpack.c.b16 %v1499, %v1491
        %v2444 = vpack.c.b16 %v1500, %v1492
        %v2445 = vpack.c.b16 %v1501, %v1493
        %v2446 = vpack.c.b16 %v1502, %v1494
        %v2447 = vpack.c.b16 %v1503, %v1495
        %v2448 = vpack.c.b16 %v1504, %v1496
        %v2449 = vpack.c.b16 %v1505, %v1497
        %v2450 = vpack.c.b16 %v1506, %v1498
        %v2451 = vpack.c.b16 %v1515, %v1507
        %v2452 = vpack.c.b16 %v1516, %v1508
        %v2453 = vpack.c.b16 %v1517, %v1509
        %v2454 = vpack.c.b16 %v1518, %v1510
        %v2455 = vpack.c.b16 %v1519, %v1511
        %v2456 = vpack.c.b16 %v1520, %v1512
        %v2457 = vpack.c.b16 %v1521, %v1513
        %v2458 = vpack.c.b16 %v1522, %v1514
        %v2459 = vpack.c.b16 %v1531, %v1523
        %v2460 = vpack.c.b16 %v1532, %v1524
        %v2461 = vpack.c.b16 %v1533, %v1525
        %v2462 = vpack.c.b16 %v1534, %v1526
        %v2463 = vpack.c.b16 %v1535, %v1527
        %v2464 = vpack.c.b16 %v1536, %v1528
        %v2465 = vpack.c.b16 %v1537, %v1529
        %v2466 = vpack.c.b16 %v1538, %v1530
        %v2467 = vpack.c.b16 %v1547, %v1539
        %v2468 = vpack.c.b16 %v1548, %v1540
        %v2469 = vpack.c.b16 %v1549, %v1541
        %v2470 = vpack.c.b16 %v1550, %v1542
        %v2471 = vpack.c.b16 %v1551, %v1543
        %v2472 = vpack.c.b16 %v1552, %v1544
        %v2473 = vpack.c.b16 %v1553, %v1545
        %v2474 = vpack.c.b16 %v1554, %v1546
        %v2475 = vpack.c.b16 %v1563, %v1555
        %v2476 = vpack.c.b16 %v1564, %v1556
        %v2477 = vpack.c.b16 %v1565, %v1557
        %v2478 = vpack.c.b16 %v1566, %v1558
        %v2479 = vpack.c.b16 %v1567, %v1559
        %v2480 = vpack.c.b16 %v1568, %v1560
        %v2481 = vpack.c.b16 %v1569, %v1561
        %v2482 = vpack.c.b16 %v1570, %v1562
        %v2483 = vpack.c.b16 %v1579, %v1571
        %v2484 = vpack.c.b16 %v1580, %v1572
        %v2485 = vpack.c.b16 %v1581, %v1573
        %v2486 = vpack.c.b16 %v1582, %v1574
        %v2487 = vpack.c.b16 %v1583, %v1575
        %v2488 = vpack.c.b16 %v1584, %v1576
        %v2489 = vpack.c.b16 %v1585, %v1577
        %v2490 = vpack.c.b16 %v1586, %v1578
        %v2491 = vpack.c.b16 %v1595, %v1587
        %v2492 = vpack.c.b16 %v1596, %v1588
        %v2493 = vpack.c.b16 %v1597, %v1589
        %v2494 = vpack.c.b16 %v1598, %v1590
        %v2495 = vpack.c.b16 %v1599, %v1591
        %v2496 = vpack.c.b16 %v1600, %v1592
        %v2497 = vpack.c.b16 %v1601, %v1593
        %v2498 = vpack.c.b16 %v1602, %v1594
        %v2499 = vpack.c.b16 %v1611, %v1603
        %v2500 = vpack.c.b16 %v1612, %v1604
        %v2501 = vpack.c.b16 %v1613, %v1605
        %v2502 = vpack.c.b16 %v1614, %v1606
        %v2503 = vpack.c.b16 %v1615, %v1607
        %v2504 = vpack.c.b16 %v1616, %v1608
        %v2505 = vpack.c.b16 %v1617, %v1609
        %v2506 = vpack.c.b16 %v1618, %v1610
        %v2507 = vpack.c.b16 %v1627, %v1619
        %v2508 = vpack.c.b16 %v1628, %v1620
        %v2509 = vpack.c.b16 %v1629, %v1621
        %v2510 = vpack.c.b16 %v1630, %v1622
        %v2511 = vpack.c.b16 %v1631, %v1623
        %v2512 = vpack.c.b16 %v1632, %v1624
        %v2513 = vpack.c.b16 %v1633, %v1625
        %v2514 = vpack.c.b16 %v1634, %v1626
        %v2515 = vpack.c.b16 %v1643, %v1635
        %v2516 = vpack.c.b16 %v1644, %v1636
        %v2517 = vpack.c.b16 %v1645, %v1637
        %v2518 = vpack.c.b16 %v1646, %v1638
        %v2519 = vpack.c.b16 %v1647, %v1639
        %v2520 = vpack.c.b16 %v1648, %v1640
        %v2521 = vpack.c.b16 %v1649, %v1641
        %v2522 = vpack.c.b16 %v1650, %v1642
        %v2523 = vpack.c.b16 %v1659, %v1651
        %v2524 = vpack.c.b16 %v1660, %v1652
        %v2525 = vpack.c.b16 %v1661, %v1653
        %v2526 = vpack.c.b16 %v1662, %v1654
        %v2527 = vpack.c.b16 %v1663, %v1655
        %v2528 = vpack.c.b16 %v1664, %v1656
        %v2529 = vpack.c.b16 %v1665, %v1657
        %v2530 = vpack.c.b16 %v1666, %v1658
        %v2531 = vpack.c.b16 %v1675, %v1667
        %v2532 = vpack.c.b16 %v1676, %v1668
        %v2533 = vpack.c.b16 %v1677, %v1669
        %v2534 = vpack.c.b16 %v1678, %v1670
        %v2535 = vpack.c.b16 %v1679, %v1671
        %v2536 = vpack.c.b16 %v1680, %v1672
        %v2537 = vpack.c.b16 %v1681, %v1673
        %v2538 = vpack.c.b16 %v1682, %v1674
        %v2539 = vpack.c.b16 %v1691, %v1683
        %v2540 = vpack.c.b16 %v1692, %v1684
        %v2541 = vpack.c.b16 %v1693, %v1685
        %v2542 = vpack.c.b16 %v1694, %v1686
        %v2543 = vpack.c.b16 %v1695, %v1687
        %v2544 = vpack.c.b16 %v1696, %v1688
        %v2545 = vpack.c.b16 %v1697, %v1689
        %v2546 = vpack.c.b16 %v1698, %v1690
        %v2547 = vpack.c.b16 %v1707, %v1699
        %v2548 = vpack.c.b16 %v1708, %v1700
        %v2549 = vpack.c.b16 %v1709, %v1701
        %v2550 = vpack.c.b16 %v1710, %v1702
        %v2551 = vpack.c.b16 %v1711, %v1703
        %v2552 = vpack.c.b16 %v1712, %v1704
        %v2553 = vpack.c.b16 %v1713, %v1705
        %v2554 = vpack.c.b16 %v1714, %v1706
        %v2555 = vpack.c.b16 %v1723, %v1715
        %v2556 = vpack.c.b16 %v1724, %v1716
        %v2557 = vpack.c.b16 %v1725, %v1717
        %v2558 = vpack.c.b16 %v1726, %v1718
        %v2559 = vpack.c.b16 %v1727, %v1719
        %v2560 = vpack.c.b16 %v1728, %v1720
        %v2561 = vpack.c.b16 %v1729, %v1721
        %v2562 = vpack.c.b16 %v1730, %v1722
        %v2563 = vpack.c.b16 %v1739, %v1731
        %v2564 = vpack.c.b16 %v1740, %v1732
        %v2565 = vpack.c.b16 %v1741, %v1733
        %v2566 = vpack.c.b16 %v1742, %v1734
        %v2567 = vpack.c.b16 %v1743, %v1735
        %v2568 = vpack.c.b16 %v1744, %v1736
        %v2569 = vpack.c.b16 %v1745, %v1737
        %v2570 = vpack.c.b16 %v1746, %v1738
        %v2571 = vpack.c.b16 %v1755, %v1747
        %v2572 = vpack.c.b16 %v1756, %v1748
        %v2573 = vpack.c.b16 %v1757, %v1749
        %v2574 = vpack.c.b16 %v1758, %v1750
        %v2575 = vpack.c.b16 %v1759, %v1751
        %v2576 = vpack.c.b16 %v1760, %v1752
        %v2577 = vpack.c.b16 %v1761, %v1753
        %v2578 = vpack.c.b16 %v1762, %v1754
        %v2579 = vpack.c.b16 %v1771, %v1763
        %v2580 = vpack.c.b16 %v1772, %v1764
        %v2581 = vpack.c.b16 %v1773, %v1765
        %v2582 = vpack.c.b16 %v1774, %v1766
        %v2583 = vpack.c.b16 %v1775, %v1767
        %v2584 = vpack.c.b16 %v1776, %v1768
        %v2585 = vpack.c.b16 %v1777, %v1769
        %v2586 = vpack.c.b16 %v1778, %v1770
        %v2587 = vpack.c.b16 %v1787, %v1779
        %v2588 = vpack.c.b16 %v1788, %v1780
        %v2589 = vpack.c.b16 %v1789, %v1781
        %v2590 = vpack.c.b16 %v1790, %v1782
        %v2591 = vpack.c.b16 %v1791, %v1783
        %v2592 = vpack.c.b16 %v1792, %v1784
        %v2593 = vpack.c.b16 %v1793, %v1785
        %v2594 = vpack.c.b16 %v1794, %v1786
        %v2595 = vpack.c.b16 %v1803, %v1795
        %v2596 = vpack.c.b16 %v1804, %v1796
        %v2597 = vpack.c.b16 %v1805, %v1797
        %v2598 = vpack.c.b16 %v1806, %v1798
        %v2599 = vpack.c.b16 %v1807, %v1799
        %v2600 = vpack.c.b16 %v1808, %v1800
        %v2601 = vpack.c.b16 %v1809, %v1801
        %v2602 = vpack.c.b16 %v1810, %v1802
        %v2603 = vpack.c.b16 %v1819, %v1811
        %v2604 = vpack.c.b16 %v1820, %v1812
        %v2605 = vpack.c.b16 %v1821, %v1813
        %v2606 = vpack.c.b16 %v1822, %v1814
        %v2607 = vpack.c.b16 %v1823, %v1815
        %v2608 = vpack.c.b16 %v1824, %v1816
        %v2609 = vpack.c.b16 %v1825, %v1817
        %v2610 = vpack.c.b16 %v1826, %v1818
        %v2611 = vpack.c.b16 %v1835, %v1827
        %v2612 = vpack.c.b16 %v1836, %v1828
        %v2613 = vpack.c.b16 %v1837, %v1829
        %v2614 = vpack.c.b16 %v1838, %v1830
        %v2615 = vpack.c.b16 %v1839, %v1831
        %v2616 = vpack.c.b16 %v1840, %v1832
        %v2617 = vpack.c.b16 %v1841, %v1833
        %v2618 = vpack.c.b16 %v1842, %v1834
        %v2619 = vpack.c.b16 %v1851, %v1843
        %v2620 = vpack.c.b16 %v1852, %v1844
        %v2621 = vpack.c.b16 %v1853, %v1845
        %v2622 = vpack.c.b16 %v1854, %v1846
        %v2623 = vpack.c.b16 %v1855, %v1847
        %v2624 = vpack.c.b16 %v1856, %v1848
        %v2625 = vpack.c.b16 %v1857, %v1849
        %v2626 = vpack.c.b16 %v1858, %v1850
        %v2627 = vpack.c.b16 %v1867, %v1859
        %v2628 = vpack.c.b16 %v1868, %v1860
        %v2629 = vpack.c.b16 %v1869, %v1861
        %v2630 = vpack.c.b16 %v1870, %v1862
        %v2631 = vpack.c.b16 %v1871, %v1863
        %v2632 = vpack.c.b16 %v1872, %v1864
        %v2633 = vpack.c.b16 %v1873, %v1865
        %v2634 = vpack.c.b16 %v1874, %v1866
        %v2635 = vpack.c.b16 %v1883, %v1875
        %v2636 = vpack.c.b16 %v1884, %v1876
        %v2637 = vpack.c.b16 %v1885, %v1877
        %v2638 = vpack.c.b16 %v1886, %v1878
        %v2639 = vpack.c.b16 %v1887, %v1879
        %v2640 = vpack.c.b16 %v1888, %v1880
        %v2641 = vpack.c.b16 %v1889, %v1881
        %v2642 = vpack.c.b16 %v1890, %v1882
        %v2643 = vpack.c.b16 %v1899, %v1891
        %v2644 = vpack.c.b16 %v1900, %v1892
        %v2645 = vpack.c.b16 %v1901, %v1893
        %v2646 = vpack.c.b16 %v1902, %v1894
        %v2647 = vpack.c.b16 %v1903, %v1895
        %v2648 = vpack.c.b16 %v1904, %v1896
        %v2649 = vpack.c.b16 %v1905, %v1897
        %v2650 = vpack.c.b16 %v1906, %v1898
        %v2651 = vpack.c.b16 %v1915, %v1907
        %v2652 = vpack.c.b16 %v1916, %v1908
        %v2653 = vpack.c.b16 %v1917, %v1909
        %v2654 = vpack.c.b16 %v1918, %v1910
        %v2655 = vpack.c.b16 %v1919, %v1911
        %v2656 = vpack.c.b16 %v1920, %v1912
        %v2657 = vpack.c.b16 %v1921, %v1913
        %v2658 = vpack.c.b16 %v1922, %v1914
        %v2659 = vpack.c.b16 %v1931, %v1923
        %v2660 = vpack.c.b16 %v1932, %v1924
        %v2661 = vpack.c.b16 %v1933, %v1925
        %v2662 = vpack.c.b16 %v1934, %v1926
        %v2663 = vpack.c.b16 %v1935, %v1927
        %v2664 = vpack.c.b16 %v1936, %v1928
        %v2665 = vpack.c.b16 %v1937, %v1929
        %v2666 = vpack.c.b16 %v1938, %v1930
        %v2667 = vpack.c.b16 %v1947, %v1939
        %v2668 = vpack.c.b16 %v1948, %v1940
        %v2669 = vpack.c.b16 %v1949, %v1941
        %v2670 = vpack.c.b16 %v1950, %v1942
        %v2671 = vpack.c.b16 %v1951, %v1943
        %v2672 = vpack.c.b16 %v1952, %v1944
        %v2673 = vpack.c.b16 %v1953, %v1945
        %v2674 = vpack.c.b16 %v1954, %v1946
        %v2675 = vpack.c.b16 %v1963, %v1955
        %v2676 = vpack.c.b16 %v1964, %v1956
        %v2677 = vpack.c.b16 %v1965, %v1957
        %v2678 = vpack.c.b16 %v1966, %v1958
        %v2679 = vpack.c.b16 %v1967, %v1959
        %v2680 = vpack.c.b16 %v1968, %v1960
        %v2681 = vpack.c.b16 %v1969, %v1961
        %v2682 = vpack.c.b16 %v1970, %v1962
        %v2683 = vpack.c.b16 %v1979, %v1971
        %v2684 = vpack.c.b16 %v1980, %v1972
        %v2685 = vpack.c.b16 %v1981, %v1973
        %v2686 = vpack.c.b16 %v1982, %v1974
        %v2687 = vpack.c.b16 %v1983, %v1975
        %v2688 = vpack.c.b16 %v1984, %v1976
        %v2689 = vpack.c.b16 %v1985, %v1977
        %v2690 = vpack.c.b16 %v1986, %v1978
        %v2691 = vpack.c.b16 %v1995, %v1987
        %v2692 = vpack.c.b16 %v1996, %v1988
        %v2693 = vpack.c.b16 %v1997, %v1989
        %v2694 = vpack.c.b16 %v1998, %v1990
        %v2695 = vpack.c.b16 %v1999, %v1991
        %v2696 = vpack.c.b16 %v2000, %v1992
        %v2697 = vpack.c.b16 %v2001, %v1993
        %v2698 = vpack.c.b16 %v2002, %v1994
        %v2699 = vpack.c.b16 %v2011, %v2003
        %v2700 = vpack.c.b16 %v2012, %v2004
        %v2701 = vpack.c.b16 %v2013, %v2005
        %v2702 = vpack.c.b16 %v2014, %v2006
        %v2703 = vpack.c.b16 %v2015, %v2007
        %v2704 = vpack.c.b16 %v2016, %v2008
        %v2705 = vpack.c.b16 %v2017, %v2009
        %v2706 = vpack.c.b16 %v2018, %v2010
        %v2707 = vpack.c.b16 %v2027, %v2019
        %v2708 = vpack.c.b16 %v2028, %v2020
        %v2709 = vpack.c.b16 %v2029, %v2021
        %v2710 = vpack.c.b16 %v2030, %v2022
        %v2711 = vpack.c.b16 %v2031, %v2023
        %v2712 = vpack.c.b16 %v2032, %v2024
        %v2713 = vpack.c.b16 %v2033, %v2025
        %v2714 = vpack.c.b16 %v2034, %v2026
        %v2715 = vpack.c.b16 %v2043, %v2035
        %v2716 = vpack.c.b16 %v2044, %v2036
        %v2717 = vpack.c.b16 %v2045, %v2037
        %v2718 = vpack.c.b16 %v2046, %v2038
        %v2719 = vpack.c.b16 %v2047, %v2039
        %v2720 = vpack.c.b16 %v2048, %v2040
        %v2721 = vpack.c.b16 %v2049, %v2041
        %v2722 = vpack.c.b16 %v2050, %v2042
        %v2723 = vpack.c.b16 %v2059, %v2051
        %v2724 = vpack.c.b16 %v2060, %v2052
        %v2725 = vpack.c.b16 %v2061, %v2053
        %v2726 = vpack.c.b16 %v2062, %v2054
        %v2727 = vpack.c.b16 %v2063, %v2055
        %v2728 = vpack.c.b16 %v2064, %v2056
        %v2729 = vpack.c.b16 %v2065, %v2057
        %v2730 = vpack.c.b16 %v2066, %v2058
        %v2731 = vpack.c.b16 %v2075, %v2067
        %v2732 = vpack.c.b16 %v2076, %v2068
        %v2733 = vpack.c.b16 %v2077, %v2069
        %v2734 = vpack.c.b16 %v2078, %v2070
        %v2735 = vpack.c.b16 %v2079, %v2071
        %v2736 = vpack.c.b16 %v2080, %v2072
        %v2737 = vpack.c.b16 %v2081, %v2073
        %v2738 = vpack.c.b16 %v2082, %v2074
        %v2739 = vpack.c.b16 %v2091, %v2083
        %v2740 = vpack.c.b16 %v2092, %v2084
        %v2741 = vpack.c.b16 %v2093, %v2085
        %v2742 = vpack.c.b16 %v2094, %v2086
        %v2743 = vpack.c.b16 %v2095, %v2087
        %v2744 = vpack.c.b16 %v2096, %v2088
        %v2745 = vpack.c.b16 %v2097, %v2089
        %v2746 = vpack.c.b16 %v2098, %v2090
        %v2747 = vpack.c.b16 %v2107, %v2099
        %v2748 = vpack.c.b16 %v2108, %v2100
        %v2749 = vpack.c.b16 %v2109, %v2101
        %v2750 = vpack.c.b16 %v2110, %v2102
        %v2751 = vpack.c.b16 %v2111, %v2103
        %v2752 = vpack.c.b16 %v2112, %v2104
        %v2753 = vpack.c.b16 %v2113, %v2105
        %v2754 = vpack.c.b16 %v2114, %v2106
        %v2755 = vpack.c.b16 %v2123, %v2115
        %v2756 = vpack.c.b16 %v2124, %v2116
        %v2757 = vpack.c.b16 %v2125, %v2117
        %v2758 = vpack.c.b16 %v2126, %v2118
        %v2759 = vpack.c.b16 %v2127, %v2119
        %v2760 = vpack.c.b16 %v2128, %v2120
        %v2761 = vpack.c.b16 %v2129, %v2121
        %v2762 = vpack.c.b16 %v2130, %v2122
        %v2763 = vpack.c.b16 %v2139, %v2131
        %v2764 = vpack.c.b16 %v2140, %v2132
        %v2765 = vpack.c.b16 %v2141, %v2133
        %v2766 = vpack.c.b16 %v2142, %v2134
        %v2767 = vpack.c.b16 %v2143, %v2135
        %v2768 = vpack.c.b16 %v2144, %v2136
        %v2769 = vpack.c.b16 %v2145, %v2137
        %v2770 = vpack.c.b16 %v2146, %v2138
        %v2771 = vpack.c.b16 %v2155, %v2147
        %v2772 = vpack.c.b16 %v2156, %v2148
        %v2773 = vpack.c.b16 %v2157, %v2149
        %v2774 = vpack.c.b16 %v2158, %v2150
        %v2775 = vpack.c.b16 %v2159, %v2151
        %v2776 = vpack.c.b16 %v2160, %v2152
        %v2777 = vpack.c.b16 %v2161, %v2153
        %v2778 = vpack.c.b16 %v2162, %v2154
        %v2779 = vpack.c.b16 %v2171, %v2163
        %v2780 = vpack.c.b16 %v2172, %v2164
        %v2781 = vpack.c.b16 %v2173, %v2165
        %v2782 = vpack.c.b16 %v2174, %v2166
        %v2783 = vpack.c.b16 %v2175, %v2167
        %v2784 = vpack.c.b16 %v2176, %v2168
        %v2785 = vpack.c.b16 %v2177, %v2169
        %v2786 = vpack.c.b16 %v2178, %v2170
        %v2787 = vpack.c.b16 %v2187, %v2179
        %v2788 = vpack.c.b16 %v2188, %v2180
        %v2789 = vpack.c.b16 %v2189, %v2181
        %v2790 = vpack.c.b16 %v2190, %v2182
        %v2791 = vpack.c.b16 %v2191, %v2183
        %v2792 = vpack.c.b16 %v2192, %v2184
        %v2793 = vpack.c.b16 %v2193, %v2185
        %v2794 = vpack.c.b16 %v2194, %v2186
        %v2795 = vpack.c.b16 %v2203, %v2195
        %v2796 = vpack.c.b16 %v2204, %v2196
        %v2797 = vpack.c.b16 %v2205, %v2197
        %v2798 = vpack.c.b16 %v2206, %v2198
        %v2799 = vpack.c.b16 %v2207, %v2199
        %v2800 = vpack.c.b16 %v2208, %v2200
        %v2801 = vpack.c.b16 %v2209, %v2201
        %v2802 = vpack.c.b16 %v2210, %v2202
        %v2803 = vpack.c.b16 %v2219, %v2211
        %v2804 = vpack.c.b16 %v2220, %v2212
        %v2805 = vpack.c.b16 %v2221, %v2213
        %v2806 = vpack.c.b16 %v2222, %v2214
        %v2807 = vpack.c.b16 %v2223, %v2215
        %v2808 = vpack.c.b16 %v2224, %v2216
        %v2809 = vpack.c.b16 %v2225, %v2217
        %v2810 = vpack.c.b16 %v2226, %v2218
        %v2811 = vpack.c.b16 %v2235, %v2227
        %v2812 = vpack.c.b16 %v2236, %v2228
        %v2813 = vpack.c.b16 %v2237, %v2229
        %v2814 = vpack.c.b16 %v2238, %v2230
        %v2815 = vpack.c.b16 %v2239, %v2231
        %v2816 = vpack.c.b16 %v2240, %v2232
        %v2817 = vpack.c.b16 %v2241, %v2233
        %v2818 = vpack.c.b16 %v2242, %v2234
        %v2819 = vpack.c.b16 %v2251, %v2243
        %v2820 = vpack.c.b16 %v2252, %v2244
        %v2821 = vpack.c.b16 %v2253, %v2245
        %v2822 = vpack.c.b16 %v2254, %v2246
        %v2823 = vpack.c.b16 %v2255, %v2247
        %v2824 = vpack.c.b16 %v2256, %v2248
        %v2825 = vpack.c.b16 %v2257, %v2249
        %v2826 = vpack.c.b16 %v2258, %v2250
        %v2827 = vpack.c.b16 %v2267, %v2259
        %v2828 = vpack.c.b16 %v2268, %v2260
        %v2829 = vpack.c.b16 %v2269, %v2261
        %v2830 = vpack.c.b16 %v2270, %v2262
        %v2831 = vpack.c.b16 %v2271, %v2263
        %v2832 = vpack.c.b16 %v2272, %v2264
        %v2833 = vpack.c.b16 %v2273, %v2265
        %v2834 = vpack.c.b16 %v2274, %v2266
        %v2835 = vpack.c.b16 %v2283, %v2275
        %v2836 = vpack.c.b16 %v2284, %v2276
        %v2837 = vpack.c.b16 %v2285, %v2277
        %v2838 = vpack.c.b16 %v2286, %v2278
        %v2839 = vpack.c.b16 %v2287, %v2279
        %v2840 = vpack.c.b16 %v2288, %v2280
        %v2841 = vpack.c.b16 %v2289, %v2281
        %v2842 = vpack.c.b16 %v2290, %v2282
        %v2843 = vpack.c.b16 %v2299, %v2291
        %v2844 = vpack.c.b16 %v2300, %v2292
        %v2845 = vpack.c.b16 %v2301, %v2293
        %v2846 = vpack.c.b16 %v2302, %v2294
        %v2847 = vpack.c.b16 %v2303, %v2295
        %v2848 = vpack.c.b16 %v2304, %v2296
        %v2849 = vpack.c.b16 %v2305, %v2297
        %v2850 = vpack.c.b16 %v2306, %v2298
        %v2851 = vpack.c.b16 %v2315, %v2307
        %v2852 = vpack.c.b16 %v2316, %v2308
        %v2853 = vpack.c.b16 %v2317, %v2309
        %v2854 = vpack.c.b16 %v2318, %v2310
        %v2855 = vpack.c.b16 %v2319, %v2311
        %v2856 = vpack.c.b16 %v2320, %v2312
        %v2857 = vpack.c.b16 %v2321, %v2313
        %v2858 = vpack.c.b16 %v2322, %v2314
        %v2859 = vpack.c.b16 %v2331, %v2323
        %v2860 = vpack.c.b16 %v2332, %v2324
        %v2861 = vpack.c.b16 %v2333, %v2325
        %v2862 = vpack.c.b16 %v2334, %v2326
        %v2863 = vpack.c.b16 %v2335, %v2327
        %v2864 = vpack.c.b16 %v2336, %v2328
        %v2865 = vpack.c.b16 %v2337, %v2329
        %v2866 = vpack.c.b16 %v2338, %v2330
        %v2867 = vpack.c.b16 %v2347, %v2339
        %v2868 = vpack.c.b16 %v2348, %v2340
        %v2869 = vpack.c.b16 %v2349, %v2341
        %v2870 = vpack.c.b16 %v2350, %v2342
        %v2871 = vpack.c.b16 %v2351, %v2343
        %v2872 = vpack.c.b16 %v2352, %v2344
        %v2873 = vpack.c.b16 %v2353, %v2345
        %v2874 = vpack.c.b16 %v2354, %v2346
        %v2875 = vpack.c.b16 %v2363, %v2355
        %v2876 = vpack.c.b16 %v2364, %v2356
        %v2877 = vpack.c.b16 %v2365, %v2357
        %v2878 = vpack.c.b16 %v2366, %v2358
        %v2879 = vpack.c.b16 %v2367, %v2359
        %v2880 = vpack.c.b16 %v2368, %v2360
        %v2881 = vpack.c.b16 %v2369, %v2361
        %v2882 = vpack.c.b16 %v2370, %v2362
        %3395 = vmatprep.subr.bf16.mxu0 %v2428
        %3396 = vmatpush1.bf16.msra.mxu0 %v2427
        %3397 = vmatprep.subr.bf16.mxu0 %v2420
        %3398 = vmatpush1.bf16.msra.mxu0 %v2419
        %3399 = vmatprep.subr.bf16.mxu0 %v2412
        %3400 = vmatpush1.bf16.msra.mxu0 %v2411
        %3401 = vmatprep.subr.bf16.mxu0 %v2404
        %3402 = vmatpush1.bf16.msra.mxu0 %v2403
        %3403 = vmatprep.subr.bf16.mxu0 %v2396
        %3404 = vmatpush1.bf16.msra.mxu0 %v2395
        %3405 = vmatprep.subr.bf16.mxu0 %v2388
        %3406 = vmatpush1.bf16.msra.mxu0 %v2387
        %3407 = vmatprep.subr.bf16.mxu0 %v2380
        %3408 = vmatpush1.bf16.msra.mxu0 %v2379
        %3409 = vmatprep.subr.bf16.mxu0 %v2372
        %3410 = vmatpush1.bf16.msra.mxu0 %v2371
        %3411 = vmatprep.subr.bf16.mxu0 %v2492
        %3412 = vmatpush2.bf16.msra.mxu0 %v2491
        %3413 = vmatprep.subr.bf16.mxu0 %v2484
        %3414 = vmatpush2.bf16.msra.mxu0 %v2483
        %3415 = vmatprep.subr.bf16.mxu0 %v2476
        %3416 = vmatpush2.bf16.msra.mxu0 %v2475
        %3417 = vmatprep.subr.bf16.mxu0 %v2468
        %3418 = vmatpush2.bf16.msra.mxu0 %v2467
        %3419 = vmatprep.subr.bf16.mxu0 %v2460
        %3420 = vmatpush2.bf16.msra.mxu0 %v2459
        %3421 = vmatprep.subr.bf16.mxu0 %v2452
        %3422 = vmatpush2.bf16.msra.mxu0 %v2451
        %3423 = vmatprep.subr.bf16.mxu0 %v2444
        %3424 = vmatpush2.bf16.msra.mxu0 %v2443
        %3425 = vmatprep.subr.bf16.mxu0 %v2436
        %3426 = vmatpush2.bf16.msra.mxu0 %v2435
        %3427 = vmatprep.mubr.bf16.mxu0 %v788
        %3428 = vmatmul.mubr.bf16.gmra.mxu0 %v787
        %v3429 = vpop.f32.mrf.mxu0
        %v3430 = vadd.f32 0.0, %v3429
        %v3431 = vpop.f32.mrf.mxu0
        %v3432 = vadd.f32 0.0, %v3431
        %v3433 = vpop.f32.mrf.mxu0
        %v3434 = vadd.f32 0.0, %v3433
        %v3435 = vpop.f32.mrf.mxu0
        %v3436 = vadd.f32 0.0, %v3435
        %3437 = vmatprep.mubr.bf16.mxu0 %v796
        %3438 = vmatmul.mubr.bf16.gmra.mxu0 %v795
        %v3439 = vpop.f32.mrf.mxu0
        %v3440 = vadd.f32 0.0, %v3439
        %v3441 = vpop.f32.mrf.mxu0
        %v3442 = vadd.f32 0.0, %v3441
        %v3443 = vpop.f32.mrf.mxu0
        %v3444 = vadd.f32 0.0, %v3443
        %v3445 = vpop.f32.mrf.mxu0
        %v3446 = vadd.f32 0.0, %v3445
        %3447 = vmatprep.mubr.bf16.mxu0 %v804
        %3448 = vmatmul.mubr.bf16.gmra.mxu0 %v803
        %v3449 = vpop.f32.mrf.mxu0
        %v3450 = vadd.f32 0.0, %v3449
        %v3451 = vpop.f32.mrf.mxu0
        %v3452 = vadd.f32 0.0, %v3451
        %v3453 = vpop.f32.mrf.mxu0
        %v3454 = vadd.f32 0.0, %v3453
        %v3455 = vpop.f32.mrf.mxu0
        %v3456 = vadd.f32 0.0, %v3455
        %3457 = vdwg.mxu0
        %3458 = vmatprep.subr.bf16.mxu0 %v2556
        %3459 = vmatpush1.bf16.msra.mxu0 %v2555
        %3460 = vmatprep.subr.bf16.mxu0 %v2548
        %3461 = vmatpush1.bf16.msra.mxu0 %v2547
        %3462 = vmatprep.subr.bf16.mxu0 %v2540
        %3463 = vmatpush1.bf16.msra.mxu0 %v2539
        %3464 = vmatprep.subr.bf16.mxu0 %v2532
        %3465 = vmatpush1.bf16.msra.mxu0 %v2531
        %3466 = vmatprep.subr.bf16.mxu0 %v2524
        %3467 = vmatpush1.bf16.msra.mxu0 %v2523
        %3468 = vmatprep.subr.bf16.mxu0 %v2516
        %3469 = vmatpush1.bf16.msra.mxu0 %v2515
        %3470 = vmatprep.subr.bf16.mxu0 %v2508
        %3471 = vmatpush1.bf16.msra.mxu0 %v2507
        %3472 = vmatprep.subr.bf16.mxu0 %v2500
        %3473 = vmatpush1.bf16.msra.mxu0 %v2499
        %3474 = vmatprep.subr.bf16.mxu0 %v2620
        %3475 = vmatpush2.bf16.msra.mxu0 %v2619
        %3476 = vmatprep.subr.bf16.mxu0 %v2612
        %3477 = vmatpush2.bf16.msra.mxu0 %v2611
        %3478 = vmatprep.subr.bf16.mxu0 %v2604
        %3479 = vmatpush2.bf16.msra.mxu0 %v2603
        %3480 = vmatprep.subr.bf16.mxu0 %v2596
        %3481 = vmatpush2.bf16.msra.mxu0 %v2595
        %3482 = vmatprep.subr.bf16.mxu0 %v2588
        %3483 = vmatpush2.bf16.msra.mxu0 %v2587
        %3484 = vmatprep.subr.bf16.mxu0 %v2580
        %3485 = vmatpush2.bf16.msra.mxu0 %v2579
        %3486 = vmatprep.subr.bf16.mxu0 %v2572
        %3487 = vmatpush2.bf16.msra.mxu0 %v2571
        %3488 = vmatprep.subr.bf16.mxu0 %v2564
        %3489 = vmatpush2.bf16.msra.mxu0 %v2563
        %3490 = vmatprep.mubr.bf16.mxu0 %v790
        %3491 = vmatmul.mubr.bf16.gmra.mxu0 %v789
        %v3492 = vpop.f32.mrf.mxu0
        %v3493 = vadd.f32 %v3430, %v3492
        %v3494 = vpop.f32.mrf.mxu0
        %v3495 = vadd.f32 %v3432, %v3494
        %v3496 = vpop.f32.mrf.mxu0
        %v3497 = vadd.f32 %v3434, %v3496
        %v3498 = vpop.f32.mrf.mxu0
        %v3499 = vadd.f32 %v3436, %v3498
        %3500 = vmatprep.mubr.bf16.mxu0 %v798
        %3501 = vmatmul.mubr.bf16.gmra.mxu0 %v797
        %v3502 = vpop.f32.mrf.mxu0
        %v3503 = vadd.f32 %v3440, %v3502
        %v3504 = vpop.f32.mrf.mxu0
        %v3505 = vadd.f32 %v3442, %v3504
        %v3506 = vpop.f32.mrf.mxu0
        %v3507 = vadd.f32 %v3444, %v3506
        %v3508 = vpop.f32.mrf.mxu0
        %v3509 = vadd.f32 %v3446, %v3508
        %3510 = vmatprep.mubr.bf16.mxu0 %v806
        %3511 = vmatmul.mubr.bf16.gmra.mxu0 %v805
        %v3512 = vpop.f32.mrf.mxu0
        %v3513 = vadd.f32 %v3450, %v3512
        %v3514 = vpop.f32.mrf.mxu0
        %v3515 = vadd.f32 %v3452, %v3514
        %v3516 = vpop.f32.mrf.mxu0
        %v3517 = vadd.f32 %v3454, %v3516
        %v3518 = vpop.f32.mrf.mxu0
        %v3519 = vadd.f32 %v3456, %v3518
        %3520 = vdwg.mxu0
        %3521 = vmatprep.subr.bf16.mxu0 %v2684
        %3522 = vmatpush1.bf16.msra.mxu0 %v2683
        %3523 = vmatprep.subr.bf16.mxu0 %v2676
        %3524 = vmatpush1.bf16.msra.mxu0 %v2675
        %3525 = vmatprep.subr.bf16.mxu0 %v2668
        %3526 = vmatpush1.bf16.msra.mxu0 %v2667
        %3527 = vmatprep.subr.bf16.mxu0 %v2660
        %3528 = vmatpush1.bf16.msra.mxu0 %v2659
        %3529 = vmatprep.subr.bf16.mxu0 %v2652
        %3530 = vmatpush1.bf16.msra.mxu0 %v2651
        %3531 = vmatprep.subr.bf16.mxu0 %v2644
        %3532 = vmatpush1.bf16.msra.mxu0 %v2643
        %3533 = vmatprep.subr.bf16.mxu0 %v2636
        %3534 = vmatpush1.bf16.msra.mxu0 %v2635
        %3535 = vmatprep.subr.bf16.mxu0 %v2628
        %3536 = vmatpush1.bf16.msra.mxu0 %v2627
        %3537 = vmatprep.subr.bf16.mxu0 %v2748
        %3538 = vmatpush2.bf16.msra.mxu0 %v2747
        %3539 = vmatprep.subr.bf16.mxu0 %v2740
        %3540 = vmatpush2.bf16.msra.mxu0 %v2739
        %3541 = vmatprep.subr.bf16.mxu0 %v2732
        %3542 = vmatpush2.bf16.msra.mxu0 %v2731
        %3543 = vmatprep.subr.bf16.mxu0 %v2724
        %3544 = vmatpush2.bf16.msra.mxu0 %v2723
        %3545 = vmatprep.subr.bf16.mxu0 %v2716
        %3546 = vmatpush2.bf16.msra.mxu0 %v2715
        %3547 = vmatprep.subr.bf16.mxu0 %v2708
        %3548 = vmatpush2.bf16.msra.mxu0 %v2707
        %3549 = vmatprep.subr.bf16.mxu0 %v2700
        %3550 = vmatpush2.bf16.msra.mxu0 %v2699
        %3551 = vmatprep.subr.bf16.mxu0 %v2692
        %3552 = vmatpush2.bf16.msra.mxu0 %v2691
        %3553 = vmatprep.mubr.bf16.mxu0 %v792
        %3554 = vmatmul.mubr.bf16.gmra.mxu0 %v791
        %v3555 = vpop.f32.mrf.mxu0
        %v3556 = vadd.f32 %v3493, %v3555
        %v3557 = vpop.f32.mrf.mxu0
        %v3558 = vadd.f32 %v3495, %v3557
        %v3559 = vpop.f32.mrf.mxu0
        %v3560 = vadd.f32 %v3497, %v3559
        %v3561 = vpop.f32.mrf.mxu0
        %v3562 = vadd.f32 %v3499, %v3561
        %3563 = vmatprep.mubr.bf16.mxu0 %v800
        %3564 = vmatmul.mubr.bf16.gmra.mxu0 %v799
        %v3565 = vpop.f32.mrf.mxu0
        %v3566 = vadd.f32 %v3503, %v3565
        %v3567 = vpop.f32.mrf.mxu0
        %v3568 = vadd.f32 %v3505, %v3567
        %v3569 = vpop.f32.mrf.mxu0
        %v3570 = vadd.f32 %v3507, %v3569
        %v3571 = vpop.f32.mrf.mxu0
        %v3572 = vadd.f32 %v3509, %v3571
        %3573 = vmatprep.mubr.bf16.mxu0 %v808
        %3574 = vmatmul.mubr.bf16.gmra.mxu0 %v807
        %v3575 = vpop.f32.mrf.mxu0
        %v3576 = vadd.f32 %v3513, %v3575
        %v3577 = vpop.f32.mrf.mxu0
        %v3578 = vadd.f32 %v3515, %v3577
        %v3579 = vpop.f32.mrf.mxu0
        %v3580 = vadd.f32 %v3517, %v3579
        %v3581 = vpop.f32.mrf.mxu0
        %v3582 = vadd.f32 %v3519, %v3581
        %3583 = vdwg.mxu0
        %3584 = vmatprep.subr.bf16.mxu0 %v2812
        %3585 = vmatpush1.bf16.msra.mxu0 %v2811
        %3586 = vmatprep.subr.bf16.mxu0 %v2804
        %3587 = vmatpush1.bf16.msra.mxu0 %v2803
        %3588 = vmatprep.subr.bf16.mxu0 %v2796
        %3589 = vmatpush1.bf16.msra.mxu0 %v2795
        %3590 = vmatprep.subr.bf16.mxu0 %v2788
        %3591 = vmatpush1.bf16.msra.mxu0 %v2787
        %3592 = vmatprep.subr.bf16.mxu0 %v2780
        %3593 = vmatpush1.bf16.msra.mxu0 %v2779
        %3594 = vmatprep.subr.bf16.mxu0 %v2772
        %3595 = vmatpush1.bf16.msra.mxu0 %v2771
        %3596 = vmatprep.subr.bf16.mxu0 %v2764
        %3597 = vmatpush1.bf16.msra.mxu0 %v2763
        %3598 = vmatprep.subr.bf16.mxu0 %v2756
        %3599 = vmatpush1.bf16.msra.mxu0 %v2755
        %3600 = vmatprep.subr.bf16.mxu0 %v2876
        %3601 = vmatpush2.bf16.msra.mxu0 %v2875
        %3602 = vmatprep.subr.bf16.mxu0 %v2868
        %3603 = vmatpush2.bf16.msra.mxu0 %v2867
        %3604 = vmatprep.subr.bf16.mxu0 %v2860
        %3605 = vmatpush2.bf16.msra.mxu0 %v2859
        %3606 = vmatprep.subr.bf16.mxu0 %v2852
        %3607 = vmatpush2.bf16.msra.mxu0 %v2851
        %3608 = vmatprep.subr.bf16.mxu0 %v2844
        %3609 = vmatpush2.bf16.msra.mxu0 %v2843
        %3610 = vmatprep.subr.bf16.mxu0 %v2836
        %3611 = vmatpush2.bf16.msra.mxu0 %v2835
        %3612 = vmatprep.subr.bf16.mxu0 %v2828
        %3613 = vmatpush2.bf16.msra.mxu0 %v2827
        %3614 = vmatprep.subr.bf16.mxu0 %v2820
        %3615 = vmatpush2.bf16.msra.mxu0 %v2819
        %3616 = vmatprep.mubr.bf16.mxu0 %v794
        %3617 = vmatmul.mubr.bf16.gmra.mxu0 %v793
        %v3618 = vpop.f32.mrf.mxu0
        %v3619 = vadd.f32 %v3556, %v3618
        %v3620 = vpop.f32.mrf.mxu0
        %v3621 = vadd.f32 %v3558, %v3620
        %v3622 = vpop.f32.mrf.mxu0
        %v3623 = vadd.f32 %v3560, %v3622
        %v3624 = vpop.f32.mrf.mxu0
        %v3625 = vadd.f32 %v3562, %v3624
        %3626 = vmatprep.mubr.bf16.mxu0 %v802
        %3627 = vmatmul.mubr.bf16.gmra.mxu0 %v801
        %v3628 = vpop.f32.mrf.mxu0
        %v3629 = vadd.f32 %v3566, %v3628
        %v3630 = vpop.f32.mrf.mxu0
        %v3631 = vadd.f32 %v3568, %v3630
        %v3632 = vpop.f32.mrf.mxu0
        %v3633 = vadd.f32 %v3570, %v3632
        %v3634 = vpop.f32.mrf.mxu0
        %v3635 = vadd.f32 %v3572, %v3634
        %3636 = vmatprep.mubr.bf16.mxu0 %v810
        %3637 = vmatmul.mubr.bf16.gmra.mxu0 %v809
        %v3638 = vpop.f32.mrf.mxu0
        %v3639 = vadd.f32 %v3576, %v3638
        %v3640 = vpop.f32.mrf.mxu0
        %v3641 = vadd.f32 %v3578, %v3640
        %v3642 = vpop.f32.mrf.mxu0
        %v3643 = vadd.f32 %v3580, %v3642
        %v3644 = vpop.f32.mrf.mxu0
        %v3645 = vadd.f32 %v3582, %v3644
        %3646 = vdwg.mxu0
        %3647 = vmatprep.subr.bf16.mxu0 %v2430
        %3648 = vmatpush1.bf16.msra.mxu0 %v2429
        %3649 = vmatprep.subr.bf16.mxu0 %v2422
        %3650 = vmatpush1.bf16.msra.mxu0 %v2421
        %3651 = vmatprep.subr.bf16.mxu0 %v2414
        %3652 = vmatpush1.bf16.msra.mxu0 %v2413
        %3653 = vmatprep.subr.bf16.mxu0 %v2406
        %3654 = vmatpush1.bf16.msra.mxu0 %v2405
        %3655 = vmatprep.subr.bf16.mxu0 %v2398
        %3656 = vmatpush1.bf16.msra.mxu0 %v2397
        %3657 = vmatprep.subr.bf16.mxu0 %v2390
        %3658 = vmatpush1.bf16.msra.mxu0 %v2389
        %3659 = vmatprep.subr.bf16.mxu0 %v2382
        %3660 = vmatpush1.bf16.msra.mxu0 %v2381
        %3661 = vmatprep.subr.bf16.mxu0 %v2374
        %3662 = vmatpush1.bf16.msra.mxu0 %v2373
        %3663 = vmatprep.subr.bf16.mxu0 %v2494
        %3664 = vmatpush2.bf16.msra.mxu0 %v2493
        %3665 = vmatprep.subr.bf16.mxu0 %v2486
        %3666 = vmatpush2.bf16.msra.mxu0 %v2485
        %3667 = vmatprep.subr.bf16.mxu0 %v2478
        %3668 = vmatpush2.bf16.msra.mxu0 %v2477
        %3669 = vmatprep.subr.bf16.mxu0 %v2470
        %3670 = vmatpush2.bf16.msra.mxu0 %v2469
        %3671 = vmatprep.subr.bf16.mxu0 %v2462
        %3672 = vmatpush2.bf16.msra.mxu0 %v2461
        %3673 = vmatprep.subr.bf16.mxu0 %v2454
        %3674 = vmatpush2.bf16.msra.mxu0 %v2453
        %3675 = vmatprep.subr.bf16.mxu0 %v2446
        %3676 = vmatpush2.bf16.msra.mxu0 %v2445
        %3677 = vmatprep.subr.bf16.mxu0 %v2438
        %3678 = vmatpush2.bf16.msra.mxu0 %v2437
        %3679 = vmatprep.mubr.bf16.mxu0 %v788
        %3680 = vmatmul.mubr.bf16.gmra.mxu0 %v787
        %v3681 = vpop.f32.mrf.mxu0
        %v3682 = vadd.f32 0.0, %v3681
        %v3683 = vpop.f32.mrf.mxu0
        %v3684 = vadd.f32 0.0, %v3683
        %v3685 = vpop.f32.mrf.mxu0
        %v3686 = vadd.f32 0.0, %v3685
        %v3687 = vpop.f32.mrf.mxu0
        %v3688 = vadd.f32 0.0, %v3687
        %3689 = vmatprep.mubr.bf16.mxu0 %v796
        %3690 = vmatmul.mubr.bf16.gmra.mxu0 %v795
        %v3691 = vpop.f32.mrf.mxu0
        %v3692 = vadd.f32 0.0, %v3691
        %v3693 = vpop.f32.mrf.mxu0
        %v3694 = vadd.f32 0.0, %v3693
        %v3695 = vpop.f32.mrf.mxu0
        %v3696 = vadd.f32 0.0, %v3695
        %v3697 = vpop.f32.mrf.mxu0
        %v3698 = vadd.f32 0.0, %v3697
        %3699 = vmatprep.mubr.bf16.mxu0 %v804
        %3700 = vmatmul.mubr.bf16.gmra.mxu0 %v803
        %v3701 = vpop.f32.mrf.mxu0
        %v3702 = vadd.f32 0.0, %v3701
        %v3703 = vpop.f32.mrf.mxu0
        %v3704 = vadd.f32 0.0, %v3703
        %v3705 = vpop.f32.mrf.mxu0
        %v3706 = vadd.f32 0.0, %v3705
        %v3707 = vpop.f32.mrf.mxu0
        %v3708 = vadd.f32 0.0, %v3707
        %3709 = vdwg.mxu0
        %3710 = vmatprep.subr.bf16.mxu0 %v2558
        %3711 = vmatpush1.bf16.msra.mxu0 %v2557
        %3712 = vmatprep.subr.bf16.mxu0 %v2550
        %3713 = vmatpush1.bf16.msra.mxu0 %v2549
        %3714 = vmatprep.subr.bf16.mxu0 %v2542
        %3715 = vmatpush1.bf16.msra.mxu0 %v2541
        %3716 = vmatprep.subr.bf16.mxu0 %v2534
        %3717 = vmatpush1.bf16.msra.mxu0 %v2533
        %3718 = vmatprep.subr.bf16.mxu0 %v2526
        %3719 = vmatpush1.bf16.msra.mxu0 %v2525
        %3720 = vmatprep.subr.bf16.mxu0 %v2518
        %3721 = vmatpush1.bf16.msra.mxu0 %v2517
        %3722 = vmatprep.subr.bf16.mxu0 %v2510
        %3723 = vmatpush1.bf16.msra.mxu0 %v2509
        %3724 = vmatprep.subr.bf16.mxu0 %v2502
        %3725 = vmatpush1.bf16.msra.mxu0 %v2501
        %3726 = vmatprep.subr.bf16.mxu0 %v2622
        %3727 = vmatpush2.bf16.msra.mxu0 %v2621
        %3728 = vmatprep.subr.bf16.mxu0 %v2614
        %3729 = vmatpush2.bf16.msra.mxu0 %v2613
        %3730 = vmatprep.subr.bf16.mxu0 %v2606
        %3731 = vmatpush2.bf16.msra.mxu0 %v2605
        %3732 = vmatprep.subr.bf16.mxu0 %v2598
        %3733 = vmatpush2.bf16.msra.mxu0 %v2597
        %3734 = vmatprep.subr.bf16.mxu0 %v2590
        %3735 = vmatpush2.bf16.msra.mxu0 %v2589
        %3736 = vmatprep.subr.bf16.mxu0 %v2582
        %3737 = vmatpush2.bf16.msra.mxu0 %v2581
        %3738 = vmatprep.subr.bf16.mxu0 %v2574
        %3739 = vmatpush2.bf16.msra.mxu0 %v2573
        %3740 = vmatprep.subr.bf16.mxu0 %v2566
        %3741 = vmatpush2.bf16.msra.mxu0 %v2565
        %3742 = vmatprep.mubr.bf16.mxu0 %v790
        %3743 = vmatmul.mubr.bf16.gmra.mxu0 %v789
        %v3744 = vpop.f32.mrf.mxu0
        %v3745 = vadd.f32 %v3682, %v3744
        %v3746 = vpop.f32.mrf.mxu0
        %v3747 = vadd.f32 %v3684, %v3746
        %v3748 = vpop.f32.mrf.mxu0
        %v3749 = vadd.f32 %v3686, %v3748
        %v3750 = vpop.f32.mrf.mxu0
        %v3751 = vadd.f32 %v3688, %v3750
        %3752 = vmatprep.mubr.bf16.mxu0 %v798
        %3753 = vmatmul.mubr.bf16.gmra.mxu0 %v797
        %v3754 = vpop.f32.mrf.mxu0
        %v3755 = vadd.f32 %v3692, %v3754
        %v3756 = vpop.f32.mrf.mxu0
        %v3757 = vadd.f32 %v3694, %v3756
        %v3758 = vpop.f32.mrf.mxu0
        %v3759 = vadd.f32 %v3696, %v3758
        %v3760 = vpop.f32.mrf.mxu0
        %v3761 = vadd.f32 %v3698, %v3760
        %3762 = vmatprep.mubr.bf16.mxu0 %v806
        %3763 = vmatmul.mubr.bf16.gmra.mxu0 %v805
        %v3764 = vpop.f32.mrf.mxu0
        %v3765 = vadd.f32 %v3702, %v3764
        %v3766 = vpop.f32.mrf.mxu0
        %v3767 = vadd.f32 %v3704, %v3766
        %v3768 = vpop.f32.mrf.mxu0
        %v3769 = vadd.f32 %v3706, %v3768
        %v3770 = vpop.f32.mrf.mxu0
        %v3771 = vadd.f32 %v3708, %v3770
        %3772 = vdwg.mxu0
        %3773 = vmatprep.subr.bf16.mxu0 %v2686
        %3774 = vmatpush1.bf16.msra.mxu0 %v2685
        %3775 = vmatprep.subr.bf16.mxu0 %v2678
        %3776 = vmatpush1.bf16.msra.mxu0 %v2677
        %3777 = vmatprep.subr.bf16.mxu0 %v2670
        %3778 = vmatpush1.bf16.msra.mxu0 %v2669
        %3779 = vmatprep.subr.bf16.mxu0 %v2662
        %3780 = vmatpush1.bf16.msra.mxu0 %v2661
        %3781 = vmatprep.subr.bf16.mxu0 %v2654
        %3782 = vmatpush1.bf16.msra.mxu0 %v2653
        %3783 = vmatprep.subr.bf16.mxu0 %v2646
        %3784 = vmatpush1.bf16.msra.mxu0 %v2645
        %3785 = vmatprep.subr.bf16.mxu0 %v2638
        %3786 = vmatpush1.bf16.msra.mxu0 %v2637
        %3787 = vmatprep.subr.bf16.mxu0 %v2630
        %3788 = vmatpush1.bf16.msra.mxu0 %v2629
        %3789 = vmatprep.subr.bf16.mxu0 %v2750
        %3790 = vmatpush2.bf16.msra.mxu0 %v2749
        %3791 = vmatprep.subr.bf16.mxu0 %v2742
        %3792 = vmatpush2.bf16.msra.mxu0 %v2741
        %3793 = vmatprep.subr.bf16.mxu0 %v2734
        %3794 = vmatpush2.bf16.msra.mxu0 %v2733
        %3795 = vmatprep.subr.bf16.mxu0 %v2726
        %3796 = vmatpush2.bf16.msra.mxu0 %v2725
        %3797 = vmatprep.subr.bf16.mxu0 %v2718
        %3798 = vmatpush2.bf16.msra.mxu0 %v2717
        %3799 = vmatprep.subr.bf16.mxu0 %v2710
        %3800 = vmatpush2.bf16.msra.mxu0 %v2709
        %3801 = vmatprep.subr.bf16.mxu0 %v2702
        %3802 = vmatpush2.bf16.msra.mxu0 %v2701
        %3803 = vmatprep.subr.bf16.mxu0 %v2694
        %3804 = vmatpush2.bf16.msra.mxu0 %v2693
        %3805 = vmatprep.mubr.bf16.mxu0 %v792
        %3806 = vmatmul.mubr.bf16.gmra.mxu0 %v791
        %v3807 = vpop.f32.mrf.mxu0
        %v3808 = vadd.f32 %v3745, %v3807
        %v3809 = vpop.f32.mrf.mxu0
        %v3810 = vadd.f32 %v3747, %v3809
        %v3811 = vpop.f32.mrf.mxu0
        %v3812 = vadd.f32 %v3749, %v3811
        %v3813 = vpop.f32.mrf.mxu0
        %v3814 = vadd.f32 %v3751, %v3813
        %3815 = vmatprep.mubr.bf16.mxu0 %v800
        %3816 = vmatmul.mubr.bf16.gmra.mxu0 %v799
        %v3817 = vpop.f32.mrf.mxu0
        %v3818 = vadd.f32 %v3755, %v3817
        %v3819 = vpop.f32.mrf.mxu0
        %v3820 = vadd.f32 %v3757, %v3819
        %v3821 = vpop.f32.mrf.mxu0
        %v3822 = vadd.f32 %v3759, %v3821
        %v3823 = vpop.f32.mrf.mxu0
        %v3824 = vadd.f32 %v3761, %v3823
        %3825 = vmatprep.mubr.bf16.mxu0 %v808
        %3826 = vmatmul.mubr.bf16.gmra.mxu0 %v807
        %v3827 = vpop.f32.mrf.mxu0
        %v3828 = vadd.f32 %v3765, %v3827
        %v3829 = vpop.f32.mrf.mxu0
        %v3830 = vadd.f32 %v3767, %v3829
        %v3831 = vpop.f32.mrf.mxu0
        %v3832 = vadd.f32 %v3769, %v3831
        %v3833 = vpop.f32.mrf.mxu0
        %v3834 = vadd.f32 %v3771, %v3833
        %3835 = vdwg.mxu0
        %3836 = vmatprep.subr.bf16.mxu0 %v2814
        %3837 = vmatpush1.bf16.msra.mxu0 %v2813
        %3838 = vmatprep.subr.bf16.mxu0 %v2806
        %3839 = vmatpush1.bf16.msra.mxu0 %v2805
        %3840 = vmatprep.subr.bf16.mxu0 %v2798
        %3841 = vmatpush1.bf16.msra.mxu0 %v2797
        %3842 = vmatprep.subr.bf16.mxu0 %v2790
        %3843 = vmatpush1.bf16.msra.mxu0 %v2789
        %3844 = vmatprep.subr.bf16.mxu0 %v2782
        %3845 = vmatpush1.bf16.msra.mxu0 %v2781
        %3846 = vmatprep.subr.bf16.mxu0 %v2774
        %3847 = vmatpush1.bf16.msra.mxu0 %v2773
        %3848 = vmatprep.subr.bf16.mxu0 %v2766
        %3849 = vmatpush1.bf16.msra.mxu0 %v2765
        %3850 = vmatprep.subr.bf16.mxu0 %v2758
        %3851 = vmatpush1.bf16.msra.mxu0 %v2757
        %3852 = vmatprep.subr.bf16.mxu0 %v2878
        %3853 = vmatpush2.bf16.msra.mxu0 %v2877
        %3854 = vmatprep.subr.bf16.mxu0 %v2870
        %3855 = vmatpush2.bf16.msra.mxu0 %v2869
        %3856 = vmatprep.subr.bf16.mxu0 %v2862
        %3857 = vmatpush2.bf16.msra.mxu0 %v2861
        %3858 = vmatprep.subr.bf16.mxu0 %v2854
        %3859 = vmatpush2.bf16.msra.mxu0 %v2853
        %3860 = vmatprep.subr.bf16.mxu0 %v2846
        %3861 = vmatpush2.bf16.msra.mxu0 %v2845
        %3862 = vmatprep.subr.bf16.mxu0 %v2838
        %3863 = vmatpush2.bf16.msra.mxu0 %v2837
        %3864 = vmatprep.subr.bf16.mxu0 %v2830
        %3865 = vmatpush2.bf16.msra.mxu0 %v2829
        %3866 = vmatprep.subr.bf16.mxu0 %v2822
        %3867 = vmatpush2.bf16.msra.mxu0 %v2821
        %3868 = vmatprep.mubr.bf16.mxu0 %v794
        %3869 = vmatmul.mubr.bf16.gmra.mxu0 %v793
        %v3870 = vpop.f32.mrf.mxu0
        %v3871 = vadd.f32 %v3808, %v3870
        %v3872 = vpop.f32.mrf.mxu0
        %v3873 = vadd.f32 %v3810, %v3872
        %v3874 = vpop.f32.mrf.mxu0
        %v3875 = vadd.f32 %v3812, %v3874
        %v3876 = vpop.f32.mrf.mxu0
        %v3877 = vadd.f32 %v3814, %v3876
        %3878 = vmatprep.mubr.bf16.mxu0 %v802
        %3879 = vmatmul.mubr.bf16.gmra.mxu0 %v801
        %v3880 = vpop.f32.mrf.mxu0
        %v3881 = vadd.f32 %v3818, %v3880
        %v3882 = vpop.f32.mrf.mxu0
        %v3883 = vadd.f32 %v3820, %v3882
        %v3884 = vpop.f32.mrf.mxu0
        %v3885 = vadd.f32 %v3822, %v3884
        %v3886 = vpop.f32.mrf.mxu0
        %v3887 = vadd.f32 %v3824, %v3886
        %3888 = vmatprep.mubr.bf16.mxu0 %v810
        %3889 = vmatmul.mubr.bf16.gmra.mxu0 %v809
        %v3890 = vpop.f32.mrf.mxu0
        %v3891 = vadd.f32 %v3828, %v3890
        %v3892 = vpop.f32.mrf.mxu0
        %v3893 = vadd.f32 %v3830, %v3892
        %v3894 = vpop.f32.mrf.mxu0
        %v3895 = vadd.f32 %v3832, %v3894
        %v3896 = vpop.f32.mrf.mxu0
        %v3897 = vadd.f32 %v3834, %v3896
        %3898 = vdwg.mxu0
        %3899 = vmatprep.subr.bf16.mxu0 %v2432
        %3900 = vmatpush1.bf16.msra.mxu0 %v2431
        %3901 = vmatprep.subr.bf16.mxu0 %v2424
        %3902 = vmatpush1.bf16.msra.mxu0 %v2423
        %3903 = vmatprep.subr.bf16.mxu0 %v2416
        %3904 = vmatpush1.bf16.msra.mxu0 %v2415
        %3905 = vmatprep.subr.bf16.mxu0 %v2408
        %3906 = vmatpush1.bf16.msra.mxu0 %v2407
        %3907 = vmatprep.subr.bf16.mxu0 %v2400
        %3908 = vmatpush1.bf16.msra.mxu0 %v2399
        %3909 = vmatprep.subr.bf16.mxu0 %v2392
        %3910 = vmatpush1.bf16.msra.mxu0 %v2391
        %3911 = vmatprep.subr.bf16.mxu0 %v2384
        %3912 = vmatpush1.bf16.msra.mxu0 %v2383
        %3913 = vmatprep.subr.bf16.mxu0 %v2376
        %3914 = vmatpush1.bf16.msra.mxu0 %v2375
        %3915 = vmatprep.subr.bf16.mxu0 %v2496
        %3916 = vmatpush2.bf16.msra.mxu0 %v2495
        %3917 = vmatprep.subr.bf16.mxu0 %v2488
        %3918 = vmatpush2.bf16.msra.mxu0 %v2487
        %3919 = vmatprep.subr.bf16.mxu0 %v2480
        %3920 = vmatpush2.bf16.msra.mxu0 %v2479
        %3921 = vmatprep.subr.bf16.mxu0 %v2472
        %3922 = vmatpush2.bf16.msra.mxu0 %v2471
        %3923 = vmatprep.subr.bf16.mxu0 %v2464
        %3924 = vmatpush2.bf16.msra.mxu0 %v2463
        %3925 = vmatprep.subr.bf16.mxu0 %v2456
        %3926 = vmatpush2.bf16.msra.mxu0 %v2455
        %3927 = vmatprep.subr.bf16.mxu0 %v2448
        %3928 = vmatpush2.bf16.msra.mxu0 %v2447
        %3929 = vmatprep.subr.bf16.mxu0 %v2440
        %3930 = vmatpush2.bf16.msra.mxu0 %v2439
        %3931 = vmatprep.mubr.bf16.mxu0 %v788
        %3932 = vmatmul.mubr.bf16.gmra.mxu0 %v787
        %v3933 = vpop.f32.mrf.mxu0
        %v3934 = vadd.f32 0.0, %v3933
        %v3935 = vpop.f32.mrf.mxu0
        %v3936 = vadd.f32 0.0, %v3935
        %v3937 = vpop.f32.mrf.mxu0
        %v3938 = vadd.f32 0.0, %v3937
        %v3939 = vpop.f32.mrf.mxu0
        %v3940 = vadd.f32 0.0, %v3939
        %3941 = vmatprep.mubr.bf16.mxu0 %v796
        %3942 = vmatmul.mubr.bf16.gmra.mxu0 %v795
        %v3943 = vpop.f32.mrf.mxu0
        %v3944 = vadd.f32 0.0, %v3943
        %v3945 = vpop.f32.mrf.mxu0
        %v3946 = vadd.f32 0.0, %v3945
        %v3947 = vpop.f32.mrf.mxu0
        %v3948 = vadd.f32 0.0, %v3947
        %v3949 = vpop.f32.mrf.mxu0
        %v3950 = vadd.f32 0.0, %v3949
        %3951 = vmatprep.mubr.bf16.mxu0 %v804
        %3952 = vmatmul.mubr.bf16.gmra.mxu0 %v803
        %v3953 = vpop.f32.mrf.mxu0
        %v3954 = vadd.f32 0.0, %v3953
        %v3955 = vpop.f32.mrf.mxu0
        %v3956 = vadd.f32 0.0, %v3955
        %v3957 = vpop.f32.mrf.mxu0
        %v3958 = vadd.f32 0.0, %v3957
        %v3959 = vpop.f32.mrf.mxu0
        %v3960 = vadd.f32 0.0, %v3959
        %3961 = vdwg.mxu0
        %3962 = vmatprep.subr.bf16.mxu0 %v2560
        %3963 = vmatpush1.bf16.msra.mxu0 %v2559
        %3964 = vmatprep.subr.bf16.mxu0 %v2552
        %3965 = vmatpush1.bf16.msra.mxu0 %v2551
        %3966 = vmatprep.subr.bf16.mxu0 %v2544
        %3967 = vmatpush1.bf16.msra.mxu0 %v2543
        %3968 = vmatprep.subr.bf16.mxu0 %v2536
        %3969 = vmatpush1.bf16.msra.mxu0 %v2535
        %3970 = vmatprep.subr.bf16.mxu0 %v2528
        %3971 = vmatpush1.bf16.msra.mxu0 %v2527
        %3972 = vmatprep.subr.bf16.mxu0 %v2520
        %3973 = vmatpush1.bf16.msra.mxu0 %v2519
        %3974 = vmatprep.subr.bf16.mxu0 %v2512
        %3975 = vmatpush1.bf16.msra.mxu0 %v2511
        %3976 = vmatprep.subr.bf16.mxu0 %v2504
        %3977 = vmatpush1.bf16.msra.mxu0 %v2503
        %3978 = vmatprep.subr.bf16.mxu0 %v2624
        %3979 = vmatpush2.bf16.msra.mxu0 %v2623
        %3980 = vmatprep.subr.bf16.mxu0 %v2616
        %3981 = vmatpush2.bf16.msra.mxu0 %v2615
        %3982 = vmatprep.subr.bf16.mxu0 %v2608
        %3983 = vmatpush2.bf16.msra.mxu0 %v2607
        %3984 = vmatprep.subr.bf16.mxu0 %v2600
        %3985 = vmatpush2.bf16.msra.mxu0 %v2599
        %3986 = vmatprep.subr.bf16.mxu0 %v2592
        %3987 = vmatpush2.bf16.msra.mxu0 %v2591
        %3988 = vmatprep.subr.bf16.mxu0 %v2584
        %3989 = vmatpush2.bf16.msra.mxu0 %v2583
        %3990 = vmatprep.subr.bf16.mxu0 %v2576
        %3991 = vmatpush2.bf16.msra.mxu0 %v2575
        %3992 = vmatprep.subr.bf16.mxu0 %v2568
        %3993 = vmatpush2.bf16.msra.mxu0 %v2567
        %3994 = vmatprep.mubr.bf16.mxu0 %v790
        %3995 = vmatmul.mubr.bf16.gmra.mxu0 %v789
        %v3996 = vpop.f32.mrf.mxu0
        %v3997 = vadd.f32 %v3934, %v3996
        %v3998 = vpop.f32.mrf.mxu0
        %v3999 = vadd.f32 %v3936, %v3998
        %v4000 = vpop.f32.mrf.mxu0
        %v4001 = vadd.f32 %v3938, %v4000
        %v4002 = vpop.f32.mrf.mxu0
        %v4003 = vadd.f32 %v3940, %v4002
        %4004 = vmatprep.mubr.bf16.mxu0 %v798
        %4005 = vmatmul.mubr.bf16.gmra.mxu0 %v797
        %v4006 = vpop.f32.mrf.mxu0
        %v4007 = vadd.f32 %v3944, %v4006
        %v4008 = vpop.f32.mrf.mxu0
        %v4009 = vadd.f32 %v3946, %v4008
        %v4010 = vpop.f32.mrf.mxu0
        %v4011 = vadd.f32 %v3948, %v4010
        %v4012 = vpop.f32.mrf.mxu0
        %v4013 = vadd.f32 %v3950, %v4012
        %4014 = vmatprep.mubr.bf16.mxu0 %v806
        %4015 = vmatmul.mubr.bf16.gmra.mxu0 %v805
        %v4016 = vpop.f32.mrf.mxu0
        %v4017 = vadd.f32 %v3954, %v4016
        %v4018 = vpop.f32.mrf.mxu0
        %v4019 = vadd.f32 %v3956, %v4018
        %v4020 = vpop.f32.mrf.mxu0
        %v4021 = vadd.f32 %v3958, %v4020
        %v4022 = vpop.f32.mrf.mxu0
        %v4023 = vadd.f32 %v3960, %v4022
        %4024 = vdwg.mxu0
        %4025 = vmatprep.subr.bf16.mxu0 %v2688
        %4026 = vmatpush1.bf16.msra.mxu0 %v2687
        %4027 = vmatprep.subr.bf16.mxu0 %v2680
        %4028 = vmatpush1.bf16.msra.mxu0 %v2679
        %4029 = vmatprep.subr.bf16.mxu0 %v2672
        %4030 = vmatpush1.bf16.msra.mxu0 %v2671
        %4031 = vmatprep.subr.bf16.mxu0 %v2664
        %4032 = vmatpush1.bf16.msra.mxu0 %v2663
        %4033 = vmatprep.subr.bf16.mxu0 %v2656
        %4034 = vmatpush1.bf16.msra.mxu0 %v2655
        %4035 = vmatprep.subr.bf16.mxu0 %v2648
        %4036 = vmatpush1.bf16.msra.mxu0 %v2647
        %4037 = vmatprep.subr.bf16.mxu0 %v2640
        %4038 = vmatpush1.bf16.msra.mxu0 %v2639
        %4039 = vmatprep.subr.bf16.mxu0 %v2632
        %4040 = vmatpush1.bf16.msra.mxu0 %v2631
        %4041 = vmatprep.subr.bf16.mxu0 %v2752
        %4042 = vmatpush2.bf16.msra.mxu0 %v2751
        %4043 = vmatprep.subr.bf16.mxu0 %v2744
        %4044 = vmatpush2.bf16.msra.mxu0 %v2743
        %4045 = vmatprep.subr.bf16.mxu0 %v2736
        %4046 = vmatpush2.bf16.msra.mxu0 %v2735
        %4047 = vmatprep.subr.bf16.mxu0 %v2728
        %4048 = vmatpush2.bf16.msra.mxu0 %v2727
        %4049 = vmatprep.subr.bf16.mxu0 %v2720
        %4050 = vmatpush2.bf16.msra.mxu0 %v2719
        %4051 = vmatprep.subr.bf16.mxu0 %v2712
        %4052 = vmatpush2.bf16.msra.mxu0 %v2711
        %4053 = vmatprep.subr.bf16.mxu0 %v2704
        %4054 = vmatpush2.bf16.msra.mxu0 %v2703
        %4055 = vmatprep.subr.bf16.mxu0 %v2696
        %4056 = vmatpush2.bf16.msra.mxu0 %v2695
        %4057 = vmatprep.mubr.bf16.mxu0 %v792
        %4058 = vmatmul.mubr.bf16.gmra.mxu0 %v791
        %v4059 = vpop.f32.mrf.mxu0
        %v4060 = vadd.f32 %v3997, %v4059
        %v4061 = vpop.f32.mrf.mxu0
        %v4062 = vadd.f32 %v3999, %v4061
        %v4063 = vpop.f32.mrf.mxu0
        %v4064 = vadd.f32 %v4001, %v4063
        %v4065 = vpop.f32.mrf.mxu0
        %v4066 = vadd.f32 %v4003, %v4065
        %4067 = vmatprep.mubr.bf16.mxu0 %v800
        %4068 = vmatmul.mubr.bf16.gmra.mxu0 %v799
        %v4069 = vpop.f32.mrf.mxu0
        %v4070 = vadd.f32 %v4007, %v4069
        %v4071 = vpop.f32.mrf.mxu0
        %v4072 = vadd.f32 %v4009, %v4071
        %v4073 = vpop.f32.mrf.mxu0
        %v4074 = vadd.f32 %v4011, %v4073
        %v4075 = vpop.f32.mrf.mxu0
        %v4076 = vadd.f32 %v4013, %v4075
        %4077 = vmatprep.mubr.bf16.mxu0 %v808
        %4078 = vmatmul.mubr.bf16.gmra.mxu0 %v807
        %v4079 = vpop.f32.mrf.mxu0
        %v4080 = vadd.f32 %v4017, %v4079
        %v4081 = vpop.f32.mrf.mxu0
        %v4082 = vadd.f32 %v4019, %v4081
        %v4083 = vpop.f32.mrf.mxu0
        %v4084 = vadd.f32 %v4021, %v4083
        %v4085 = vpop.f32.mrf.mxu0
        %v4086 = vadd.f32 %v4023, %v4085
        %4087 = vdwg.mxu0
        %4088 = vmatprep.subr.bf16.mxu0 %v2816
        %4089 = vmatpush1.bf16.msra.mxu0 %v2815
        %4090 = vmatprep.subr.bf16.mxu0 %v2808
        %4091 = vmatpush1.bf16.msra.mxu0 %v2807
        %4092 = vmatprep.subr.bf16.mxu0 %v2800
        %4093 = vmatpush1.bf16.msra.mxu0 %v2799
        %4094 = vmatprep.subr.bf16.mxu0 %v2792
        %4095 = vmatpush1.bf16.msra.mxu0 %v2791
        %4096 = vmatprep.subr.bf16.mxu0 %v2784
        %4097 = vmatpush1.bf16.msra.mxu0 %v2783
        %4098 = vmatprep.subr.bf16.mxu0 %v2776
        %4099 = vmatpush1.bf16.msra.mxu0 %v2775
        %4100 = vmatprep.subr.bf16.mxu0 %v2768
        %4101 = vmatpush1.bf16.msra.mxu0 %v2767
        %4102 = vmatprep.subr.bf16.mxu0 %v2760
        %4103 = vmatpush1.bf16.msra.mxu0 %v2759
        %4104 = vmatprep.subr.bf16.mxu0 %v2880
        %4105 = vmatpush2.bf16.msra.mxu0 %v2879
        %4106 = vmatprep.subr.bf16.mxu0 %v2872
        %4107 = vmatpush2.bf16.msra.mxu0 %v2871
        %4108 = vmatprep.subr.bf16.mxu0 %v2864
        %4109 = vmatpush2.bf16.msra.mxu0 %v2863
        %4110 = vmatprep.subr.bf16.mxu0 %v2856
        %4111 = vmatpush2.bf16.msra.mxu0 %v2855
        %4112 = vmatprep.subr.bf16.mxu0 %v2848
        %4113 = vmatpush2.bf16.msra.mxu0 %v2847
        %4114 = vmatprep.subr.bf16.mxu0 %v2840
        %4115 = vmatpush2.bf16.msra.mxu0 %v2839
        %4116 = vmatprep.subr.bf16.mxu0 %v2832
        %4117 = vmatpush2.bf16.msra.mxu0 %v2831
        %4118 = vmatprep.subr.bf16.mxu0 %v2824
        %4119 = vmatpush2.bf16.msra.mxu0 %v2823
        %4120 = vmatprep.mubr.bf16.mxu0 %v794
        %4121 = vmatmul.mubr.bf16.gmra.mxu0 %v793
        %v4122 = vpop.f32.mrf.mxu0
        %v4123 = vadd.f32 %v4060, %v4122
        %v4124 = vpop.f32.mrf.mxu0
        %v4125 = vadd.f32 %v4062, %v4124
        %v4126 = vpop.f32.mrf.mxu0
        %v4127 = vadd.f32 %v4064, %v4126
        %v4128 = vpop.f32.mrf.mxu0
        %v4129 = vadd.f32 %v4066, %v4128
        %4130 = vmatprep.mubr.bf16.mxu0 %v802
        %4131 = vmatmul.mubr.bf16.gmra.mxu0 %v801
        %v4132 = vpop.f32.mrf.mxu0
        %v4133 = vadd.f32 %v4070, %v4132
        %v4134 = vpop.f32.mrf.mxu0
        %v4135 = vadd.f32 %v4072, %v4134
        %v4136 = vpop.f32.mrf.mxu0
        %v4137 = vadd.f32 %v4074, %v4136
        %v4138 = vpop.f32.mrf.mxu0
        %v4139 = vadd.f32 %v4076, %v4138
        %4140 = vmatprep.mubr.bf16.mxu0 %v810
        %4141 = vmatmul.mubr.bf16.gmra.mxu0 %v809
        %v4142 = vpop.f32.mrf.mxu0
        %v4143 = vadd.f32 %v4080, %v4142
        %v4144 = vpop.f32.mrf.mxu0
        %v4145 = vadd.f32 %v4082, %v4144
        %v4146 = vpop.f32.mrf.mxu0
        %v4147 = vadd.f32 %v4084, %v4146
        %v4148 = vpop.f32.mrf.mxu0
        %v4149 = vadd.f32 %v4086, %v4148
        %4150 = vdwg.mxu0
        %4151 = vmatprep.subr.bf16.mxu0 %v2434
        %4152 = vmatpush1.bf16.msra.mxu0 %v2433
        %4153 = vmatprep.subr.bf16.mxu0 %v2426
        %4154 = vmatpush1.bf16.msra.mxu0 %v2425
        %4155 = vmatprep.subr.bf16.mxu0 %v2418
        %4156 = vmatpush1.bf16.msra.mxu0 %v2417
        %4157 = vmatprep.subr.bf16.mxu0 %v2410
        %4158 = vmatpush1.bf16.msra.mxu0 %v2409
        %4159 = vmatprep.subr.bf16.mxu0 %v2402
        %4160 = vmatpush1.bf16.msra.mxu0 %v2401
        %4161 = vmatprep.subr.bf16.mxu0 %v2394
        %4162 = vmatpush1.bf16.msra.mxu0 %v2393
        %4163 = vmatprep.subr.bf16.mxu0 %v2386
        %4164 = vmatpush1.bf16.msra.mxu0 %v2385
        %4165 = vmatprep.subr.bf16.mxu0 %v2378
        %4166 = vmatpush1.bf16.msra.mxu0 %v2377
        %4167 = vmatprep.subr.bf16.mxu0 %v2498
        %4168 = vmatpush2.bf16.msra.mxu0 %v2497
        %4169 = vmatprep.subr.bf16.mxu0 %v2490
        %4170 = vmatpush2.bf16.msra.mxu0 %v2489
        %4171 = vmatprep.subr.bf16.mxu0 %v2482
        %4172 = vmatpush2.bf16.msra.mxu0 %v2481
        %4173 = vmatprep.subr.bf16.mxu0 %v2474
        %4174 = vmatpush2.bf16.msra.mxu0 %v2473
        %4175 = vmatprep.subr.bf16.mxu0 %v2466
        %4176 = vmatpush2.bf16.msra.mxu0 %v2465
        %4177 = vmatprep.subr.bf16.mxu0 %v2458
        %4178 = vmatpush2.bf16.msra.mxu0 %v2457
        %4179 = vmatprep.subr.bf16.mxu0 %v2450
        %4180 = vmatpush2.bf16.msra.mxu0 %v2449
        %4181 = vmatprep.subr.bf16.mxu0 %v2442
        %4182 = vmatpush2.bf16.msra.mxu0 %v2441
        %4183 = vmatprep.mubr.bf16.mxu0 %v788
        %4184 = vmatmul.mubr.bf16.gmra.mxu0 %v787
        %v4185 = vpop.f32.mrf.mxu0
        %v4186 = vadd.f32 0.0, %v4185
        %v4187 = vpop.f32.mrf.mxu0
        %v4188 = vadd.f32 0.0, %v4187
        %v4189 = vpop.f32.mrf.mxu0
        %v4190 = vadd.f32 0.0, %v4189
        %v4191 = vpop.f32.mrf.mxu0
        %v4192 = vadd.f32 0.0, %v4191
        %4193 = vmatprep.mubr.bf16.mxu0 %v796
        %4194 = vmatmul.mubr.bf16.gmra.mxu0 %v795
        %v4195 = vpop.f32.mrf.mxu0
        %v4196 = vadd.f32 0.0, %v4195
        %v4197 = vpop.f32.mrf.mxu0
        %v4198 = vadd.f32 0.0, %v4197
        %v4199 = vpop.f32.mrf.mxu0
        %v4200 = vadd.f32 0.0, %v4199
        %v4201 = vpop.f32.mrf.mxu0
        %v4202 = vadd.f32 0.0, %v4201
        %4203 = vmatprep.mubr.bf16.mxu0 %v804
        %4204 = vmatmul.mubr.bf16.gmra.mxu0 %v803
        %v4205 = vpop.f32.mrf.mxu0
        %v4206 = vadd.f32 0.0, %v4205
        %v4207 = vpop.f32.mrf.mxu0
        %v4208 = vadd.f32 0.0, %v4207
        %v4209 = vpop.f32.mrf.mxu0
        %v4210 = vadd.f32 0.0, %v4209
        %v4211 = vpop.f32.mrf.mxu0
        %v4212 = vadd.f32 0.0, %v4211
        %4213 = vdwg.mxu0
        %4214 = vmatprep.subr.bf16.mxu0 %v2562
        %4215 = vmatpush1.bf16.msra.mxu0 %v2561
        %4216 = vmatprep.subr.bf16.mxu0 %v2554
        %4217 = vmatpush1.bf16.msra.mxu0 %v2553
        %4218 = vmatprep.subr.bf16.mxu0 %v2546
        %4219 = vmatpush1.bf16.msra.mxu0 %v2545
        %4220 = vmatprep.subr.bf16.mxu0 %v2538
        %4221 = vmatpush1.bf16.msra.mxu0 %v2537
        %4222 = vmatprep.subr.bf16.mxu0 %v2530
        %4223 = vmatpush1.bf16.msra.mxu0 %v2529
        %4224 = vmatprep.subr.bf16.mxu0 %v2522
        %4225 = vmatpush1.bf16.msra.mxu0 %v2521
        %4226 = vmatprep.subr.bf16.mxu0 %v2514
        %4227 = vmatpush1.bf16.msra.mxu0 %v2513
        %4228 = vmatprep.subr.bf16.mxu0 %v2506
        %4229 = vmatpush1.bf16.msra.mxu0 %v2505
        %4230 = vmatprep.subr.bf16.mxu0 %v2626
        %4231 = vmatpush2.bf16.msra.mxu0 %v2625
        %4232 = vmatprep.subr.bf16.mxu0 %v2618
        %4233 = vmatpush2.bf16.msra.mxu0 %v2617
        %4234 = vmatprep.subr.bf16.mxu0 %v2610
        %4235 = vmatpush2.bf16.msra.mxu0 %v2609
        %4236 = vmatprep.subr.bf16.mxu0 %v2602
        %4237 = vmatpush2.bf16.msra.mxu0 %v2601
        %4238 = vmatprep.subr.bf16.mxu0 %v2594
        %4239 = vmatpush2.bf16.msra.mxu0 %v2593
        %4240 = vmatprep.subr.bf16.mxu0 %v2586
        %4241 = vmatpush2.bf16.msra.mxu0 %v2585
        %4242 = vmatprep.subr.bf16.mxu0 %v2578
        %4243 = vmatpush2.bf16.msra.mxu0 %v2577
        %4244 = vmatprep.subr.bf16.mxu0 %v2570
        %4245 = vmatpush2.bf16.msra.mxu0 %v2569
        %4246 = vmatprep.mubr.bf16.mxu0 %v790
        %4247 = vmatmul.mubr.bf16.gmra.mxu0 %v789
        %v4248 = vpop.f32.mrf.mxu0
        %v4249 = vadd.f32 %v4186, %v4248
        %v4250 = vpop.f32.mrf.mxu0
        %v4251 = vadd.f32 %v4188, %v4250
        %v4252 = vpop.f32.mrf.mxu0
        %v4253 = vadd.f32 %v4190, %v4252
        %v4254 = vpop.f32.mrf.mxu0
        %v4255 = vadd.f32 %v4192, %v4254
        %4256 = vmatprep.mubr.bf16.mxu0 %v798
        %4257 = vmatmul.mubr.bf16.gmra.mxu0 %v797
        %v4258 = vpop.f32.mrf.mxu0
        %v4259 = vadd.f32 %v4196, %v4258
        %v4260 = vpop.f32.mrf.mxu0
        %v4261 = vadd.f32 %v4198, %v4260
        %v4262 = vpop.f32.mrf.mxu0
        %v4263 = vadd.f32 %v4200, %v4262
        %v4264 = vpop.f32.mrf.mxu0
        %v4265 = vadd.f32 %v4202, %v4264
        %4266 = vmatprep.mubr.bf16.mxu0 %v806
        %4267 = vmatmul.mubr.bf16.gmra.mxu0 %v805
        %v4268 = vpop.f32.mrf.mxu0
        %v4269 = vadd.f32 %v4206, %v4268
        %v4270 = vpop.f32.mrf.mxu0
        %v4271 = vadd.f32 %v4208, %v4270
        %v4272 = vpop.f32.mrf.mxu0
        %v4273 = vadd.f32 %v4210, %v4272
        %v4274 = vpop.f32.mrf.mxu0
        %v4275 = vadd.f32 %v4212, %v4274
        %4276 = vdwg.mxu0
        %4277 = vmatprep.subr.bf16.mxu0 %v2690
        %4278 = vmatpush1.bf16.msra.mxu0 %v2689
        %4279 = vmatprep.subr.bf16.mxu0 %v2682
        %4280 = vmatpush1.bf16.msra.mxu0 %v2681
        %4281 = vmatprep.subr.bf16.mxu0 %v2674
        %4282 = vmatpush1.bf16.msra.mxu0 %v2673
        %4283 = vmatprep.subr.bf16.mxu0 %v2666
        %4284 = vmatpush1.bf16.msra.mxu0 %v2665
        %4285 = vmatprep.subr.bf16.mxu0 %v2658
        %4286 = vmatpush1.bf16.msra.mxu0 %v2657
        %4287 = vmatprep.subr.bf16.mxu0 %v2650
        %4288 = vmatpush1.bf16.msra.mxu0 %v2649
        %4289 = vmatprep.subr.bf16.mxu0 %v2642
        %4290 = vmatpush1.bf16.msra.mxu0 %v2641
        %4291 = vmatprep.subr.bf16.mxu0 %v2634
        %4292 = vmatpush1.bf16.msra.mxu0 %v2633
        %4293 = vmatprep.subr.bf16.mxu0 %v2754
        %4294 = vmatpush2.bf16.msra.mxu0 %v2753
        %4295 = vmatprep.subr.bf16.mxu0 %v2746
        %4296 = vmatpush2.bf16.msra.mxu0 %v2745
        %4297 = vmatprep.subr.bf16.mxu0 %v2738
        %4298 = vmatpush2.bf16.msra.mxu0 %v2737
        %4299 = vmatprep.subr.bf16.mxu0 %v2730
        %4300 = vmatpush2.bf16.msra.mxu0 %v2729
        %4301 = vmatprep.subr.bf16.mxu0 %v2722
        %4302 = vmatpush2.bf16.msra.mxu0 %v2721
        %4303 = vmatprep.subr.bf16.mxu0 %v2714
        %4304 = vmatpush2.bf16.msra.mxu0 %v2713
        %4305 = vmatprep.subr.bf16.mxu0 %v2706
        %4306 = vmatpush2.bf16.msra.mxu0 %v2705
        %4307 = vmatprep.subr.bf16.mxu0 %v2698
        %4308 = vmatpush2.bf16.msra.mxu0 %v2697
        %4309 = vmatprep.mubr.bf16.mxu0 %v792
        %4310 = vmatmul.mubr.bf16.gmra.mxu0 %v791
        %v4311 = vpop.f32.mrf.mxu0
        %v4312 = vadd.f32 %v4249, %v4311
        %v4313 = vpop.f32.mrf.mxu0
        %v4314 = vadd.f32 %v4251, %v4313
        %v4315 = vpop.f32.mrf.mxu0
        %v4316 = vadd.f32 %v4253, %v4315
        %v4317 = vpop.f32.mrf.mxu0
        %v4318 = vadd.f32 %v4255, %v4317
        %4319 = vmatprep.mubr.bf16.mxu0 %v800
        %4320 = vmatmul.mubr.bf16.gmra.mxu0 %v799
        %v4321 = vpop.f32.mrf.mxu0
        %v4322 = vadd.f32 %v4259, %v4321
        %v4323 = vpop.f32.mrf.mxu0
        %v4324 = vadd.f32 %v4261, %v4323
        %v4325 = vpop.f32.mrf.mxu0
        %v4326 = vadd.f32 %v4263, %v4325
        %v4327 = vpop.f32.mrf.mxu0
        %v4328 = vadd.f32 %v4265, %v4327
        %4329 = vmatprep.mubr.bf16.mxu0 %v808
        %4330 = vmatmul.mubr.bf16.gmra.mxu0 %v807
        %v4331 = vpop.f32.mrf.mxu0
        %v4332 = vadd.f32 %v4269, %v4331
        %v4333 = vpop.f32.mrf.mxu0
        %v4334 = vadd.f32 %v4271, %v4333
        %v4335 = vpop.f32.mrf.mxu0
        %v4336 = vadd.f32 %v4273, %v4335
        %v4337 = vpop.f32.mrf.mxu0
        %v4338 = vadd.f32 %v4275, %v4337
        %4339 = vdwg.mxu0
        %4340 = vmatprep.subr.bf16.mxu0 %v2818
        %4341 = vmatpush1.bf16.msra.mxu0 %v2817
        %4342 = vmatprep.subr.bf16.mxu0 %v2810
        %4343 = vmatpush1.bf16.msra.mxu0 %v2809
        %4344 = vmatprep.subr.bf16.mxu0 %v2802
        %4345 = vmatpush1.bf16.msra.mxu0 %v2801
        %4346 = vmatprep.subr.bf16.mxu0 %v2794
        %4347 = vmatpush1.bf16.msra.mxu0 %v2793
        %4348 = vmatprep.subr.bf16.mxu0 %v2786
        %4349 = vmatpush1.bf16.msra.mxu0 %v2785
        %4350 = vmatprep.subr.bf16.mxu0 %v2778
        %4351 = vmatpush1.bf16.msra.mxu0 %v2777
        %4352 = vmatprep.subr.bf16.mxu0 %v2770
        %4353 = vmatpush1.bf16.msra.mxu0 %v2769
        %4354 = vmatprep.subr.bf16.mxu0 %v2762
        %4355 = vmatpush1.bf16.msra.mxu0 %v2761
        %4356 = vmatprep.subr.bf16.mxu0 %v2882
        %4357 = vmatpush2.bf16.msra.mxu0 %v2881
        %4358 = vmatprep.subr.bf16.mxu0 %v2874
        %4359 = vmatpush2.bf16.msra.mxu0 %v2873
        %4360 = vmatprep.subr.bf16.mxu0 %v2866
        %4361 = vmatpush2.bf16.msra.mxu0 %v2865
        %4362 = vmatprep.subr.bf16.mxu0 %v2858
        %4363 = vmatpush2.bf16.msra.mxu0 %v2857
        %4364 = vmatprep.subr.bf16.mxu0 %v2850
        %4365 = vmatpush2.bf16.msra.mxu0 %v2849
        %4366 = vmatprep.subr.bf16.mxu0 %v2842
        %4367 = vmatpush2.bf16.msra.mxu0 %v2841
        %4368 = vmatprep.subr.bf16.mxu0 %v2834
        %4369 = vmatpush2.bf16.msra.mxu0 %v2833
        %4370 = vmatprep.subr.bf16.mxu0 %v2826
        %4371 = vmatpush2.bf16.msra.mxu0 %v2825
        %4372 = vmatprep.mubr.bf16.mxu0 %v794
        %4373 = vmatmul.mubr.bf16.gmra.mxu0 %v793
        %v4374 = vpop.f32.mrf.mxu0
        %v4375 = vadd.f32 %v4312, %v4374
        %v4376 = vpop.f32.mrf.mxu0
        %v4377 = vadd.f32 %v4314, %v4376
        %v4378 = vpop.f32.mrf.mxu0
        %v4379 = vadd.f32 %v4316, %v4378
        %v4380 = vpop.f32.mrf.mxu0
        %v4381 = vadd.f32 %v4318, %v4380
        %4382 = vmatprep.mubr.bf16.mxu0 %v802
        %4383 = vmatmul.mubr.bf16.gmra.mxu0 %v801
        %v4384 = vpop.f32.mrf.mxu0
        %v4385 = vadd.f32 %v4322, %v4384
        %v4386 = vpop.f32.mrf.mxu0
        %v4387 = vadd.f32 %v4324, %v4386
        %v4388 = vpop.f32.mrf.mxu0
        %v4389 = vadd.f32 %v4326, %v4388
        %v4390 = vpop.f32.mrf.mxu0
        %v4391 = vadd.f32 %v4328, %v4390
        %4392 = vmatprep.mubr.bf16.mxu0 %v810
        %4393 = vmatmul.mubr.bf16.gmra.mxu0 %v809
        %v4394 = vpop.f32.mrf.mxu0
        %v4395 = vadd.f32 %v4332, %v4394
        %v4396 = vpop.f32.mrf.mxu0
        %v4397 = vadd.f32 %v4334, %v4396
        %v4398 = vpop.f32.mrf.mxu0
        %v4399 = vadd.f32 %v4336, %v4398
        %v4400 = vpop.f32.mrf.mxu0
        %v4401 = vadd.f32 %v4338, %v4400
        %4402 = vdwg.mxu0
        %v4403 = vmul.f32 %v3619, %v3619
        %v4404 = vmul.f32 %v3621, %v3621
        %v4405 = vmul.f32 %v3871, %v3871
        %v4406 = vmul.f32 %v3873, %v3873
        %v4407 = vmul.f32 %v3623, %v3623
        %v4408 = vmul.f32 %v3625, %v3625
        %v4409 = vmul.f32 %v3875, %v3875
        %v4410 = vmul.f32 %v3877, %v3877
        %v4411 = vmul.f32 %v3629, %v3629
        %v4412 = vmul.f32 %v3631, %v3631
        %v4413 = vmul.f32 %v3881, %v3881
        %v4414 = vmul.f32 %v3883, %v3883
        %v4415 = vmul.f32 %v3633, %v3633
        %v4416 = vmul.f32 %v3635, %v3635
        %v4417 = vmul.f32 %v3885, %v3885
        %v4418 = vmul.f32 %v3887, %v3887
        %v4419 = vmul.f32 %v3639, %v3639
        %v4420 = vmul.f32 %v3641, %v3641
        %v4421 = vmul.f32 %v3891, %v3891
        %v4422 = vmul.f32 %v3893, %v3893
        %v4423 = vmul.f32 %v3643, %v3643
        %v4424 = vmul.f32 %v3645, %v3645
        %v4425 = vmul.f32 %v3895, %v3895
        %v4426 = vmul.f32 %v3897, %v3897
        %v4427 = vmul.f32 %v4123, %v4123
        %v4428 = vmul.f32 %v4125, %v4125
        %v4429 = vmul.f32 %v4375, %v4375
        %v4430 = vmul.f32 %v4377, %v4377
        %v4431 = vmul.f32 %v4127, %v4127
        %v4432 = vmul.f32 %v4129, %v4129
        %v4433 = vmul.f32 %v4379, %v4379
        %v4434 = vmul.f32 %v4381, %v4381
        %v4435 = vmul.f32 %v4133, %v4133
        %v4436 = vmul.f32 %v4135, %v4135
        %v4437 = vmul.f32 %v4385, %v4385
        %v4438 = vmul.f32 %v4387, %v4387
        %v4439 = vmul.f32 %v4137, %v4137
        %v4440 = vmul.f32 %v4139, %v4139
        %v4441 = vmul.f32 %v4389, %v4389
        %v4442 = vmul.f32 %v4391, %v4391
        %v4443 = vmul.f32 %v4143, %v4143
        %v4444 = vmul.f32 %v4145, %v4145
        %v4445 = vmul.f32 %v4395, %v4395
        %v4446 = vmul.f32 %v4397, %v4397
        %v4447 = vmul.f32 %v4147, %v4147
        %v4448 = vmul.f32 %v4149, %v4149
        %v4449 = vmul.f32 %v4399, %v4399
        %v4450 = vmul.f32 %v4401, %v4401
        %v4451 = vadd.f32 %v4403, %v4427
        %v4452 = vadd.f32 %v4404, %v4428
        %v4453 = vadd.f32 %v4405, %v4429
        %v4454 = vadd.f32 %v4406, %v4430
        %v4455 = vadd.f32 %v4407, %v4431
        %v4456 = vadd.f32 %v4408, %v4432
        %v4457 = vadd.f32 %v4409, %v4433
        %v4458 = vadd.f32 %v4410, %v4434
        %v4459 = vadd.f32 %v4411, %v4435
        %v4460 = vadd.f32 %v4412, %v4436
        %v4461 = vadd.f32 %v4413, %v4437
        %v4462 = vadd.f32 %v4414, %v4438
        %v4463 = vadd.f32 %v4415, %v4439
        %v4464 = vadd.f32 %v4416, %v4440
        %v4465 = vadd.f32 %v4417, %v4441
        %v4466 = vadd.f32 %v4418, %v4442
        %v4467 = vadd.f32 %v4419, %v4443
        %v4468 = vadd.f32 %v4420, %v4444
        %v4469 = vadd.f32 %v4421, %v4445
        %v4470 = vadd.f32 %v4422, %v4446
        %v4471 = vadd.f32 %v4423, %v4447
        %v4472 = vadd.f32 %v4424, %v4448
        %v4473 = vadd.f32 %v4425, %v4449
        %v4474 = vadd.f32 %v4426, %v4450
        %v4475 = vmax.f32 %v4451, 1e-08
        %v4476 = vmax.f32 %v4452, 1e-08
        %v4477 = vmax.f32 %v4453, 1e-08
        %v4478 = vmax.f32 %v4454, 1e-08
        %v4479 = vmax.f32 %v4455, 1e-08
        %v4480 = vmax.f32 %v4456, 1e-08
        %v4481 = vmax.f32 %v4457, 1e-08
        %v4482 = vmax.f32 %v4458, 1e-08
        %v4483 = vmax.f32 %v4459, 1e-08
        %v4484 = vmax.f32 %v4460, 1e-08
        %v4485 = vmax.f32 %v4461, 1e-08
        %v4486 = vmax.f32 %v4462, 1e-08
        %v4487 = vmax.f32 %v4463, 1e-08
        %v4488 = vmax.f32 %v4464, 1e-08
        %v4489 = vmax.f32 %v4465, 1e-08
        %v4490 = vmax.f32 %v4466, 1e-08
        %v4491 = vmax.f32 %v4467, 1e-08
        %v4492 = vmax.f32 %v4468, 1e-08
        %v4493 = vmax.f32 %v4469, 1e-08
        %v4494 = vmax.f32 %v4470, 1e-08
        %v4495 = vmax.f32 %v4471, 1e-08
        %v4496 = vmax.f32 %v4472, 1e-08
        %v4497 = vmax.f32 %v4473, 1e-08
        %v4498 = vmax.f32 %v4474, 1e-08
        %v4499 = vlog2.pop %v4487
        %v4500 = vmul.f32 %v4499, 0.6931472
        %v4501 = vlog2.pop %v4488
        %v4502 = vmul.f32 %v4501, 0.6931472
        %v4503 = vlog2.pop %v4489
        %v4504 = vmul.f32 %v4503, 0.6931472
        %v4505 = vlog2.pop %v4490
        %v4506 = vmul.f32 %v4505, 0.6931472
        %v4507 = vlog2.pop %v4491
        %v4508 = vmul.f32 %v4507, 0.6931472
        %v4509 = vlog2.pop %v4492
        %v4510 = vmul.f32 %v4509, 0.6931472
        %v4511 = vlog2.pop %v4493
        %v4512 = vmul.f32 %v4511, 0.6931472
        %v4513 = vlog2.pop %v4494
        %v4514 = vmul.f32 %v4513, 0.6931472
        %v4515 = vlog2.pop %v4495
        %v4516 = vmul.f32 %v4515, 0.6931472
        %v4517 = vlog2.pop %v4496
        %v4518 = vmul.f32 %v4517, 0.6931472
        %v4519 = vlog2.pop %v4497
        %v4520 = vmul.f32 %v4519, 0.6931472
        %v4521 = vlog2.pop %v4498
        %v4522 = vmul.f32 %v4521, 0.6931472
        %v4523 = vlog2.pop %v4475
        %v4524 = vmul.f32 %v4523, 0.6931472
        %v4525 = vlog2.pop %v4476
        %v4526 = vmul.f32 %v4525, 0.6931472
        %v4527 = vlog2.pop %v4477
        %v4528 = vmul.f32 %v4527, 0.6931472
        %v4529 = vlog2.pop %v4478
        %v4530 = vmul.f32 %v4529, 0.6931472
        %v4531 = vlog2.pop %v4479
        %v4532 = vmul.f32 %v4531, 0.6931472
        %v4533 = vlog2.pop %v4480
        %v4534 = vmul.f32 %v4533, 0.6931472
        %v4535 = vlog2.pop %v4481
        %v4536 = vmul.f32 %v4535, 0.6931472
        %v4537 = vlog2.pop %v4482
        %v4538 = vmul.f32 %v4537, 0.6931472
        %v4539 = vlog2.pop %v4483
        %v4540 = vmul.f32 %v4539, 0.6931472
        %v4541 = vlog2.pop %v4484
        %v4542 = vmul.f32 %v4541, 0.6931472
        %v4543 = vlog2.pop %v4485
        %v4544 = vmul.f32 %v4543, 0.6931472
        %v4545 = vlog2.pop %v4486
        %v4546 = vmul.f32 %v4545, 0.6931472
        %v4547 = vsub.f32 %v4500, %v4524
        %v4548 = vsub.f32 %v4502, %v4526
        %v4549 = vsub.f32 %v4504, %v4528
        %v4550 = vsub.f32 %v4506, %v4530
        %v4551 = vsub.f32 %v4508, %v4532
        %v4552 = vsub.f32 %v4510, %v4534
        %v4553 = vsub.f32 %v4512, %v4536
        %v4554 = vsub.f32 %v4514, %v4538
        %v4555 = vsub.f32 %v4516, %v4540
        %v4556 = vsub.f32 %v4518, %v4542
        %v4557 = vsub.f32 %v4520, %v4544
        %v4558 = vsub.f32 %v4522, %v4546
        %v4559 = vand.u32 2147483647, %v4547
        %v4560 = vand.u32 2147483647, %v4548
        %v4561 = vand.u32 2147483647, %v4549
        %v4562 = vand.u32 2147483647, %v4550
        %v4563 = vand.u32 2147483647, %v4551
        %v4564 = vand.u32 2147483647, %v4552
        %v4565 = vand.u32 2147483647, %v4553
        %v4566 = vand.u32 2147483647, %v4554
        %v4567 = vand.u32 2147483647, %v4555
        %v4568 = vand.u32 2147483647, %v4556
        %v4569 = vand.u32 2147483647, %v4557
        %v4570 = vand.u32 2147483647, %v4558
        %v4571 = vmul.f32 %v4559, 0.5
        %v4572 = vmul.f32 %v4560, 0.5
        %v4573 = vmul.f32 %v4561, 0.5
        %v4574 = vmul.f32 %v4562, 0.5
        %v4575 = vmul.f32 %v4563, 0.5
        %v4576 = vmul.f32 %v4564, 0.5
        %v4577 = vmul.f32 %v4565, 0.5
        %v4578 = vmul.f32 %v4566, 0.5
        %v4579 = vmul.f32 %v4567, 0.5
        %v4580 = vmul.f32 %v4568, 0.5
        %v4581 = vmul.f32 %v4569, 0.5
        %v4582 = vmul.f32 %v4570, 0.5
        %v4583 = vrsqrt.pop %v4487
        %v4584 = vmul.f32 %v4487, %v4583
        %vm4585 = vcmp.eq.f32.partialorder %v4487, inf
        %v4586 = vsel %vm4585, %v4487, %v4584
        %vm4587 = vcmp.eq.f32.partialorder %v4487, 0.0
        %v4588 = vand.u32 %v4487, 2147483648
        %v4589 = vsel %vm4587, %v4588, %v4586
        %v4590 = vrsqrt.pop %v4488
        %v4591 = vmul.f32 %v4488, %v4590
        %vm4592 = vcmp.eq.f32.partialorder %v4488, inf
        %v4593 = vsel %vm4592, %v4488, %v4591
        %vm4594 = vcmp.eq.f32.partialorder %v4488, 0.0
        %v4595 = vand.u32 %v4488, 2147483648
        %v4596 = vsel %vm4594, %v4595, %v4593
        %v4597 = vrsqrt.pop %v4489
        %v4598 = vmul.f32 %v4489, %v4597
        %vm4599 = vcmp.eq.f32.partialorder %v4489, inf
        %v4600 = vsel %vm4599, %v4489, %v4598
        %vm4601 = vcmp.eq.f32.partialorder %v4489, 0.0
        %v4602 = vand.u32 %v4489, 2147483648
        %v4603 = vsel %vm4601, %v4602, %v4600
        %v4604 = vrsqrt.pop %v4490
        %v4605 = vmul.f32 %v4490, %v4604
        %vm4606 = vcmp.eq.f32.partialorder %v4490, inf
        %v4607 = vsel %vm4606, %v4490, %v4605
        %vm4608 = vcmp.eq.f32.partialorder %v4490, 0.0
        %v4609 = vand.u32 %v4490, 2147483648
        %v4610 = vsel %vm4608, %v4609, %v4607
        %v4611 = vrsqrt.pop %v4491
        %v4612 = vmul.f32 %v4491, %v4611
        %vm4613 = vcmp.eq.f32.partialorder %v4491, inf
        %v4614 = vsel %vm4613, %v4491, %v4612
        %vm4615 = vcmp.eq.f32.partialorder %v4491, 0.0
        %v4616 = vand.u32 %v4491, 2147483648
        %v4617 = vsel %vm4615, %v4616, %v4614
        %v4618 = vrsqrt.pop %v4492
        %v4619 = vmul.f32 %v4492, %v4618
        %vm4620 = vcmp.eq.f32.partialorder %v4492, inf
        %v4621 = vsel %vm4620, %v4492, %v4619
        %vm4622 = vcmp.eq.f32.partialorder %v4492, 0.0
        %v4623 = vand.u32 %v4492, 2147483648
        %v4624 = vsel %vm4622, %v4623, %v4621
        %v4625 = vrsqrt.pop %v4493
        %v4626 = vmul.f32 %v4493, %v4625
        %vm4627 = vcmp.eq.f32.partialorder %v4493, inf
        %v4628 = vsel %vm4627, %v4493, %v4626
        %vm4629 = vcmp.eq.f32.partialorder %v4493, 0.0
        %v4630 = vand.u32 %v4493, 2147483648
        %v4631 = vsel %vm4629, %v4630, %v4628
        %v4632 = vrsqrt.pop %v4494
        %v4633 = vmul.f32 %v4494, %v4632
        %vm4634 = vcmp.eq.f32.partialorder %v4494, inf
        %v4635 = vsel %vm4634, %v4494, %v4633
        %vm4636 = vcmp.eq.f32.partialorder %v4494, 0.0
        %v4637 = vand.u32 %v4494, 2147483648
        %v4638 = vsel %vm4636, %v4637, %v4635
        %v4639 = vrsqrt.pop %v4495
        %v4640 = vmul.f32 %v4495, %v4639
        %vm4641 = vcmp.eq.f32.partialorder %v4495, inf
        %v4642 = vsel %vm4641, %v4495, %v4640
        %vm4643 = vcmp.eq.f32.partialorder %v4495, 0.0
        %v4644 = vand.u32 %v4495, 2147483648
        %v4645 = vsel %vm4643, %v4644, %v4642
        %v4646 = vrsqrt.pop %v4496
        %v4647 = vmul.f32 %v4496, %v4646
        %vm4648 = vcmp.eq.f32.partialorder %v4496, inf
        %v4649 = vsel %vm4648, %v4496, %v4647
        %vm4650 = vcmp.eq.f32.partialorder %v4496, 0.0
        %v4651 = vand.u32 %v4496, 2147483648
        %v4652 = vsel %vm4650, %v4651, %v4649
        %v4653 = vrsqrt.pop %v4497
        %v4654 = vmul.f32 %v4497, %v4653
        %vm4655 = vcmp.eq.f32.partialorder %v4497, inf
        %v4656 = vsel %vm4655, %v4497, %v4654
        %vm4657 = vcmp.eq.f32.partialorder %v4497, 0.0
        %v4658 = vand.u32 %v4497, 2147483648
        %v4659 = vsel %vm4657, %v4658, %v4656
        %v4660 = vrsqrt.pop %v4498
        %v4661 = vmul.f32 %v4498, %v4660
        %vm4662 = vcmp.eq.f32.partialorder %v4498, inf
        %v4663 = vsel %vm4662, %v4498, %v4661
        %vm4664 = vcmp.eq.f32.partialorder %v4498, 0.0
        %v4665 = vand.u32 %v4498, 2147483648
        %v4666 = vsel %vm4664, %v4665, %v4663
        %v4667 = vrsqrt.pop %v4475
        %v4668 = vmul.f32 %v4475, %v4667
        %vm4669 = vcmp.eq.f32.partialorder %v4475, inf
        %v4670 = vsel %vm4669, %v4475, %v4668
        %vm4671 = vcmp.eq.f32.partialorder %v4475, 0.0
        %v4672 = vand.u32 %v4475, 2147483648
        %v4673 = vsel %vm4671, %v4672, %v4670
        %v4674 = vrsqrt.pop %v4476
        %v4675 = vmul.f32 %v4476, %v4674
        %vm4676 = vcmp.eq.f32.partialorder %v4476, inf
        %v4677 = vsel %vm4676, %v4476, %v4675
        %vm4678 = vcmp.eq.f32.partialorder %v4476, 0.0
        %v4679 = vand.u32 %v4476, 2147483648
        %v4680 = vsel %vm4678, %v4679, %v4677
        %v4681 = vrsqrt.pop %v4477
        %v4682 = vmul.f32 %v4477, %v4681
        %vm4683 = vcmp.eq.f32.partialorder %v4477, inf
        %v4684 = vsel %vm4683, %v4477, %v4682
        %vm4685 = vcmp.eq.f32.partialorder %v4477, 0.0
        %v4686 = vand.u32 %v4477, 2147483648
        %v4687 = vsel %vm4685, %v4686, %v4684
        %v4688 = vrsqrt.pop %v4478
        %v4689 = vmul.f32 %v4478, %v4688
        %vm4690 = vcmp.eq.f32.partialorder %v4478, inf
        %v4691 = vsel %vm4690, %v4478, %v4689
        %vm4692 = vcmp.eq.f32.partialorder %v4478, 0.0
        %v4693 = vand.u32 %v4478, 2147483648
        %v4694 = vsel %vm4692, %v4693, %v4691
        %v4695 = vrsqrt.pop %v4479
        %v4696 = vmul.f32 %v4479, %v4695
        %vm4697 = vcmp.eq.f32.partialorder %v4479, inf
        %v4698 = vsel %vm4697, %v4479, %v4696
        %vm4699 = vcmp.eq.f32.partialorder %v4479, 0.0
        %v4700 = vand.u32 %v4479, 2147483648
        %v4701 = vsel %vm4699, %v4700, %v4698
        %v4702 = vrsqrt.pop %v4480
        %v4703 = vmul.f32 %v4480, %v4702
        %vm4704 = vcmp.eq.f32.partialorder %v4480, inf
        %v4705 = vsel %vm4704, %v4480, %v4703
        %vm4706 = vcmp.eq.f32.partialorder %v4480, 0.0
        %v4707 = vand.u32 %v4480, 2147483648
        %v4708 = vsel %vm4706, %v4707, %v4705
        %v4709 = vrsqrt.pop %v4481
        %v4710 = vmul.f32 %v4481, %v4709
        %vm4711 = vcmp.eq.f32.partialorder %v4481, inf
        %v4712 = vsel %vm4711, %v4481, %v4710
        %vm4713 = vcmp.eq.f32.partialorder %v4481, 0.0
        %v4714 = vand.u32 %v4481, 2147483648
        %v4715 = vsel %vm4713, %v4714, %v4712
        %v4716 = vrsqrt.pop %v4482
        %v4717 = vmul.f32 %v4482, %v4716
        %vm4718 = vcmp.eq.f32.partialorder %v4482, inf
        %v4719 = vsel %vm4718, %v4482, %v4717
        %vm4720 = vcmp.eq.f32.partialorder %v4482, 0.0
        %v4721 = vand.u32 %v4482, 2147483648
        %v4722 = vsel %vm4720, %v4721, %v4719
        %v4723 = vrsqrt.pop %v4483
        %v4724 = vmul.f32 %v4483, %v4723
        %vm4725 = vcmp.eq.f32.partialorder %v4483, inf
        %v4726 = vsel %vm4725, %v4483, %v4724
        %vm4727 = vcmp.eq.f32.partialorder %v4483, 0.0
        %v4728 = vand.u32 %v4483, 2147483648
        %v4729 = vsel %vm4727, %v4728, %v4726
        %v4730 = vrsqrt.pop %v4484
        %v4731 = vmul.f32 %v4484, %v4730
        %vm4732 = vcmp.eq.f32.partialorder %v4484, inf
        %v4733 = vsel %vm4732, %v4484, %v4731
        %vm4734 = vcmp.eq.f32.partialorder %v4484, 0.0
        %v4735 = vand.u32 %v4484, 2147483648
        %v4736 = vsel %vm4734, %v4735, %v4733
        %v4737 = vrsqrt.pop %v4485
        %v4738 = vmul.f32 %v4485, %v4737
        %vm4739 = vcmp.eq.f32.partialorder %v4485, inf
        %v4740 = vsel %vm4739, %v4485, %v4738
        %vm4741 = vcmp.eq.f32.partialorder %v4485, 0.0
        %v4742 = vand.u32 %v4485, 2147483648
        %v4743 = vsel %vm4741, %v4742, %v4740
        %v4744 = vrsqrt.pop %v4486
        %v4745 = vmul.f32 %v4486, %v4744
        %vm4746 = vcmp.eq.f32.partialorder %v4486, inf
        %v4747 = vsel %vm4746, %v4486, %v4745
        %vm4748 = vcmp.eq.f32.partialorder %v4486, 0.0
        %v4749 = vand.u32 %v4486, 2147483648
        %v4750 = vsel %vm4748, %v4749, %v4747
        %v4751 = vsub.f32 %v4589, %v4673
        %v4752 = vsub.f32 %v4596, %v4680
        %v4753 = vsub.f32 %v4603, %v4687
        %v4754 = vsub.f32 %v4610, %v4694
        %v4755 = vsub.f32 %v4617, %v4701
        %v4756 = vsub.f32 %v4624, %v4708
        %v4757 = vsub.f32 %v4631, %v4715
        %v4758 = vsub.f32 %v4638, %v4722
        %v4759 = vsub.f32 %v4645, %v4729
        %v4760 = vsub.f32 %v4652, %v4736
        %v4761 = vsub.f32 %v4659, %v4743
        %v4762 = vsub.f32 %v4666, %v4750
        %v4763 = vadd.f32 %v4571, %v4575
        %v4764 = vadd.f32 %v4763, %v4579
        %v4765 = vadd.f32 %v4572, %v4576
        %v4766 = vadd.f32 %v4765, %v4580
        %v4767 = vadd.f32 %v4573, %v4577
        %v4768 = vadd.f32 %v4767, %v4581
        %v4769 = vadd.f32 %v4574, %v4578
        %v4770 = vadd.f32 %v4769, %v4582
        %4771 = vst [vmem:[%s177] sm:$0xff] %v4764
        %4772 = vst [vmem:[%s177 + $0x8] sm:$0xff] %v4766
        %4773 = vst [vmem:[%s177 + $0x10] sm:$0xff] %v4768
        %4774 = vst [vmem:[%s177 + $0x18] sm:$0xff] %v4770
        %v4775 = vmul.f32 %v4751, %v4751
        %v4776 = vmul.f32 %v4752, %v4752
        %v4777 = vmul.f32 %v4753, %v4753
        %v4778 = vmul.f32 %v4754, %v4754
        %v4779 = vmul.f32 %v4755, %v4755
        %v4780 = vmul.f32 %v4756, %v4756
        %v4781 = vmul.f32 %v4757, %v4757
        %v4782 = vmul.f32 %v4758, %v4758
        %v4783 = vmul.f32 %v4759, %v4759
        %v4784 = vmul.f32 %v4760, %v4760
        %v4785 = vmul.f32 %v4761, %v4761
        %v4786 = vmul.f32 %v4762, %v4762
        %v4787 = vadd.f32 %v4775, %v4779
        %v4788 = vadd.f32 %v4787, %v4783
        %v4789 = vadd.f32 %v4776, %v4780
        %v4790 = vadd.f32 %v4789, %v4784
        %v4791 = vadd.f32 %v4777, %v4781
        %v4792 = vadd.f32 %v4791, %v4785
        %v4793 = vadd.f32 %v4778, %v4782
        %v4794 = vadd.f32 %v4793, %v4786
        %4795 = vst [vmem:[%s177 + $0x20] sm:$0xff] %v4788
        %4796 = vst [vmem:[%s177 + $0x28] sm:$0xff] %v4790
        %4797 = vst [vmem:[%s177 + $0x30] sm:$0xff] %v4792
        %4798 = vst [vmem:[%s177 + $0x38] sm:$0xff] %v4794
        %v4799 = vadd.f32 %v4487, %v4491
        %v4800 = vadd.f32 %v4799, %v4495
        %v4801 = vadd.f32 %v4488, %v4492
        %v4802 = vadd.f32 %v4801, %v4496
        %v4803 = vadd.f32 %v4489, %v4493
        %v4804 = vadd.f32 %v4803, %v4497
        %v4805 = vadd.f32 %v4490, %v4494
        %v4806 = vadd.f32 %v4805, %v4498
        %4807 = vst [vmem:[%s177 + $0x40] sm:$0xff] %v4800
        %4808 = vst [vmem:[%s177 + $0x48] sm:$0xff] %v4802
        %4809 = vst [vmem:[%s177 + $0x50] sm:$0xff] %v4804
        %4810 = vst [vmem:[%s177 + $0x58] sm:$0xff] %v4806
        %s4811 = sand.u32 %s75, 1
        %s4812 = scalar_lea.sflag [#allocation4], %s4811
        %s4813 = sand.u32 %s75, 1
        %s4814 = smul.addr %s4813, 96
        %s4815 = scalar_lea.vmem [#allocation7], %s4814
        // Predicated region
        $region37: #{tpu_custom_call.1} parent=27 // pred_check
          %p4816 = pneg %p85
        $region38: #{tpu_custom_call.1} parent=27 // pred_check_branch
          %4818 = sbr.rel (%p4816) target = $region40
        $region39: #{tpu_custom_call.1} parent=27 // pred_region
          %s4820 = ssub.s32 1536, 1536
          %4821 = vsyncadd %s4812, %s4820
          %s4822 = smul.addr %s20, 12
          %s4823 = smul.addr %s4822, 128
          %s4824 = scalar_lea.hbm %s2, %s4823
          %s4826 = sshll.u32 %s4815, 4
          %s4827 = int_to_ptr.vmem [resolvable:$true] %s4826
          %4829 = dma.vmem_to_hbm [thread:$0]  %s4827, 1536, %s4824, %s4812
        $region40: #{tpu_custom_call.1} parent=27 // pred_fallthru
          _
      $region28: #{tpu_custom_call.1} parent=5 // pred_fallthru
        _
      %p4830 = scmp.le.s32.totalorder 2, %s15
      // Predicated region
      $region41: #{tpu_custom_call.1} parent=5 // pred_check
        %p4831 = pneg %p4830
      $region42: #{tpu_custom_call.1} parent=5 // pred_check_branch
        %4833 = sbr.rel (%p4831) target = $region44
      $region43: #{tpu_custom_call.1} parent=5 // pred_region
        %s4834 = ssub.s32 %s15, 2
        // Predicated region
        $region45: #{tpu_custom_call.1} parent=43 // pred_check
          %p4835 = pneg %p91
        $region46: #{tpu_custom_call.1} parent=43 // pred_check_branch
          %4837 = sbr.rel (%p4835) target = $region48
        $region47: #{tpu_custom_call.1} parent=43 // pred_region
          %s4838 = sand.u32 %s76, 1
          %s4839 = scalar_lea.sflag [#allocation4], %s4838
          %s4840 = sand.u32 %s76, 1
          %s4841 = smul.addr %s4840, 96
          %s4842 = scalar_lea.vmem [#allocation7], %s4841
          %4843 = dma.done %s4839, 1536
        $region48: #{tpu_custom_call.1} parent=43 // pred_fallthru
          _
      $region44: #{tpu_custom_call.1} parent=5 // pred_fallthru
        _
    $region6: #{tpu_custom_call.1} parent=1 // loop_footer
      %s19 = sadd.s32 1, %s15
    $region7: #{tpu_custom_call.1} parent=1 // loop_footer_branch
      %14 = sbr.rel target = $region3
    $region8: #{tpu_custom_call.1} parent=1 // loop_exit
      _
    %4844 = vsyncpa [#allocation3], 1
    %s4845 = scalar_lea.sflag [#allocation3], 1
    %4846 = vsyncpa %s4845, 1
    %4847 = vsyncpa [#allocation6], 1
    %4848 = vsyncpa [#allocation4], 1
    %s4849 = scalar_lea.sflag [#allocation4], 1
    %4850 = vsyncpa %s4849, 1

// kernel: tpu_custom_call.1
$region0: #{tpu_custom_call.1}
  #allocation0 [shape = 'u32[]', space=smem, size = 0x4, offset = 0x4, fixed_abs, tag = 'smem constant byte address 0x4 - core index']
  #allocation1 [shape = 'u32[144,128]{1,0:T(1,128)}', space=vmem, size = 0x12000, scoped, tag = 'internal scratch']
  %s0 = inlined_call_operand.hbm [shape: bf16[96,1024], index: 0, kind: input, shape index: {}]
  %s1 = inlined_call_operand.hbm [shape: bf16[1024,1024], index: 1, kind: input, shape index: {}]
  %s2 = inlined_call_operand.hbm [shape: f32[2,8,1536], index: 2, kind: output, shape index: {}]
  %s3 = sld [smem:[#allocation0]]
  $region49: #{tpu_custom_call.1} parent=0
    _
  %s5 = ssub.s32 1, %s3
  %s6 = scalar_select 0, %s5, %s3
  $region1: #{tpu_custom_call.1} parent=0
    #allocation2 [shape = 'u8[196608]{0}', space=vmem, size = 0x30000, scoped, tag = 'input window, operand 0']
    #allocation3 [shape = 's32[2]{0}', space=sflag, size = 0x8, scoped, tag = 'scoped memory for tpu_custom_call.1']
    #allocation4 [shape = 's32[2]{0}', space=sflag, size = 0x8, scoped, tag = 'scoped memory for tpu_custom_call.1']
    #allocation5 [shape = 'u8[2097152]{0}', space=vmem, size = 0x200000, scoped, tag = 'input window, operand 1, single buffered']
    #allocation6 [shape = 's32[1]{0}', space=sflag, size = 0x4, scoped, tag = 'scoped memory for tpu_custom_call.1']
    #allocation7 [shape = 'u8[98304]{0}', space=vmem, size = 0x18000, scoped, tag = 'output window, operand 0']
    %7 = vsyncpa [#allocation3], 0
    %s8 = scalar_lea.sflag [#allocation3], 1
    %9 = vsyncpa %s8, 0
    %10 = vsyncpa [#allocation6], 0
    %11 = vsyncpa [#allocation4], 0
    %s12 = scalar_lea.sflag [#allocation4], 1
    %13 = vsyncpa %s12, 0
    loop: start=0, step=1, limit=4
    $region2: #{tpu_custom_call.1} parent=1 // loop_pre_header
      _
    $region3: #{tpu_custom_call.1} parent=1 // loop_header
      %s15 = sphi 0, %s19
      %p16 = scmp.ge.s32.totalorder %s15, 4
      %s25 = sphi 0, %s27
      %s28 = sphi 0, %s25
      %s29 = sphi 0, %s28
      %s45 = sphi 0, %s29
      %s49 = sphi 0, %s49
      %s51 = sphi 0, %s49
      %s52 = sphi 0, %s51
      %s66 = sphi 0, %s52
      %s72 = sphi 0, %s74
      %s75 = sphi 0, %s72
      %s76 = sphi 0, %s75
      %s92 = sphi 0, %s76
    $region4: #{tpu_custom_call.1} parent=1 // loop_header_branch
      %18 = sbr.rel (%p16) target = $region8
    $region5: #{tpu_custom_call.1} parent=1 // loop_body
      %s20 = ssub.s32 %s15, 1
      %s21 = ssub.s32 %s15, 2
      %s22 = sadd.s32 %s15, 1
      %s23 = ssub.s32 %s15, %s22
      %p24 = scmp.eq.s32.totalorder %s23, 0
      %s26 = sadd.s32 %s25, 1
      %s27 = scalar_select %p24, %s25, %s26
      %p30 = pneg %p24
      %p31 = scmp.eq.s32.totalorder %s15, 1
      %p32 = por %p30, %p31
      %p33 = scmp.ne.s32.totalorder %s25, %s28
      %p34 = scmp.eq.s32.totalorder %s15, 0
      %p35 = por %p33, %p34
      %p36 = scmp.ne.s32.totalorder %s25, %s28
      %p37 = scmp.eq.s32.totalorder %s20, 1
      %p38 = por %p36, %p37
      %p39 = scmp.ne.s32.totalorder %s28, %s29
      %p40 = scmp.eq.s32.totalorder %s20, 0
      %p41 = por %p39, %p40
      %p42 = scmp.ne.s32.totalorder %s28, %s29
      %p43 = scmp.eq.s32.totalorder %s21, 1
      %p44 = por %p42, %p43
      %p46 = scmp.ne.s32.totalorder %s29, %s45
      %p47 = scmp.eq.s32.totalorder %s21, 0
      %p48 = por %p46, %p47
      %s50 = sadd.s32 %s49, 1
      %p53 = scmp.eq.s32.totalorder %s15, 1
      %p54 = scmp.ne.s32.totalorder %s49, %s51
      %p55 = scmp.eq.s32.totalorder %s15, 0
      %p56 = por %p54, %p55
      %p57 = scmp.ne.s32.totalorder %s49, %s51
      %p58 = scmp.eq.s32.totalorder %s20, 1
      %p59 = por %p57, %p58
      %p60 = scmp.ne.s32.totalorder %s51, %s52
      %p61 = scmp.eq.s32.totalorder %s20, 0
      %p62 = por %p60, %p61
      %p63 = scmp.ne.s32.totalorder %s51, %s52
      %p64 = scmp.eq.s32.totalorder %s21, 1
      %p65 = por %p63, %p64
      %p67 = scmp.ne.s32.totalorder %s52, %s66
      %p68 = scmp.eq.s32.totalorder %s21, 0
      %p69 = por %p67, %p68
      %s70 = ssub.s32 %s15, %s22
      %p71 = scmp.eq.s32.totalorder %s70, 0
      %s73 = sadd.s32 %s72, 1
      %s74 = scalar_select %p71, %s72, %s73
      %p77 = pneg %p71
      %p78 = scmp.eq.s32.totalorder %s15, 1
      %p79 = por %p77, %p78
      %p80 = scmp.ne.s32.totalorder %s72, %s75
      %p81 = scmp.eq.s32.totalorder %s15, 0
      %p82 = por %p80, %p81
      %p83 = scmp.ne.s32.totalorder %s72, %s75
      %p84 = scmp.eq.s32.totalorder %s20, 1
      %p85 = por %p83, %p84
      %p86 = scmp.ne.s32.totalorder %s75, %s76
      %p87 = scmp.eq.s32.totalorder %s20, 0
      %p88 = por %p86, %p87
      %p89 = scmp.ne.s32.totalorder %s75, %s76
      %p90 = scmp.eq.s32.totalorder %s21, 1
      %p91 = por %p89, %p90
      %p93 = scmp.ne.s32.totalorder %s76, %s92
      %p94 = scmp.eq.s32.totalorder %s21, 0
      %p95 = por %p93, %p94
      %p96 = scmp.le.s32.totalorder 1, %s15
      %p97 = scmp.lt.s32.totalorder %s15, 3
      %p98 = pnand %p96, %p97
      %p99 = pneg %p98
      // Predicated region
      $region9: #{tpu_custom_call.1} parent=5 // pred_check
        _
      $region10: #{tpu_custom_call.1} parent=5 // pred_check_branch
        %101 = sbr.rel (%p98) target = $region12
      $region11: #{tpu_custom_call.1} parent=5 // pred_region
        %s102 = ssub.s32 %s15, 1
        // Predicated region
        $region13: #{tpu_custom_call.1} parent=11 // pred_check
          %p103 = pneg %p62
        $region14: #{tpu_custom_call.1} parent=11 // pred_check_branch
          %105 = sbr.rel (%p103) target = $region16
        $region15: #{tpu_custom_call.1} parent=11 // pred_region
          %s107 = ssub.s32 65536, 65536
          %108 = vsyncadd [#allocation6], %s107
          %s109 = sshll.u32 [#allocation5], 4
          %s110 = int_to_ptr.vmem [resolvable:$true] %s109
          %115 = dma.hbm_to_vmem [thread:$0]  %s1, 65536, %s110, [#allocation6], 512, 512, 32
        $region16: #{tpu_custom_call.1} parent=11 // pred_fallthru
          _
      $region12: #{tpu_custom_call.1} parent=5 // pred_fallthru
        _
      %p116 = scmp.lt.s32.totalorder %s15, 2
      // Predicated region
      $region17: #{tpu_custom_call.1} parent=5 // pred_check
        %p117 = pneg %p116
      $region18: #{tpu_custom_call.1} parent=5 // pred_check_branch
        %119 = sbr.rel (%p117) target = $region20
      $region19: #{tpu_custom_call.1} parent=5 // pred_region
        // Predicated region
        $region21: #{tpu_custom_call.1} parent=19 // pred_check
          %p120 = pneg %p35
        $region22: #{tpu_custom_call.1} parent=19 // pred_check_branch
          %122 = sbr.rel (%p120) target = $region24
        $region23: #{tpu_custom_call.1} parent=19 // pred_region
          %s123 = sand.u32 %s25, 1
          %s124 = scalar_lea.sflag [#allocation3], %s123
          %s125 = sand.u32 %s25, 1
          %s126 = smul.addr %s125, 192
          %s127 = scalar_lea.vmem [#allocation2], %s126
          %s128 = smul.u32 6, %s15
          %s130 = ssub.s32 3072, 3072
          %131 = vsyncadd %s124, %s130
          %s132 = smul.addr %s128, 8
          %s133 = smul.addr %s132, 64
          %s134 = scalar_lea.hbm %s0, %s133
          %s135 = sshll.u32 %s127, 4
          %s136 = int_to_ptr.vmem [resolvable:$true] %s135
          %141 = dma.hbm_to_vmem [thread:$0]  %s134, 3072, %s136, %s124, 512, 512, 32
        $region24: #{tpu_custom_call.1} parent=19 // pred_fallthru
          _
      $region20: #{tpu_custom_call.1} parent=5 // pred_fallthru
        _
      %p142 = scmp.le.s32.totalorder 1, %s15
      %p143 = scmp.lt.s32.totalorder %s15, 3
      %p144 = pnand %p142, %p143
      %p145 = pneg %p144
      // Predicated region
      $region25: #{tpu_custom_call.1} parent=5 // pred_check
        _
      $region26: #{tpu_custom_call.1} parent=5 // pred_check_branch
        %147 = sbr.rel (%p144) target = $region28
      $region27: #{tpu_custom_call.1} parent=5 // pred_region
        %s148 = ssub.s32 %s15, 1
        %s149 = sand.u32 %s28, 1
        %s150 = scalar_lea.sflag [#allocation3], %s149
        %s151 = sand.u32 %s28, 1
        %s152 = smul.addr %s151, 192
        %s153 = scalar_lea.vmem [#allocation2], %s152
        // Predicated region
        $region29: #{tpu_custom_call.1} parent=27 // pred_check
          %p154 = pneg %p41
        $region30: #{tpu_custom_call.1} parent=27 // pred_check_branch
          %156 = sbr.rel (%p154) target = $region32
        $region31: #{tpu_custom_call.1} parent=27 // pred_region
          %157 = dma.done %s150, 3072
        $region32: #{tpu_custom_call.1} parent=27 // pred_fallthru
          _
        // Predicated region
        $region33: #{tpu_custom_call.1} parent=27 // pred_check
          %p158 = pneg %p62
        $region34: #{tpu_custom_call.1} parent=27 // pred_check_branch
          %160 = sbr.rel (%p158) target = $region36
        $region35: #{tpu_custom_call.1} parent=27 // pred_region
          %161 = dma.done [#allocation6], 65536
        $region36: #{tpu_custom_call.1} parent=27 // pred_fallthru
          _
        %s162 = sand.u32 %s28, 1
        %s163 = scalar_lea.sflag [#allocation3], %s162
        %s164 = sand.u32 %s28, 1
        %s165 = smul.addr %s164, 192
        %s166 = scalar_lea.vmem [#allocation2], %s165
        %p167 = pneg %p41
        %p168 = pneg %p38
        %p169 = pneg %p62
        %p170 = pneg %p59
        %p171 = pneg %p88
        %p172 = pneg %p85
        %s173 = sand.u32 %s75, 1
        %s174 = scalar_lea.sflag [#allocation4], %s173
        %s175 = sand.u32 %s75, 1
        %s176 = smul.addr %s175, 96
        %s177 = scalar_lea.vmem [#allocation7], %s176
        %s178 = smul.u32 6, %s20
        %v179 = vld [vmem:[%s153] sm:$0xff]
        %v180 = vld [vmem:[%s153 + $0x8] sm:$0xff]
        %v181 = vld [vmem:[%s153 + $0x10] sm:$0xff]
        %v182 = vld [vmem:[%s153 + $0x18] sm:$0xff]
        %v183 = vld [vmem:[%s153 + $0x20] sm:$0xff]
        %v184 = vld [vmem:[%s153 + $0x28] sm:$0xff]
        %v185 = vld [vmem:[%s153 + $0x30] sm:$0xff]
        %v186 = vld [vmem:[%s153 + $0x38] sm:$0xff]
        %v187 = vld [vmem:[%s153 + $0x40] sm:$0xff]
        %v188 = vld [vmem:[%s153 + $0x48] sm:$0xff]
        %v189 = vld [vmem:[%s153 + $0x50] sm:$0xff]
        %v190 = vld [vmem:[%s153 + $0x58] sm:$0xff]
        %v191 = vld [vmem:[%s153 + $0x60] sm:$0xff]
        %v192 = vld [vmem:[%s153 + $0x68] sm:$0xff]
        %v193 = vld [vmem:[%s153 + $0x70] sm:$0xff]
        %v194 = vld [vmem:[%s153 + $0x78] sm:$0xff]
        %v195 = vld [vmem:[%s153 + $0x80] sm:$0xff]
        %v196 = vld [vmem:[%s153 + $0x88] sm:$0xff]
        %v197 = vld [vmem:[%s153 + $0x90] sm:$0xff]
        %v198 = vld [vmem:[%s153 + $0x98] sm:$0xff]
        %v199 = vld [vmem:[%s153 + $0xa0] sm:$0xff]
        %v200 = vld [vmem:[%s153 + $0xa8] sm:$0xff]
        %v201 = vld [vmem:[%s153 + $0xb0] sm:$0xff]
        %v202 = vld [vmem:[%s153 + $0xb8] sm:$0xff]
        %v203 = vld [vmem:[#allocation5] sm:$0xff]
        %v204 = vld [vmem:[#allocation5 + $0x8] sm:$0xff]
        %v205 = vld [vmem:[#allocation5 + $0x10] sm:$0xff]
        %v206 = vld [vmem:[#allocation5 + $0x18] sm:$0xff]
        %v207 = vld [vmem:[#allocation5 + $0x20] sm:$0xff]
        %v208 = vld [vmem:[#allocation5 + $0x28] sm:$0xff]
        %v209 = vld [vmem:[#allocation5 + $0x30] sm:$0xff]
        %v210 = vld [vmem:[#allocation5 + $0x38] sm:$0xff]
        %v211 = vld [vmem:[#allocation5 + $0x40] sm:$0xff]
        %v212 = vld [vmem:[#allocation5 + $0x48] sm:$0xff]
        %v213 = vld [vmem:[#allocation5 + $0x50] sm:$0xff]
        %v214 = vld [vmem:[#allocation5 + $0x58] sm:$0xff]
        %v215 = vld [vmem:[#allocation5 + $0x60] sm:$0xff]
        %v216 = vld [vmem:[#allocation5 + $0x68] sm:$0xff]
        %v217 = vld [vmem:[#allocation5 + $0x70] sm:$0xff]
        %v218 = vld [vmem:[#allocation5 + $0x78] sm:$0xff]
        %v219 = vld [vmem:[#allocation5 + $0x80] sm:$0xff]
        %v220 = vld [vmem:[#allocation5 + $0x88] sm:$0xff]
        %v221 = vld [vmem:[#allocation5 + $0x90] sm:$0xff]
        %v222 = vld [vmem:[#allocation5 + $0x98] sm:$0xff]
        %v223 = vld [vmem:[#allocation5 + $0xa0] sm:$0xff]
        %v224 = vld [vmem:[#allocation5 + $0xa8] sm:$0xff]
        %v225 = vld [vmem:[#allocation5 + $0xb0] sm:$0xff]
        %v226 = vld [vmem:[#allocation5 + $0xb8] sm:$0xff]
        %v227 = vld [vmem:[#allocation5 + $0xc0] sm:$0xff]
        %v228 = vld [vmem:[#allocation5 + $0xc8] sm:$0xff]
        %v229 = vld [vmem:[#allocation5 + $0xd0] sm:$0xff]
        %v230 = vld [vmem:[#allocation5 + $0xd8] sm:$0xff]
        %v231 = vld [vmem:[#allocation5 + $0xe0] sm:$0xff]
        %v232 = vld [vmem:[#allocation5 + $0xe8] sm:$0xff]
        %v233 = vld [vmem:[#allocation5 + $0xf0] sm:$0xff]
        %v234 = vld [vmem:[#allocation5 + $0xf8] sm:$0xff]
        %v235 = vld [vmem:[#allocation5 + $0x100] sm:$0xff]
        %v236 = vld [vmem:[#allocation5 + $0x108] sm:$0xff]
        %v237 = vld [vmem:[#allocation5 + $0x110] sm:$0xff]
        %v238 = vld [vmem:[#allocation5 + $0x118] sm:$0xff]
        %v239 = vld [vmem:[#allocation5 + $0x120] sm:$0xff]
        %v240 = vld [vmem:[#allocation5 + $0x128] sm:$0xff]
        %v241 = vld [vmem:[#allocation5 + $0x130] sm:$0xff]
        %v242 = vld [vmem:[#allocation5 + $0x138] sm:$0xff]
        %v243 = vld [vmem:[#allocation5 + $0x140] sm:$0xff]
        %v244 = vld [vmem:[#allocation5 + $0x148] sm:$0xff]
        %v245 = vld [vmem:[#allocation5 + $0x150] sm:$0xff]
        %v246 = vld [vmem:[#allocation5 + $0x158] sm:$0xff]
        %v247 = vld [vmem:[#allocation5 + $0x160] sm:$0xff]
        %v248 = vld [vmem:[#allocation5 + $0x168] sm:$0xff]
        %v249 = vld [vmem:[#allocation5 + $0x170] sm:$0xff]
        %v250 = vld [vmem:[#allocation5 + $0x178] sm:$0xff]
        %v251 = vld [vmem:[#allocation5 + $0x180] sm:$0xff]
        %v252 = vld [vmem:[#allocation5 + $0x188] sm:$0xff]
        %v253 = vld [vmem:[#allocation5 + $0x190] sm:$0xff]
        %v254 = vld [vmem:[#allocation5 + $0x198] sm:$0xff]
        %v255 = vld [vmem:[#allocation5 + $0x1a0] sm:$0xff]
        %v256 = vld [vmem:[#allocation5 + $0x1a8] sm:$0xff]
        %v257 = vld [vmem:[#allocation5 + $0x1b0] sm:$0xff]
        %v258 = vld [vmem:[#allocation5 + $0x1b8] sm:$0xff]
        %v259 = vld [vmem:[#allocation5 + $0x1c0] sm:$0xff]
        %v260 = vld [vmem:[#allocation5 + $0x1c8] sm:$0xff]
        %v261 = vld [vmem:[#allocation5 + $0x1d0] sm:$0xff]
        %v262 = vld [vmem:[#allocation5 + $0x1d8] sm:$0xff]
        %v263 = vld [vmem:[#allocation5 + $0x1e0] sm:$0xff]
        %v264 = vld [vmem:[#allocation5 + $0x1e8] sm:$0xff]
        %v265 = vld [vmem:[#allocation5 + $0x1f0] sm:$0xff]
        %v266 = vld [vmem:[#allocation5 + $0x1f8] sm:$0xff]
        %v267 = vld [vmem:[#allocation5 + $0x200] sm:$0xff]
        %v268 = vld [vmem:[#allocation5 + $0x208] sm:$0xff]
        %v269 = vld [vmem:[#allocation5 + $0x210] sm:$0xff]
        %v270 = vld [vmem:[#allocation5 + $0x218] sm:$0xff]
        %v271 = vld [vmem:[#allocation5 + $0x220] sm:$0xff]
        %v272 = vld [vmem:[#allocation5 + $0x228] sm:$0xff]
        %v273 = vld [vmem:[#allocation5 + $0x230] sm:$0xff]
        %v274 = vld [vmem:[#allocation5 + $0x238] sm:$0xff]
        %v275 = vld [vmem:[#allocation5 + $0x240] sm:$0xff]
        %v276 = vld [vmem:[#allocation5 + $0x248] sm:$0xff]
        %v277 = vld [vmem:[#allocation5 + $0x250] sm:$0xff]
        %v278 = vld [vmem:[#allocation5 + $0x258] sm:$0xff]
        %v279 = vld [vmem:[#allocation5 + $0x260] sm:$0xff]
        %v280 = vld [vmem:[#allocation5 + $0x268] sm:$0xff]
        %v281 = vld [vmem:[#allocation5 + $0x270] sm:$0xff]
        %v282 = vld [vmem:[#allocation5 + $0x278] sm:$0xff]
        %v283 = vld [vmem:[#allocation5 + $0x280] sm:$0xff]
        %v284 = vld [vmem:[#allocation5 + $0x288] sm:$0xff]
        %v285 = vld [vmem:[#allocation5 + $0x290] sm:$0xff]
        %v286 = vld [vmem:[#allocation5 + $0x298] sm:$0xff]
        %v287 = vld [vmem:[#allocation5 + $0x2a0] sm:$0xff]
        %v288 = vld [vmem:[#allocation5 + $0x2a8] sm:$0xff]
        %v289 = vld [vmem:[#allocation5 + $0x2b0] sm:$0xff]
        %v290 = vld [vmem:[#allocation5 + $0x2b8] sm:$0xff]
        %v291 = vld [vmem:[#allocation5 + $0x2c0] sm:$0xff]
        %v292 = vld [vmem:[#allocation5 + $0x2c8] sm:$0xff]
        %v293 = vld [vmem:[#allocation5 + $0x2d0] sm:$0xff]
        %v294 = vld [vmem:[#allocation5 + $0x2d8] sm:$0xff]
        %v295 = vld [vmem:[#allocation5 + $0x2e0] sm:$0xff]
        %v296 = vld [vmem:[#allocation5 + $0x2e8] sm:$0xff]
        %v297 = vld [vmem:[#allocation5 + $0x2f0] sm:$0xff]
        %v298 = vld [vmem:[#allocation5 + $0x2f8] sm:$0xff]
        %v299 = vld [vmem:[#allocation5 + $0x300] sm:$0xff]
        %v300 = vld [vmem:[#allocation5 + $0x308] sm:$0xff]
        %v301 = vld [vmem:[#allocation5 + $0x310] sm:$0xff]
        %v302 = vld [vmem:[#allocation5 + $0x318] sm:$0xff]
        %v303 = vld [vmem:[#allocation5 + $0x320] sm:$0xff]
        %v304 = vld [vmem:[#allocation5 + $0x328] sm:$0xff]
        %v305 = vld [vmem:[#allocation5 + $0x330] sm:$0xff]
        %v306 = vld [vmem:[#allocation5 + $0x338] sm:$0xff]
        %v307 = vld [vmem:[#allocation5 + $0x340] sm:$0xff]
        %v308 = vld [vmem:[#allocation5 + $0x348] sm:$0xff]
        %v309 = vld [vmem:[#allocation5 + $0x350] sm:$0xff]
        %v310 = vld [vmem:[#allocation5 + $0x358] sm:$0xff]
        %v311 = vld [vmem:[#allocation5 + $0x360] sm:$0xff]
        %v312 = vld [vmem:[#allocation5 + $0x368] sm:$0xff]
        %v313 = vld [vmem:[#allocation5 + $0x370] sm:$0xff]
        %v314 = vld [vmem:[#allocation5 + $0x378] sm:$0xff]
        %v315 = vld [vmem:[#allocation5 + $0x380] sm:$0xff]
        %v316 = vld [vmem:[#allocation5 + $0x388] sm:$0xff]
        %v317 = vld [vmem:[#allocation5 + $0x390] sm:$0xff]
        %v318 = vld [vmem:[#allocation5 + $0x398] sm:$0xff]
        %v319 = vld [vmem:[#allocation5 + $0x3a0] sm:$0xff]
        %v320 = vld [vmem:[#allocation5 + $0x3a8] sm:$0xff]
        %v321 = vld [vmem:[#allocation5 + $0x3b0] sm:$0xff]
        %v322 = vld [vmem:[#allocation5 + $0x3b8] sm:$0xff]
        %v323 = vld [vmem:[#allocation5 + $0x3c0] sm:$0xff]
        %v324 = vld [vmem:[#allocation5 + $0x3c8] sm:$0xff]
        %v325 = vld [vmem:[#allocation5 + $0x3d0] sm:$0xff]
        %v326 = vld [vmem:[#allocation5 + $0x3d8] sm:$0xff]
        %v327 = vld [vmem:[#allocation5 + $0x3e0] sm:$0xff]
        %v328 = vld [vmem:[#allocation5 + $0x3e8] sm:$0xff]
        %v329 = vld [vmem:[#allocation5 + $0x3f0] sm:$0xff]
        %v330 = vld [vmem:[#allocation5 + $0x3f8] sm:$0xff]
        %v331 = vld [vmem:[#allocation5 + $0x400] sm:$0xff]
        %v332 = vld [vmem:[#allocation5 + $0x408] sm:$0xff]
        %v333 = vld [vmem:[#allocation5 + $0x410] sm:$0xff]
        %v334 = vld [vmem:[#allocation5 + $0x418] sm:$0xff]
        %v335 = vld [vmem:[#allocation5 + $0x420] sm:$0xff]
        %v336 = vld [vmem:[#allocation5 + $0x428] sm:$0xff]
        %v337 = vld [vmem:[#allocation5 + $0x430] sm:$0xff]
        %v338 = vld [vmem:[#allocation5 + $0x438] sm:$0xff]
        %v339 = vld [vmem:[#allocation5 + $0x440] sm:$0xff]
        %v340 = vld [vmem:[#allocation5 + $0x448] sm:$0xff]
        %v341 = vld [vmem:[#allocation5 + $0x450] sm:$0xff]
        %v342 = vld [vmem:[#allocation5 + $0x458] sm:$0xff]
        %v343 = vld [vmem:[#allocation5 + $0x460] sm:$0xff]
        %v344 = vld [vmem:[#allocation5 + $0x468] sm:$0xff]
        %v345 = vld [vmem:[#allocation5 + $0x470] sm:$0xff]
        %v346 = vld [vmem:[#allocation5 + $0x478] sm:$0xff]
        %v347 = vld [vmem:[#allocation5 + $0x480] sm:$0xff]
        %v348 = vld [vmem:[#allocation5 + $0x488] sm:$0xff]
        %v349 = vld [vmem:[#allocation5 + $0x490] sm:$0xff]
        %v350 = vld [vmem:[#allocation5 + $0x498] sm:$0xff]
        %v351 = vld [vmem:[#allocation5 + $0x4a0] sm:$0xff]
        %v352 = vld [vmem:[#allocation5 + $0x4a8] sm:$0xff]
        %v353 = vld [vmem:[#allocation5 + $0x4b0] sm:$0xff]
        %v354 = vld [vmem:[#allocation5 + $0x4b8] sm:$0xff]
        %v355 = vld [vmem:[#allocation5 + $0x4c0] sm:$0xff]
        %v356 = vld [vmem:[#allocation5 + $0x4c8] sm:$0xff]
        %v357 = vld [vmem:[#allocation5 + $0x4d0] sm:$0xff]
        %v358 = vld [vmem:[#allocation5 + $0x4d8] sm:$0xff]
        %v359 = vld [vmem:[#allocation5 + $0x4e0] sm:$0xff]
        %v360 = vld [vmem:[#allocation5 + $0x4e8] sm:$0xff]
        %v361 = vld [vmem:[#allocation5 + $0x4f0] sm:$0xff]
        %v362 = vld [vmem:[#allocation5 + $0x4f8] sm:$0xff]
        %v363 = vld [vmem:[#allocation5 + $0x500] sm:$0xff]
        %v364 = vld [vmem:[#allocation5 + $0x508] sm:$0xff]
        %v365 = vld [vmem:[#allocation5 + $0x510] sm:$0xff]
        %v366 = vld [vmem:[#allocation5 + $0x518] sm:$0xff]
        %v367 = vld [vmem:[#allocation5 + $0x520] sm:$0xff]
        %v368 = vld [vmem:[#allocation5 + $0x528] sm:$0xff]
        %v369 = vld [vmem:[#allocation5 + $0x530] sm:$0xff]
        %v370 = vld [vmem:[#allocation5 + $0x538] sm:$0xff]
        %v371 = vld [vmem:[#allocation5 + $0x540] sm:$0xff]
        %v372 = vld [vmem:[#allocation5 + $0x548] sm:$0xff]
        %v373 = vld [vmem:[#allocation5 + $0x550] sm:$0xff]
        %v374 = vld [vmem:[#allocation5 + $0x558] sm:$0xff]
        %v375 = vld [vmem:[#allocation5 + $0x560] sm:$0xff]
        %v376 = vld [vmem:[#allocation5 + $0x568] sm:$0xff]
        %v377 = vld [vmem:[#allocation5 + $0x570] sm:$0xff]
        %v378 = vld [vmem:[#allocation5 + $0x578] sm:$0xff]
        %v379 = vld [vmem:[#allocation5 + $0x580] sm:$0xff]
        %v380 = vld [vmem:[#allocation5 + $0x588] sm:$0xff]
        %v381 = vld [vmem:[#allocation5 + $0x590] sm:$0xff]
        %v382 = vld [vmem:[#allocation5 + $0x598] sm:$0xff]
        %v383 = vld [vmem:[#allocation5 + $0x5a0] sm:$0xff]
        %v384 = vld [vmem:[#allocation5 + $0x5a8] sm:$0xff]
        %v385 = vld [vmem:[#allocation5 + $0x5b0] sm:$0xff]
        %v386 = vld [vmem:[#allocation5 + $0x5b8] sm:$0xff]
        %v387 = vld [vmem:[#allocation5 + $0x5c0] sm:$0xff]
        %v388 = vld [vmem:[#allocation5 + $0x5c8] sm:$0xff]
        %v389 = vld [vmem:[#allocation5 + $0x5d0] sm:$0xff]
        %v390 = vld [vmem:[#allocation5 + $0x5d8] sm:$0xff]
        %v391 = vld [vmem:[#allocation5 + $0x5e0] sm:$0xff]
        %v392 = vld [vmem:[#allocation5 + $0x5e8] sm:$0xff]
        %v393 = vld [vmem:[#allocation5 + $0x5f0] sm:$0xff]
        %v394 = vld [vmem:[#allocation5 + $0x5f8] sm:$0xff]
        %v395 = vld [vmem:[#allocation5 + $0x600] sm:$0xff]
        %v396 = vld [vmem:[#allocation5 + $0x608] sm:$0xff]
        %v397 = vld [vmem:[#allocation5 + $0x610] sm:$0xff]
        %v398 = vld [vmem:[#allocation5 + $0x618] sm:$0xff]
        %v399 = vld [vmem:[#allocation5 + $0x620] sm:$0xff]
        %v400 = vld [vmem:[#allocation5 + $0x628] sm:$0xff]
        %v401 = vld [vmem:[#allocation5 + $0x630] sm:$0xff]
        %v402 = vld [vmem:[#allocation5 + $0x638] sm:$0xff]
        %v403 = vld [vmem:[#allocation5 + $0x640] sm:$0xff]
        %v404 = vld [vmem:[#allocation5 + $0x648] sm:$0xff]
        %v405 = vld [vmem:[#allocation5 + $0x650] sm:$0xff]
        %v406 = vld [vmem:[#allocation5 + $0x658] sm:$0xff]
        %v407 = vld [vmem:[#allocation5 + $0x660] sm:$0xff]
        %v408 = vld [vmem:[#allocation5 + $0x668] sm:$0xff]
        %v409 = vld [vmem:[#allocation5 + $0x670] sm:$0xff]
        %v410 = vld [vmem:[#allocation5 + $0x678] sm:$0xff]
        %v411 = vld [vmem:[#allocation5 + $0x680] sm:$0xff]
        %v412 = vld [vmem:[#allocation5 + $0x688] sm:$0xff]
        %v413 = vld [vmem:[#allocation5 + $0x690] sm:$0xff]
        %v414 = vld [vmem:[#allocation5 + $0x698] sm:$0xff]
        %v415 = vld [vmem:[#allocation5 + $0x6a0] sm:$0xff]
        %v416 = vld [vmem:[#allocation5 + $0x6a8] sm:$0xff]
        %v417 = vld [vmem:[#allocation5 + $0x6b0] sm:$0xff]
        %v418 = vld [vmem:[#allocation5 + $0x6b8] sm:$0xff]
        %v419 = vld [vmem:[#allocation5 + $0x6c0] sm:$0xff]
        %v420 = vld [vmem:[#allocation5 + $0x6c8] sm:$0xff]
        %v421 = vld [vmem:[#allocation5 + $0x6d0] sm:$0xff]
        %v422 = vld [vmem:[#allocation5 + $0x6d8] sm:$0xff]
        %v423 = vld [vmem:[#allocation5 + $0x6e0] sm:$0xff]
        %v424 = vld [vmem:[#allocation5 + $0x6e8] sm:$0xff]
        %v425 = vld [vmem:[#allocation5 + $0x6f0] sm:$0xff]
        %v426 = vld [vmem:[#allocation5 + $0x6f8] sm:$0xff]
        %v427 = vld [vmem:[#allocation5 + $0x700] sm:$0xff]
        %v428 = vld [vmem:[#allocation5 + $0x708] sm:$0xff]
        %v429 = vld [vmem:[#allocation5 + $0x710] sm:$0xff]
        %v430 = vld [vmem:[#allocation5 + $0x718] sm:$0xff]
        %v431 = vld [vmem:[#allocation5 + $0x720] sm:$0xff]
        %v432 = vld [vmem:[#allocation5 + $0x728] sm:$0xff]
        %v433 = vld [vmem:[#allocation5 + $0x730] sm:$0xff]
        %v434 = vld [vmem:[#allocation5 + $0x738] sm:$0xff]
        %v435 = vld [vmem:[#allocation5 + $0x740] sm:$0xff]
        %v436 = vld [vmem:[#allocation5 + $0x748] sm:$0xff]
        %v437 = vld [vmem:[#allocation5 + $0x750] sm:$0xff]
        %v438 = vld [vmem:[#allocation5 + $0x758] sm:$0xff]
        %v439 = vld [vmem:[#allocation5 + $0x760] sm:$0xff]
        %v440 = vld [vmem:[#allocation5 + $0x768] sm:$0xff]
        %v441 = vld [vmem:[#allocation5 + $0x770] sm:$0xff]
        %v442 = vld [vmem:[#allocation5 + $0x778] sm:$0xff]
        %v443 = vld [vmem:[#allocation5 + $0x780] sm:$0xff]
        %v444 = vld [vmem:[#allocation5 + $0x788] sm:$0xff]
        %v445 = vld [vmem:[#allocation5 + $0x790] sm:$0xff]
        %v446 = vld [vmem:[#allocation5 + $0x798] sm:$0xff]
        %v447 = vld [vmem:[#allocation5 + $0x7a0] sm:$0xff]
        %v448 = vld [vmem:[#allocation5 + $0x7a8] sm:$0xff]
        %v449 = vld [vmem:[#allocation5 + $0x7b0] sm:$0xff]
        %v450 = vld [vmem:[#allocation5 + $0x7b8] sm:$0xff]
        %v451 = vld [vmem:[#allocation5 + $0x7c0] sm:$0xff]
        %v452 = vld [vmem:[#allocation5 + $0x7c8] sm:$0xff]
        %v453 = vld [vmem:[#allocation5 + $0x7d0] sm:$0xff]
        %v454 = vld [vmem:[#allocation5 + $0x7d8] sm:$0xff]
        %v455 = vld [vmem:[#allocation5 + $0x7e0] sm:$0xff]
        %v456 = vld [vmem:[#allocation5 + $0x7e8] sm:$0xff]
        %v457 = vld [vmem:[#allocation5 + $0x7f0] sm:$0xff]
        %v458 = vld [vmem:[#allocation5 + $0x7f8] sm:$0xff]
        %v459 = vld [vmem:[#allocation5 + $0x800] sm:$0xff]
        %v460 = vld [vmem:[#allocation5 + $0x808] sm:$0xff]
        %v461 = vld [vmem:[#allocation5 + $0x810] sm:$0xff]
        %v462 = vld [vmem:[#allocation5 + $0x818] sm:$0xff]
        %v463 = vld [vmem:[#allocation5 + $0x820] sm:$0xff]
        %v464 = vld [vmem:[#allocation5 + $0x828] sm:$0xff]
        %v465 = vld [vmem:[#allocation5 + $0x830] sm:$0xff]
        %v466 = vld [vmem:[#allocation5 + $0x838] sm:$0xff]
        %v467 = vld [vmem:[#allocation5 + $0x840] sm:$0xff]
        %v468 = vld [vmem:[#allocation5 + $0x848] sm:$0xff]
        %v469 = vld [vmem:[#allocation5 + $0x850] sm:$0xff]
        %v470 = vld [vmem:[#allocation5 + $0x858] sm:$0xff]
        %v471 = vld [vmem:[#allocation5 + $0x860] sm:$0xff]
        %v472 = vld [vmem:[#allocation5 + $0x868] sm:$0xff]
        %v473 = vld [vmem:[#allocation5 + $0x870] sm:$0xff]
        %v474 = vld [vmem:[#allocation5 + $0x878] sm:$0xff]
        %v475 = vld [vmem:[#allocation5 + $0x880] sm:$0xff]
        %v476 = vld [vmem:[#allocation5 + $0x888] sm:$0xff]
        %v477 = vld [vmem:[#allocation5 + $0x890] sm:$0xff]
        %v478 = vld [vmem:[#allocation5 + $0x898] sm:$0xff]
        %v479 = vld [vmem:[#allocation5 + $0x8a0] sm:$0xff]
        %v480 = vld [vmem:[#allocation5 + $0x8a8] sm:$0xff]
        %v481 = vld [vmem:[#allocation5 + $0x8b0] sm:$0xff]
        %v482 = vld [vmem:[#allocation5 + $0x8b8] sm:$0xff]
        %v483 = vld [vmem:[#allocation5 + $0x8c0] sm:$0xff]
        %v484 = vld [vmem:[#allocation5 + $0x8c8] sm:$0xff]
        %v485 = vld [vmem:[#allocation5 + $0x8d0] sm:$0xff]
        %v486 = vld [vmem:[#allocation5 + $0x8d8] sm:$0xff]
        %v487 = vld [vmem:[#allocation5 + $0x8e0] sm:$0xff]
        %v488 = vld [vmem:[#allocation5 + $0x8e8] sm:$0xff]
        %v489 = vld [vmem:[#allocation5 + $0x8f0] sm:$0xff]
        %v490 = vld [vmem:[#allocation5 + $0x8f8] sm:$0xff]
        %v491 = vld [vmem:[#allocation5 + $0x900] sm:$0xff]
        %v492 = vld [vmem:[#allocation5 + $0x908] sm:$0xff]
        %v493 = vld [vmem:[#allocation5 + $0x910] sm:$0xff]
        %v494 = vld [vmem:[#allocation5 + $0x918] sm:$0xff]
        %v495 = vld [vmem:[#allocation5 + $0x920] sm:$0xff]
        %v496 = vld [vmem:[#allocation5 + $0x928] sm:$0xff]
        %v497 = vld [vmem:[#allocation5 + $0x930] sm:$0xff]
        %v498 = vld [vmem:[#allocation5 + $0x938] sm:$0xff]
        %v499 = vld [vmem:[#allocation5 + $0x940] sm:$0xff]
        %v500 = vld [vmem:[#allocation5 + $0x948] sm:$0xff]
        %v501 = vld [vmem:[#allocation5 + $0x950] sm:$0xff]
        %v502 = vld [vmem:[#allocation5 + $0x958] sm:$0xff]
        %v503 = vld [vmem:[#allocation5 + $0x960] sm:$0xff]
        %v504 = vld [vmem:[#allocation5 + $0x968] sm:$0xff]
        %v505 = vld [vmem:[#allocation5 + $0x970] sm:$0xff]
        %v506 = vld [vmem:[#allocation5 + $0x978] sm:$0xff]
        %v507 = vld [vmem:[#allocation5 + $0x980] sm:$0xff]
        %v508 = vld [vmem:[#allocation5 + $0x988] sm:$0xff]
        %v509 = vld [vmem:[#allocation5 + $0x990] sm:$0xff]
        %v510 = vld [vmem:[#allocation5 + $0x998] sm:$0xff]
        %v511 = vld [vmem:[#allocation5 + $0x9a0] sm:$0xff]
        %v512 = vld [vmem:[#allocation5 + $0x9a8] sm:$0xff]
        %v513 = vld [vmem:[#allocation5 + $0x9b0] sm:$0xff]
        %v514 = vld [vmem:[#allocation5 + $0x9b8] sm:$0xff]
        %v515 = vld [vmem:[#allocation5 + $0x9c0] sm:$0xff]
        %v516 = vld [vmem:[#allocation5 + $0x9c8] sm:$0xff]
        %v517 = vld [vmem:[#allocation5 + $0x9d0] sm:$0xff]
        %v518 = vld [vmem:[#allocation5 + $0x9d8] sm:$0xff]
        %v519 = vld [vmem:[#allocation5 + $0x9e0] sm:$0xff]
        %v520 = vld [vmem:[#allocation5 + $0x9e8] sm:$0xff]
        %v521 = vld [vmem:[#allocation5 + $0x9f0] sm:$0xff]
        %v522 = vld [vmem:[#allocation5 + $0x9f8] sm:$0xff]
        %v523 = vld [vmem:[#allocation5 + $0xa00] sm:$0xff]
        %v524 = vld [vmem:[#allocation5 + $0xa08] sm:$0xff]
        %v525 = vld [vmem:[#allocation5 + $0xa10] sm:$0xff]
        %v526 = vld [vmem:[#allocation5 + $0xa18] sm:$0xff]
        %v527 = vld [vmem:[#allocation5 + $0xa20] sm:$0xff]
        %v528 = vld [vmem:[#allocation5 + $0xa28] sm:$0xff]
        %v529 = vld [vmem:[#allocation5 + $0xa30] sm:$0xff]
        %v530 = vld [vmem:[#allocation5 + $0xa38] sm:$0xff]
        %v531 = vld [vmem:[#allocation5 + $0xa40] sm:$0xff]
        %v532 = vld [vmem:[#allocation5 + $0xa48] sm:$0xff]
        %v533 = vld [vmem:[#allocation5 + $0xa50] sm:$0xff]
        %v534 = vld [vmem:[#allocation5 + $0xa58] sm:$0xff]
        %v535 = vld [vmem:[#allocation5 + $0xa60] sm:$0xff]
        %v536 = vld [vmem:[#allocation5 + $0xa68] sm:$0xff]
        %v537 = vld [vmem:[#allocation5 + $0xa70] sm:$0xff]
        %v538 = vld [vmem:[#allocation5 + $0xa78] sm:$0xff]
        %v539 = vld [vmem:[#allocation5 + $0xa80] sm:$0xff]
        %v540 = vld [vmem:[#allocation5 + $0xa88] sm:$0xff]
        %v541 = vld [vmem:[#allocation5 + $0xa90] sm:$0xff]
        %v542 = vld [vmem:[#allocation5 + $0xa98] sm:$0xff]
        %v543 = vld [vmem:[#allocation5 + $0xaa0] sm:$0xff]
        %v544 = vld [vmem:[#allocation5 + $0xaa8] sm:$0xff]
        %v545 = vld [vmem:[#allocation5 + $0xab0] sm:$0xff]
        %v546 = vld [vmem:[#allocation5 + $0xab8] sm:$0xff]
        %v547 = vld [vmem:[#allocation5 + $0xac0] sm:$0xff]
        %v548 = vld [vmem:[#allocation5 + $0xac8] sm:$0xff]
        %v549 = vld [vmem:[#allocation5 + $0xad0] sm:$0xff]
        %v550 = vld [vmem:[#allocation5 + $0xad8] sm:$0xff]
        %v551 = vld [vmem:[#allocation5 + $0xae0] sm:$0xff]
        %v552 = vld [vmem:[#allocation5 + $0xae8] sm:$0xff]
        %v553 = vld [vmem:[#allocation5 + $0xaf0] sm:$0xff]
        %v554 = vld [vmem:[#allocation5 + $0xaf8] sm:$0xff]
        %v555 = vld [vmem:[#allocation5 + $0xb00] sm:$0xff]
        %v556 = vld [vmem:[#allocation5 + $0xb08] sm:$0xff]
        %v557 = vld [vmem:[#allocation5 + $0xb10] sm:$0xff]
        %v558 = vld [vmem:[#allocation5 + $0xb18] sm:$0xff]
        %v559 = vld [vmem:[#allocation5 + $0xb20] sm:$0xff]
        %v560 = vld [vmem:[#allocation5 + $0xb28] sm:$0xff]
        %v561 = vld [vmem:[#allocation5 + $0xb30] sm:$0xff]
        %v562 = vld [vmem:[#allocation5 + $0xb38] sm:$0xff]
        %v563 = vld [vmem:[#allocation5 + $0xb40] sm:$0xff]
        %v564 = vld [vmem:[#allocation5 + $0xb48] sm:$0xff]
        %v565 = vld [vmem:[#allocation5 + $0xb50] sm:$0xff]
        %v566 = vld [vmem:[#allocation5 + $0xb58] sm:$0xff]
        %v567 = vld [vmem:[#allocation5 + $0xb60] sm:$0xff]
        %v568 = vld [vmem:[#allocation5 + $0xb68] sm:$0xff]
        %v569 = vld [vmem:[#allocation5 + $0xb70] sm:$0xff]
        %v570 = vld [vmem:[#allocation5 + $0xb78] sm:$0xff]
        %v571 = vld [vmem:[#allocation5 + $0xb80] sm:$0xff]
        %v572 = vld [vmem:[#allocation5 + $0xb88] sm:$0xff]
        %v573 = vld [vmem:[#allocation5 + $0xb90] sm:$0xff]
        %v574 = vld [vmem:[#allocation5 + $0xb98] sm:$0xff]
        %v575 = vld [vmem:[#allocation5 + $0xba0] sm:$0xff]
        %v576 = vld [vmem:[#allocation5 + $0xba8] sm:$0xff]
        %v577 = vld [vmem:[#allocation5 + $0xbb0] sm:$0xff]
        %v578 = vld [vmem:[#allocation5 + $0xbb8] sm:$0xff]
        %v579 = vld [vmem:[#allocation5 + $0xbc0] sm:$0xff]
        %v580 = vld [vmem:[#allocation5 + $0xbc8] sm:$0xff]
        %v581 = vld [vmem:[#allocation5 + $0xbd0] sm:$0xff]
        %v582 = vld [vmem:[#allocation5 + $0xbd8] sm:$0xff]
        %v583 = vld [vmem:[#allocation5 + $0xbe0] sm:$0xff]
        %v584 = vld [vmem:[#allocation5 + $0xbe8] sm:$0xff]
        %v585 = vld [vmem:[#allocation5 + $0xbf0] sm:$0xff]
        %v586 = vld [vmem:[#allocation5 + $0xbf8] sm:$0xff]
        %v587 = vld [vmem:[#allocation5 + $0xc00] sm:$0xff]
        %v588 = vld [vmem:[#allocation5 + $0xc08] sm:$0xff]
        %v589 = vld [vmem:[#allocation5 + $0xc10] sm:$0xff]
        %v590 = vld [vmem:[#allocation5 + $0xc18] sm:$0xff]
        %v591 = vld [vmem:[#allocation5 + $0xc20] sm:$0xff]
        %v592 = vld [vmem:[#allocation5 + $0xc28] sm:$0xff]
        %v593 = vld [vmem:[#allocation5 + $0xc30] sm:$0xff]
        %v594 = vld [vmem:[#allocation5 + $0xc38] sm:$0xff]
        %v595 = vld [vmem:[#allocation5 + $0xc40] sm:$0xff]
        %v596 = vld [vmem:[#allocation5 + $0xc48] sm:$0xff]
        %v597 = vld [vmem:[#allocation5 + $0xc50] sm:$0xff]
        %v598 = vld [vmem:[#allocation5 + $0xc58] sm:$0xff]
        %v599 = vld [vmem:[#allocation5 + $0xc60] sm:$0xff]
        %v600 = vld [vmem:[#allocation5 + $0xc68] sm:$0xff]
        %v601 = vld [vmem:[#allocation5 + $0xc70] sm:$0xff]
        %v602 = vld [vmem:[#allocation5 + $0xc78] sm:$0xff]
        %v603 = vld [vmem:[#allocation5 + $0xc80] sm:$0xff]
        %v604 = vld [vmem:[#allocation5 + $0xc88] sm:$0xff]
        %v605 = vld [vmem:[#allocation5 + $0xc90] sm:$0xff]
        %v606 = vld [vmem:[#allocation5 + $0xc98] sm:$0xff]
        %v607 = vld [vmem:[#allocation5 + $0xca0] sm:$0xff]
        %v608 = vld [vmem:[#allocation5 + $0xca8] sm:$0xff]
        %v609 = vld [vmem:[#allocation5 + $0xcb0] sm:$0xff]
        %v610 = vld [vmem:[#allocation5 + $0xcb8] sm:$0xff]
        %v611 = vld [vmem:[#allocation5 + $0xcc0] sm:$0xff]
        %v612 = vld [vmem:[#allocation5 + $0xcc8] sm:$0xff]
        %v613 = vld [vmem:[#allocation5 + $0xcd0] sm:$0xff]
        %v614 = vld [vmem:[#allocation5 + $0xcd8] sm:$0xff]
        %v615 = vld [vmem:[#allocation5 + $0xce0] sm:$0xff]
        %v616 = vld [vmem:[#allocation5 + $0xce8] sm:$0xff]
        %v617 = vld [vmem:[#allocation5 + $0xcf0] sm:$0xff]
        %v618 = vld [vmem:[#allocation5 + $0xcf8] sm:$0xff]
        %v619 = vld [vmem:[#allocation5 + $0xd00] sm:$0xff]
        %v620 = vld [vmem:[#allocation5 + $0xd08] sm:$0xff]
        %v621 = vld [vmem:[#allocation5 + $0xd10] sm:$0xff]
        %v622 = vld [vmem:[#allocation5 + $0xd18] sm:$0xff]
        %v623 = vld [vmem:[#allocation5 + $0xd20] sm:$0xff]
        %v624 = vld [vmem:[#allocation5 + $0xd28] sm:$0xff]
        %v625 = vld [vmem:[#allocation5 + $0xd30] sm:$0xff]
        %v626 = vld [vmem:[#allocation5 + $0xd38] sm:$0xff]
        %v627 = vld [vmem:[#allocation5 + $0xd40] sm:$0xff]
        %v628 = vld [vmem:[#allocation5 + $0xd48] sm:$0xff]
        %v629 = vld [vmem:[#allocation5 + $0xd50] sm:$0xff]
        %v630 = vld [vmem:[#allocation5 + $0xd58] sm:$0xff]
        %v631 = vld [vmem:[#allocation5 + $0xd60] sm:$0xff]
        %v632 = vld [vmem:[#allocation5 + $0xd68] sm:$0xff]
        %v633 = vld [vmem:[#allocation5 + $0xd70] sm:$0xff]
        %v634 = vld [vmem:[#allocation5 + $0xd78] sm:$0xff]
        %v635 = vld [vmem:[#allocation5 + $0xd80] sm:$0xff]
        %v636 = vld [vmem:[#allocation5 + $0xd88] sm:$0xff]
        %v637 = vld [vmem:[#allocation5 + $0xd90] sm:$0xff]
        %v638 = vld [vmem:[#allocation5 + $0xd98] sm:$0xff]
        %v639 = vld [vmem:[#allocation5 + $0xda0] sm:$0xff]
        %v640 = vld [vmem:[#allocation5 + $0xda8] sm:$0xff]
        %v641 = vld [vmem:[#allocation5 + $0xdb0] sm:$0xff]
        %v642 = vld [vmem:[#allocation5 + $0xdb8] sm:$0xff]
        %v643 = vld [vmem:[#allocation5 + $0xdc0] sm:$0xff]
        %v644 = vld [vmem:[#allocation5 + $0xdc8] sm:$0xff]
        %v645 = vld [vmem:[#allocation5 + $0xdd0] sm:$0xff]
        %v646 = vld [vmem:[#allocation5 + $0xdd8] sm:$0xff]
        %v647 = vld [vmem:[#allocation5 + $0xde0] sm:$0xff]
        %v648 = vld [vmem:[#allocation5 + $0xde8] sm:$0xff]
        %v649 = vld [vmem:[#allocation5 + $0xdf0] sm:$0xff]
        %v650 = vld [vmem:[#allocation5 + $0xdf8] sm:$0xff]
        %v651 = vld [vmem:[#allocation5 + $0xe00] sm:$0xff]
        %v652 = vld [vmem:[#allocation5 + $0xe08] sm:$0xff]
        %v653 = vld [vmem:[#allocation5 + $0xe10] sm:$0xff]
        %v654 = vld [vmem:[#allocation5 + $0xe18] sm:$0xff]
        %v655 = vld [vmem:[#allocation5 + $0xe20] sm:$0xff]
        %v656 = vld [vmem:[#allocation5 + $0xe28] sm:$0xff]
        %v657 = vld [vmem:[#allocation5 + $0xe30] sm:$0xff]
        %v658 = vld [vmem:[#allocation5 + $0xe38] sm:$0xff]
        %v659 = vld [vmem:[#allocation5 + $0xe40] sm:$0xff]
        %v660 = vld [vmem:[#allocation5 + $0xe48] sm:$0xff]
        %v661 = vld [vmem:[#allocation5 + $0xe50] sm:$0xff]
        %v662 = vld [vmem:[#allocation5 + $0xe58] sm:$0xff]
        %v663 = vld [vmem:[#allocation5 + $0xe60] sm:$0xff]
        %v664 = vld [vmem:[#allocation5 + $0xe68] sm:$0xff]
        %v665 = vld [vmem:[#allocation5 + $0xe70] sm:$0xff]
        %v666 = vld [vmem:[#allocation5 + $0xe78] sm:$0xff]
        %v667 = vld [vmem:[#allocation5 + $0xe80] sm:$0xff]
        %v668 = vld [vmem:[#allocation5 + $0xe88] sm:$0xff]
        %v669 = vld [vmem:[#allocation5 + $0xe90] sm:$0xff]
        %v670 = vld [vmem:[#allocation5 + $0xe98] sm:$0xff]
        %v671 = vld [vmem:[#allocation5 + $0xea0] sm:$0xff]
        %v672 = vld [vmem:[#allocation5 + $0xea8] sm:$0xff]
        %v673 = vld [vmem:[#allocation5 + $0xeb0] sm:$0xff]
        %v674 = vld [vmem:[#allocation5 + $0xeb8] sm:$0xff]
        %v675 = vld [vmem:[#allocation5 + $0xec0] sm:$0xff]
        %v676 = vld [vmem:[#allocation5 + $0xec8] sm:$0xff]
        %v677 = vld [vmem:[#allocation5 + $0xed0] sm:$0xff]
        %v678 = vld [vmem:[#allocation5 + $0xed8] sm:$0xff]
        %v679 = vld [vmem:[#allocation5 + $0xee0] sm:$0xff]
        %v680 = vld [vmem:[#allocation5 + $0xee8] sm:$0xff]
        %v681 = vld [vmem:[#allocation5 + $0xef0] sm:$0xff]
        %v682 = vld [vmem:[#allocation5 + $0xef8] sm:$0xff]
        %v683 = vld [vmem:[#allocation5 + $0xf00] sm:$0xff]
        %v684 = vld [vmem:[#allocation5 + $0xf08] sm:$0xff]
        %v685 = vld [vmem:[#allocation5 + $0xf10] sm:$0xff]
        %v686 = vld [vmem:[#allocation5 + $0xf18] sm:$0xff]
        %v687 = vld [vmem:[#allocation5 + $0xf20] sm:$0xff]
        %v688 = vld [vmem:[#allocation5 + $0xf28] sm:$0xff]
        %v689 = vld [vmem:[#allocation5 + $0xf30] sm:$0xff]
        %v690 = vld [vmem:[#allocation5 + $0xf38] sm:$0xff]
        %v691 = vld [vmem:[#allocation5 + $0xf40] sm:$0xff]
        %v692 = vld [vmem:[#allocation5 + $0xf48] sm:$0xff]
        %v693 = vld [vmem:[#allocation5 + $0xf50] sm:$0xff]
        %v694 = vld [vmem:[#allocation5 + $0xf58] sm:$0xff]
        %v695 = vld [vmem:[#allocation5 + $0xf60] sm:$0xff]
        %v696 = vld [vmem:[#allocation5 + $0xf68] sm:$0xff]
        %v697 = vld [vmem:[#allocation5 + $0xf70] sm:$0xff]
        %v698 = vld [vmem:[#allocation5 + $0xf78] sm:$0xff]
        %v699 = vld [vmem:[#allocation5 + $0xf80] sm:$0xff]
        %v700 = vld [vmem:[#allocation5 + $0xf88] sm:$0xff]
        %v701 = vld [vmem:[#allocation5 + $0xf90] sm:$0xff]
        %v702 = vld [vmem:[#allocation5 + $0xf98] sm:$0xff]
        %v703 = vld [vmem:[#allocation5 + $0xfa0] sm:$0xff]
        %v704 = vld [vmem:[#allocation5 + $0xfa8] sm:$0xff]
        %v705 = vld [vmem:[#allocation5 + $0xfb0] sm:$0xff]
        %v706 = vld [vmem:[#allocation5 + $0xfb8] sm:$0xff]
        %v707 = vld [vmem:[#allocation5 + $0xfc0] sm:$0xff]
        %v708 = vld [vmem:[#allocation5 + $0xfc8] sm:$0xff]
        %v709 = vld [vmem:[#allocation5 + $0xfd0] sm:$0xff]
        %v710 = vld [vmem:[#allocation5 + $0xfd8] sm:$0xff]
        %v711 = vld [vmem:[#allocation5 + $0xfe0] sm:$0xff]
        %v712 = vld [vmem:[#allocation5 + $0xfe8] sm:$0xff]
        %v713 = vld [vmem:[#allocation5 + $0xff0] sm:$0xff]
        %v714 = vld [vmem:[#allocation5 + $0xff8] sm:$0xff]
        %v739 = vunpack.c.l.b16 %v179
        %v740 = vunpack.c.h.b16 %v179
        %v741 = vunpack.c.l.b16 %v180
        %v742 = vunpack.c.h.b16 %v180
        %v743 = vunpack.c.l.b16 %v181
        %v744 = vunpack.c.h.b16 %v181
        %v745 = vunpack.c.l.b16 %v182
        %v746 = vunpack.c.h.b16 %v182
        %v747 = vunpack.c.l.b16 %v183
        %v748 = vunpack.c.h.b16 %v183
        %v749 = vunpack.c.l.b16 %v184
        %v750 = vunpack.c.h.b16 %v184
        %v751 = vunpack.c.l.b16 %v185
        %v752 = vunpack.c.h.b16 %v185
        %v753 = vunpack.c.l.b16 %v186
        %v754 = vunpack.c.h.b16 %v186
        %v755 = vunpack.c.l.b16 %v187
        %v756 = vunpack.c.h.b16 %v187
        %v757 = vunpack.c.l.b16 %v188
        %v758 = vunpack.c.h.b16 %v188
        %v759 = vunpack.c.l.b16 %v189
        %v760 = vunpack.c.h.b16 %v189
        %v761 = vunpack.c.l.b16 %v190
        %v762 = vunpack.c.h.b16 %v190
        %v763 = vunpack.c.l.b16 %v191
        %v764 = vunpack.c.h.b16 %v191
        %v765 = vunpack.c.l.b16 %v192
        %v766 = vunpack.c.h.b16 %v192
        %v767 = vunpack.c.l.b16 %v193
        %v768 = vunpack.c.h.b16 %v193
        %v769 = vunpack.c.l.b16 %v194
        %v770 = vunpack.c.h.b16 %v194
        %v771 = vunpack.c.l.b16 %v195
        %v772 = vunpack.c.h.b16 %v195
        %v773 = vunpack.c.l.b16 %v196
        %v774 = vunpack.c.h.b16 %v196
        %v775 = vunpack.c.l.b16 %v197
        %v776 = vunpack.c.h.b16 %v197
        %v777 = vunpack.c.l.b16 %v198
        %v778 = vunpack.c.h.b16 %v198
        %v779 = vunpack.c.l.b16 %v199
        %v780 = vunpack.c.h.b16 %v199
        %v781 = vunpack.c.l.b16 %v200
        %v782 = vunpack.c.h.b16 %v200
        %v783 = vunpack.c.l.b16 %v201
        %v784 = vunpack.c.h.b16 %v201
        %v785 = vunpack.c.l.b16 %v202
        %v786 = vunpack.c.h.b16 %v202
        %v787 = vpack.c.b16 %v747, %v739
        %v788 = vpack.c.b16 %v748, %v740
        %v789 = vpack.c.b16 %v749, %v741
        %v790 = vpack.c.b16 %v750, %v742
        %v791 = vpack.c.b16 %v751, %v743
        %v792 = vpack.c.b16 %v752, %v744
        %v793 = vpack.c.b16 %v753, %v745
        %v794 = vpack.c.b16 %v754, %v746
        %v795 = vpack.c.b16 %v763, %v755
        %v796 = vpack.c.b16 %v764, %v756
        %v797 = vpack.c.b16 %v765, %v757
        %v798 = vpack.c.b16 %v766, %v758
        %v799 = vpack.c.b16 %v767, %v759
        %v800 = vpack.c.b16 %v768, %v760
        %v801 = vpack.c.b16 %v769, %v761
        %v802 = vpack.c.b16 %v770, %v762
        %v803 = vpack.c.b16 %v779, %v771
        %v804 = vpack.c.b16 %v780, %v772
        %v805 = vpack.c.b16 %v781, %v773
        %v806 = vpack.c.b16 %v782, %v774
        %v807 = vpack.c.b16 %v783, %v775
        %v808 = vpack.c.b16 %v784, %v776
        %v809 = vpack.c.b16 %v785, %v777
        %v810 = vpack.c.b16 %v786, %v778
        %v1347 = vunpack.c.l.b16 %v203
        %v1348 = vunpack.c.h.b16 %v203
        %v1349 = vunpack.c.l.b16 %v204
        %v1350 = vunpack.c.h.b16 %v204
        %v1351 = vunpack.c.l.b16 %v205
        %v1352 = vunpack.c.h.b16 %v205
        %v1353 = vunpack.c.l.b16 %v206
        %v1354 = vunpack.c.h.b16 %v206
        %v1355 = vunpack.c.l.b16 %v207
        %v1356 = vunpack.c.h.b16 %v207
        %v1357 = vunpack.c.l.b16 %v208
        %v1358 = vunpack.c.h.b16 %v208
        %v1359 = vunpack.c.l.b16 %v209
        %v1360 = vunpack.c.h.b16 %v209
        %v1361 = vunpack.c.l.b16 %v210
        %v1362 = vunpack.c.h.b16 %v210
        %v1363 = vunpack.c.l.b16 %v211
        %v1364 = vunpack.c.h.b16 %v211
        %v1365 = vunpack.c.l.b16 %v212
        %v1366 = vunpack.c.h.b16 %v212
        %v1367 = vunpack.c.l.b16 %v213
        %v1368 = vunpack.c.h.b16 %v213
        %v1369 = vunpack.c.l.b16 %v214
        %v1370 = vunpack.c.h.b16 %v214
        %v1371 = vunpack.c.l.b16 %v215
        %v1372 = vunpack.c.h.b16 %v215
        %v1373 = vunpack.c.l.b16 %v216
        %v1374 = vunpack.c.h.b16 %v216
        %v1375 = vunpack.c.l.b16 %v217
        %v1376 = vunpack.c.h.b16 %v217
        %v1377 = vunpack.c.l.b16 %v218
        %v1378 = vunpack.c.h.b16 %v218
        %v1379 = vunpack.c.l.b16 %v219
        %v1380 = vunpack.c.h.b16 %v219
        %v1381 = vunpack.c.l.b16 %v220
        %v1382 = vunpack.c.h.b16 %v220
        %v1383 = vunpack.c.l.b16 %v221
        %v1384 = vunpack.c.h.b16 %v221
        %v1385 = vunpack.c.l.b16 %v222
        %v1386 = vunpack.c.h.b16 %v222
        %v1387 = vunpack.c.l.b16 %v223
        %v1388 = vunpack.c.h.b16 %v223
        %v1389 = vunpack.c.l.b16 %v224
        %v1390 = vunpack.c.h.b16 %v224
        %v1391 = vunpack.c.l.b16 %v225
        %v1392 = vunpack.c.h.b16 %v225
        %v1393 = vunpack.c.l.b16 %v226
        %v1394 = vunpack.c.h.b16 %v226
        %v1395 = vunpack.c.l.b16 %v227
        %v1396 = vunpack.c.h.b16 %v227
        %v1397 = vunpack.c.l.b16 %v228
        %v1398 = vunpack.c.h.b16 %v228
        %v1399 = vunpack.c.l.b16 %v229
        %v1400 = vunpack.c.h.b16 %v229
        %v1401 = vunpack.c.l.b16 %v230
        %v1402 = vunpack.c.h.b16 %v230
        %v1403 = vunpack.c.l.b16 %v231
        %v1404 = vunpack.c.h.b16 %v231
        %v1405 = vunpack.c.l.b16 %v232
        %v1406 = vunpack.c.h.b16 %v232
        %v1407 = vunpack.c.l.b16 %v233
        %v1408 = vunpack.c.h.b16 %v233
        %v1409 = vunpack.c.l.b16 %v234
        %v1410 = vunpack.c.h.b16 %v234
        %v1411 = vunpack.c.l.b16 %v235
        %v1412 = vunpack.c.h.b16 %v235
        %v1413 = vunpack.c.l.b16 %v236
        %v1414 = vunpack.c.h.b16 %v236
        %v1415 = vunpack.c.l.b16 %v237
        %v1416 = vunpack.c.h.b16 %v237
        %v1417 = vunpack.c.l.b16 %v238
        %v1418 = vunpack.c.h.b16 %v238
        %v1419 = vunpack.c.l.b16 %v239
        %v1420 = vunpack.c.h.b16 %v239
        %v1421 = vunpack.c.l.b16 %v240
        %v1422 = vunpack.c.h.b16 %v240
        %v1423 = vunpack.c.l.b16 %v241
        %v1424 = vunpack.c.h.b16 %v241
        %v1425 = vunpack.c.l.b16 %v242
        %v1426 = vunpack.c.h.b16 %v242
        %v1427 = vunpack.c.l.b16 %v243
        %v1428 = vunpack.c.h.b16 %v243
        %v1429 = vunpack.c.l.b16 %v244
        %v1430 = vunpack.c.h.b16 %v244
        %v1431 = vunpack.c.l.b16 %v245
        %v1432 = vunpack.c.h.b16 %v245
        %v1433 = vunpack.c.l.b16 %v246
        %v1434 = vunpack.c.h.b16 %v246
        %v1435 = vunpack.c.l.b16 %v247
        %v1436 = vunpack.c.h.b16 %v247
        %v1437 = vunpack.c.l.b16 %v248
        %v1438 = vunpack.c.h.b16 %v248
        %v1439 = vunpack.c.l.b16 %v249
        %v1440 = vunpack.c.h.b16 %v249
        %v1441 = vunpack.c.l.b16 %v250
        %v1442 = vunpack.c.h.b16 %v250
        %v1443 = vunpack.c.l.b16 %v251
        %v1444 = vunpack.c.h.b16 %v251
        %v1445 = vunpack.c.l.b16 %v252
        %v1446 = vunpack.c.h.b16 %v252
        %v1447 = vunpack.c.l.b16 %v253
        %v1448 = vunpack.c.h.b16 %v253
        %v1449 = vunpack.c.l.b16 %v254
        %v1450 = vunpack.c.h.b16 %v254
        %v1451 = vunpack.c.l.b16 %v255
        %v1452 = vunpack.c.h.b16 %v255
        %v1453 = vunpack.c.l.b16 %v256
        %v1454 = vunpack.c.h.b16 %v256
        %v1455 = vunpack.c.l.b16 %v257
        %v1456 = vunpack.c.h.b16 %v257
        %v1457 = vunpack.c.l.b16 %v258
        %v1458 = vunpack.c.h.b16 %v258
        %v1459 = vunpack.c.l.b16 %v259
        %v1460 = vunpack.c.h.b16 %v259
        %v1461 = vunpack.c.l.b16 %v260
        %v1462 = vunpack.c.h.b16 %v260
        %v1463 = vunpack.c.l.b16 %v261
        %v1464 = vunpack.c.h.b16 %v261
        %v1465 = vunpack.c.l.b16 %v262
        %v1466 = vunpack.c.h.b16 %v262
        %v1467 = vunpack.c.l.b16 %v263
        %v1468 = vunpack.c.h.b16 %v263
        %v1469 = vunpack.c.l.b16 %v264
        %v1470 = vunpack.c.h.b16 %v264
        %v1471 = vunpack.c.l.b16 %v265
        %v1472 = vunpack.c.h.b16 %v265
        %v1473 = vunpack.c.l.b16 %v266
        %v1474 = vunpack.c.h.b16 %v266
        %v1475 = vunpack.c.l.b16 %v267
        %v1476 = vunpack.c.h.b16 %v267
        %v1477 = vunpack.c.l.b16 %v268
        %v1478 = vunpack.c.h.b16 %v268
        %v1479 = vunpack.c.l.b16 %v269
        %v1480 = vunpack.c.h.b16 %v269
        %v1481 = vunpack.c.l.b16 %v270
        %v1482 = vunpack.c.h.b16 %v270
        %v1483 = vunpack.c.l.b16 %v271
        %v1484 = vunpack.c.h.b16 %v271
        %v1485 = vunpack.c.l.b16 %v272
        %v1486 = vunpack.c.h.b16 %v272
        %v1487 = vunpack.c.l.b16 %v273
        %v1488 = vunpack.c.h.b16 %v273
        %v1489 = vunpack.c.l.b16 %v274
        %v1490 = vunpack.c.h.b16 %v274
        %v1491 = vunpack.c.l.b16 %v275
        %v1492 = vunpack.c.h.b16 %v275
        %v1493 = vunpack.c.l.b16 %v276
        %v1494 = vunpack.c.h.b16 %v276
        %v1495 = vunpack.c.l.b16 %v277
        %v1496 = vunpack.c.h.b16 %v277
        %v1497 = vunpack.c.l.b16 %v278
        %v1498 = vunpack.c.h.b16 %v278
        %v1499 = vunpack.c.l.b16 %v279
        %v1500 = vunpack.c.h.b16 %v279
        %v1501 = vunpack.c.l.b16 %v280
        %v1502 = vunpack.c.h.b16 %v280
        %v1503 = vunpack.c.l.b16 %v281
        %v1504 = vunpack.c.h.b16 %v281
        %v1505 = vunpack.c.l.b16 %v282
        %v1506 = vunpack.c.h.b16 %v282
        %v1507 = vunpack.c.l.b16 %v283
        %v1508 = vunpack.c.h.b16 %v283
        %v1509 = vunpack.c.l.b16 %v284
        %v1510 = vunpack.c.h.b16 %v284
        %v1511 = vunpack.c.l.b16 %v285
        %v1512 = vunpack.c.h.b16 %v285
        %v1513 = vunpack.c.l.b16 %v286
        %v1514 = vunpack.c.h.b16 %v286
        %v1515 = vunpack.c.l.b16 %v287
        %v1516 = vunpack.c.h.b16 %v287
        %v1517 = vunpack.c.l.b16 %v288
        %v1518 = vunpack.c.h.b16 %v288
        %v1519 = vunpack.c.l.b16 %v289
        %v1520 = vunpack.c.h.b16 %v289
        %v1521 = vunpack.c.l.b16 %v290
        %v1522 = vunpack.c.h.b16 %v290
        %v1523 = vunpack.c.l.b16 %v291
        %v1524 = vunpack.c.h.b16 %v291
        %v1525 = vunpack.c.l.b16 %v292
        %v1526 = vunpack.c.h.b16 %v292
        %v1527 = vunpack.c.l.b16 %v293
        %v1528 = vunpack.c.h.b16 %v293
        %v1529 = vunpack.c.l.b16 %v294
        %v1530 = vunpack.c.h.b16 %v294
        %v1531 = vunpack.c.l.b16 %v295
        %v1532 = vunpack.c.h.b16 %v295
        %v1533 = vunpack.c.l.b16 %v296
        %v1534 = vunpack.c.h.b16 %v296
        %v1535 = vunpack.c.l.b16 %v297
        %v1536 = vunpack.c.h.b16 %v297
        %v1537 = vunpack.c.l.b16 %v298
        %v1538 = vunpack.c.h.b16 %v298
        %v1539 = vunpack.c.l.b16 %v299
        %v1540 = vunpack.c.h.b16 %v299
        %v1541 = vunpack.c.l.b16 %v300
        %v1542 = vunpack.c.h.b16 %v300
        %v1543 = vunpack.c.l.b16 %v301
        %v1544 = vunpack.c.h.b16 %v301
        %v1545 = vunpack.c.l.b16 %v302
        %v1546 = vunpack.c.h.b16 %v302
        %v1547 = vunpack.c.l.b16 %v303
        %v1548 = vunpack.c.h.b16 %v303
        %v1549 = vunpack.c.l.b16 %v304
        %v1550 = vunpack.c.h.b16 %v304
        %v1551 = vunpack.c.l.b16 %v305
        %v1552 = vunpack.c.h.b16 %v305
        %v1553 = vunpack.c.l.b16 %v306
        %v1554 = vunpack.c.h.b16 %v306
        %v1555 = vunpack.c.l.b16 %v307
        %v1556 = vunpack.c.h.b16 %v307
        %v1557 = vunpack.c.l.b16 %v308
        %v1558 = vunpack.c.h.b16 %v308
        %v1559 = vunpack.c.l.b16 %v309
        %v1560 = vunpack.c.h.b16 %v309
        %v1561 = vunpack.c.l.b16 %v310
        %v1562 = vunpack.c.h.b16 %v310
        %v1563 = vunpack.c.l.b16 %v311
        %v1564 = vunpack.c.h.b16 %v311
        %v1565 = vunpack.c.l.b16 %v312
        %v1566 = vunpack.c.h.b16 %v312
        %v1567 = vunpack.c.l.b16 %v313
        %v1568 = vunpack.c.h.b16 %v313
        %v1569 = vunpack.c.l.b16 %v314
        %v1570 = vunpack.c.h.b16 %v314
        %v1571 = vunpack.c.l.b16 %v315
        %v1572 = vunpack.c.h.b16 %v315
        %v1573 = vunpack.c.l.b16 %v316
        %v1574 = vunpack.c.h.b16 %v316
        %v1575 = vunpack.c.l.b16 %v317
        %v1576 = vunpack.c.h.b16 %v317
        %v1577 = vunpack.c.l.b16 %v318
        %v1578 = vunpack.c.h.b16 %v318
        %v1579 = vunpack.c.l.b16 %v319
        %v1580 = vunpack.c.h.b16 %v319
        %v1581 = vunpack.c.l.b16 %v320
        %v1582 = vunpack.c.h.b16 %v320
        %v1583 = vunpack.c.l.b16 %v321
        %v1584 = vunpack.c.h.b16 %v321
        %v1585 = vunpack.c.l.b16 %v322
        %v1586 = vunpack.c.h.b16 %v322
        %v1587 = vunpack.c.l.b16 %v323
        %v1588 = vunpack.c.h.b16 %v323
        %v1589 = vunpack.c.l.b16 %v324
        %v1590 = vunpack.c.h.b16 %v324
        %v1591 = vunpack.c.l.b16 %v325
        %v1592 = vunpack.c.h.b16 %v325
        %v1593 = vunpack.c.l.b16 %v326
        %v1594 = vunpack.c.h.b16 %v326
        %v1595 = vunpack.c.l.b16 %v327
        %v1596 = vunpack.c.h.b16 %v327
        %v1597 = vunpack.c.l.b16 %v328
        %v1598 = vunpack.c.h.b16 %v328
        %v1599 = vunpack.c.l.b16 %v329
        %v1600 = vunpack.c.h.b16 %v329
        %v1601 = vunpack.c.l.b16 %v330
        %v1602 = vunpack.c.h.b16 %v330
        %v1603 = vunpack.c.l.b16 %v331
        %v1604 = vunpack.c.h.b16 %v331
        %v1605 = vunpack.c.l.b16 %v332
        %v1606 = vunpack.c.h.b16 %v332
        %v1607 = vunpack.c.l.b16 %v333
        %v1608 = vunpack.c.h.b16 %v333
        %v1609 = vunpack.c.l.b16 %v334
        %v1610 = vunpack.c.h.b16 %v334
        %v1611 = vunpack.c.l.b16 %v335
        %v1612 = vunpack.c.h.b16 %v335
        %v1613 = vunpack.c.l.b16 %v336
        %v1614 = vunpack.c.h.b16 %v336
        %v1615 = vunpack.c.l.b16 %v337
        %v1616 = vunpack.c.h.b16 %v337
        %v1617 = vunpack.c.l.b16 %v338
        %v1618 = vunpack.c.h.b16 %v338
        %v1619 = vunpack.c.l.b16 %v339
        %v1620 = vunpack.c.h.b16 %v339
        %v1621 = vunpack.c.l.b16 %v340
        %v1622 = vunpack.c.h.b16 %v340
        %v1623 = vunpack.c.l.b16 %v341
        %v1624 = vunpack.c.h.b16 %v341
        %v1625 = vunpack.c.l.b16 %v342
        %v1626 = vunpack.c.h.b16 %v342
        %v1627 = vunpack.c.l.b16 %v343
        %v1628 = vunpack.c.h.b16 %v343
        %v1629 = vunpack.c.l.b16 %v344
        %v1630 = vunpack.c.h.b16 %v344
        %v1631 = vunpack.c.l.b16 %v345
        %v1632 = vunpack.c.h.b16 %v345
        %v1633 = vunpack.c.l.b16 %v346
        %v1634 = vunpack.c.h.b16 %v346
        %v1635 = vunpack.c.l.b16 %v347
        %v1636 = vunpack.c.h.b16 %v347
        %v1637 = vunpack.c.l.b16 %v348
        %v1638 = vunpack.c.h.b16 %v348
        %v1639 = vunpack.c.l.b16 %v349
        %v1640 = vunpack.c.h.b16 %v349
        %v1641 = vunpack.c.l.b16 %v350
        %v1642 = vunpack.c.h.b16 %v350
        %v1643 = vunpack.c.l.b16 %v351
        %v1644 = vunpack.c.h.b16 %v351
        %v1645 = vunpack.c.l.b16 %v352
        %v1646 = vunpack.c.h.b16 %v352
        %v1647 = vunpack.c.l.b16 %v353
        %v1648 = vunpack.c.h.b16 %v353
        %v1649 = vunpack.c.l.b16 %v354
        %v1650 = vunpack.c.h.b16 %v354
        %v1651 = vunpack.c.l.b16 %v355
        %v1652 = vunpack.c.h.b16 %v355
        %v1653 = vunpack.c.l.b16 %v356
        %v1654 = vunpack.c.h.b16 %v356
        %v1655 = vunpack.c.l.b16 %v357
        %v1656 = vunpack.c.h.b16 %v357
        %v1657 = vunpack.c.l.b16 %v358
        %v1658 = vunpack.c.h.b16 %v358
        %v1659 = vunpack.c.l.b16 %v359
        %v1660 = vunpack.c.h.b16 %v359
        %v1661 = vunpack.c.l.b16 %v360
        %v1662 = vunpack.c.h.b16 %v360
        %v1663 = vunpack.c.l.b16 %v361
        %v1664 = vunpack.c.h.b16 %v361
        %v1665 = vunpack.c.l.b16 %v362
        %v1666 = vunpack.c.h.b16 %v362
        %v1667 = vunpack.c.l.b16 %v363
        %v1668 = vunpack.c.h.b16 %v363
        %v1669 = vunpack.c.l.b16 %v364
        %v1670 = vunpack.c.h.b16 %v364
        %v1671 = vunpack.c.l.b16 %v365
        %v1672 = vunpack.c.h.b16 %v365
        %v1673 = vunpack.c.l.b16 %v366
        %v1674 = vunpack.c.h.b16 %v366
        %v1675 = vunpack.c.l.b16 %v367
        %v1676 = vunpack.c.h.b16 %v367
        %v1677 = vunpack.c.l.b16 %v368
        %v1678 = vunpack.c.h.b16 %v368
        %v1679 = vunpack.c.l.b16 %v369
        %v1680 = vunpack.c.h.b16 %v369
        %v1681 = vunpack.c.l.b16 %v370
        %v1682 = vunpack.c.h.b16 %v370
        %v1683 = vunpack.c.l.b16 %v371
        %v1684 = vunpack.c.h.b16 %v371
        %v1685 = vunpack.c.l.b16 %v372
        %v1686 = vunpack.c.h.b16 %v372
        %v1687 = vunpack.c.l.b16 %v373
        %v1688 = vunpack.c.h.b16 %v373
        %v1689 = vunpack.c.l.b16 %v374
        %v1690 = vunpack.c.h.b16 %v374
        %v1691 = vunpack.c.l.b16 %v375
        %v1692 = vunpack.c.h.b16 %v375
        %v1693 = vunpack.c.l.b16 %v376
        %v1694 = vunpack.c.h.b16 %v376
        %v1695 = vunpack.c.l.b16 %v377
        %v1696 = vunpack.c.h.b16 %v377
        %v1697 = vunpack.c.l.b16 %v378
        %v1698 = vunpack.c.h.b16 %v378
        %v1699 = vunpack.c.l.b16 %v379
        %v1700 = vunpack.c.h.b16 %v379
        %v1701 = vunpack.c.l.b16 %v380
        %v1702 = vunpack.c.h.b16 %v380
        %v1703 = vunpack.c.l.b16 %v381
        %v1704 = vunpack.c.h.b16 %v381
        %v1705 = vunpack.c.l.b16 %v382
        %v1706 = vunpack.c.h.b16 %v382
        %v1707 = vunpack.c.l.b16 %v383
        %v1708 = vunpack.c.h.b16 %v383
        %v1709 = vunpack.c.l.b16 %v384
        %v1710 = vunpack.c.h.b16 %v384
        %v1711 = vunpack.c.l.b16 %v385
        %v1712 = vunpack.c.h.b16 %v385
        %v1713 = vunpack.c.l.b16 %v386
        %v1714 = vunpack.c.h.b16 %v386
        %v1715 = vunpack.c.l.b16 %v387
        %v1716 = vunpack.c.h.b16 %v387
        %v1717 = vunpack.c.l.b16 %v388
        %v1718 = vunpack.c.h.b16 %v388
        %v1719 = vunpack.c.l.b16 %v389
        %v1720 = vunpack.c.h.b16 %v389
        %v1721 = vunpack.c.l.b16 %v390
        %v1722 = vunpack.c.h.b16 %v390
        %v1723 = vunpack.c.l.b16 %v391
        %v1724 = vunpack.c.h.b16 %v391
        %v1725 = vunpack.c.l.b16 %v392
        %v1726 = vunpack.c.h.b16 %v392
        %v1727 = vunpack.c.l.b16 %v393
        %v1728 = vunpack.c.h.b16 %v393
        %v1729 = vunpack.c.l.b16 %v394
        %v1730 = vunpack.c.h.b16 %v394
        %v1731 = vunpack.c.l.b16 %v395
        %v1732 = vunpack.c.h.b16 %v395
        %v1733 = vunpack.c.l.b16 %v396
        %v1734 = vunpack.c.h.b16 %v396
        %v1735 = vunpack.c.l.b16 %v397
        %v1736 = vunpack.c.h.b16 %v397
        %v1737 = vunpack.c.l.b16 %v398
        %v1738 = vunpack.c.h.b16 %v398
        %v1739 = vunpack.c.l.b16 %v399
        %v1740 = vunpack.c.h.b16 %v399
        %v1741 = vunpack.c.l.b16 %v400
        %v1742 = vunpack.c.h.b16 %v400
        %v1743 = vunpack.c.l.b16 %v401
        %v1744 = vunpack.c.h.b16 %v401
        %v1745 = vunpack.c.l.b16 %v402
        %v1746 = vunpack.c.h.b16 %v402
        %v1747 = vunpack.c.l.b16 %v403
        %v1748 = vunpack.c.h.b16 %v403
        %v1749 = vunpack.c.l.b16 %v404
        %v1750 = vunpack.c.h.b16 %v404
        %v1751 = vunpack.c.l.b16 %v405
        %v1752 = vunpack.c.h.b16 %v405
        %v1753 = vunpack.c.l.b16 %v406
        %v1754 = vunpack.c.h.b16 %v406
        %v1755 = vunpack.c.l.b16 %v407
        %v1756 = vunpack.c.h.b16 %v407
        %v1757 = vunpack.c.l.b16 %v408
        %v1758 = vunpack.c.h.b16 %v408
        %v1759 = vunpack.c.l.b16 %v409
        %v1760 = vunpack.c.h.b16 %v409
        %v1761 = vunpack.c.l.b16 %v410
        %v1762 = vunpack.c.h.b16 %v410
        %v1763 = vunpack.c.l.b16 %v411
        %v1764 = vunpack.c.h.b16 %v411
        %v1765 = vunpack.c.l.b16 %v412
        %v1766 = vunpack.c.h.b16 %v412
        %v1767 = vunpack.c.l.b16 %v413
        %v1768 = vunpack.c.h.b16 %v413
        %v1769 = vunpack.c.l.b16 %v414
        %v1770 = vunpack.c.h.b16 %v414
        %v1771 = vunpack.c.l.b16 %v415
        %v1772 = vunpack.c.h.b16 %v415
        %v1773 = vunpack.c.l.b16 %v416
        %v1774 = vunpack.c.h.b16 %v416
        %v1775 = vunpack.c.l.b16 %v417
        %v1776 = vunpack.c.h.b16 %v417
        %v1777 = vunpack.c.l.b16 %v418
        %v1778 = vunpack.c.h.b16 %v418
        %v1779 = vunpack.c.l.b16 %v419
        %v1780 = vunpack.c.h.b16 %v419
        %v1781 = vunpack.c.l.b16 %v420
        %v1782 = vunpack.c.h.b16 %v420
        %v1783 = vunpack.c.l.b16 %v421
        %v1784 = vunpack.c.h.b16 %v421
        %v1785 = vunpack.c.l.b16 %v422
        %v1786 = vunpack.c.h.b16 %v422
        %v1787 = vunpack.c.l.b16 %v423
        %v1788 = vunpack.c.h.b16 %v423
        %v1789 = vunpack.c.l.b16 %v424
        %v1790 = vunpack.c.h.b16 %v424
        %v1791 = vunpack.c.l.b16 %v425
        %v1792 = vunpack.c.h.b16 %v425
        %v1793 = vunpack.c.l.b16 %v426
        %v1794 = vunpack.c.h.b16 %v426
        %v1795 = vunpack.c.l.b16 %v427
        %v1796 = vunpack.c.h.b16 %v427
        %v1797 = vunpack.c.l.b16 %v428
        %v1798 = vunpack.c.h.b16 %v428
        %v1799 = vunpack.c.l.b16 %v429
        %v1800 = vunpack.c.h.b16 %v429
        %v1801 = vunpack.c.l.b16 %v430
        %v1802 = vunpack.c.h.b16 %v430
        %v1803 = vunpack.c.l.b16 %v431
        %v1804 = vunpack.c.h.b16 %v431
        %v1805 = vunpack.c.l.b16 %v432
        %v1806 = vunpack.c.h.b16 %v432
        %v1807 = vunpack.c.l.b16 %v433
        %v1808 = vunpack.c.h.b16 %v433
        %v1809 = vunpack.c.l.b16 %v434
        %v1810 = vunpack.c.h.b16 %v434
        %v1811 = vunpack.c.l.b16 %v435
        %v1812 = vunpack.c.h.b16 %v435
        %v1813 = vunpack.c.l.b16 %v436
        %v1814 = vunpack.c.h.b16 %v436
        %v1815 = vunpack.c.l.b16 %v437
        %v1816 = vunpack.c.h.b16 %v437
        %v1817 = vunpack.c.l.b16 %v438
        %v1818 = vunpack.c.h.b16 %v438
        %v1819 = vunpack.c.l.b16 %v439
        %v1820 = vunpack.c.h.b16 %v439
        %v1821 = vunpack.c.l.b16 %v440
        %v1822 = vunpack.c.h.b16 %v440
        %v1823 = vunpack.c.l.b16 %v441
        %v1824 = vunpack.c.h.b16 %v441
        %v1825 = vunpack.c.l.b16 %v442
        %v1826 = vunpack.c.h.b16 %v442
        %v1827 = vunpack.c.l.b16 %v443
        %v1828 = vunpack.c.h.b16 %v443
        %v1829 = vunpack.c.l.b16 %v444
        %v1830 = vunpack.c.h.b16 %v444
        %v1831 = vunpack.c.l.b16 %v445
        %v1832 = vunpack.c.h.b16 %v445
        %v1833 = vunpack.c.l.b16 %v446
        %v1834 = vunpack.c.h.b16 %v446
        %v1835 = vunpack.c.l.b16 %v447
        %v1836 = vunpack.c.h.b16 %v447
        %v1837 = vunpack.c.l.b16 %v448
        %v1838 = vunpack.c.h.b16 %v448
        %v1839 = vunpack.c.l.b16 %v449
        %v1840 = vunpack.c.h.b16 %v449
        %v1841 = vunpack.c.l.b16 %v450
        %v1842 = vunpack.c.h.b16 %v450
        %v1843 = vunpack.c.l.b16 %v451
        %v1844 = vunpack.c.h.b16 %v451
        %v1845 = vunpack.c.l.b16 %v452
        %v1846 = vunpack.c.h.b16 %v452
        %v1847 = vunpack.c.l.b16 %v453
        %v1848 = vunpack.c.h.b16 %v453
        %v1849 = vunpack.c.l.b16 %v454
        %v1850 = vunpack.c.h.b16 %v454
        %v1851 = vunpack.c.l.b16 %v455
        %v1852 = vunpack.c.h.b16 %v455
        %v1853 = vunpack.c.l.b16 %v456
        %v1854 = vunpack.c.h.b16 %v456
        %v1855 = vunpack.c.l.b16 %v457
        %v1856 = vunpack.c.h.b16 %v457
        %v1857 = vunpack.c.l.b16 %v458
        %v1858 = vunpack.c.h.b16 %v458
        %v1859 = vunpack.c.l.b16 %v459
        %v1860 = vunpack.c.h.b16 %v459
        %v1861 = vunpack.c.l.b16 %v460
        %v1862 = vunpack.c.h.b16 %v460
        %v1863 = vunpack.c.l.b16 %v461
        %v1864 = vunpack.c.h.b16 %v461
        %v1865 = vunpack.c.l.b16 %v462
        %v1866 = vunpack.c.h.b16 %v462
        %v1867 = vunpack.c.l.b16 %v463
        %v1868 = vunpack.c.h.b16 %v463
        %v1869 = vunpack.c.l.b16 %v464
        %v1870 = vunpack.c.h.b16 %v464
        %v1871 = vunpack.c.l.b16 %v465
        %v1872 = vunpack.c.h.b16 %v465
        %v1873 = vunpack.c.l.b16 %v466
        %v1874 = vunpack.c.h.b16 %v466
        %v1875 = vunpack.c.l.b16 %v467
        %v1876 = vunpack.c.h.b16 %v467
        %v1877 = vunpack.c.l.b16 %v468
        %v1878 = vunpack.c.h.b16 %v468
        %v1879 = vunpack.c.l.b16 %v469
        %v1880 = vunpack.c.h.b16 %v469
        %v1881 = vunpack.c.l.b16 %v470
        %v1882 = vunpack.c.h.b16 %v470
        %v1883 = vunpack.c.l.b16 %v471
        %v1884 = vunpack.c.h.b16 %v471
        %v1885 = vunpack.c.l.b16 %v472
        %v1886 = vunpack.c.h.b16 %v472
        %v1887 = vunpack.c.l.b16 %v473
        %v1888 = vunpack.c.h.b16 %v473
        %v1889 = vunpack.c.l.b16 %v474
        %v1890 = vunpack.c.h.b16 %v474
        %v1891 = vunpack.c.l.b16 %v475
        %v1892 = vunpack.c.h.b16 %v475
        %v1893 = vunpack.c.l.b16 %v476
        %v1894 = vunpack.c.h.b16 %v476
        %v1895 = vunpack.c.l.b16 %v477
        %v1896 = vunpack.c.h.b16 %v477
        %v1897 = vunpack.c.l.b16 %v478
        %v1898 = vunpack.c.h.b16 %v478
        %v1899 = vunpack.c.l.b16 %v479
        %v1900 = vunpack.c.h.b16 %v479
        %v1901 = vunpack.c.l.b16 %v480
        %v1902 = vunpack.c.h.b16 %v480
        %v1903 = vunpack.c.l.b16 %v481
        %v1904 = vunpack.c.h.b16 %v481
        %v1905 = vunpack.c.l.b16 %v482
        %v1906 = vunpack.c.h.b16 %v482
        %v1907 = vunpack.c.l.b16 %v483
        %v1908 = vunpack.c.h.b16 %v483
        %v1909 = vunpack.c.l.b16 %v484
        %v1910 = vunpack.c.h.b16 %v484
        %v1911 = vunpack.c.l.b16 %v485
        %v1912 = vunpack.c.h.b16 %v485
        %v1913 = vunpack.c.l.b16 %v486
        %v1914 = vunpack.c.h.b16 %v486
        %v1915 = vunpack.c.l.b16 %v487
        %v1916 = vunpack.c.h.b16 %v487
        %v1917 = vunpack.c.l.b16 %v488
        %v1918 = vunpack.c.h.b16 %v488
        %v1919 = vunpack.c.l.b16 %v489
        %v1920 = vunpack.c.h.b16 %v489
        %v1921 = vunpack.c.l.b16 %v490
        %v1922 = vunpack.c.h.b16 %v490
        %v1923 = vunpack.c.l.b16 %v491
        %v1924 = vunpack.c.h.b16 %v491
        %v1925 = vunpack.c.l.b16 %v492
        %v1926 = vunpack.c.h.b16 %v492
        %v1927 = vunpack.c.l.b16 %v493
        %v1928 = vunpack.c.h.b16 %v493
        %v1929 = vunpack.c.l.b16 %v494
        %v1930 = vunpack.c.h.b16 %v494
        %v1931 = vunpack.c.l.b16 %v495
        %v1932 = vunpack.c.h.b16 %v495
        %v1933 = vunpack.c.l.b16 %v496
        %v1934 = vunpack.c.h.b16 %v496
        %v1935 = vunpack.c.l.b16 %v497
        %v1936 = vunpack.c.h.b16 %v497
        %v1937 = vunpack.c.l.b16 %v498
        %v1938 = vunpack.c.h.b16 %v498
        %v1939 = vunpack.c.l.b16 %v499
        %v1940 = vunpack.c.h.b16 %v499
        %v1941 = vunpack.c.l.b16 %v500
        %v1942 = vunpack.c.h.b16 %v500
        %v1943 = vunpack.c.l.b16 %v501
        %v1944 = vunpack.c.h.b16 %v501
        %v1945 = vunpack.c.l.b16 %v502
        %v1946 = vunpack.c.h.b16 %v502
        %v1947 = vunpack.c.l.b16 %v503
        %v1948 = vunpack.c.h.b16 %v503
        %v1949 = vunpack.c.l.b16 %v504
        %v1950 = vunpack.c.h.b16 %v504
        %v1951 = vunpack.c.l.b16 %v505
        %v1952 = vunpack.c.h.b16 %v505
        %v1953 = vunpack.c.l.b16 %v506
        %v1954 = vunpack.c.h.b16 %v506
        %v1955 = vunpack.c.l.b16 %v507
        %v1956 = vunpack.c.h.b16 %v507
        %v1957 = vunpack.c.l.b16 %v508
        %v1958 = vunpack.c.h.b16 %v508
        %v1959 = vunpack.c.l.b16 %v509
        %v1960 = vunpack.c.h.b16 %v509
        %v1961 = vunpack.c.l.b16 %v510
        %v1962 = vunpack.c.h.b16 %v510
        %v1963 = vunpack.c.l.b16 %v511
        %v1964 = vunpack.c.h.b16 %v511
        %v1965 = vunpack.c.l.b16 %v512
        %v1966 = vunpack.c.h.b16 %v512
        %v1967 = vunpack.c.l.b16 %v513
        %v1968 = vunpack.c.h.b16 %v513
        %v1969 = vunpack.c.l.b16 %v514
        %v1970 = vunpack.c.h.b16 %v514
        %v1971 = vunpack.c.l.b16 %v515
        %v1972 = vunpack.c.h.b16 %v515
        %v1973 = vunpack.c.l.b16 %v516
        %v1974 = vunpack.c.h.b16 %v516
        %v1975 = vunpack.c.l.b16 %v517
        %v1976 = vunpack.c.h.b16 %v517
        %v1977 = vunpack.c.l.b16 %v518
        %v1978 = vunpack.c.h.b16 %v518
        %v1979 = vunpack.c.l.b16 %v519
        %v1980 = vunpack.c.h.b16 %v519
        %v1981 = vunpack.c.l.b16 %v520
        %v1982 = vunpack.c.h.b16 %v520
        %v1983 = vunpack.c.l.b16 %v521
        %v1984 = vunpack.c.h.b16 %v521
        %v1985 = vunpack.c.l.b16 %v522
        %v1986 = vunpack.c.h.b16 %v522
        %v1987 = vunpack.c.l.b16 %v523
        %v1988 = vunpack.c.h.b16 %v523
        %v1989 = vunpack.c.l.b16 %v524
        %v1990 = vunpack.c.h.b16 %v524
        %v1991 = vunpack.c.l.b16 %v525
        %v1992 = vunpack.c.h.b16 %v525
        %v1993 = vunpack.c.l.b16 %v526
        %v1994 = vunpack.c.h.b16 %v526
        %v1995 = vunpack.c.l.b16 %v527
        %v1996 = vunpack.c.h.b16 %v527
        %v1997 = vunpack.c.l.b16 %v528
        %v1998 = vunpack.c.h.b16 %v528
        %v1999 = vunpack.c.l.b16 %v529
        %v2000 = vunpack.c.h.b16 %v529
        %v2001 = vunpack.c.l.b16 %v530
        %v2002 = vunpack.c.h.b16 %v530
        %v2003 = vunpack.c.l.b16 %v531
        %v2004 = vunpack.c.h.b16 %v531
        %v2005 = vunpack.c.l.b16 %v532
        %v2006 = vunpack.c.h.b16 %v532
        %v2007 = vunpack.c.l.b16 %v533
        %v2008 = vunpack.c.h.b16 %v533
        %v2009 = vunpack.c.l.b16 %v534
        %v2010 = vunpack.c.h.b16 %v534
        %v2011 = vunpack.c.l.b16 %v535
        %v2012 = vunpack.c.h.b16 %v535
        %v2013 = vunpack.c.l.b16 %v536
        %v2014 = vunpack.c.h.b16 %v536
        %v2015 = vunpack.c.l.b16 %v537
        %v2016 = vunpack.c.h.b16 %v537
        %v2017 = vunpack.c.l.b16 %v538
        %v2018 = vunpack.c.h.b16 %v538
        %v2019 = vunpack.c.l.b16 %v539
        %v2020 = vunpack.c.h.b16 %v539
        %v2021 = vunpack.c.l.b16 %v540
        %v2022 = vunpack.c.h.b16 %v540
        %v2023 = vunpack.c.l.b16 %v541
        %v2024 = vunpack.c.h.b16 %v541
        %v2025 = vunpack.c.l.b16 %v542
        %v2026 = vunpack.c.h.b16 %v542
        %v2027 = vunpack.c.l.b16 %v543
        %v2028 = vunpack.c.h.b16 %v543
        %v2029 = vunpack.c.l.b16 %v544
        %v2030 = vunpack.c.h.b16 %v544
        %v2031 = vunpack.c.l.b16 %v545
        %v2032 = vunpack.c.h.b16 %v545
        %v2033 = vunpack.c.l.b16 %v546
        %v2034 = vunpack.c.h.b16 %v546
        %v2035 = vunpack.c.l.b16 %v547
        %v2036 = vunpack.c.h.b16 %v547
        %v2037 = vunpack.c.l.b16 %v548
        %v2038 = vunpack.c.h.b16 %v548
        %v2039 = vunpack.c.l.b16 %v549
        %v2040 = vunpack.c.h.b16 %v549
        %v2041 = vunpack.c.l.b16 %v550
        %v2042 = vunpack.c.h.b16 %v550
        %v2043 = vunpack.c.l.b16 %v551
        %v2044 = vunpack.c.h.b16 %v551
        %v2045 = vunpack.c.l.b16 %v552
        %v2046 = vunpack.c.h.b16 %v552
        %v2047 = vunpack.c.l.b16 %v553
        %v2048 = vunpack.c.h.b16 %v553
        %v2049 = vunpack.c.l.b16 %v554
        %v2050 = vunpack.c.h.b16 %v554
        %v2051 = vunpack.c.l.b16 %v555
        %v2052 = vunpack.c.h.b16 %v555
        %v2053 = vunpack.c.l.b16 %v556
        %v2054 = vunpack.c.h.b16 %v556
        %v2055 = vunpack.c.l.b16 %v557
        %v2056 = vunpack.c.h.b16 %v557
        %v2057 = vunpack.c.l.b16 %v558
        %v2058 = vunpack.c.h.b16 %v558
        %v2059 = vunpack.c.l.b16 %v559
        %v2060 = vunpack.c.h.b16 %v559
        %v2061 = vunpack.c.l.b16 %v560
        %v2062 = vunpack.c.h.b16 %v560
        %v2063 = vunpack.c.l.b16 %v561
        %v2064 = vunpack.c.h.b16 %v561
        %v2065 = vunpack.c.l.b16 %v562
        %v2066 = vunpack.c.h.b16 %v562
        %v2067 = vunpack.c.l.b16 %v563
        %v2068 = vunpack.c.h.b16 %v563
        %v2069 = vunpack.c.l.b16 %v564
        %v2070 = vunpack.c.h.b16 %v564
        %v2071 = vunpack.c.l.b16 %v565
        %v2072 = vunpack.c.h.b16 %v565
        %v2073 = vunpack.c.l.b16 %v566
        %v2074 = vunpack.c.h.b16 %v566
        %v2075 = vunpack.c.l.b16 %v567
        %v2076 = vunpack.c.h.b16 %v567
        %v2077 = vunpack.c.l.b16 %v568
        %v2078 = vunpack.c.h.b16 %v568
        %v2079 = vunpack.c.l.b16 %v569
        %v2080 = vunpack.c.h.b16 %v569
        %v2081 = vunpack.c.l.b16 %v570
        %v2082 = vunpack.c.h.b16 %v570
        %v2083 = vunpack.c.l.b16 %v571
        %v2084 = vunpack.c.h.b16 %v571
        %v2085 = vunpack.c.l.b16 %v572
        %v2086 = vunpack.c.h.b16 %v572
        %v2087 = vunpack.c.l.b16 %v573
        %v2088 = vunpack.c.h.b16 %v573
        %v2089 = vunpack.c.l.b16 %v574
        %v2090 = vunpack.c.h.b16 %v574
        %v2091 = vunpack.c.l.b16 %v575
        %v2092 = vunpack.c.h.b16 %v575
        %v2093 = vunpack.c.l.b16 %v576
        %v2094 = vunpack.c.h.b16 %v576
        %v2095 = vunpack.c.l.b16 %v577
        %v2096 = vunpack.c.h.b16 %v577
        %v2097 = vunpack.c.l.b16 %v578
        %v2098 = vunpack.c.h.b16 %v578
        %v2099 = vunpack.c.l.b16 %v579
        %v2100 = vunpack.c.h.b16 %v579
        %v2101 = vunpack.c.l.b16 %v580
        %v2102 = vunpack.c.h.b16 %v580
        %v2103 = vunpack.c.l.b16 %v581
        %v2104 = vunpack.c.h.b16 %v581
        %v2105 = vunpack.c.l.b16 %v582
        %v2106 = vunpack.c.h.b16 %v582
        %v2107 = vunpack.c.l.b16 %v583
        %v2108 = vunpack.c.h.b16 %v583
        %v2109 = vunpack.c.l.b16 %v584
        %v2110 = vunpack.c.h.b16 %v584
        %v2111 = vunpack.c.l.b16 %v585
        %v2112 = vunpack.c.h.b16 %v585
        %v2113 = vunpack.c.l.b16 %v586
        %v2114 = vunpack.c.h.b16 %v586
        %v2115 = vunpack.c.l.b16 %v587
        %v2116 = vunpack.c.h.b16 %v587
        %v2117 = vunpack.c.l.b16 %v588
        %v2118 = vunpack.c.h.b16 %v588
        %v2119 = vunpack.c.l.b16 %v589
        %v2120 = vunpack.c.h.b16 %v589
        %v2121 = vunpack.c.l.b16 %v590
        %v2122 = vunpack.c.h.b16 %v590
        %v2123 = vunpack.c.l.b16 %v591
        %v2124 = vunpack.c.h.b16 %v591
        %v2125 = vunpack.c.l.b16 %v592
        %v2126 = vunpack.c.h.b16 %v592
        %v2127 = vunpack.c.l.b16 %v593
        %v2128 = vunpack.c.h.b16 %v593
        %v2129 = vunpack.c.l.b16 %v594
        %v2130 = vunpack.c.h.b16 %v594
        %v2131 = vunpack.c.l.b16 %v595
        %v2132 = vunpack.c.h.b16 %v595
        %v2133 = vunpack.c.l.b16 %v596
        %v2134 = vunpack.c.h.b16 %v596
        %v2135 = vunpack.c.l.b16 %v597
        %v2136 = vunpack.c.h.b16 %v597
        %v2137 = vunpack.c.l.b16 %v598
        %v2138 = vunpack.c.h.b16 %v598
        %v2139 = vunpack.c.l.b16 %v599
        %v2140 = vunpack.c.h.b16 %v599
        %v2141 = vunpack.c.l.b16 %v600
        %v2142 = vunpack.c.h.b16 %v600
        %v2143 = vunpack.c.l.b16 %v601
        %v2144 = vunpack.c.h.b16 %v601
        %v2145 = vunpack.c.l.b16 %v602
        %v2146 = vunpack.c.h.b16 %v602
        %v2147 = vunpack.c.l.b16 %v603
        %v2148 = vunpack.c.h.b16 %v603
        %v2149 = vunpack.c.l.b16 %v604
        %v2150 = vunpack.c.h.b16 %v604
        %v2151 = vunpack.c.l.b16 %v605
        %v2152 = vunpack.c.h.b16 %v605
        %v2153 = vunpack.c.l.b16 %v606
        %v2154 = vunpack.c.h.b16 %v606
        %v2155 = vunpack.c.l.b16 %v607
        %v2156 = vunpack.c.h.b16 %v607
        %v2157 = vunpack.c.l.b16 %v608
        %v2158 = vunpack.c.h.b16 %v608
        %v2159 = vunpack.c.l.b16 %v609
        %v2160 = vunpack.c.h.b16 %v609
        %v2161 = vunpack.c.l.b16 %v610
        %v2162 = vunpack.c.h.b16 %v610
        %v2163 = vunpack.c.l.b16 %v611
        %v2164 = vunpack.c.h.b16 %v611
        %v2165 = vunpack.c.l.b16 %v612
        %v2166 = vunpack.c.h.b16 %v612
        %v2167 = vunpack.c.l.b16 %v613
        %v2168 = vunpack.c.h.b16 %v613
        %v2169 = vunpack.c.l.b16 %v614
        %v2170 = vunpack.c.h.b16 %v614
        %v2171 = vunpack.c.l.b16 %v615
        %v2172 = vunpack.c.h.b16 %v615
        %v2173 = vunpack.c.l.b16 %v616
        %v2174 = vunpack.c.h.b16 %v616
        %v2175 = vunpack.c.l.b16 %v617
        %v2176 = vunpack.c.h.b16 %v617
        %v2177 = vunpack.c.l.b16 %v618
        %v2178 = vunpack.c.h.b16 %v618
        %v2179 = vunpack.c.l.b16 %v619
        %v2180 = vunpack.c.h.b16 %v619
        %v2181 = vunpack.c.l.b16 %v620
        %v2182 = vunpack.c.h.b16 %v620
        %v2183 = vunpack.c.l.b16 %v621
        %v2184 = vunpack.c.h.b16 %v621
        %v2185 = vunpack.c.l.b16 %v622
        %v2186 = vunpack.c.h.b16 %v622
        %v2187 = vunpack.c.l.b16 %v623
        %v2188 = vunpack.c.h.b16 %v623
        %v2189 = vunpack.c.l.b16 %v624
        %v2190 = vunpack.c.h.b16 %v624
        %v2191 = vunpack.c.l.b16 %v625
        %v2192 = vunpack.c.h.b16 %v625
        %v2193 = vunpack.c.l.b16 %v626
        %v2194 = vunpack.c.h.b16 %v626
        %v2195 = vunpack.c.l.b16 %v627
        %v2196 = vunpack.c.h.b16 %v627
        %v2197 = vunpack.c.l.b16 %v628
        %v2198 = vunpack.c.h.b16 %v628
        %v2199 = vunpack.c.l.b16 %v629
        %v2200 = vunpack.c.h.b16 %v629
        %v2201 = vunpack.c.l.b16 %v630
        %v2202 = vunpack.c.h.b16 %v630
        %v2203 = vunpack.c.l.b16 %v631
        %v2204 = vunpack.c.h.b16 %v631
        %v2205 = vunpack.c.l.b16 %v632
        %v2206 = vunpack.c.h.b16 %v632
        %v2207 = vunpack.c.l.b16 %v633
        %v2208 = vunpack.c.h.b16 %v633
        %v2209 = vunpack.c.l.b16 %v634
        %v2210 = vunpack.c.h.b16 %v634
        %v2211 = vunpack.c.l.b16 %v635
        %v2212 = vunpack.c.h.b16 %v635
        %v2213 = vunpack.c.l.b16 %v636
        %v2214 = vunpack.c.h.b16 %v636
        %v2215 = vunpack.c.l.b16 %v637
        %v2216 = vunpack.c.h.b16 %v637
        %v2217 = vunpack.c.l.b16 %v638
        %v2218 = vunpack.c.h.b16 %v638
        %v2219 = vunpack.c.l.b16 %v639
        %v2220 = vunpack.c.h.b16 %v639
        %v2221 = vunpack.c.l.b16 %v640
        %v2222 = vunpack.c.h.b16 %v640
        %v2223 = vunpack.c.l.b16 %v641
        %v2224 = vunpack.c.h.b16 %v641
        %v2225 = vunpack.c.l.b16 %v642
        %v2226 = vunpack.c.h.b16 %v642
        %v2227 = vunpack.c.l.b16 %v643
        %v2228 = vunpack.c.h.b16 %v643
        %v2229 = vunpack.c.l.b16 %v644
        %v2230 = vunpack.c.h.b16 %v644
        %v2231 = vunpack.c.l.b16 %v645
        %v2232 = vunpack.c.h.b16 %v645
        %v2233 = vunpack.c.l.b16 %v646
        %v2234 = vunpack.c.h.b16 %v646
        %v2235 = vunpack.c.l.b16 %v647
        %v2236 = vunpack.c.h.b16 %v647
        %v2237 = vunpack.c.l.b16 %v648
        %v2238 = vunpack.c.h.b16 %v648
        %v2239 = vunpack.c.l.b16 %v649
        %v2240 = vunpack.c.h.b16 %v649
        %v2241 = vunpack.c.l.b16 %v650
        %v2242 = vunpack.c.h.b16 %v650
        %v2243 = vunpack.c.l.b16 %v651
        %v2244 = vunpack.c.h.b16 %v651
        %v2245 = vunpack.c.l.b16 %v652
        %v2246 = vunpack.c.h.b16 %v652
        %v2247 = vunpack.c.l.b16 %v653
        %v2248 = vunpack.c.h.b16 %v653
        %v2249 = vunpack.c.l.b16 %v654
        %v2250 = vunpack.c.h.b16 %v654
        %v2251 = vunpack.c.l.b16 %v655
        %v2252 = vunpack.c.h.b16 %v655
        %v2253 = vunpack.c.l.b16 %v656
        %v2254 = vunpack.c.h.b16 %v656
        %v2255 = vunpack.c.l.b16 %v657
        %v2256 = vunpack.c.h.b16 %v657
        %v2257 = vunpack.c.l.b16 %v658
        %v2258 = vunpack.c.h.b16 %v658
        %v2259 = vunpack.c.l.b16 %v659
        %v2260 = vunpack.c.h.b16 %v659
        %v2261 = vunpack.c.l.b16 %v660
        %v2262 = vunpack.c.h.b16 %v660
        %v2263 = vunpack.c.l.b16 %v661
        %v2264 = vunpack.c.h.b16 %v661
        %v2265 = vunpack.c.l.b16 %v662
        %v2266 = vunpack.c.h.b16 %v662
        %v2267 = vunpack.c.l.b16 %v663
        %v2268 = vunpack.c.h.b16 %v663
        %v2269 = vunpack.c.l.b16 %v664
        %v2270 = vunpack.c.h.b16 %v664
        %v2271 = vunpack.c.l.b16 %v665
        %v2272 = vunpack.c.h.b16 %v665
        %v2273 = vunpack.c.l.b16 %v666
        %v2274 = vunpack.c.h.b16 %v666
        %v2275 = vunpack.c.l.b16 %v667
        %v2276 = vunpack.c.h.b16 %v667
        %v2277 = vunpack.c.l.b16 %v668
        %v2278 = vunpack.c.h.b16 %v668
        %v2279 = vunpack.c.l.b16 %v669
        %v2280 = vunpack.c.h.b16 %v669
        %v2281 = vunpack.c.l.b16 %v670
        %v2282 = vunpack.c.h.b16 %v670
        %v2283 = vunpack.c.l.b16 %v671
        %v2284 = vunpack.c.h.b16 %v671
        %v2285 = vunpack.c.l.b16 %v672
        %v2286 = vunpack.c.h.b16 %v672
        %v2287 = vunpack.c.l.b16 %v673
        %v2288 = vunpack.c.h.b16 %v673
        %v2289 = vunpack.c.l.b16 %v674
        %v2290 = vunpack.c.h.b16 %v674
        %v2291 = vunpack.c.l.b16 %v675
        %v2292 = vunpack.c.h.b16 %v675
        %v2293 = vunpack.c.l.b16 %v676
        %v2294 = vunpack.c.h.b16 %v676
        %v2295 = vunpack.c.l.b16 %v677
        %v2296 = vunpack.c.h.b16 %v677
        %v2297 = vunpack.c.l.b16 %v678
        %v2298 = vunpack.c.h.b16 %v678
        %v2299 = vunpack.c.l.b16 %v679
        %v2300 = vunpack.c.h.b16 %v679
        %v2301 = vunpack.c.l.b16 %v680
        %v2302 = vunpack.c.h.b16 %v680
        %v2303 = vunpack.c.l.b16 %v681
        %v2304 = vunpack.c.h.b16 %v681
        %v2305 = vunpack.c.l.b16 %v682
        %v2306 = vunpack.c.h.b16 %v682
        %v2307 = vunpack.c.l.b16 %v683
        %v2308 = vunpack.c.h.b16 %v683
        %v2309 = vunpack.c.l.b16 %v684
        %v2310 = vunpack.c.h.b16 %v684
        %v2311 = vunpack.c.l.b16 %v685
        %v2312 = vunpack.c.h.b16 %v685
        %v2313 = vunpack.c.l.b16 %v686
        %v2314 = vunpack.c.h.b16 %v686
        %v2315 = vunpack.c.l.b16 %v687
        %v2316 = vunpack.c.h.b16 %v687
        %v2317 = vunpack.c.l.b16 %v688
        %v2318 = vunpack.c.h.b16 %v688
        %v2319 = vunpack.c.l.b16 %v689
        %v2320 = vunpack.c.h.b16 %v689
        %v2321 = vunpack.c.l.b16 %v690
        %v2322 = vunpack.c.h.b16 %v690
        %v2323 = vunpack.c.l.b16 %v691
        %v2324 = vunpack.c.h.b16 %v691
        %v2325 = vunpack.c.l.b16 %v692
        %v2326 = vunpack.c.h.b16 %v692
        %v2327 = vunpack.c.l.b16 %v693
        %v2328 = vunpack.c.h.b16 %v693
        %v2329 = vunpack.c.l.b16 %v694
        %v2330 = vunpack.c.h.b16 %v694
        %v2331 = vunpack.c.l.b16 %v695
        %v2332 = vunpack.c.h.b16 %v695
        %v2333 = vunpack.c.l.b16 %v696
        %v2334 = vunpack.c.h.b16 %v696
        %v2335 = vunpack.c.l.b16 %v697
        %v2336 = vunpack.c.h.b16 %v697
        %v2337 = vunpack.c.l.b16 %v698
        %v2338 = vunpack.c.h.b16 %v698
        %v2339 = vunpack.c.l.b16 %v699
        %v2340 = vunpack.c.h.b16 %v699
        %v2341 = vunpack.c.l.b16 %v700
        %v2342 = vunpack.c.h.b16 %v700
        %v2343 = vunpack.c.l.b16 %v701
        %v2344 = vunpack.c.h.b16 %v701
        %v2345 = vunpack.c.l.b16 %v702
        %v2346 = vunpack.c.h.b16 %v702
        %v2347 = vunpack.c.l.b16 %v703
        %v2348 = vunpack.c.h.b16 %v703
        %v2349 = vunpack.c.l.b16 %v704
        %v2350 = vunpack.c.h.b16 %v704
        %v2351 = vunpack.c.l.b16 %v705
        %v2352 = vunpack.c.h.b16 %v705
        %v2353 = vunpack.c.l.b16 %v706
        %v2354 = vunpack.c.h.b16 %v706
        %v2355 = vunpack.c.l.b16 %v707
        %v2356 = vunpack.c.h.b16 %v707
        %v2357 = vunpack.c.l.b16 %v708
        %v2358 = vunpack.c.h.b16 %v708
        %v2359 = vunpack.c.l.b16 %v709
        %v2360 = vunpack.c.h.b16 %v709
        %v2361 = vunpack.c.l.b16 %v710
        %v2362 = vunpack.c.h.b16 %v710
        %v2363 = vunpack.c.l.b16 %v711
        %v2364 = vunpack.c.h.b16 %v711
        %v2365 = vunpack.c.l.b16 %v712
        %v2366 = vunpack.c.h.b16 %v712
        %v2367 = vunpack.c.l.b16 %v713
        %v2368 = vunpack.c.h.b16 %v713
        %v2369 = vunpack.c.l.b16 %v714
        %v2370 = vunpack.c.h.b16 %v714
        %v2371 = vpack.c.b16 %v1355, %v1347
        %v2372 = vpack.c.b16 %v1356, %v1348
        %v2373 = vpack.c.b16 %v1357, %v1349
        %v2374 = vpack.c.b16 %v1358, %v1350
        %v2375 = vpack.c.b16 %v1359, %v1351
        %v2376 = vpack.c.b16 %v1360, %v1352
        %v2377 = vpack.c.b16 %v1361, %v1353
        %v2378 = vpack.c.b16 %v1362, %v1354
        %v2379 = vpack.c.b16 %v1371, %v1363
        %v2380 = vpack.c.b16 %v1372, %v1364
        %v2381 = vpack.c.b16 %v1373, %v1365
        %v2382 = vpack.c.b16 %v1374, %v1366
        %v2383 = vpack.c.b16 %v1375, %v1367
        %v2384 = vpack.c.b16 %v1376, %v1368
        %v2385 = vpack.c.b16 %v1377, %v1369
        %v2386 = vpack.c.b16 %v1378, %v1370
        %v2387 = vpack.c.b16 %v1387, %v1379
        %v2388 = vpack.c.b16 %v1388, %v1380
        %v2389 = vpack.c.b16 %v1389, %v1381
        %v2390 = vpack.c.b16 %v1390, %v1382
        %v2391 = vpack.c.b16 %v1391, %v1383
        %v2392 = vpack.c.b16 %v1392, %v1384
        %v2393 = vpack.c.b16 %v1393, %v1385
        %v2394 = vpack.c.b16 %v1394, %v1386
        %v2395 = vpack.c.b16 %v1403, %v1395
        %v2396 = vpack.c.b16 %v1404, %v1396
        %v2397 = vpack.c.b16 %v1405, %v1397
        %v2398 = vpack.c.b16 %v1406, %v1398
        %v2399 = vpack.c.b16 %v1407, %v1399
        %v2400 = vpack.c.b16 %v1408, %v1400
        %v2401 = vpack.c.b16 %v1409, %v1401
        %v2402 = vpack.c.b16 %v1410, %v1402
        %v2403 = vpack.c.b16 %v1419, %v1411
        %v2404 = vpack.c.b16 %v1420, %v1412
        %v2405 = vpack.c.b16 %v1421, %v1413
        %v2406 = vpack.c.b16 %v1422, %v1414
        %v2407 = vpack.c.b16 %v1423, %v1415
        %v2408 = vpack.c.b16 %v1424, %v1416
        %v2409 = vpack.c.b16 %v1425, %v1417
        %v2410 = vpack.c.b16 %v1426, %v1418
        %v2411 = vpack.c.b16 %v1435, %v1427
        %v2412 = vpack.c.b16 %v1436, %v1428
        %v2413 = vpack.c.b16 %v1437, %v1429
        %v2414 = vpack.c.b16 %v1438, %v1430
        %v2415 = vpack.c.b16 %v1439, %v1431
        %v2416 = vpack.c.b16 %v1440, %v1432
        %v2417 = vpack.c.b16 %v1441, %v1433
        %v2418 = vpack.c.b16 %v1442, %v1434
        %v2419 = vpack.c.b16 %v1451, %v1443
        %v2420 = vpack.c.b16 %v1452, %v1444
        %v2421 = vpack.c.b16 %v1453, %v1445
        %v2422 = vpack.c.b16 %v1454, %v1446
        %v2423 = vpack.c.b16 %v1455, %v1447
        %v2424 = vpack.c.b16 %v1456, %v1448
        %v2425 = vpack.c.b16 %v1457, %v1449
        %v2426 = vpack.c.b16 %v1458, %v1450
        %v2427 = vpack.c.b16 %v1467, %v1459
        %v2428 = vpack.c.b16 %v1468, %v1460
        %v2429 = vpack.c.b16 %v1469, %v1461
        %v2430 = vpack.c.b16 %v1470, %v1462
        %v2431 = vpack.c.b16 %v1471, %v1463
        %v2432 = vpack.c.b16 %v1472, %v1464
        %v2433 = vpack.c.b16 %v1473, %v1465
        %v2434 = vpack.c.b16 %v1474, %v1466
        %v2435 = vpack.c.b16 %v1483, %v1475
        %v2436 = vpack.c.b16 %v1484, %v1476
        %v2437 = vpack.c.b16 %v1485, %v1477
        %v2438 = vpack.c.b16 %v1486, %v1478
        %v2439 = vpack.c.b16 %v1487, %v1479
        %v2440 = vpack.c.b16 %v1488, %v1480
        %v2441 = vpack.c.b16 %v1489, %v1481
        %v2442 = vpack.c.b16 %v1490, %v1482
        %v2443 = vpack.c.b16 %v1499, %v1491
        %v2444 = vpack.c.b16 %v1500, %v1492
        %v2445 = vpack.c.b16 %v1501, %v1493
        %v2446 = vpack.c.b16 %v1502, %v1494
        %v2447 = vpack.c.b16 %v1503, %v1495
        %v2448 = vpack.c.b16 %v1504, %v1496
        %v2449 = vpack.c.b16 %v1505, %v1497
        %v2450 = vpack.c.b16 %v1506, %v1498
        %v2451 = vpack.c.b16 %v1515, %v1507
        %v2452 = vpack.c.b16 %v1516, %v1508
        %v2453 = vpack.c.b16 %v1517, %v1509
        %v2454 = vpack.c.b16 %v1518, %v1510
        %v2455 = vpack.c.b16 %v1519, %v1511
        %v2456 = vpack.c.b16 %v1520, %v1512
        %v2457 = vpack.c.b16 %v1521, %v1513
        %v2458 = vpack.c.b16 %v1522, %v1514
        %v2459 = vpack.c.b16 %v1531, %v1523
        %v2460 = vpack.c.b16 %v1532, %v1524
        %v2461 = vpack.c.b16 %v1533, %v1525
        %v2462 = vpack.c.b16 %v1534, %v1526
        %v2463 = vpack.c.b16 %v1535, %v1527
        %v2464 = vpack.c.b16 %v1536, %v1528
        %v2465 = vpack.c.b16 %v1537, %v1529
        %v2466 = vpack.c.b16 %v1538, %v1530
        %v2467 = vpack.c.b16 %v1547, %v1539
        %v2468 = vpack.c.b16 %v1548, %v1540
        %v2469 = vpack.c.b16 %v1549, %v1541
        %v2470 = vpack.c.b16 %v1550, %v1542
        %v2471 = vpack.c.b16 %v1551, %v1543
        %v2472 = vpack.c.b16 %v1552, %v1544
        %v2473 = vpack.c.b16 %v1553, %v1545
        %v2474 = vpack.c.b16 %v1554, %v1546
        %v2475 = vpack.c.b16 %v1563, %v1555
        %v2476 = vpack.c.b16 %v1564, %v1556
        %v2477 = vpack.c.b16 %v1565, %v1557
        %v2478 = vpack.c.b16 %v1566, %v1558
        %v2479 = vpack.c.b16 %v1567, %v1559
        %v2480 = vpack.c.b16 %v1568, %v1560
        %v2481 = vpack.c.b16 %v1569, %v1561
        %v2482 = vpack.c.b16 %v1570, %v1562
        %v2483 = vpack.c.b16 %v1579, %v1571
        %v2484 = vpack.c.b16 %v1580, %v1572
        %v2485 = vpack.c.b16 %v1581, %v1573
        %v2486 = vpack.c.b16 %v1582, %v1574
        %v2487 = vpack.c.b16 %v1583, %v1575
        %v2488 = vpack.c.b16 %v1584, %v1576
        %v2489 = vpack.c.b16 %v1585, %v1577
        %v2490 = vpack.c.b16 %v1586, %v1578
        %v2491 = vpack.c.b16 %v1595, %v1587
        %v2492 = vpack.c.b16 %v1596, %v1588
        %v2493 = vpack.c.b16 %v1597, %v1589
        %v2494 = vpack.c.b16 %v1598, %v1590
        %v2495 = vpack.c.b16 %v1599, %v1591
        %v2496 = vpack.c.b16 %v1600, %v1592
        %v2497 = vpack.c.b16 %v1601, %v1593
        %v2498 = vpack.c.b16 %v1602, %v1594
        %v2499 = vpack.c.b16 %v1611, %v1603
        %v2500 = vpack.c.b16 %v1612, %v1604
        %v2501 = vpack.c.b16 %v1613, %v1605
        %v2502 = vpack.c.b16 %v1614, %v1606
        %v2503 = vpack.c.b16 %v1615, %v1607
        %v2504 = vpack.c.b16 %v1616, %v1608
        %v2505 = vpack.c.b16 %v1617, %v1609
        %v2506 = vpack.c.b16 %v1618, %v1610
        %v2507 = vpack.c.b16 %v1627, %v1619
        %v2508 = vpack.c.b16 %v1628, %v1620
        %v2509 = vpack.c.b16 %v1629, %v1621
        %v2510 = vpack.c.b16 %v1630, %v1622
        %v2511 = vpack.c.b16 %v1631, %v1623
        %v2512 = vpack.c.b16 %v1632, %v1624
        %v2513 = vpack.c.b16 %v1633, %v1625
        %v2514 = vpack.c.b16 %v1634, %v1626
        %v2515 = vpack.c.b16 %v1643, %v1635
        %v2516 = vpack.c.b16 %v1644, %v1636
        %v2517 = vpack.c.b16 %v1645, %v1637
        %v2518 = vpack.c.b16 %v1646, %v1638
        %v2519 = vpack.c.b16 %v1647, %v1639
        %v2520 = vpack.c.b16 %v1648, %v1640
        %v2521 = vpack.c.b16 %v1649, %v1641
        %v2522 = vpack.c.b16 %v1650, %v1642
        %v2523 = vpack.c.b16 %v1659, %v1651
        %v2524 = vpack.c.b16 %v1660, %v1652
        %v2525 = vpack.c.b16 %v1661, %v1653
        %v2526 = vpack.c.b16 %v1662, %v1654
        %v2527 = vpack.c.b16 %v1663, %v1655
        %v2528 = vpack.c.b16 %v1664, %v1656
        %v2529 = vpack.c.b16 %v1665, %v1657
        %v2530 = vpack.c.b16 %v1666, %v1658
        %v2531 = vpack.c.b16 %v1675, %v1667
        %v2532 = vpack.c.b16 %v1676, %v1668
        %v2533 = vpack.c.b16 %v1677, %v1669
        %v2534 = vpack.c.b16 %v1678, %v1670
        %v2535 = vpack.c.b16 %v1679, %v1671
        %v2536 = vpack.c.b16 %v1680, %v1672
        %v2537 = vpack.c.b16 %v1681, %v1673
        %v2538 = vpack.c.b16 %v1682, %v1674
        %v2539 = vpack.c.b16 %v1691, %v1683
        %v2540 = vpack.c.b16 %v1692, %v1684
        %v2541 = vpack.c.b16 %v1693, %v1685
        %v2542 = vpack.c.b16 %v1694, %v1686
        %v2543 = vpack.c.b16 %v1695, %v1687
        %v2544 = vpack.c.b16 %v1696, %v1688
        %v2545 = vpack.c.b16 %v1697, %v1689
        %v2546 = vpack.c.b16 %v1698, %v1690
        %v2547 = vpack.c.b16 %v1707, %v1699
        %v2548 = vpack.c.b16 %v1708, %v1700
        %v2549 = vpack.c.b16 %v1709, %v1701
        %v2550 = vpack.c.b16 %v1710, %v1702
        %v2551 = vpack.c.b16 %v1711, %v1703
        %v2552 = vpack.c.b16 %v1712, %v1704
        %v2553 = vpack.c.b16 %v1713, %v1705
        %v2554 = vpack.c.b16 %v1714, %v1706
        %v2555 = vpack.c.b16 %v1723, %v1715
        %v2556 = vpack.c.b16 %v1724, %v1716
        %v2557 = vpack.c.b16 %v1725, %v1717
        %v2558 = vpack.c.b16 %v1726, %v1718
        %v2559 = vpack.c.b16 %v1727, %v1719
        %v2560 = vpack.c.b16 %v1728, %v1720
        %v2561 = vpack.c.b16 %v1729, %v1721
        %v2562 = vpack.c.b16 %v1730, %v1722
        %v2563 = vpack.c.b16 %v1739, %v1731
        %v2564 = vpack.c.b16 %v1740, %v1732
        %v2565 = vpack.c.b16 %v1741, %v1733
        %v2566 = vpack.c.b16 %v1742, %v1734
        %v2567 = vpack.c.b16 %v1743, %v1735
        %v2568 = vpack.c.b16 %v1744, %v1736
        %v2569 = vpack.c.b16 %v1745, %v1737
        %v2570 = vpack.c.b16 %v1746, %v1738
        %v2571 = vpack.c.b16 %v1755, %v1747
        %v2572 = vpack.c.b16 %v1756, %v1748
        %v2573 = vpack.c.b16 %v1757, %v1749
        %v2574 = vpack.c.b16 %v1758, %v1750
        %v2575 = vpack.c.b16 %v1759, %v1751
        %v2576 = vpack.c.b16 %v1760, %v1752
        %v2577 = vpack.c.b16 %v1761, %v1753
        %v2578 = vpack.c.b16 %v1762, %v1754
        %v2579 = vpack.c.b16 %v1771, %v1763
        %v2580 = vpack.c.b16 %v1772, %v1764
        %v2581 = vpack.c.b16 %v1773, %v1765
        %v2582 = vpack.c.b16 %v1774, %v1766
        %v2583 = vpack.c.b16 %v1775, %v1767
        %v2584 = vpack.c.b16 %v1776, %v1768
        %v2585 = vpack.c.b16 %v1777, %v1769
        %v2586 = vpack.c.b16 %v1778, %v1770
        %v2587 = vpack.c.b16 %v1787, %v1779
        %v2588 = vpack.c.b16 %v1788, %v1780
        %v2589 = vpack.c.b16 %v1789, %v1781
        %v2590 = vpack.c.b16 %v1790, %v1782
        %v2591 = vpack.c.b16 %v1791, %v1783
        %v2592 = vpack.c.b16 %v1792, %v1784
        %v2593 = vpack.c.b16 %v1793, %v1785
        %v2594 = vpack.c.b16 %v1794, %v1786
        %v2595 = vpack.c.b16 %v1803, %v1795
        %v2596 = vpack.c.b16 %v1804, %v1796
        %v2597 = vpack.c.b16 %v1805, %v1797
        %v2598 = vpack.c.b16 %v1806, %v1798
        %v2599 = vpack.c.b16 %v1807, %v1799
        %v2600 = vpack.c.b16 %v1808, %v1800
        %v2601 = vpack.c.b16 %v1809, %v1801
        %v2602 = vpack.c.b16 %v1810, %v1802
        %v2603 = vpack.c.b16 %v1819, %v1811
        %v2604 = vpack.c.b16 %v1820, %v1812
        %v2605 = vpack.c.b16 %v1821, %v1813
        %v2606 = vpack.c.b16 %v1822, %v1814
        %v2607 = vpack.c.b16 %v1823, %v1815
        %v2608 = vpack.c.b16 %v1824, %v1816
        %v2609 = vpack.c.b16 %v1825, %v1817
        %v2610 = vpack.c.b16 %v1826, %v1818
        %v2611 = vpack.c.b16 %v1835, %v1827
        %v2612 = vpack.c.b16 %v1836, %v1828
        %v2613 = vpack.c.b16 %v1837, %v1829
        %v2614 = vpack.c.b16 %v1838, %v1830
        %v2615 = vpack.c.b16 %v1839, %v1831
        %v2616 = vpack.c.b16 %v1840, %v1832
        %v2617 = vpack.c.b16 %v1841, %v1833
        %v2618 = vpack.c.b16 %v1842, %v1834
        %v2619 = vpack.c.b16 %v1851, %v1843
        %v2620 = vpack.c.b16 %v1852, %v1844
        %v2621 = vpack.c.b16 %v1853, %v1845
        %v2622 = vpack.c.b16 %v1854, %v1846
        %v2623 = vpack.c.b16 %v1855, %v1847
        %v2624 = vpack.c.b16 %v1856, %v1848
        %v2625 = vpack.c.b16 %v1857, %v1849
        %v2626 = vpack.c.b16 %v1858, %v1850
        %v2627 = vpack.c.b16 %v1867, %v1859
        %v2628 = vpack.c.b16 %v1868, %v1860
        %v2629 = vpack.c.b16 %v1869, %v1861
        %v2630 = vpack.c.b16 %v1870, %v1862
        %v2631 = vpack.c.b16 %v1871, %v1863
        %v2632 = vpack.c.b16 %v1872, %v1864
        %v2633 = vpack.c.b16 %v1873, %v1865
        %v2634 = vpack.c.b16 %v1874, %v1866
        %v2635 = vpack.c.b16 %v1883, %v1875
        %v2636 = vpack.c.b16 %v1884, %v1876
        %v2637 = vpack.c.b16 %v1885, %v1877
        %v2638 = vpack.c.b16 %v1886, %v1878
        %v2639 = vpack.c.b16 %v1887, %v1879
        %v2640 = vpack.c.b16 %v1888, %v1880
        %v2641 = vpack.c.b16 %v1889, %v1881
        %v2642 = vpack.c.b16 %v1890, %v1882
        %v2643 = vpack.c.b16 %v1899, %v1891
        %v2644 = vpack.c.b16 %v1900, %v1892
        %v2645 = vpack.c.b16 %v1901, %v1893
        %v2646 = vpack.c.b16 %v1902, %v1894
        %v2647 = vpack.c.b16 %v1903, %v1895
        %v2648 = vpack.c.b16 %v1904, %v1896
        %v2649 = vpack.c.b16 %v1905, %v1897
        %v2650 = vpack.c.b16 %v1906, %v1898
        %v2651 = vpack.c.b16 %v1915, %v1907
        %v2652 = vpack.c.b16 %v1916, %v1908
        %v2653 = vpack.c.b16 %v1917, %v1909
        %v2654 = vpack.c.b16 %v1918, %v1910
        %v2655 = vpack.c.b16 %v1919, %v1911
        %v2656 = vpack.c.b16 %v1920, %v1912
        %v2657 = vpack.c.b16 %v1921, %v1913
        %v2658 = vpack.c.b16 %v1922, %v1914
        %v2659 = vpack.c.b16 %v1931, %v1923
        %v2660 = vpack.c.b16 %v1932, %v1924
        %v2661 = vpack.c.b16 %v1933, %v1925
        %v2662 = vpack.c.b16 %v1934, %v1926
        %v2663 = vpack.c.b16 %v1935, %v1927
        %v2664 = vpack.c.b16 %v1936, %v1928
        %v2665 = vpack.c.b16 %v1937, %v1929
        %v2666 = vpack.c.b16 %v1938, %v1930
        %v2667 = vpack.c.b16 %v1947, %v1939
        %v2668 = vpack.c.b16 %v1948, %v1940
        %v2669 = vpack.c.b16 %v1949, %v1941
        %v2670 = vpack.c.b16 %v1950, %v1942
        %v2671 = vpack.c.b16 %v1951, %v1943
        %v2672 = vpack.c.b16 %v1952, %v1944
        %v2673 = vpack.c.b16 %v1953, %v1945
        %v2674 = vpack.c.b16 %v1954, %v1946
        %v2675 = vpack.c.b16 %v1963, %v1955
        %v2676 = vpack.c.b16 %v1964, %v1956
        %v2677 = vpack.c.b16 %v1965, %v1957
        %v2678 = vpack.c.b16 %v1966, %v1958
        %v2679 = vpack.c.b16 %v1967, %v1959
        %v2680 = vpack.c.b16 %v1968, %v1960
        %v2681 = vpack.c.b16 %v1969, %v1961
        %v2682 = vpack.c.b16 %v1970, %v1962
        %v2683 = vpack.c.b16 %v1979, %v1971
        %v2684 = vpack.c.b16 %v1980, %v1972
        %v2685 = vpack.c.b16 %v1981, %v1973
        %v2686 = vpack.c.b16 %v1982, %v1974
        %v2687 = vpack.c.b16 %v1983, %v1975
        %v2688 = vpack.c.b16 %v1984, %v1976
        %v2689 = vpack.c.b16 %v1985, %v1977
        %v2690 = vpack.c.b16 %v1986, %v1978
        %v2691 = vpack.c.b16 %v1995, %v1987
        %v2692 = vpack.c.b16 %v1996, %v1988
        %v2693 = vpack.c.b16 %v1997, %v1989
        %v2694 = vpack.c.b16 %v1998, %v1990
        %v2695 = vpack.c.b16 %v1999, %v1991
        %v2696 = vpack.c.b16 %v2000, %v1992
        %v2697 = vpack.c.b16 %v2001, %v1993
        %v2698 = vpack.c.b16 %v2002, %v1994
        %v2699 = vpack.c.b16 %v2011, %v2003
        %v2700 = vpack.c.b16 %v2012, %v2004
        %v2701 = vpack.c.b16 %v2013, %v2005
        %v2702 = vpack.c.b16 %v2014, %v2006
        %v2703 = vpack.c.b16 %v2015, %v2007
        %v2704 = vpack.c.b16 %v2016, %v2008
        %v2705 = vpack.c.b16 %v2017, %v2009
        %v2706 = vpack.c.b16 %v2018, %v2010
        %v2707 = vpack.c.b16 %v2027, %v2019
        %v2708 = vpack.c.b16 %v2028, %v2020
        %v2709 = vpack.c.b16 %v2029, %v2021
        %v2710 = vpack.c.b16 %v2030, %v2022
        %v2711 = vpack.c.b16 %v2031, %v2023
        %v2712 = vpack.c.b16 %v2032, %v2024
        %v2713 = vpack.c.b16 %v2033, %v2025
        %v2714 = vpack.c.b16 %v2034, %v2026
        %v2715 = vpack.c.b16 %v2043, %v2035
        %v2716 = vpack.c.b16 %v2044, %v2036
        %v2717 = vpack.c.b16 %v2045, %v2037
        %v2718 = vpack.c.b16 %v2046, %v2038
        %v2719 = vpack.c.b16 %v2047, %v2039
        %v2720 = vpack.c.b16 %v2048, %v2040
        %v2721 = vpack.c.b16 %v2049, %v2041
        %v2722 = vpack.c.b16 %v2050, %v2042
        %v2723 = vpack.c.b16 %v2059, %v2051
        %v2724 = vpack.c.b16 %v2060, %v2052
        %v2725 = vpack.c.b16 %v2061, %v2053
        %v2726 = vpack.c.b16 %v2062, %v2054
        %v2727 = vpack.c.b16 %v2063, %v2055
        %v2728 = vpack.c.b16 %v2064, %v2056
        %v2729 = vpack.c.b16 %v2065, %v2057
        %v2730 = vpack.c.b16 %v2066, %v2058
        %v2731 = vpack.c.b16 %v2075, %v2067
        %v2732 = vpack.c.b16 %v2076, %v2068
        %v2733 = vpack.c.b16 %v2077, %v2069
        %v2734 = vpack.c.b16 %v2078, %v2070
        %v2735 = vpack.c.b16 %v2079, %v2071
        %v2736 = vpack.c.b16 %v2080, %v2072
        %v2737 = vpack.c.b16 %v2081, %v2073
        %v2738 = vpack.c.b16 %v2082, %v2074
        %v2739 = vpack.c.b16 %v2091, %v2083
        %v2740 = vpack.c.b16 %v2092, %v2084
        %v2741 = vpack.c.b16 %v2093, %v2085
        %v2742 = vpack.c.b16 %v2094, %v2086
        %v2743 = vpack.c.b16 %v2095, %v2087
        %v2744 = vpack.c.b16 %v2096, %v2088
        %v2745 = vpack.c.b16 %v2097, %v2089
        %v2746 = vpack.c.b16 %v2098, %v2090
        %v2747 = vpack.c.b16 %v2107, %v2099
        %v2748 = vpack.c.b16 %v2108, %v2100
        %v2749 = vpack.c.b16 %v2109, %v2101
        %v2750 = vpack.c.b16 %v2110, %v2102
        %v2751 = vpack.c.b16 %v2111, %v2103
        %v2752 = vpack.c.b16 %v2112, %v2104
        %v2753 = vpack.c.b16 %v2113, %v2105
        %v2754 = vpack.c.b16 %v2114, %v2106
        %v2755 = vpack.c.b16 %v2123, %v2115
        %v2756 = vpack.c.b16 %v2124, %v2116
        %v2757 = vpack.c.b16 %v2125, %v2117
        %v2758 = vpack.c.b16 %v2126, %v2118
        %v2759 = vpack.c.b16 %v2127, %v2119
        %v2760 = vpack.c.b16 %v2128, %v2120
        %v2761 = vpack.c.b16 %v2129, %v2121
        %v2762 = vpack.c.b16 %v2130, %v2122
        %v2763 = vpack.c.b16 %v2139, %v2131
        %v2764 = vpack.c.b16 %v2140, %v2132
        %v2765 = vpack.c.b16 %v2141, %v2133
        %v2766 = vpack.c.b16 %v2142, %v2134
        %v2767 = vpack.c.b16 %v2143, %v2135
        %v2768 = vpack.c.b16 %v2144, %v2136
        %v2769 = vpack.c.b16 %v2145, %v2137
        %v2770 = vpack.c.b16 %v2146, %v2138
        %v2771 = vpack.c.b16 %v2155, %v2147
        %v2772 = vpack.c.b16 %v2156, %v2148
        %v2773 = vpack.c.b16 %v2157, %v2149
        %v2774 = vpack.c.b16 %v2158, %v2150
        %v2775 = vpack.c.b16 %v2159, %v2151
        %v2776 = vpack.c.b16 %v2160, %v2152
        %v2777 = vpack.c.b16 %v2161, %v2153
        %v2778 = vpack.c.b16 %v2162, %v2154
        %v2779 = vpack.c.b16 %v2171, %v2163
        %v2780 = vpack.c.b16 %v2172, %v2164
        %v2781 = vpack.c.b16 %v2173, %v2165
        %v2782 = vpack.c.b16 %v2174, %v2166
        %v2783 = vpack.c.b16 %v2175, %v2167
        %v2784 = vpack.c.b16 %v2176, %v2168
        %v2785 = vpack.c.b16 %v2177, %v2169
        %v2786 = vpack.c.b16 %v2178, %v2170
        %v2787 = vpack.c.b16 %v2187, %v2179
        %v2788 = vpack.c.b16 %v2188, %v2180
        %v2789 = vpack.c.b16 %v2189, %v2181
        %v2790 = vpack.c.b16 %v2190, %v2182
        %v2791 = vpack.c.b16 %v2191, %v2183
        %v2792 = vpack.c.b16 %v2192, %v2184
        %v2793 = vpack.c.b16 %v2193, %v2185
        %v2794 = vpack.c.b16 %v2194, %v2186
        %v2795 = vpack.c.b16 %v2203, %v2195
        %v2796 = vpack.c.b16 %v2204, %v2196
        %v2797 = vpack.c.b16 %v2205, %v2197
        %v2798 = vpack.c.b16 %v2206, %v2198
        %v2799 = vpack.c.b16 %v2207, %v2199
        %v2800 = vpack.c.b16 %v2208, %v2200
        %v2801 = vpack.c.b16 %v2209, %v2201
        %v2802 = vpack.c.b16 %v2210, %v2202
        %v2803 = vpack.c.b16 %v2219, %v2211
        %v2804 = vpack.c.b16 %v2220, %v2212
        %v2805 = vpack.c.b16 %v2221, %v2213
        %v2806 = vpack.c.b16 %v2222, %v2214
        %v2807 = vpack.c.b16 %v2223, %v2215
        %v2808 = vpack.c.b16 %v2224, %v2216
        %v2809 = vpack.c.b16 %v2225, %v2217
        %v2810 = vpack.c.b16 %v2226, %v2218
        %v2811 = vpack.c.b16 %v2235, %v2227
        %v2812 = vpack.c.b16 %v2236, %v2228
        %v2813 = vpack.c.b16 %v2237, %v2229
        %v2814 = vpack.c.b16 %v2238, %v2230
        %v2815 = vpack.c.b16 %v2239, %v2231
        %v2816 = vpack.c.b16 %v2240, %v2232
        %v2817 = vpack.c.b16 %v2241, %v2233
        %v2818 = vpack.c.b16 %v2242, %v2234
        %v2819 = vpack.c.b16 %v2251, %v2243
        %v2820 = vpack.c.b16 %v2252, %v2244
        %v2821 = vpack.c.b16 %v2253, %v2245
        %v2822 = vpack.c.b16 %v2254, %v2246
        %v2823 = vpack.c.b16 %v2255, %v2247
        %v2824 = vpack.c.b16 %v2256, %v2248
        %v2825 = vpack.c.b16 %v2257, %v2249
        %v2826 = vpack.c.b16 %v2258, %v2250
        %v2827 = vpack.c.b16 %v2267, %v2259
        %v2828 = vpack.c.b16 %v2268, %v2260
        %v2829 = vpack.c.b16 %v2269, %v2261
        %v2830 = vpack.c.b16 %v2270, %v2262
        %v2831 = vpack.c.b16 %v2271, %v2263
        %v2832 = vpack.c.b16 %v2272, %v2264
        %v2833 = vpack.c.b16 %v2273, %v2265
        %v2834 = vpack.c.b16 %v2274, %v2266
        %v2835 = vpack.c.b16 %v2283, %v2275
        %v2836 = vpack.c.b16 %v2284, %v2276
        %v2837 = vpack.c.b16 %v2285, %v2277
        %v2838 = vpack.c.b16 %v2286, %v2278
        %v2839 = vpack.c.b16 %v2287, %v2279
        %v2840 = vpack.c.b16 %v2288, %v2280
        %v2841 = vpack.c.b16 %v2289, %v2281
        %v2842 = vpack.c.b16 %v2290, %v2282
        %v2843 = vpack.c.b16 %v2299, %v2291
        %v2844 = vpack.c.b16 %v2300, %v2292
        %v2845 = vpack.c.b16 %v2301, %v2293
        %v2846 = vpack.c.b16 %v2302, %v2294
        %v2847 = vpack.c.b16 %v2303, %v2295
        %v2848 = vpack.c.b16 %v2304, %v2296
        %v2849 = vpack.c.b16 %v2305, %v2297
        %v2850 = vpack.c.b16 %v2306, %v2298
        %v2851 = vpack.c.b16 %v2315, %v2307
        %v2852 = vpack.c.b16 %v2316, %v2308
        %v2853 = vpack.c.b16 %v2317, %v2309
        %v2854 = vpack.c.b16 %v2318, %v2310
        %v2855 = vpack.c.b16 %v2319, %v2311
        %v2856 = vpack.c.b16 %v2320, %v2312
        %v2857 = vpack.c.b16 %v2321, %v2313
        %v2858 = vpack.c.b16 %v2322, %v2314
        %v2859 = vpack.c.b16 %v2331, %v2323
        %v2860 = vpack.c.b16 %v2332, %v2324
        %v2861 = vpack.c.b16 %v2333, %v2325
        %v2862 = vpack.c.b16 %v2334, %v2326
        %v2863 = vpack.c.b16 %v2335, %v2327
        %v2864 = vpack.c.b16 %v2336, %v2328
        %v2865 = vpack.c.b16 %v2337, %v2329
        %v2866 = vpack.c.b16 %v2338, %v2330
        %v2867 = vpack.c.b16 %v2347, %v2339
        %v2868 = vpack.c.b16 %v2348, %v2340
        %v2869 = vpack.c.b16 %v2349, %v2341
        %v2870 = vpack.c.b16 %v2350, %v2342
        %v2871 = vpack.c.b16 %v2351, %v2343
        %v2872 = vpack.c.b16 %v2352, %v2344
        %v2873 = vpack.c.b16 %v2353, %v2345
        %v2874 = vpack.c.b16 %v2354, %v2346
        %v2875 = vpack.c.b16 %v2363, %v2355
        %v2876 = vpack.c.b16 %v2364, %v2356
        %v2877 = vpack.c.b16 %v2365, %v2357
        %v2878 = vpack.c.b16 %v2366, %v2358
        %v2879 = vpack.c.b16 %v2367, %v2359
        %v2880 = vpack.c.b16 %v2368, %v2360
        %v2881 = vpack.c.b16 %v2369, %v2361
        %v2882 = vpack.c.b16 %v2370, %v2362
        %3395 = vmatprep.subr.bf16.mxu0 %v2428
        %3396 = vmatpush1.bf16.msra.mxu0 %v2427
        %3397 = vmatprep.subr.bf16.mxu0 %v2420
        %3398 = vmatpush1.bf16.msra.mxu0 %v2419
        %3399 = vmatprep.subr.bf16.mxu0 %v2412
        %3400 = vmatpush1.bf16.msra.mxu0 %v2411
        %3401 = vmatprep.subr.bf16.mxu0 %v2404
        %3402 = vmatpush1.bf16.msra.mxu0 %v2403
        %3403 = vmatprep.subr.bf16.mxu0 %v2396
        %3404 = vmatpush1.bf16.msra.mxu0 %v2395
        %3405 = vmatprep.subr.bf16.mxu0 %v2388
        %3406 = vmatpush1.bf16.msra.mxu0 %v2387
        %3407 = vmatprep.subr.bf16.mxu0 %v2380
        %3408 = vmatpush1.bf16.msra.mxu0 %v2379
        %3409 = vmatprep.subr.bf16.mxu0 %v2372
        %3410 = vmatpush1.bf16.msra.mxu0 %v2371
        %3411 = vmatprep.subr.bf16.mxu0 %v2492
        %3412 = vmatpush2.bf16.msra.mxu0 %v2491
        %3413 = vmatprep.subr.bf16.mxu0 %v2484
        %3414 = vmatpush2.bf16.msra.mxu0 %v2483
        %3415 = vmatprep.subr.bf16.mxu0 %v2476
        %3416 = vmatpush2.bf16.msra.mxu0 %v2475
        %3417 = vmatprep.subr.bf16.mxu0 %v2468
        %3418 = vmatpush2.bf16.msra.mxu0 %v2467
        %3419 = vmatprep.subr.bf16.mxu0 %v2460
        %3420 = vmatpush2.bf16.msra.mxu0 %v2459
        %3421 = vmatprep.subr.bf16.mxu0 %v2452
        %3422 = vmatpush2.bf16.msra.mxu0 %v2451
        %3423 = vmatprep.subr.bf16.mxu0 %v2444
        %3424 = vmatpush2.bf16.msra.mxu0 %v2443
        %3425 = vmatprep.subr.bf16.mxu0 %v2436
        %3426 = vmatpush2.bf16.msra.mxu0 %v2435
        %3427 = vmatprep.mubr.bf16.mxu0 %v788
        %3428 = vmatmul.mubr.bf16.gmra.mxu0 %v787
        %v3429 = vpop.f32.mrf.mxu0
        %v3430 = vadd.f32 0.0, %v3429
        %v3431 = vpop.f32.mrf.mxu0
        %v3432 = vadd.f32 0.0, %v3431
        %v3433 = vpop.f32.mrf.mxu0
        %v3434 = vadd.f32 0.0, %v3433
        %v3435 = vpop.f32.mrf.mxu0
        %v3436 = vadd.f32 0.0, %v3435
        %3437 = vmatprep.mubr.bf16.mxu0 %v796
        %3438 = vmatmul.mubr.bf16.gmra.mxu0 %v795
        %v3439 = vpop.f32.mrf.mxu0
        %v3440 = vadd.f32 0.0, %v3439
        %v3441 = vpop.f32.mrf.mxu0
        %v3442 = vadd.f32 0.0, %v3441
        %v3443 = vpop.f32.mrf.mxu0
        %v3444 = vadd.f32 0.0, %v3443
        %v3445 = vpop.f32.mrf.mxu0
        %v3446 = vadd.f32 0.0, %v3445
        %3447 = vmatprep.mubr.bf16.mxu0 %v804
        %3448 = vmatmul.mubr.bf16.gmra.mxu0 %v803
        %v3449 = vpop.f32.mrf.mxu0
        %v3450 = vadd.f32 0.0, %v3449
        %v3451 = vpop.f32.mrf.mxu0
        %v3452 = vadd.f32 0.0, %v3451
        %v3453 = vpop.f32.mrf.mxu0
        %v3454 = vadd.f32 0.0, %v3453
        %v3455 = vpop.f32.mrf.mxu0
        %v3456 = vadd.f32 0.0, %v3455
        %3457 = vdwg.mxu0
        %3458 = vmatprep.subr.bf16.mxu0 %v2556
        %3459 = vmatpush1.bf16.msra.mxu0 %v2555
        %3460 = vmatprep.subr.bf16.mxu0 %v2548
        %3461 = vmatpush1.bf16.msra.mxu0 %v2547
        %3462 = vmatprep.subr.bf16.mxu0 %v2540
        %3463 = vmatpush1.bf16.msra.mxu0 %v2539
        %3464 = vmatprep.subr.bf16.mxu0 %v2532
        %3465 = vmatpush1.bf16.msra.mxu0 %v2531
        %3466 = vmatprep.subr.bf16.mxu0 %v2524
        %3467 = vmatpush1.bf16.msra.mxu0 %v2523
        %3468 = vmatprep.subr.bf16.mxu0 %v2516
        %3469 = vmatpush1.bf16.msra.mxu0 %v2515
        %3470 = vmatprep.subr.bf16.mxu0 %v2508
        %3471 = vmatpush1.bf16.msra.mxu0 %v2507
        %3472 = vmatprep.subr.bf16.mxu0 %v2500
        %3473 = vmatpush1.bf16.msra.mxu0 %v2499
        %3474 = vmatprep.subr.bf16.mxu0 %v2620
        %3475 = vmatpush2.bf16.msra.mxu0 %v2619
        %3476 = vmatprep.subr.bf16.mxu0 %v2612
        %3477 = vmatpush2.bf16.msra.mxu0 %v2611
        %3478 = vmatprep.subr.bf16.mxu0 %v2604
        %3479 = vmatpush2.bf16.msra.mxu0 %v2603
        %3480 = vmatprep.subr.bf16.mxu0 %v2596
        %3481 = vmatpush2.bf16.msra.mxu0 %v2595
        %3482 = vmatprep.subr.bf16.mxu0 %v2588
        %3483 = vmatpush2.bf16.msra.mxu0 %v2587
        %3484 = vmatprep.subr.bf16.mxu0 %v2580
        %3485 = vmatpush2.bf16.msra.mxu0 %v2579
        %3486 = vmatprep.subr.bf16.mxu0 %v2572
        %3487 = vmatpush2.bf16.msra.mxu0 %v2571
        %3488 = vmatprep.subr.bf16.mxu0 %v2564
        %3489 = vmatpush2.bf16.msra.mxu0 %v2563
        %3490 = vmatprep.mubr.bf16.mxu0 %v790
        %3491 = vmatmul.mubr.bf16.gmra.mxu0 %v789
        %v3492 = vpop.f32.mrf.mxu0
        %v3493 = vadd.f32 %v3430, %v3492
        %v3494 = vpop.f32.mrf.mxu0
        %v3495 = vadd.f32 %v3432, %v3494
        %v3496 = vpop.f32.mrf.mxu0
        %v3497 = vadd.f32 %v3434, %v3496
        %v3498 = vpop.f32.mrf.mxu0
        %v3499 = vadd.f32 %v3436, %v3498
        %3500 = vmatprep.mubr.bf16.mxu0 %v798
        %3501 = vmatmul.mubr.bf16.gmra.mxu0 %v797
        %v3502 = vpop.f32.mrf.mxu0
        %v3503 = vadd.f32 %v3440, %v3502
        %v3504 = vpop.f32.mrf.mxu0
        %v3505 = vadd.f32 %v3442, %v3504
        %v3506 = vpop.f32.mrf.mxu0
        %v3507 = vadd.f32 %v3444, %v3506
        %v3508 = vpop.f32.mrf.mxu0
        %v3509 = vadd.f32 %v3446, %v3508
        %3510 = vmatprep.mubr.bf16.mxu0 %v806
        %3511 = vmatmul.mubr.bf16.gmra.mxu0 %v805
        %v3512 = vpop.f32.mrf.mxu0
        %v3513 = vadd.f32 %v3450, %v3512
        %v3514 = vpop.f32.mrf.mxu0
        %v3515 = vadd.f32 %v3452, %v3514
        %v3516 = vpop.f32.mrf.mxu0
        %v3517 = vadd.f32 %v3454, %v3516
        %v3518 = vpop.f32.mrf.mxu0
        %v3519 = vadd.f32 %v3456, %v3518
        %3520 = vdwg.mxu0
        %3521 = vmatprep.subr.bf16.mxu0 %v2684
        %3522 = vmatpush1.bf16.msra.mxu0 %v2683
        %3523 = vmatprep.subr.bf16.mxu0 %v2676
        %3524 = vmatpush1.bf16.msra.mxu0 %v2675
        %3525 = vmatprep.subr.bf16.mxu0 %v2668
        %3526 = vmatpush1.bf16.msra.mxu0 %v2667
        %3527 = vmatprep.subr.bf16.mxu0 %v2660
        %3528 = vmatpush1.bf16.msra.mxu0 %v2659
        %3529 = vmatprep.subr.bf16.mxu0 %v2652
        %3530 = vmatpush1.bf16.msra.mxu0 %v2651
        %3531 = vmatprep.subr.bf16.mxu0 %v2644
        %3532 = vmatpush1.bf16.msra.mxu0 %v2643
        %3533 = vmatprep.subr.bf16.mxu0 %v2636
        %3534 = vmatpush1.bf16.msra.mxu0 %v2635
        %3535 = vmatprep.subr.bf16.mxu0 %v2628
        %3536 = vmatpush1.bf16.msra.mxu0 %v2627
        %3537 = vmatprep.subr.bf16.mxu0 %v2748
        %3538 = vmatpush2.bf16.msra.mxu0 %v2747
        %3539 = vmatprep.subr.bf16.mxu0 %v2740
        %3540 = vmatpush2.bf16.msra.mxu0 %v2739
        %3541 = vmatprep.subr.bf16.mxu0 %v2732
        %3542 = vmatpush2.bf16.msra.mxu0 %v2731
        %3543 = vmatprep.subr.bf16.mxu0 %v2724
        %3544 = vmatpush2.bf16.msra.mxu0 %v2723
        %3545 = vmatprep.subr.bf16.mxu0 %v2716
        %3546 = vmatpush2.bf16.msra.mxu0 %v2715
        %3547 = vmatprep.subr.bf16.mxu0 %v2708
        %3548 = vmatpush2.bf16.msra.mxu0 %v2707
        %3549 = vmatprep.subr.bf16.mxu0 %v2700
        %3550 = vmatpush2.bf16.msra.mxu0 %v2699
        %3551 = vmatprep.subr.bf16.mxu0 %v2692
        %3552 = vmatpush2.bf16.msra.mxu0 %v2691
        %3553 = vmatprep.mubr.bf16.mxu0 %v792
        %3554 = vmatmul.mubr.bf16.gmra.mxu0 %v791
        %v3555 = vpop.f32.mrf.mxu0
        %v3556 = vadd.f32 %v3493, %v3555
        %v3557 = vpop.f32.mrf.mxu0
        %v3558 = vadd.f32 %v3495, %v3557
        %v3559 = vpop.f32.mrf.mxu0
        %v3560 = vadd.f32 %v3497, %v3559
        %v3561 = vpop.f32.mrf.mxu0
        %v3562 = vadd.f32 %v3499, %v3561
        %3563 = vmatprep.mubr.bf16.mxu0 %v800
        %3564 = vmatmul.mubr.bf16.gmra.mxu0 %v799
        %v3565 = vpop.f32.mrf.mxu0
        %v3566 = vadd.f32 %v3503, %v3565
        %v3567 = vpop.f32.mrf.mxu0
        %v3568 = vadd.f32 %v3505, %v3567
        %v3569 = vpop.f32.mrf.mxu0
        %v3570 = vadd.f32 %v3507, %v3569
        %v3571 = vpop.f32.mrf.mxu0
        %v3572 = vadd.f32 %v3509, %v3571
        %3573 = vmatprep.mubr.bf16.mxu0 %v808
        %3574 = vmatmul.mubr.bf16.gmra.mxu0 %v807
        %v3575 = vpop.f32.mrf.mxu0
        %v3576 = vadd.f32 %v3513, %v3575
        %v3577 = vpop.f32.mrf.mxu0
        %v3578 = vadd.f32 %v3515, %v3577
        %v3579 = vpop.f32.mrf.mxu0
        %v3580 = vadd.f32 %v3517, %v3579
        %v3581 = vpop.f32.mrf.mxu0
        %v3582 = vadd.f32 %v3519, %v3581
        %3583 = vdwg.mxu0
        %3584 = vmatprep.subr.bf16.mxu0 %v2812
        %3585 = vmatpush1.bf16.msra.mxu0 %v2811
        %3586 = vmatprep.subr.bf16.mxu0 %v2804
        %3587 = vmatpush1.bf16.msra.mxu0 %v2803
        %3588 = vmatprep.subr.bf16.mxu0 %v2796
        %3589 = vmatpush1.bf16.msra.mxu0 %v2795
        %3590 = vmatprep.subr.bf16.mxu0 %v2788
        %3591 = vmatpush1.bf16.msra.mxu0 %v2787
        %3592 = vmatprep.subr.bf16.mxu0 %v2780
        %3593 = vmatpush1.bf16.msra.mxu0 %v2779
        %3594 = vmatprep.subr.bf16.mxu0 %v2772
        %3595 = vmatpush1.bf16.msra.mxu0 %v2771
        %3596 = vmatprep.subr.bf16.mxu0 %v2764
        %3597 = vmatpush1.bf16.msra.mxu0 %v2763
        %3598 = vmatprep.subr.bf16.mxu0 %v2756
        %3599 = vmatpush1.bf16.msra.mxu0 %v2755
        %3600 = vmatprep.subr.bf16.mxu0 %v2876
        %3601 = vmatpush2.bf16.msra.mxu0 %v2875
        %3602 = vmatprep.subr.bf16.mxu0 %v2868
        %3603 = vmatpush2.bf16.msra.mxu0 %v2867
        %3604 = vmatprep.subr.bf16.mxu0 %v2860
        %3605 = vmatpush2.bf16.msra.mxu0 %v2859
        %3606 = vmatprep.subr.bf16.mxu0 %v2852
        %3607 = vmatpush2.bf16.msra.mxu0 %v2851
        %3608 = vmatprep.subr.bf16.mxu0 %v2844
        %3609 = vmatpush2.bf16.msra.mxu0 %v2843
        %3610 = vmatprep.subr.bf16.mxu0 %v2836
        %3611 = vmatpush2.bf16.msra.mxu0 %v2835
        %3612 = vmatprep.subr.bf16.mxu0 %v2828
        %3613 = vmatpush2.bf16.msra.mxu0 %v2827
        %3614 = vmatprep.subr.bf16.mxu0 %v2820
        %3615 = vmatpush2.bf16.msra.mxu0 %v2819
        %3616 = vmatprep.mubr.bf16.mxu0 %v794
        %3617 = vmatmul.mubr.bf16.gmra.mxu0 %v793
        %v3618 = vpop.f32.mrf.mxu0
        %v3619 = vadd.f32 %v3556, %v3618
        %v3620 = vpop.f32.mrf.mxu0
        %v3621 = vadd.f32 %v3558, %v3620
        %v3622 = vpop.f32.mrf.mxu0
        %v3623 = vadd.f32 %v3560, %v3622
        %v3624 = vpop.f32.mrf.mxu0
        %v3625 = vadd.f32 %v3562, %v3624
        %3626 = vmatprep.mubr.bf16.mxu0 %v802
        %3627 = vmatmul.mubr.bf16.gmra.mxu0 %v801
        %v3628 = vpop.f32.mrf.mxu0
        %v3629 = vadd.f32 %v3566, %v3628
        %v3630 = vpop.f32.mrf.mxu0
        %v3631 = vadd.f32 %v3568, %v3630
        %v3632 = vpop.f32.mrf.mxu0
        %v3633 = vadd.f32 %v3570, %v3632
        %v3634 = vpop.f32.mrf.mxu0
        %v3635 = vadd.f32 %v3572, %v3634
        %3636 = vmatprep.mubr.bf16.mxu0 %v810
        %3637 = vmatmul.mubr.bf16.gmra.mxu0 %v809
        %v3638 = vpop.f32.mrf.mxu0
        %v3639 = vadd.f32 %v3576, %v3638
        %v3640 = vpop.f32.mrf.mxu0
        %v3641 = vadd.f32 %v3578, %v3640
        %v3642 = vpop.f32.mrf.mxu0
        %v3643 = vadd.f32 %v3580, %v3642
        %v3644 = vpop.f32.mrf.mxu0
        %v3645 = vadd.f32 %v3582, %v3644
        %3646 = vdwg.mxu0
        %3647 = vmatprep.subr.bf16.mxu0 %v2430
        %3648 = vmatpush1.bf16.msra.mxu0 %v2429
        %3649 = vmatprep.subr.bf16.mxu0 %v2422
        %3650 = vmatpush1.bf16.msra.mxu0 %v2421
        %3651 = vmatprep.subr.bf16.mxu0 %v2414
        %3652 = vmatpush1.bf16.msra.mxu0 %v2413
        %3653 = vmatprep.subr.bf16.mxu0 %v2406
        %3654 = vmatpush1.bf16.msra.mxu0 %v2405
        %3655 = vmatprep.subr.bf16.mxu0 %v2398
        %3656 = vmatpush1.bf16.msra.mxu0 %v2397
        %3657 = vmatprep.subr.bf16.mxu0 %v2390
        %3658 = vmatpush1.bf16.msra.mxu0 %v2389
        %3659 = vmatprep.subr.bf16.mxu0 %v2382
        %3660 = vmatpush1.bf16.msra.mxu0 %v2381
        %3661 = vmatprep.subr.bf16.mxu0 %v2374
        %3662 = vmatpush1.bf16.msra.mxu0 %v2373
        %3663 = vmatprep.subr.bf16.mxu0 %v2494
        %3664 = vmatpush2.bf16.msra.mxu0 %v2493
        %3665 = vmatprep.subr.bf16.mxu0 %v2486
        %3666 = vmatpush2.bf16.msra.mxu0 %v2485
        %3667 = vmatprep.subr.bf16.mxu0 %v2478
        %3668 = vmatpush2.bf16.msra.mxu0 %v2477
        %3669 = vmatprep.subr.bf16.mxu0 %v2470
        %3670 = vmatpush2.bf16.msra.mxu0 %v2469
        %3671 = vmatprep.subr.bf16.mxu0 %v2462
        %3672 = vmatpush2.bf16.msra.mxu0 %v2461
        %3673 = vmatprep.subr.bf16.mxu0 %v2454
        %3674 = vmatpush2.bf16.msra.mxu0 %v2453
        %3675 = vmatprep.subr.bf16.mxu0 %v2446
        %3676 = vmatpush2.bf16.msra.mxu0 %v2445
        %3677 = vmatprep.subr.bf16.mxu0 %v2438
        %3678 = vmatpush2.bf16.msra.mxu0 %v2437
        %3679 = vmatprep.mubr.bf16.mxu0 %v788
        %3680 = vmatmul.mubr.bf16.gmra.mxu0 %v787
        %v3681 = vpop.f32.mrf.mxu0
        %v3682 = vadd.f32 0.0, %v3681
        %v3683 = vpop.f32.mrf.mxu0
        %v3684 = vadd.f32 0.0, %v3683
        %v3685 = vpop.f32.mrf.mxu0
        %v3686 = vadd.f32 0.0, %v3685
        %v3687 = vpop.f32.mrf.mxu0
        %v3688 = vadd.f32 0.0, %v3687
        %3689 = vmatprep.mubr.bf16.mxu0 %v796
        %3690 = vmatmul.mubr.bf16.gmra.mxu0 %v795
        %v3691 = vpop.f32.mrf.mxu0
        %v3692 = vadd.f32 0.0, %v3691
        %v3693 = vpop.f32.mrf.mxu0
        %v3694 = vadd.f32 0.0, %v3693
        %v3695 = vpop.f32.mrf.mxu0
        %v3696 = vadd.f32 0.0, %v3695
        %v3697 = vpop.f32.mrf.mxu0
        %v3698 = vadd.f32 0.0, %v3697
        %3699 = vmatprep.mubr.bf16.mxu0 %v804
        %3700 = vmatmul.mubr.bf16.gmra.mxu0 %v803
        %v3701 = vpop.f32.mrf.mxu0
        %v3702 = vadd.f32 0.0, %v3701
        %v3703 = vpop.f32.mrf.mxu0
        %v3704 = vadd.f32 0.0, %v3703
        %v3705 = vpop.f32.mrf.mxu0
        %v3706 = vadd.f32 0.0, %v3705
        %v3707 = vpop.f32.mrf.mxu0
        %v3708 = vadd.f32 0.0, %v3707
        %3709 = vdwg.mxu0
        %3710 = vmatprep.subr.bf16.mxu0 %v2558
        %3711 = vmatpush1.bf16.msra.mxu0 %v2557
        %3712 = vmatprep.subr.bf16.mxu0 %v2550
        %3713 = vmatpush1.bf16.msra.mxu0 %v2549
        %3714 = vmatprep.subr.bf16.mxu0 %v2542
        %3715 = vmatpush1.bf16.msra.mxu0 %v2541
        %3716 = vmatprep.subr.bf16.mxu0 %v2534
        %3717 = vmatpush1.bf16.msra.mxu0 %v2533
        %3718 = vmatprep.subr.bf16.mxu0 %v2526
        %3719 = vmatpush1.bf16.msra.mxu0 %v2525
        %3720 = vmatprep.subr.bf16.mxu0 %v2518
        %3721 = vmatpush1.bf16.msra.mxu0 %v2517
        %3722 = vmatprep.subr.bf16.mxu0 %v2510
        %3723 = vmatpush1.bf16.msra.mxu0 %v2509
        %3724 = vmatprep.subr.bf16.mxu0 %v2502
        %3725 = vmatpush1.bf16.msra.mxu0 %v2501
        %3726 = vmatprep.subr.bf16.mxu0 %v2622
        %3727 = vmatpush2.bf16.msra.mxu0 %v2621
        %3728 = vmatprep.subr.bf16.mxu0 %v2614
        %3729 = vmatpush2.bf16.msra.mxu0 %v2613
        %3730 = vmatprep.subr.bf16.mxu0 %v2606
        %3731 = vmatpush2.bf16.msra.mxu0 %v2605
        %3732 = vmatprep.subr.bf16.mxu0 %v2598
        %3733 = vmatpush2.bf16.msra.mxu0 %v2597
        %3734 = vmatprep.subr.bf16.mxu0 %v2590
        %3735 = vmatpush2.bf16.msra.mxu0 %v2589
        %3736 = vmatprep.subr.bf16.mxu0 %v2582
        %3737 = vmatpush2.bf16.msra.mxu0 %v2581
        %3738 = vmatprep.subr.bf16.mxu0 %v2574
        %3739 = vmatpush2.bf16.msra.mxu0 %v2573
        %3740 = vmatprep.subr.bf16.mxu0 %v2566
        %3741 = vmatpush2.bf16.msra.mxu0 %v2565
        %3742 = vmatprep.mubr.bf16.mxu0 %v790
        %3743 = vmatmul.mubr.bf16.gmra.mxu0 %v789
        %v3744 = vpop.f32.mrf.mxu0
        %v3745 = vadd.f32 %v3682, %v3744
        %v3746 = vpop.f32.mrf.mxu0
        %v3747 = vadd.f32 %v3684, %v3746
        %v3748 = vpop.f32.mrf.mxu0
        %v3749 = vadd.f32 %v3686, %v3748
        %v3750 = vpop.f32.mrf.mxu0
        %v3751 = vadd.f32 %v3688, %v3750
        %3752 = vmatprep.mubr.bf16.mxu0 %v798
        %3753 = vmatmul.mubr.bf16.gmra.mxu0 %v797
        %v3754 = vpop.f32.mrf.mxu0
        %v3755 = vadd.f32 %v3692, %v3754
        %v3756 = vpop.f32.mrf.mxu0
        %v3757 = vadd.f32 %v3694, %v3756
        %v3758 = vpop.f32.mrf.mxu0
        %v3759 = vadd.f32 %v3696, %v3758
        %v3760 = vpop.f32.mrf.mxu0
        %v3761 = vadd.f32 %v3698, %v3760
        %3762 = vmatprep.mubr.bf16.mxu0 %v806
        %3763 = vmatmul.mubr.bf16.gmra.mxu0 %v805
        %v3764 = vpop.f32.mrf.mxu0
        %v3765 = vadd.f32 %v3702, %v3764
        %v3766 = vpop.f32.mrf.mxu0
        %v3767 = vadd.f32 %v3704, %v3766
        %v3768 = vpop.f32.mrf.mxu0
        %v3769 = vadd.f32 %v3706, %v3768
        %v3770 = vpop.f32.mrf.mxu0
        %v3771 = vadd.f32 %v3708, %v3770
        %3772 = vdwg.mxu0
        %3773 = vmatprep.subr.bf16.mxu0 %v2686
        %3774 = vmatpush1.bf16.msra.mxu0 %v2685
        %3775 = vmatprep.subr.bf16.mxu0 %v2678
        %3776 = vmatpush1.bf16.msra.mxu0 %v2677
        %3777 = vmatprep.subr.bf16.mxu0 %v2670
        %3778 = vmatpush1.bf16.msra.mxu0 %v2669
        %3779 = vmatprep.subr.bf16.mxu0 %v2662
        %3780 = vmatpush1.bf16.msra.mxu0 %v2661
        %3781 = vmatprep.subr.bf16.mxu0 %v2654
        %3782 = vmatpush1.bf16.msra.mxu0 %v2653
        %3783 = vmatprep.subr.bf16.mxu0 %v2646
        %3784 = vmatpush1.bf16.msra.mxu0 %v2645
        %3785 = vmatprep.subr.bf16.mxu0 %v2638
        %3786 = vmatpush1.bf16.msra.mxu0 %v2637
        %3787 = vmatprep.subr.bf16.mxu0 %v2630
        %3788 = vmatpush1.bf16.msra.mxu0 %v2629
        %3789 = vmatprep.subr.bf16.mxu0 %v2750
        %3790 = vmatpush2.bf16.msra.mxu0 %v2749
        %3791 = vmatprep.subr.bf16.mxu0 %v2742
        %3792 = vmatpush2.bf16.msra.mxu0 %v2741
        %3793 = vmatprep.subr.bf16.mxu0 %v2734
        %3794 = vmatpush2.bf16.msra.mxu0 %v2733
        %3795 = vmatprep.subr.bf16.mxu0 %v2726
        %3796 = vmatpush2.bf16.msra.mxu0 %v2725
        %3797 = vmatprep.subr.bf16.mxu0 %v2718
        %3798 = vmatpush2.bf16.msra.mxu0 %v2717
        %3799 = vmatprep.subr.bf16.mxu0 %v2710
        %3800 = vmatpush2.bf16.msra.mxu0 %v2709
        %3801 = vmatprep.subr.bf16.mxu0 %v2702
        %3802 = vmatpush2.bf16.msra.mxu0 %v2701
        %3803 = vmatprep.subr.bf16.mxu0 %v2694
        %3804 = vmatpush2.bf16.msra.mxu0 %v2693
        %3805 = vmatprep.mubr.bf16.mxu0 %v792
        %3806 = vmatmul.mubr.bf16.gmra.mxu0 %v791
        %v3807 = vpop.f32.mrf.mxu0
        %v3808 = vadd.f32 %v3745, %v3807
        %v3809 = vpop.f32.mrf.mxu0
        %v3810 = vadd.f32 %v3747, %v3809
        %v3811 = vpop.f32.mrf.mxu0
        %v3812 = vadd.f32 %v3749, %v3811
        %v3813 = vpop.f32.mrf.mxu0
        %v3814 = vadd.f32 %v3751, %v3813
        %3815 = vmatprep.mubr.bf16.mxu0 %v800
        %3816 = vmatmul.mubr.bf16.gmra.mxu0 %v799
        %v3817 = vpop.f32.mrf.mxu0
        %v3818 = vadd.f32 %v3755, %v3817
        %v3819 = vpop.f32.mrf.mxu0
        %v3820 = vadd.f32 %v3757, %v3819
        %v3821 = vpop.f32.mrf.mxu0
        %v3822 = vadd.f32 %v3759, %v3821
        %v3823 = vpop.f32.mrf.mxu0
        %v3824 = vadd.f32 %v3761, %v3823
        %3825 = vmatprep.mubr.bf16.mxu0 %v808
        %3826 = vmatmul.mubr.bf16.gmra.mxu0 %v807
        %v3827 = vpop.f32.mrf.mxu0
        %v3828 = vadd.f32 %v3765, %v3827
        %v3829 = vpop.f32.mrf.mxu0
        %v3830 = vadd.f32 %v3767, %v3829
        %v3831 = vpop.f32.mrf.mxu0
        %v3832 = vadd.f32 %v3769, %v3831
        %v3833 = vpop.f32.mrf.mxu0
        %v3834 = vadd.f32 %v3771, %v3833
        %3835 = vdwg.mxu0
        %3836 = vmatprep.subr.bf16.mxu0 %v2814
        %3837 = vmatpush1.bf16.msra.mxu0 %v2813
        %3838 = vmatprep.subr.bf16.mxu0 %v2806
        %3839 = vmatpush1.bf16.msra.mxu0 %v2805
        %3840 = vmatprep.subr.bf16.mxu0 %v2798
        %3841 = vmatpush1.bf16.msra.mxu0 %v2797
        %3842 = vmatprep.subr.bf16.mxu0 %v2790
        %3843 = vmatpush1.bf16.msra.mxu0 %v2789
        %3844 = vmatprep.subr.bf16.mxu0 %v2782
        %3845 = vmatpush1.bf16.msra.mxu0 %v2781
        %3846 = vmatprep.subr.bf16.mxu0 %v2774
        %3847 = vmatpush1.bf16.msra.mxu0 %v2773
        %3848 = vmatprep.subr.bf16.mxu0 %v2766
        %3849 = vmatpush1.bf16.msra.mxu0 %v2765
        %3850 = vmatprep.subr.bf16.mxu0 %v2758
        %3851 = vmatpush1.bf16.msra.mxu0 %v2757
        %3852 = vmatprep.subr.bf16.mxu0 %v2878
        %3853 = vmatpush2.bf16.msra.mxu0 %v2877
        %3854 = vmatprep.subr.bf16.mxu0 %v2870
        %3855 = vmatpush2.bf16.msra.mxu0 %v2869
        %3856 = vmatprep.subr.bf16.mxu0 %v2862
        %3857 = vmatpush2.bf16.msra.mxu0 %v2861
        %3858 = vmatprep.subr.bf16.mxu0 %v2854
        %3859 = vmatpush2.bf16.msra.mxu0 %v2853
        %3860 = vmatprep.subr.bf16.mxu0 %v2846
        %3861 = vmatpush2.bf16.msra.mxu0 %v2845
        %3862 = vmatprep.subr.bf16.mxu0 %v2838
        %3863 = vmatpush2.bf16.msra.mxu0 %v2837
        %3864 = vmatprep.subr.bf16.mxu0 %v2830
        %3865 = vmatpush2.bf16.msra.mxu0 %v2829
        %3866 = vmatprep.subr.bf16.mxu0 %v2822
        %3867 = vmatpush2.bf16.msra.mxu0 %v2821
        %3868 = vmatprep.mubr.bf16.mxu0 %v794
        %3869 = vmatmul.mubr.bf16.gmra.mxu0 %v793
        %v3870 = vpop.f32.mrf.mxu0
        %v3871 = vadd.f32 %v3808, %v3870
        %v3872 = vpop.f32.mrf.mxu0
        %v3873 = vadd.f32 %v3810, %v3872
        %v3874 = vpop.f32.mrf.mxu0
        %v3875 = vadd.f32 %v3812, %v3874
        %v3876 = vpop.f32.mrf.mxu0
        %v3877 = vadd.f32 %v3814, %v3876
        %3878 = vmatprep.mubr.bf16.mxu0 %v802
        %3879 = vmatmul.mubr.bf16.gmra.mxu0 %v801
        %v3880 = vpop.f32.mrf.mxu0
        %v3881 = vadd.f32 %v3818, %v3880
        %v3882 = vpop.f32.mrf.mxu0
        %v3883 = vadd.f32 %v3820, %v3882
        %v3884 = vpop.f32.mrf.mxu0
        %v3885 = vadd.f32 %v3822, %v3884
        %v3886 = vpop.f32.mrf.mxu0
        %v3887 = vadd.f32 %v3824, %v3886
        %3888 = vmatprep.mubr.bf16.mxu0 %v810
        %3889 = vmatmul.mubr.bf16.gmra.mxu0 %v809
        %v3890 = vpop.f32.mrf.mxu0
        %v3891 = vadd.f32 %v3828, %v3890
        %v3892 = vpop.f32.mrf.mxu0
        %v3893 = vadd.f32 %v3830, %v3892
        %v3894 = vpop.f32.mrf.mxu0
        %v3895 = vadd.f32 %v3832, %v3894
        %v3896 = vpop.f32.mrf.mxu0
        %v3897 = vadd.f32 %v3834, %v3896
        %3898 = vdwg.mxu0
        %3899 = vmatprep.subr.bf16.mxu0 %v2432
        %3900 = vmatpush1.bf16.msra.mxu0 %v2431
        %3901 = vmatprep.subr.bf16.mxu0 %v2424
        %3902 = vmatpush1.bf16.msra.mxu0 %v2423
        %3903 = vmatprep.subr.bf16.mxu0 %v2416
        %3904 = vmatpush1.bf16.msra.mxu0 %v2415
        %3905 = vmatprep.subr.bf16.mxu0 %v2408
        %3906 = vmatpush1.bf16.msra.mxu0 %v2407
        %3907 = vmatprep.subr.bf16.mxu0 %v2400
        %3908 = vmatpush1.bf16.msra.mxu0 %v2399
        %3909 = vmatprep.subr.bf16.mxu0 %v2392
        %3910 = vmatpush1.bf16.msra.mxu0 %v2391
        %3911 = vmatprep.subr.bf16.mxu0 %v2384
        %3912 = vmatpush1.bf16.msra.mxu0 %v2383
        %3913 = vmatprep.subr.bf16.mxu0 %v2376
        %3914 = vmatpush1.bf16.msra.mxu0 %v2375
        %3915 = vmatprep.subr.bf16.mxu0 %v2496
        %3916 = vmatpush2.bf16.msra.mxu0 %v2495
        %3917 = vmatprep.subr.bf16.mxu0 %v2488
        %3918 = vmatpush2.bf16.msra.mxu0 %v2487
        %3919 = vmatprep.subr.bf16.mxu0 %v2480
        %3920 = vmatpush2.bf16.msra.mxu0 %v2479
        %3921 = vmatprep.subr.bf16.mxu0 %v2472
        %3922 = vmatpush2.bf16.msra.mxu0 %v2471
        %3923 = vmatprep.subr.bf16.mxu0 %v2464
        %3924 = vmatpush2.bf16.msra.mxu0 %v2463
        %3925 = vmatprep.subr.bf16.mxu0 %v2456
        %3926 = vmatpush2.bf16.msra.mxu0 %v2455
        %3927 = vmatprep.subr.bf16.mxu0 %v2448
        %3928 = vmatpush2.bf16.msra.mxu0 %v2447
        %3929 = vmatprep.subr.bf16.mxu0 %v2440
        %3930 = vmatpush2.bf16.msra.mxu0 %v2439
        %3931 = vmatprep.mubr.bf16.mxu0 %v788
        %3932 = vmatmul.mubr.bf16.gmra.mxu0 %v787
        %v3933 = vpop.f32.mrf.mxu0
        %v3934 = vadd.f32 0.0, %v3933
        %v3935 = vpop.f32.mrf.mxu0
        %v3936 = vadd.f32 0.0, %v3935
        %v3937 = vpop.f32.mrf.mxu0
        %v3938 = vadd.f32 0.0, %v3937
        %v3939 = vpop.f32.mrf.mxu0
        %v3940 = vadd.f32 0.0, %v3939
        %3941 = vmatprep.mubr.bf16.mxu0 %v796
        %3942 = vmatmul.mubr.bf16.gmra.mxu0 %v795
        %v3943 = vpop.f32.mrf.mxu0
        %v3944 = vadd.f32 0.0, %v3943
        %v3945 = vpop.f32.mrf.mxu0
        %v3946 = vadd.f32 0.0, %v3945
        %v3947 = vpop.f32.mrf.mxu0
        %v3948 = vadd.f32 0.0, %v3947
        %v3949 = vpop.f32.mrf.mxu0
        %v3950 = vadd.f32 0.0, %v3949
        %3951 = vmatprep.mubr.bf16.mxu0 %v804
        %3952 = vmatmul.mubr.bf16.gmra.mxu0 %v803
        %v3953 = vpop.f32.mrf.mxu0
        %v3954 = vadd.f32 0.0, %v3953
        %v3955 = vpop.f32.mrf.mxu0
        %v3956 = vadd.f32 0.0, %v3955
        %v3957 = vpop.f32.mrf.mxu0
        %v3958 = vadd.f32 0.0, %v3957
        %v3959 = vpop.f32.mrf.mxu0
        %v3960 = vadd.f32 0.0, %v3959
        %3961 = vdwg.mxu0
        %3962 = vmatprep.subr.bf16.mxu0 %v2560
        %3963 = vmatpush1.bf16.msra.mxu0 %v2559
        %3964 = vmatprep.subr.bf16.mxu0 %v2552
        %3965 = vmatpush1.bf16.msra.mxu0 %v2551
        %3966 = vmatprep.subr.bf16.mxu0 %v2544
        %3967 = vmatpush1.bf16.msra.mxu0 %v2543
        %3968 = vmatprep.subr.bf16.mxu0 %v2536
        %3969 = vmatpush1.bf16.msra.mxu0 %v2535
        %3970 = vmatprep.subr.bf16.mxu0 %v2528
        %3971 = vmatpush1.bf16.msra.mxu0 %v2527
        %3972 = vmatprep.subr.bf16.mxu0 %v2520
        %3973 = vmatpush1.bf16.msra.mxu0 %v2519
        %3974 = vmatprep.subr.bf16.mxu0 %v2512
        %3975 = vmatpush1.bf16.msra.mxu0 %v2511
        %3976 = vmatprep.subr.bf16.mxu0 %v2504
        %3977 = vmatpush1.bf16.msra.mxu0 %v2503
        %3978 = vmatprep.subr.bf16.mxu0 %v2624
        %3979 = vmatpush2.bf16.msra.mxu0 %v2623
        %3980 = vmatprep.subr.bf16.mxu0 %v2616
        %3981 = vmatpush2.bf16.msra.mxu0 %v2615
        %3982 = vmatprep.subr.bf16.mxu0 %v2608
        %3983 = vmatpush2.bf16.msra.mxu0 %v2607
        %3984 = vmatprep.subr.bf16.mxu0 %v2600
        %3985 = vmatpush2.bf16.msra.mxu0 %v2599
        %3986 = vmatprep.subr.bf16.mxu0 %v2592
        %3987 = vmatpush2.bf16.msra.mxu0 %v2591
        %3988 = vmatprep.subr.bf16.mxu0 %v2584
        %3989 = vmatpush2.bf16.msra.mxu0 %v2583
        %3990 = vmatprep.subr.bf16.mxu0 %v2576
        %3991 = vmatpush2.bf16.msra.mxu0 %v2575
        %3992 = vmatprep.subr.bf16.mxu0 %v2568
        %3993 = vmatpush2.bf16.msra.mxu0 %v2567
        %3994 = vmatprep.mubr.bf16.mxu0 %v790
        %3995 = vmatmul.mubr.bf16.gmra.mxu0 %v789
        %v3996 = vpop.f32.mrf.mxu0
        %v3997 = vadd.f32 %v3934, %v3996
        %v3998 = vpop.f32.mrf.mxu0
        %v3999 = vadd.f32 %v3936, %v3998
        %v4000 = vpop.f32.mrf.mxu0
        %v4001 = vadd.f32 %v3938, %v4000
        %v4002 = vpop.f32.mrf.mxu0
        %v4003 = vadd.f32 %v3940, %v4002
        %4004 = vmatprep.mubr.bf16.mxu0 %v798
        %4005 = vmatmul.mubr.bf16.gmra.mxu0 %v797
        %v4006 = vpop.f32.mrf.mxu0
        %v4007 = vadd.f32 %v3944, %v4006
        %v4008 = vpop.f32.mrf.mxu0
        %v4009 = vadd.f32 %v3946, %v4008
        %v4010 = vpop.f32.mrf.mxu0
        %v4011 = vadd.f32 %v3948, %v4010
        %v4012 = vpop.f32.mrf.mxu0
        %v4013 = vadd.f32 %v3950, %v4012
        %4014 = vmatprep.mubr.bf16.mxu0 %v806
        %4015 = vmatmul.mubr.bf16.gmra.mxu0 %v805
        %v4016 = vpop.f32.mrf.mxu0
        %v4017 = vadd.f32 %v3954, %v4016
        %v4018 = vpop.f32.mrf.mxu0
        %v4019 = vadd.f32 %v3956, %v4018
        %v4020 = vpop.f32.mrf.mxu0
        %v4021 = vadd.f32 %v3958, %v4020
        %v4022 = vpop.f32.mrf.mxu0
        %v4023 = vadd.f32 %v3960, %v4022
        %4024 = vdwg.mxu0
        %4025 = vmatprep.subr.bf16.mxu0 %v2688
        %4026 = vmatpush1.bf16.msra.mxu0 %v2687
        %4027 = vmatprep.subr.bf16.mxu0 %v2680
        %4028 = vmatpush1.bf16.msra.mxu0 %v2679
        %4029 = vmatprep.subr.bf16.mxu0 %v2672
        %4030 = vmatpush1.bf16.msra.mxu0 %v2671
        %4031 = vmatprep.subr.bf16.mxu0 %v2664
        %4032 = vmatpush1.bf16.msra.mxu0 %v2663
        %4033 = vmatprep.subr.bf16.mxu0 %v2656
        %4034 = vmatpush1.bf16.msra.mxu0 %v2655
        %4035 = vmatprep.subr.bf16.mxu0 %v2648
        %4036 = vmatpush1.bf16.msra.mxu0 %v2647
        %4037 = vmatprep.subr.bf16.mxu0 %v2640
        %4038 = vmatpush1.bf16.msra.mxu0 %v2639
        %4039 = vmatprep.subr.bf16.mxu0 %v2632
        %4040 = vmatpush1.bf16.msra.mxu0 %v2631
        %4041 = vmatprep.subr.bf16.mxu0 %v2752
        %4042 = vmatpush2.bf16.msra.mxu0 %v2751
        %4043 = vmatprep.subr.bf16.mxu0 %v2744
        %4044 = vmatpush2.bf16.msra.mxu0 %v2743
        %4045 = vmatprep.subr.bf16.mxu0 %v2736
        %4046 = vmatpush2.bf16.msra.mxu0 %v2735
        %4047 = vmatprep.subr.bf16.mxu0 %v2728
        %4048 = vmatpush2.bf16.msra.mxu0 %v2727
        %4049 = vmatprep.subr.bf16.mxu0 %v2720
        %4050 = vmatpush2.bf16.msra.mxu0 %v2719
        %4051 = vmatprep.subr.bf16.mxu0 %v2712
        %4052 = vmatpush2.bf16.msra.mxu0 %v2711
        %4053 = vmatprep.subr.bf16.mxu0 %v2704
        %4054 = vmatpush2.bf16.msra.mxu0 %v2703
        %4055 = vmatprep.subr.bf16.mxu0 %v2696
        %4056 = vmatpush2.bf16.msra.mxu0 %v2695
        %4057 = vmatprep.mubr.bf16.mxu0 %v792
        %4058 = vmatmul.mubr.bf16.gmra.mxu0 %v791
        %v4059 = vpop.f32.mrf.mxu0
        %v4060 = vadd.f32 %v3997, %v4059
        %v4061 = vpop.f32.mrf.mxu0
        %v4062 = vadd.f32 %v3999, %v4061
        %v4063 = vpop.f32.mrf.mxu0
        %v4064 = vadd.f32 %v4001, %v4063
        %v4065 = vpop.f32.mrf.mxu0
        %v4066 = vadd.f32 %v4003, %v4065
        %4067 = vmatprep.mubr.bf16.mxu0 %v800
        %4068 = vmatmul.mubr.bf16.gmra.mxu0 %v799
        %v4069 = vpop.f32.mrf.mxu0
        %v4070 = vadd.f32 %v4007, %v4069
        %v4071 = vpop.f32.mrf.mxu0
        %v4072 = vadd.f32 %v4009, %v4071
        %v4073 = vpop.f32.mrf.mxu0
        %v4074 = vadd.f32 %v4011, %v4073
        %v4075 = vpop.f32.mrf.mxu0
        %v4076 = vadd.f32 %v4013, %v4075
        %4077 = vmatprep.mubr.bf16.mxu0 %v808
        %4078 = vmatmul.mubr.bf16.gmra.mxu0 %v807
        %v4079 = vpop.f32.mrf.mxu0
        %v4080 = vadd.f32 %v4017, %v4079
        %v4081 = vpop.f32.mrf.mxu0
        %v4082 = vadd.f32 %v4019, %v4081
        %v4083 = vpop.f32.mrf.mxu0
        %v4084 = vadd.f32 %v4021, %v4083
        %v4085 = vpop.f32.mrf.mxu0
        %v4086 = vadd.f32 %v4023, %v4085
        %4087 = vdwg.mxu0
        %4088 = vmatprep.subr.bf16.mxu0 %v2816
        %4089 = vmatpush1.bf16.msra.mxu0 %v2815
        %4090 = vmatprep.subr.bf16.mxu0 %v2808
        %4091 = vmatpush1.bf16.msra.mxu0 %v2807
        %4092 = vmatprep.subr.bf16.mxu0 %v2800
        %4093 = vmatpush1.bf16.msra.mxu0 %v2799
        %4094 = vmatprep.subr.bf16.mxu0 %v2792
        %4095 = vmatpush1.bf16.msra.mxu0 %v2791
        %4096 = vmatprep.subr.bf16.mxu0 %v2784
        %4097 = vmatpush1.bf16.msra.mxu0 %v2783
        %4098 = vmatprep.subr.bf16.mxu0 %v2776
        %4099 = vmatpush1.bf16.msra.mxu0 %v2775
        %4100 = vmatprep.subr.bf16.mxu0 %v2768
        %4101 = vmatpush1.bf16.msra.mxu0 %v2767
        %4102 = vmatprep.subr.bf16.mxu0 %v2760
        %4103 = vmatpush1.bf16.msra.mxu0 %v2759
        %4104 = vmatprep.subr.bf16.mxu0 %v2880
        %4105 = vmatpush2.bf16.msra.mxu0 %v2879
        %4106 = vmatprep.subr.bf16.mxu0 %v2872
        %4107 = vmatpush2.bf16.msra.mxu0 %v2871
        %4108 = vmatprep.subr.bf16.mxu0 %v2864
        %4109 = vmatpush2.bf16.msra.mxu0 %v2863
        %4110 = vmatprep.subr.bf16.mxu0 %v2856
        %4111 = vmatpush2.bf16.msra.mxu0 %v2855
        %4112 = vmatprep.subr.bf16.mxu0 %v2848
        %4113 = vmatpush2.bf16.msra.mxu0 %v2847
        %4114 = vmatprep.subr.bf16.mxu0 %v2840
        %4115 = vmatpush2.bf16.msra.mxu0 %v2839
        %4116 = vmatprep.subr.bf16.mxu0 %v2832
        %4117 = vmatpush2.bf16.msra.mxu0 %v2831
        %4118 = vmatprep.subr.bf16.mxu0 %v2824
        %4119 = vmatpush2.bf16.msra.mxu0 %v2823
        %4120 = vmatprep.mubr.bf16.mxu0 %v794
        %4121 = vmatmul.mubr.bf16.gmra.mxu0 %v793
        %v4122 = vpop.f32.mrf.mxu0
        %v4123 = vadd.f32 %v4060, %v4122
        %v4124 = vpop.f32.mrf.mxu0
        %v4125 = vadd.f32 %v4062, %v4124
        %v4126 = vpop.f32.mrf.mxu0
        %v4127 = vadd.f32 %v4064, %v4126
        %v4128 = vpop.f32.mrf.mxu0
        %v4129 = vadd.f32 %v4066, %v4128
        %4130 = vmatprep.mubr.bf16.mxu0 %v802
        %4131 = vmatmul.mubr.bf16.gmra.mxu0 %v801
        %v4132 = vpop.f32.mrf.mxu0
        %v4133 = vadd.f32 %v4070, %v4132
        %v4134 = vpop.f32.mrf.mxu0
        %v4135 = vadd.f32 %v4072, %v4134
        %v4136 = vpop.f32.mrf.mxu0
        %v4137 = vadd.f32 %v4074, %v4136
        %v4138 = vpop.f32.mrf.mxu0
        %v4139 = vadd.f32 %v4076, %v4138
        %4140 = vmatprep.mubr.bf16.mxu0 %v810
        %4141 = vmatmul.mubr.bf16.gmra.mxu0 %v809
        %v4142 = vpop.f32.mrf.mxu0
        %v4143 = vadd.f32 %v4080, %v4142
        %v4144 = vpop.f32.mrf.mxu0
        %v4145 = vadd.f32 %v4082, %v4144
        %v4146 = vpop.f32.mrf.mxu0
        %v4147 = vadd.f32 %v4084, %v4146
        %v4148 = vpop.f32.mrf.mxu0
        %v4149 = vadd.f32 %v4086, %v4148
        %4150 = vdwg.mxu0
        %4151 = vmatprep.subr.bf16.mxu0 %v2434
        %4152 = vmatpush1.bf16.msra.mxu0 %v2433
        %4153 = vmatprep.subr.bf16.mxu0 %v2426
        %4154 = vmatpush1.bf16.msra.mxu0 %v2425
        %4155 = vmatprep.subr.bf16.mxu0 %v2418
        %4156 = vmatpush1.bf16.msra.mxu0 %v2417
        %4157 = vmatprep.subr.bf16.mxu0 %v2410
        %4158 = vmatpush1.bf16.msra.mxu0 %v2409
        %4159 = vmatprep.subr.bf16.mxu0 %v2402
        %4160 = vmatpush1.bf16.msra.mxu0 %v2401
        %4161 = vmatprep.subr.bf16.mxu0 %v2394
        %4162 = vmatpush1.bf16.msra.mxu0 %v2393
        %4163 = vmatprep.subr.bf16.mxu0 %v2386
        %4164 = vmatpush1.bf16.msra.mxu0 %v2385
        %4165 = vmatprep.subr.bf16.mxu0 %v2378
        %4166 = vmatpush1.bf16.msra.mxu0 %v2377
        %4167 = vmatprep.subr.bf16.mxu0 %v2498
        %4168 = vmatpush2.bf16.msra.mxu0 %v2497
        %4169 = vmatprep.subr.bf16.mxu0 %v2490
        %4170 = vmatpush2.bf16.msra.mxu0 %v2489
        %4171 = vmatprep.subr.bf16.mxu0 %v2482
        %4172 = vmatpush2.bf16.msra.mxu0 %v2481
        %4173 = vmatprep.subr.bf16.mxu0 %v2474
        %4174 = vmatpush2.bf16.msra.mxu0 %v2473
        %4175 = vmatprep.subr.bf16.mxu0 %v2466
        %4176 = vmatpush2.bf16.msra.mxu0 %v2465
        %4177 = vmatprep.subr.bf16.mxu0 %v2458
        %4178 = vmatpush2.bf16.msra.mxu0 %v2457
        %4179 = vmatprep.subr.bf16.mxu0 %v2450
        %4180 = vmatpush2.bf16.msra.mxu0 %v2449
        %4181 = vmatprep.subr.bf16.mxu0 %v2442
        %4182 = vmatpush2.bf16.msra.mxu0 %v2441
        %4183 = vmatprep.mubr.bf16.mxu0 %v788
        %4184 = vmatmul.mubr.bf16.gmra.mxu0 %v787
        %v4185 = vpop.f32.mrf.mxu0
        %v4186 = vadd.f32 0.0, %v4185
        %v4187 = vpop.f32.mrf.mxu0
        %v4188 = vadd.f32 0.0, %v4187
        %v4189 = vpop.f32.mrf.mxu0
        %v4190 = vadd.f32 0.0, %v4189
        %v4191 = vpop.f32.mrf.mxu0
        %v4192 = vadd.f32 0.0, %v4191
        %4193 = vmatprep.mubr.bf16.mxu0 %v796
        %4194 = vmatmul.mubr.bf16.gmra.mxu0 %v795
        %v4195 = vpop.f32.mrf.mxu0
        %v4196 = vadd.f32 0.0, %v4195
        %v4197 = vpop.f32.mrf.mxu0
        %v4198 = vadd.f32 0.0, %v4197
        %v4199 = vpop.f32.mrf.mxu0
        %v4200 = vadd.f32 0.0, %v4199
        %v4201 = vpop.f32.mrf.mxu0
        %v4202 = vadd.f32 0.0, %v4201
        %4203 = vmatprep.mubr.bf16.mxu0 %v804
        %4204 = vmatmul.mubr.bf16.gmra.mxu0 %v803
        %v4205 = vpop.f32.mrf.mxu0
        %v4206 = vadd.f32 0.0, %v4205
        %v4207 = vpop.f32.mrf.mxu0
        %v4208 = vadd.f32 0.0, %v4207
        %v4209 = vpop.f32.mrf.mxu0
        %v4210 = vadd.f32 0.0, %v4209
        %v4211 = vpop.f32.mrf.mxu0
        %v4212 = vadd.f32 0.0, %v4211
        %4213 = vdwg.mxu0
        %4214 = vmatprep.subr.bf16.mxu0 %v2562
        %4215 = vmatpush1.bf16.msra.mxu0 %v2561
        %4216 = vmatprep.subr.bf16.mxu0 %v2554
        %4217 = vmatpush1.bf16.msra.mxu0 %v2553
        %4218 = vmatprep.subr.bf16.mxu0 %v2546
        %4219 = vmatpush1.bf16.msra.mxu0 %v2545
        %4220 = vmatprep.subr.bf16.mxu0 %v2538
        %4221 = vmatpush1.bf16.msra.mxu0 %v2537
        %4222 = vmatprep.subr.bf16.mxu0 %v2530
        %4223 = vmatpush1.bf16.msra.mxu0 %v2529
        %4224 = vmatprep.subr.bf16.mxu0 %v2522
        %4225 = vmatpush1.bf16.msra.mxu0 %v2521
        %4226 = vmatprep.subr.bf16.mxu0 %v2514
        %4227 = vmatpush1.bf16.msra.mxu0 %v2513
        %4228 = vmatprep.subr.bf16.mxu0 %v2506
        %4229 = vmatpush1.bf16.msra.mxu0 %v2505
        %4230 = vmatprep.subr.bf16.mxu0 %v2626
        %4231 = vmatpush2.bf16.msra.mxu0 %v2625
        %4232 = vmatprep.subr.bf16.mxu0 %v2618
        %4233 = vmatpush2.bf16.msra.mxu0 %v2617
        %4234 = vmatprep.subr.bf16.mxu0 %v2610
        %4235 = vmatpush2.bf16.msra.mxu0 %v2609
        %4236 = vmatprep.subr.bf16.mxu0 %v2602
        %4237 = vmatpush2.bf16.msra.mxu0 %v2601
        %4238 = vmatprep.subr.bf16.mxu0 %v2594
        %4239 = vmatpush2.bf16.msra.mxu0 %v2593
        %4240 = vmatprep.subr.bf16.mxu0 %v2586
        %4241 = vmatpush2.bf16.msra.mxu0 %v2585
        %4242 = vmatprep.subr.bf16.mxu0 %v2578
        %4243 = vmatpush2.bf16.msra.mxu0 %v2577
        %4244 = vmatprep.subr.bf16.mxu0 %v2570
        %4245 = vmatpush2.bf16.msra.mxu0 %v2569
        %4246 = vmatprep.mubr.bf16.mxu0 %v790
        %4247 = vmatmul.mubr.bf16.gmra.mxu0 %v789
        %v4248 = vpop.f32.mrf.mxu0
        %v4249 = vadd.f32 %v4186, %v4248
        %v4250 = vpop.f32.mrf.mxu0
        %v4251 = vadd.f32 %v4188, %v4250
        %v4252 = vpop.f32.mrf.mxu0
        %v4253 = vadd.f32 %v4190, %v4252
        %v4254 = vpop.f32.mrf.mxu0
        %v4255 = vadd.f32 %v4192, %v4254
        %4256 = vmatprep.mubr.bf16.mxu0 %v798
        %4257 = vmatmul.mubr.bf16.gmra.mxu0 %v797
        %v4258 = vpop.f32.mrf.mxu0
        %v4259 = vadd.f32 %v4196, %v4258
        %v4260 = vpop.f32.mrf.mxu0
        %v4261 = vadd.f32 %v4198, %v4260
        %v4262 = vpop.f32.mrf.mxu0
        %v4263 = vadd.f32 %v4200, %v4262
        %v4264 = vpop.f32.mrf.mxu0
        %v4265 = vadd.f32 %v4202, %v4264
        %4266 = vmatprep.mubr.bf16.mxu0 %v806
        %4267 = vmatmul.mubr.bf16.gmra.mxu0 %v805
        %v4268 = vpop.f32.mrf.mxu0
        %v4269 = vadd.f32 %v4206, %v4268
        %v4270 = vpop.f32.mrf.mxu0
        %v4271 = vadd.f32 %v4208, %v4270
        %v4272 = vpop.f32.mrf.mxu0
        %v4273 = vadd.f32 %v4210, %v4272
        %v4274 = vpop.f32.mrf.mxu0
        %v4275 = vadd.f32 %v4212, %v4274
        %4276 = vdwg.mxu0
        %4277 = vmatprep.subr.bf16.mxu0 %v2690
        %4278 = vmatpush1.bf16.msra.mxu0 %v2689
        %4279 = vmatprep.subr.bf16.mxu0 %v2682
        %4280 = vmatpush1.bf16.msra.mxu0 %v2681
        %4281 = vmatprep.subr.bf16.mxu0 %v2674
        %4282 = vmatpush1.bf16.msra.mxu0 %v2673
        %4283 = vmatprep.subr.bf16.mxu0 %v2666
        %4284 = vmatpush1.bf16.msra.mxu0 %v2665
        %4285 = vmatprep.subr.bf16.mxu0 %v2658
        %4286 = vmatpush1.bf16.msra.mxu0 %v2657
        %4287 = vmatprep.subr.bf16.mxu0 %v2650
        %4288 = vmatpush1.bf16.msra.mxu0 %v2649
        %4289 = vmatprep.subr.bf16.mxu0 %v2642
        %4290 = vmatpush1.bf16.msra.mxu0 %v2641
        %4291 = vmatprep.subr.bf16.mxu0 %v2634
        %4292 = vmatpush1.bf16.msra.mxu0 %v2633
        %4293 = vmatprep.subr.bf16.mxu0 %v2754
        %4294 = vmatpush2.bf16.msra.mxu0 %v2753
        %4295 = vmatprep.subr.bf16.mxu0 %v2746
        %4296 = vmatpush2.bf16.msra.mxu0 %v2745
        %4297 = vmatprep.subr.bf16.mxu0 %v2738
        %4298 = vmatpush2.bf16.msra.mxu0 %v2737
        %4299 = vmatprep.subr.bf16.mxu0 %v2730
        %4300 = vmatpush2.bf16.msra.mxu0 %v2729
        %4301 = vmatprep.subr.bf16.mxu0 %v2722
        %4302 = vmatpush2.bf16.msra.mxu0 %v2721
        %4303 = vmatprep.subr.bf16.mxu0 %v2714
        %4304 = vmatpush2.bf16.msra.mxu0 %v2713
        %4305 = vmatprep.subr.bf16.mxu0 %v2706
        %4306 = vmatpush2.bf16.msra.mxu0 %v2705
        %4307 = vmatprep.subr.bf16.mxu0 %v2698
        %4308 = vmatpush2.bf16.msra.mxu0 %v2697
        %4309 = vmatprep.mubr.bf16.mxu0 %v792
        %4310 = vmatmul.mubr.bf16.gmra.mxu0 %v791
        %v4311 = vpop.f32.mrf.mxu0
        %v4312 = vadd.f32 %v4249, %v4311
        %v4313 = vpop.f32.mrf.mxu0
        %v4314 = vadd.f32 %v4251, %v4313
        %v4315 = vpop.f32.mrf.mxu0
        %v4316 = vadd.f32 %v4253, %v4315
        %v4317 = vpop.f32.mrf.mxu0
        %v4318 = vadd.f32 %v4255, %v4317
        %4319 = vmatprep.mubr.bf16.mxu0 %v800
        %4320 = vmatmul.mubr.bf16.gmra.mxu0 %v799
        %v4321 = vpop.f32.mrf.mxu0
        %v4322 = vadd.f32 %v4259, %v4321
        %v4323 = vpop.f32.mrf.mxu0
        %v4324 = vadd.f32 %v4261, %v4323
        %v4325 = vpop.f32.mrf.mxu0
        %v4326 = vadd.f32 %v4263, %v4325
        %v4327 = vpop.f32.mrf.mxu0
        %v4328 = vadd.f32 %v4265, %v4327
        %4329 = vmatprep.mubr.bf16.mxu0 %v808
        %4330 = vmatmul.mubr.bf16.gmra.mxu0 %v807
        %v4331 = vpop.f32.mrf.mxu0
        %v4332 = vadd.f32 %v4269, %v4331
        %v4333 = vpop.f32.mrf.mxu0
        %v4334 = vadd.f32 %v4271, %v4333
        %v4335 = vpop.f32.mrf.mxu0
        %v4336 = vadd.f32 %v4273, %v4335
        %v4337 = vpop.f32.mrf.mxu0
        %v4338 = vadd.f32 %v4275, %v4337
        %4339 = vdwg.mxu0
        %4340 = vmatprep.subr.bf16.mxu0 %v2818
        %4341 = vmatpush1.bf16.msra.mxu0 %v2817
        %4342 = vmatprep.subr.bf16.mxu0 %v2810
        %4343 = vmatpush1.bf16.msra.mxu0 %v2809
        %4344 = vmatprep.subr.bf16.mxu0 %v2802
        %4345 = vmatpush1.bf16.msra.mxu0 %v2801
        %4346 = vmatprep.subr.bf16.mxu0 %v2794
        %4347 = vmatpush1.bf16.msra.mxu0 %v2793
        %4348 = vmatprep.subr.bf16.mxu0 %v2786
        %4349 = vmatpush1.bf16.msra.mxu0 %v2785
        %4350 = vmatprep.subr.bf16.mxu0 %v2778
        %4351 = vmatpush1.bf16.msra.mxu0 %v2777
        %4352 = vmatprep.subr.bf16.mxu0 %v2770
        %4353 = vmatpush1.bf16.msra.mxu0 %v2769
        %4354 = vmatprep.subr.bf16.mxu0 %v2762
        %4355 = vmatpush1.bf16.msra.mxu0 %v2761
        %4356 = vmatprep.subr.bf16.mxu0 %v2882
        %4357 = vmatpush2.bf16.msra.mxu0 %v2881
        %4358 = vmatprep.subr.bf16.mxu0 %v2874
        %4359 = vmatpush2.bf16.msra.mxu0 %v2873
        %4360 = vmatprep.subr.bf16.mxu0 %v2866
        %4361 = vmatpush2.bf16.msra.mxu0 %v2865
        %4362 = vmatprep.subr.bf16.mxu0 %v2858
        %4363 = vmatpush2.bf16.msra.mxu0 %v2857
        %4364 = vmatprep.subr.bf16.mxu0 %v2850
        %4365 = vmatpush2.bf16.msra.mxu0 %v2849
        %4366 = vmatprep.subr.bf16.mxu0 %v2842
        %4367 = vmatpush2.bf16.msra.mxu0 %v2841
        %4368 = vmatprep.subr.bf16.mxu0 %v2834
        %4369 = vmatpush2.bf16.msra.mxu0 %v2833
        %4370 = vmatprep.subr.bf16.mxu0 %v2826
        %4371 = vmatpush2.bf16.msra.mxu0 %v2825
        %4372 = vmatprep.mubr.bf16.mxu0 %v794
        %4373 = vmatmul.mubr.bf16.gmra.mxu0 %v793
        %v4374 = vpop.f32.mrf.mxu0
        %v4375 = vadd.f32 %v4312, %v4374
        %v4376 = vpop.f32.mrf.mxu0
        %v4377 = vadd.f32 %v4314, %v4376
        %v4378 = vpop.f32.mrf.mxu0
        %v4379 = vadd.f32 %v4316, %v4378
        %v4380 = vpop.f32.mrf.mxu0
        %v4381 = vadd.f32 %v4318, %v4380
        %4382 = vmatprep.mubr.bf16.mxu0 %v802
        %4383 = vmatmul.mubr.bf16.gmra.mxu0 %v801
        %v4384 = vpop.f32.mrf.mxu0
        %v4385 = vadd.f32 %v4322, %v4384
        %v4386 = vpop.f32.mrf.mxu0
        %v4387 = vadd.f32 %v4324, %v4386
        %v4388 = vpop.f32.mrf.mxu0
        %v4389 = vadd.f32 %v4326, %v4388
        %v4390 = vpop.f32.mrf.mxu0
        %v4391 = vadd.f32 %v4328, %v4390
        %4392 = vmatprep.mubr.bf16.mxu0 %v810
        %4393 = vmatmul.mubr.bf16.gmra.mxu0 %v809
        %v4394 = vpop.f32.mrf.mxu0
        %v4395 = vadd.f32 %v4332, %v4394
        %v4396 = vpop.f32.mrf.mxu0
        %v4397 = vadd.f32 %v4334, %v4396
        %v4398 = vpop.f32.mrf.mxu0
        %v4399 = vadd.f32 %v4336, %v4398
        %v4400 = vpop.f32.mrf.mxu0
        %v4401 = vadd.f32 %v4338, %v4400
        %4402 = vdwg.mxu0
        %v4403 = vmul.f32 %v3619, %v3619
        %v4404 = vmul.f32 %v3621, %v3621
        %v4405 = vmul.f32 %v3871, %v3871
        %v4406 = vmul.f32 %v3873, %v3873
        %v4407 = vmul.f32 %v3623, %v3623
        %v4408 = vmul.f32 %v3625, %v3625
        %v4409 = vmul.f32 %v3875, %v3875
        %v4410 = vmul.f32 %v3877, %v3877
        %v4411 = vmul.f32 %v3629, %v3629
        %v4412 = vmul.f32 %v3631, %v3631
        %v4413 = vmul.f32 %v3881, %v3881
        %v4414 = vmul.f32 %v3883, %v3883
        %v4415 = vmul.f32 %v3633, %v3633
        %v4416 = vmul.f32 %v3635, %v3635
        %v4417 = vmul.f32 %v3885, %v3885
        %v4418 = vmul.f32 %v3887, %v3887
        %v4419 = vmul.f32 %v3639, %v3639
        %v4420 = vmul.f32 %v3641, %v3641
        %v4421 = vmul.f32 %v3891, %v3891
        %v4422 = vmul.f32 %v3893, %v3893
        %v4423 = vmul.f32 %v3643, %v3643
        %v4424 = vmul.f32 %v3645, %v3645
        %v4425 = vmul.f32 %v3895, %v3895
        %v4426 = vmul.f32 %v3897, %v3897
        %v4427 = vmul.f32 %v4123, %v4123
        %v4428 = vmul.f32 %v4125, %v4125
        %v4429 = vmul.f32 %v4375, %v4375
        %v4430 = vmul.f32 %v4377, %v4377
        %v4431 = vmul.f32 %v4127, %v4127
        %v4432 = vmul.f32 %v4129, %v4129
        %v4433 = vmul.f32 %v4379, %v4379
        %v4434 = vmul.f32 %v4381, %v4381
        %v4435 = vmul.f32 %v4133, %v4133
        %v4436 = vmul.f32 %v4135, %v4135
        %v4437 = vmul.f32 %v4385, %v4385
        %v4438 = vmul.f32 %v4387, %v4387
        %v4439 = vmul.f32 %v4137, %v4137
        %v4440 = vmul.f32 %v4139, %v4139
        %v4441 = vmul.f32 %v4389, %v4389
        %v4442 = vmul.f32 %v4391, %v4391
        %v4443 = vmul.f32 %v4143, %v4143
        %v4444 = vmul.f32 %v4145, %v4145
        %v4445 = vmul.f32 %v4395, %v4395
        %v4446 = vmul.f32 %v4397, %v4397
        %v4447 = vmul.f32 %v4147, %v4147
        %v4448 = vmul.f32 %v4149, %v4149
        %v4449 = vmul.f32 %v4399, %v4399
        %v4450 = vmul.f32 %v4401, %v4401
        %v4451 = vadd.f32 %v4403, %v4427
        %v4452 = vadd.f32 %v4404, %v4428
        %v4453 = vadd.f32 %v4405, %v4429
        %v4454 = vadd.f32 %v4406, %v4430
        %v4455 = vadd.f32 %v4407, %v4431
        %v4456 = vadd.f32 %v4408, %v4432
        %v4457 = vadd.f32 %v4409, %v4433
        %v4458 = vadd.f32 %v4410, %v4434
        %v4459 = vadd.f32 %v4411, %v4435
        %v4460 = vadd.f32 %v4412, %v4436
        %v4461 = vadd.f32 %v4413, %v4437
        %v4462 = vadd.f32 %v4414, %v4438
        %v4463 = vadd.f32 %v4415, %v4439
        %v4464 = vadd.f32 %v4416, %v4440
        %v4465 = vadd.f32 %v4417, %v4441
        %v4466 = vadd.f32 %v4418, %v4442
        %v4467 = vadd.f32 %v4419, %v4443
        %v4468 = vadd.f32 %v4420, %v4444
        %v4469 = vadd.f32 %v4421, %v4445
        %v4470 = vadd.f32 %v4422, %v4446
        %v4471 = vadd.f32 %v4423, %v4447
        %v4472 = vadd.f32 %v4424, %v4448
        %v4473 = vadd.f32 %v4425, %v4449
        %v4474 = vadd.f32 %v4426, %v4450
        %v4475 = vmax.f32 %v4451, 1e-08
        %v4476 = vmax.f32 %v4452, 1e-08
        %v4477 = vmax.f32 %v4453, 1e-08
        %v4478 = vmax.f32 %v4454, 1e-08
        %v4479 = vmax.f32 %v4455, 1e-08
        %v4480 = vmax.f32 %v4456, 1e-08
        %v4481 = vmax.f32 %v4457, 1e-08
        %v4482 = vmax.f32 %v4458, 1e-08
        %v4483 = vmax.f32 %v4459, 1e-08
        %v4484 = vmax.f32 %v4460, 1e-08
        %v4485 = vmax.f32 %v4461, 1e-08
        %v4486 = vmax.f32 %v4462, 1e-08
        %v4487 = vmax.f32 %v4463, 1e-08
        %v4488 = vmax.f32 %v4464, 1e-08
        %v4489 = vmax.f32 %v4465, 1e-08
        %v4490 = vmax.f32 %v4466, 1e-08
        %v4491 = vmax.f32 %v4467, 1e-08
        %v4492 = vmax.f32 %v4468, 1e-08
        %v4493 = vmax.f32 %v4469, 1e-08
        %v4494 = vmax.f32 %v4470, 1e-08
        %v4495 = vmax.f32 %v4471, 1e-08
        %v4496 = vmax.f32 %v4472, 1e-08
        %v4497 = vmax.f32 %v4473, 1e-08
        %v4498 = vmax.f32 %v4474, 1e-08
        %v4499 = vlog2.pop %v4487
        %v4500 = vmul.f32 %v4499, 0.6931472
        %v4501 = vlog2.pop %v4488
        %v4502 = vmul.f32 %v4501, 0.6931472
        %v4503 = vlog2.pop %v4489
        %v4504 = vmul.f32 %v4503, 0.6931472
        %v4505 = vlog2.pop %v4490
        %v4506 = vmul.f32 %v4505, 0.6931472
        %v4507 = vlog2.pop %v4491
        %v4508 = vmul.f32 %v4507, 0.6931472
        %v4509 = vlog2.pop %v4492
        %v4510 = vmul.f32 %v4509, 0.6931472
        %v4511 = vlog2.pop %v4493
        %v4512 = vmul.f32 %v4511, 0.6931472
        %v4513 = vlog2.pop %v4494
        %v4514 = vmul.f32 %v4513, 0.6931472
        %v4515 = vlog2.pop %v4495
        %v4516 = vmul.f32 %v4515, 0.6931472
        %v4517 = vlog2.pop %v4496
        %v4518 = vmul.f32 %v4517, 0.6931472
        %v4519 = vlog2.pop %v4497
        %v4520 = vmul.f32 %v4519, 0.6931472
        %v4521 = vlog2.pop %v4498
        %v4522 = vmul.f32 %v4521, 0.6931472
        %v4523 = vlog2.pop %v4475
        %v4524 = vmul.f32 %v4523, 0.6931472
        %v4525 = vlog2.pop %v4476
        %v4526 = vmul.f32 %v4525, 0.6931472
        %v4527 = vlog2.pop %v4477
        %v4528 = vmul.f32 %v4527, 0.6931472
        %v4529 = vlog2.pop %v4478
        %v4530 = vmul.f32 %v4529, 0.6931472
        %v4531 = vlog2.pop %v4479
        %v4532 = vmul.f32 %v4531, 0.6931472
        %v4533 = vlog2.pop %v4480
        %v4534 = vmul.f32 %v4533, 0.6931472
        %v4535 = vlog2.pop %v4481
        %v4536 = vmul.f32 %v4535, 0.6931472
        %v4537 = vlog2.pop %v4482
        %v4538 = vmul.f32 %v4537, 0.6931472
        %v4539 = vlog2.pop %v4483
        %v4540 = vmul.f32 %v4539, 0.6931472
        %v4541 = vlog2.pop %v4484
        %v4542 = vmul.f32 %v4541, 0.6931472
        %v4543 = vlog2.pop %v4485
        %v4544 = vmul.f32 %v4543, 0.6931472
        %v4545 = vlog2.pop %v4486
        %v4546 = vmul.f32 %v4545, 0.6931472
        %v4547 = vsub.f32 %v4500, %v4524
        %v4548 = vsub.f32 %v4502, %v4526
        %v4549 = vsub.f32 %v4504, %v4528
        %v4550 = vsub.f32 %v4506, %v4530
        %v4551 = vsub.f32 %v4508, %v4532
        %v4552 = vsub.f32 %v4510, %v4534
        %v4553 = vsub.f32 %v4512, %v4536
        %v4554 = vsub.f32 %v4514, %v4538
        %v4555 = vsub.f32 %v4516, %v4540
        %v4556 = vsub.f32 %v4518, %v4542
        %v4557 = vsub.f32 %v4520, %v4544
        %v4558 = vsub.f32 %v4522, %v4546
        %v4559 = vand.u32 2147483647, %v4547
        %v4560 = vand.u32 2147483647, %v4548
        %v4561 = vand.u32 2147483647, %v4549
        %v4562 = vand.u32 2147483647, %v4550
        %v4563 = vand.u32 2147483647, %v4551
        %v4564 = vand.u32 2147483647, %v4552
        %v4565 = vand.u32 2147483647, %v4553
        %v4566 = vand.u32 2147483647, %v4554
        %v4567 = vand.u32 2147483647, %v4555
        %v4568 = vand.u32 2147483647, %v4556
        %v4569 = vand.u32 2147483647, %v4557
        %v4570 = vand.u32 2147483647, %v4558
        %v4571 = vmul.f32 %v4559, 0.5
        %v4572 = vmul.f32 %v4560, 0.5
        %v4573 = vmul.f32 %v4561, 0.5
        %v4574 = vmul.f32 %v4562, 0.5
        %v4575 = vmul.f32 %v4563, 0.5
        %v4576 = vmul.f32 %v4564, 0.5
        %v4577 = vmul.f32 %v4565, 0.5
        %v4578 = vmul.f32 %v4566, 0.5
        %v4579 = vmul.f32 %v4567, 0.5
        %v4580 = vmul.f32 %v4568, 0.5
        %v4581 = vmul.f32 %v4569, 0.5
        %v4582 = vmul.f32 %v4570, 0.5
        %v4583 = vrsqrt.pop %v4487
        %v4584 = vmul.f32 %v4487, %v4583
        %vm4585 = vcmp.eq.f32.partialorder %v4487, inf
        %v4586 = vsel %vm4585, %v4487, %v4584
        %vm4587 = vcmp.eq.f32.partialorder %v4487, 0.0
        %v4588 = vand.u32 %v4487, 2147483648
        %v4589 = vsel %vm4587, %v4588, %v4586
        %v4590 = vrsqrt.pop %v4488
        %v4591 = vmul.f32 %v4488, %v4590
        %vm4592 = vcmp.eq.f32.partialorder %v4488, inf
        %v4593 = vsel %vm4592, %v4488, %v4591
        %vm4594 = vcmp.eq.f32.partialorder %v4488, 0.0
        %v4595 = vand.u32 %v4488, 2147483648
        %v4596 = vsel %vm4594, %v4595, %v4593
        %v4597 = vrsqrt.pop %v4489
        %v4598 = vmul.f32 %v4489, %v4597
        %vm4599 = vcmp.eq.f32.partialorder %v4489, inf
        %v4600 = vsel %vm4599, %v4489, %v4598
        %vm4601 = vcmp.eq.f32.partialorder %v4489, 0.0
        %v4602 = vand.u32 %v4489, 2147483648
        %v4603 = vsel %vm4601, %v4602, %v4600
        %v4604 = vrsqrt.pop %v4490
        %v4605 = vmul.f32 %v4490, %v4604
        %vm4606 = vcmp.eq.f32.partialorder %v4490, inf
        %v4607 = vsel %vm4606, %v4490, %v4605
        %vm4608 = vcmp.eq.f32.partialorder %v4490, 0.0
        %v4609 = vand.u32 %v4490, 2147483648
        %v4610 = vsel %vm4608, %v4609, %v4607
        %v4611 = vrsqrt.pop %v4491
        %v4612 = vmul.f32 %v4491, %v4611
        %vm4613 = vcmp.eq.f32.partialorder %v4491, inf
        %v4614 = vsel %vm4613, %v4491, %v4612
        %vm4615 = vcmp.eq.f32.partialorder %v4491, 0.0
        %v4616 = vand.u32 %v4491, 2147483648
        %v4617 = vsel %vm4615, %v4616, %v4614
        %v4618 = vrsqrt.pop %v4492
        %v4619 = vmul.f32 %v4492, %v4618
        %vm4620 = vcmp.eq.f32.partialorder %v4492, inf
        %v4621 = vsel %vm4620, %v4492, %v4619
        %vm4622 = vcmp.eq.f32.partialorder %v4492, 0.0
        %v4623 = vand.u32 %v4492, 2147483648
        %v4624 = vsel %vm4622, %v4623, %v4621
        %v4625 = vrsqrt.pop %v4493
        %v4626 = vmul.f32 %v4493, %v4625
        %vm4627 = vcmp.eq.f32.partialorder %v4493, inf
        %v4628 = vsel %vm4627, %v4493, %v4626
        %vm4629 = vcmp.eq.f32.partialorder %v4493, 0.0
        %v4630 = vand.u32 %v4493, 2147483648
        %v4631 = vsel %vm4629, %v4630, %v4628
        %v4632 = vrsqrt.pop %v4494
        %v4633 = vmul.f32 %v4494, %v4632
        %vm4634 = vcmp.eq.f32.partialorder %v4494, inf
        %v4635 = vsel %vm4634, %v4494, %v4633
        %vm4636 = vcmp.eq.f32.partialorder %v4494, 0.0
        %v4637 = vand.u32 %v4494, 2147483648
        %v4638 = vsel %vm4636, %v4637, %v4635
        %v4639 = vrsqrt.pop %v4495
        %v4640 = vmul.f32 %v4495, %v4639
        %vm4641 = vcmp.eq.f32.partialorder %v4495, inf
        %v4642 = vsel %vm4641, %v4495, %v4640
        %vm4643 = vcmp.eq.f32.partialorder %v4495, 0.0
        %v4644 = vand.u32 %v4495, 2147483648
        %v4645 = vsel %vm4643, %v4644, %v4642
        %v4646 = vrsqrt.pop %v4496
        %v4647 = vmul.f32 %v4496, %v4646
        %vm4648 = vcmp.eq.f32.partialorder %v4496, inf
        %v4649 = vsel %vm4648, %v4496, %v4647
        %vm4650 = vcmp.eq.f32.partialorder %v4496, 0.0
        %v4651 = vand.u32 %v4496, 2147483648
        %v4652 = vsel %vm4650, %v4651, %v4649
        %v4653 = vrsqrt.pop %v4497
        %v4654 = vmul.f32 %v4497, %v4653
        %vm4655 = vcmp.eq.f32.partialorder %v4497, inf
        %v4656 = vsel %vm4655, %v4497, %v4654
        %vm4657 = vcmp.eq.f32.partialorder %v4497, 0.0
        %v4658 = vand.u32 %v4497, 2147483648
        %v4659 = vsel %vm4657, %v4658, %v4656
        %v4660 = vrsqrt.pop %v4498
        %v4661 = vmul.f32 %v4498, %v4660
        %vm4662 = vcmp.eq.f32.partialorder %v4498, inf
        %v4663 = vsel %vm4662, %v4498, %v4661
        %vm4664 = vcmp.eq.f32.partialorder %v4498, 0.0
        %v4665 = vand.u32 %v4498, 2147483648
        %v4666 = vsel %vm4664, %v4665, %v4663
        %v4667 = vrsqrt.pop %v4475
        %v4668 = vmul.f32 %v4475, %v4667
        %vm4669 = vcmp.eq.f32.partialorder %v4475, inf
        %v4670 = vsel %vm4669, %v4475, %v4668
        %vm4671 = vcmp.eq.f32.partialorder %v4475, 0.0
        %v4672 = vand.u32 %v4475, 2147483648
        %v4673 = vsel %vm4671, %v4672, %v4670
        %v4674 = vrsqrt.pop %v4476
        %v4675 = vmul.f32 %v4476, %v4674
        %vm4676 = vcmp.eq.f32.partialorder %v4476, inf
        %v4677 = vsel %vm4676, %v4476, %v4675
        %vm4678 = vcmp.eq.f32.partialorder %v4476, 0.0
        %v4679 = vand.u32 %v4476, 2147483648
        %v4680 = vsel %vm4678, %v4679, %v4677
        %v4681 = vrsqrt.pop %v4477
        %v4682 = vmul.f32 %v4477, %v4681
        %vm4683 = vcmp.eq.f32.partialorder %v4477, inf
        %v4684 = vsel %vm4683, %v4477, %v4682
        %vm4685 = vcmp.eq.f32.partialorder %v4477, 0.0
        %v4686 = vand.u32 %v4477, 2147483648
        %v4687 = vsel %vm4685, %v4686, %v4684
        %v4688 = vrsqrt.pop %v4478
        %v4689 = vmul.f32 %v4478, %v4688
        %vm4690 = vcmp.eq.f32.partialorder %v4478, inf
        %v4691 = vsel %vm4690, %v4478, %v4689
        %vm4692 = vcmp.eq.f32.partialorder %v4478, 0.0
        %v4693 = vand.u32 %v4478, 2147483648
        %v4694 = vsel %vm4692, %v4693, %v4691
        %v4695 = vrsqrt.pop %v4479
        %v4696 = vmul.f32 %v4479, %v4695
        %vm4697 = vcmp.eq.f32.partialorder %v4479, inf
        %v4698 = vsel %vm4697, %v4479, %v4696
        %vm4699 = vcmp.eq.f32.partialorder %v4479, 0.0
        %v4700 = vand.u32 %v4479, 2147483648
        %v4701 = vsel %vm4699, %v4700, %v4698
        %v4702 = vrsqrt.pop %v4480
        %v4703 = vmul.f32 %v4480, %v4702
        %vm4704 = vcmp.eq.f32.partialorder %v4480, inf
        %v4705 = vsel %vm4704, %v4480, %v4703
        %vm4706 = vcmp.eq.f32.partialorder %v4480, 0.0
        %v4707 = vand.u32 %v4480, 2147483648
        %v4708 = vsel %vm4706, %v4707, %v4705
        %v4709 = vrsqrt.pop %v4481
        %v4710 = vmul.f32 %v4481, %v4709
        %vm4711 = vcmp.eq.f32.partialorder %v4481, inf
        %v4712 = vsel %vm4711, %v4481, %v4710
        %vm4713 = vcmp.eq.f32.partialorder %v4481, 0.0
        %v4714 = vand.u32 %v4481, 2147483648
        %v4715 = vsel %vm4713, %v4714, %v4712
        %v4716 = vrsqrt.pop %v4482
        %v4717 = vmul.f32 %v4482, %v4716
        %vm4718 = vcmp.eq.f32.partialorder %v4482, inf
        %v4719 = vsel %vm4718, %v4482, %v4717
        %vm4720 = vcmp.eq.f32.partialorder %v4482, 0.0
        %v4721 = vand.u32 %v4482, 2147483648
        %v4722 = vsel %vm4720, %v4721, %v4719
        %v4723 = vrsqrt.pop %v4483
        %v4724 = vmul.f32 %v4483, %v4723
        %vm4725 = vcmp.eq.f32.partialorder %v4483, inf
        %v4726 = vsel %vm4725, %v4483, %v4724
        %vm4727 = vcmp.eq.f32.partialorder %v4483, 0.0
        %v4728 = vand.u32 %v4483, 2147483648
        %v4729 = vsel %vm4727, %v4728, %v4726
        %v4730 = vrsqrt.pop %v4484
        %v4731 = vmul.f32 %v4484, %v4730
        %vm4732 = vcmp.eq.f32.partialorder %v4484, inf
        %v4733 = vsel %vm4732, %v4484, %v4731
        %vm4734 = vcmp.eq.f32.partialorder %v4484, 0.0
        %v4735 = vand.u32 %v4484, 2147483648
        %v4736 = vsel %vm4734, %v4735, %v4733
        %v4737 = vrsqrt.pop %v4485
        %v4738 = vmul.f32 %v4485, %v4737
        %vm4739 = vcmp.eq.f32.partialorder %v4485, inf
        %v4740 = vsel %vm4739, %v4485, %v4738
        %vm4741 = vcmp.eq.f32.partialorder %v4485, 0.0
        %v4742 = vand.u32 %v4485, 2147483648
        %v4743 = vsel %vm4741, %v4742, %v4740
        %v4744 = vrsqrt.pop %v4486
        %v4745 = vmul.f32 %v4486, %v4744
        %vm4746 = vcmp.eq.f32.partialorder %v4486, inf
        %v4747 = vsel %vm4746, %v4486, %v4745
        %vm4748 = vcmp.eq.f32.partialorder %v4486, 0.0
        %v4749 = vand.u32 %v4486, 2147483648
        %v4750 = vsel %vm4748, %v4749, %v4747
        %v4751 = vsub.f32 %v4589, %v4673
        %v4752 = vsub.f32 %v4596, %v4680
        %v4753 = vsub.f32 %v4603, %v4687
        %v4754 = vsub.f32 %v4610, %v4694
        %v4755 = vsub.f32 %v4617, %v4701
        %v4756 = vsub.f32 %v4624, %v4708
        %v4757 = vsub.f32 %v4631, %v4715
        %v4758 = vsub.f32 %v4638, %v4722
        %v4759 = vsub.f32 %v4645, %v4729
        %v4760 = vsub.f32 %v4652, %v4736
        %v4761 = vsub.f32 %v4659, %v4743
        %v4762 = vsub.f32 %v4666, %v4750
        %v4763 = vadd.f32 %v4571, %v4575
        %v4764 = vadd.f32 %v4763, %v4579
        %v4765 = vadd.f32 %v4572, %v4576
        %v4766 = vadd.f32 %v4765, %v4580
        %v4767 = vadd.f32 %v4573, %v4577
        %v4768 = vadd.f32 %v4767, %v4581
        %v4769 = vadd.f32 %v4574, %v4578
        %v4770 = vadd.f32 %v4769, %v4582
        %4771 = vst [vmem:[%s177] sm:$0xff] %v4764
        %4772 = vst [vmem:[%s177 + $0x8] sm:$0xff] %v4766
        %4773 = vst [vmem:[%s177 + $0x10] sm:$0xff] %v4768
        %4774 = vst [vmem:[%s177 + $0x18] sm:$0xff] %v4770
        %v4775 = vmul.f32 %v4751, %v4751
        %v4776 = vmul.f32 %v4752, %v4752
        %v4777 = vmul.f32 %v4753, %v4753
        %v4778 = vmul.f32 %v4754, %v4754
        %v4779 = vmul.f32 %v4755, %v4755
        %v4780 = vmul.f32 %v4756, %v4756
        %v4781 = vmul.f32 %v4757, %v4757
        %v4782 = vmul.f32 %v4758, %v4758
        %v4783 = vmul.f32 %v4759, %v4759
        %v4784 = vmul.f32 %v4760, %v4760
        %v4785 = vmul.f32 %v4761, %v4761
        %v4786 = vmul.f32 %v4762, %v4762
        %v4787 = vadd.f32 %v4775, %v4779
        %v4788 = vadd.f32 %v4787, %v4783
        %v4789 = vadd.f32 %v4776, %v4780
        %v4790 = vadd.f32 %v4789, %v4784
        %v4791 = vadd.f32 %v4777, %v4781
        %v4792 = vadd.f32 %v4791, %v4785
        %v4793 = vadd.f32 %v4778, %v4782
        %v4794 = vadd.f32 %v4793, %v4786
        %4795 = vst [vmem:[%s177 + $0x20] sm:$0xff] %v4788
        %4796 = vst [vmem:[%s177 + $0x28] sm:$0xff] %v4790
        %4797 = vst [vmem:[%s177 + $0x30] sm:$0xff] %v4792
        %4798 = vst [vmem:[%s177 + $0x38] sm:$0xff] %v4794
        %v4799 = vadd.f32 %v4487, %v4491
        %v4800 = vadd.f32 %v4799, %v4495
        %v4801 = vadd.f32 %v4488, %v4492
        %v4802 = vadd.f32 %v4801, %v4496
        %v4803 = vadd.f32 %v4489, %v4493
        %v4804 = vadd.f32 %v4803, %v4497
        %v4805 = vadd.f32 %v4490, %v4494
        %v4806 = vadd.f32 %v4805, %v4498
        %4807 = vst [vmem:[%s177 + $0x40] sm:$0xff] %v4800
        %4808 = vst [vmem:[%s177 + $0x48] sm:$0xff] %v4802
        %4809 = vst [vmem:[%s177 + $0x50] sm:$0xff] %v4804
        %4810 = vst [vmem:[%s177 + $0x58] sm:$0xff] %v4806
        %s4811 = sand.u32 %s75, 1
        %s4812 = scalar_lea.sflag [#allocation4], %s4811
        %s4813 = sand.u32 %s75, 1
        %s4814 = smul.addr %s4813, 96
        %s4815 = scalar_lea.vmem [#allocation7], %s4814
        // Predicated region
        $region37: #{tpu_custom_call.1} parent=27 // pred_check
          %p4816 = pneg %p85
        $region38: #{tpu_custom_call.1} parent=27 // pred_check_branch
          %4818 = sbr.rel (%p4816) target = $region40
        $region39: #{tpu_custom_call.1} parent=27 // pred_region
          %s4820 = ssub.s32 1536, 1536
          %4821 = vsyncadd %s4812, %s4820
          %s4822 = smul.addr %s20, 12
          %s4823 = smul.addr %s4822, 128
          %s4824 = scalar_lea.hbm %s2, %s4823
          %s4826 = sshll.u32 %s4815, 4
          %s4827 = int_to_ptr.vmem [resolvable:$true] %s4826
          %4829 = dma.vmem_to_hbm [thread:$0]  %s4827, 1536, %s4824, %s4812
        $region40: #{tpu_custom_call.1} parent=27 // pred_fallthru
          _
      $region28: #{tpu_custom_call.1} parent=5 // pred_fallthru
        _
      %p4830 = scmp.le.s32.totalorder 2, %s15
      // Predicated region
      $region41: #{tpu_custom_call.1} parent=5 // pred_check
        %p4831 = pneg %p4830
      $region42: #{tpu_custom_call.1} parent=5 // pred_check_branch
        %4833 = sbr.rel (%p4831) target = $region44
      $region43: #{tpu_custom_call.1} parent=5 // pred_region
        %s4834 = ssub.s32 %s15, 2
        // Predicated region
        $region45: #{tpu_custom_call.1} parent=43 // pred_check
          %p4835 = pneg %p91
        $region46: #{tpu_custom_call.1} parent=43 // pred_check_branch
          %4837 = sbr.rel (%p4835) target = $region48
        $region47: #{tpu_custom_call.1} parent=43 // pred_region
          %s4838 = sand.u32 %s76, 1
          %s4839 = scalar_lea.sflag [#allocation4], %s4838
          %s4840 = sand.u32 %s76, 1
          %s4841 = smul.addr %s4840, 96
          %s4842 = scalar_lea.vmem [#allocation7], %s4841
          %4843 = dma.done %s4839, 1536
        $region48: #{tpu_custom_call.1} parent=43 // pred_fallthru
          _
      $region44: #{tpu_custom_call.1} parent=5 // pred_fallthru
        _
    $region6: #{tpu_custom_call.1} parent=1 // loop_footer
      %s19 = sadd.s32 1, %s15
    $region7: #{tpu_custom_call.1} parent=1 // loop_footer_branch
      %14 = sbr.rel target = $region3
    $region8: #{tpu_custom_call.1} parent=1 // loop_exit
      _
    %4844 = vsyncpa [#allocation3], 1
    %s4845 = scalar_lea.sflag [#allocation3], 1
    %4846 = vsyncpa %s4845, 1
    %4847 = vsyncpa [#allocation6], 1
    %4848 = vsyncpa [#allocation4], 1
    %s4849 = scalar_lea.sflag [#allocation4], 1
    %4850 = vsyncpa %s4849, 1

</llo_original>
